<compile_context>
chip_gen: v7x
topology: tpu7x:2x2x1
jax: 0.10.0
libtpu: 0.0.40
codegen_flags: <defaults>
</compile_context>

<pallas_src>
import functools

import jax
import jax.numpy as jnp
import numpy as np
from jax.experimental import pallas as pl
from jax.experimental.pallas import tpu as pltpu

# True f32 matmuls everywhere (kernel and reference); TPU default precision
# would otherwise use bf16 passes and break the 1e-5 comparison.
jax.config.update("jax_default_matmul_precision", "highest")

# ---- problem sizes (small, consistent with the module) ----------------------
B = 2          # batch
N = 8          # query sequence length
M = 8          # key/value sequence length
DQ = 32        # query_size (hidden)
DKV = 32       # key_value_size
H = 4          # num_heads
HD = DQ // H   # head_size
SCALE = HD ** (-0.5)


def _mha_kernel(q_ref, kv_ref, w_ref, b_ref, out_ref, attn_ref,
                *, b, n, m, dq, dkv, heads, hd):
    """Whole forward in one grid step; everything lives in VMEM.

    Ref shapes:
      q_ref    (b*n, dq)              flattened query
      kv_ref   (b*m, dkv)             flattened key/value
      w_ref    (max(dq,dkv), 4*dq)    packed [Wq | Wkv | Wp] along lanes
      b_ref    (1, 4*dq)              packed [bq | bkv | bp]
      out_ref  (b*n, dq)              projected attention output
      attn_ref (b*heads, n, m)        head-major softmax weights
    """
    scale = hd ** (-0.5)

    # Static lane-slices of the packed parameter slabs (no extra DMAs).
    wq = w_ref[0:dq, 0:dq]                   # (dq, dq)
    wkv = w_ref[0:dkv, dq:3 * dq]            # (dkv, 2*dq)
    wp = w_ref[0:dq, 3 * dq:4 * dq]          # (dq, dq)
    bq = b_ref[:, 0:dq]                      # (1, dq)
    bkv = b_ref[:, dq:3 * dq]                # (1, 2*dq)
    bp = b_ref[:, 3 * dq:4 * dq]             # (1, dq)

    q2 = q_ref[...]                          # (b*n, dq)
    kv2 = kv_ref[...]                        # (b*m, dkv)

    # --- projections: two plain 2D MXU matmuls (each RHS pushed once) --------
    qp = jnp.dot(q2, wq, preferred_element_type=jnp.float32) + bq        # (b*n, dq)
    kvp = jnp.dot(kv2, wkv, preferred_element_type=jnp.float32) + bkv    # (b*m, 2*dq)
    kp = kvp[:, 0:dq]                        # keys   (b*m, dq)
    vp = kvp[:, dq:2 * dq]                   # values (b*m, dq)

    # Head-major (b*heads, seq, hd) views for the batched score/PV einsums;
    # b*heads == 8 exactly fills the sublane dim.
    def heads_major(x, seq):
        x = x.reshape(b, seq, heads, hd)
        return jnp.transpose(x, (0, 2, 1, 3)).reshape(b * heads, seq, hd)

    qh = heads_major(qp, n)                  # (bH, n, hd)
    kh = heads_major(kp, m)                  # (bH, m, hd)
    vh = heads_major(vp, m)                  # (bH, m, hd)

    # --- scores + numerically-stable softmax over m ---------------------------
    s = jnp.einsum('bnk,bmk->bnm', qh, kh,
                   preferred_element_type=jnp.float32) * scale           # (bH,n,m)
    s = s - jnp.max(s, axis=-1, keepdims=True)
    e = jnp.exp(s)
    p = e * pl.reciprocal(jnp.sum(e, axis=-1, keepdims=True), approx=False)

    # --- weighted values, merge heads, output projection ----------------------
    oh = jnp.einsum('bnm,bmk->bnk', p, vh,
                    preferred_element_type=jnp.float32)                  # (bH,n,hd)
    o = jnp.transpose(oh.reshape(b, heads, n, hd), (0, 2, 1, 3))
    o = o.reshape(b * n, dq)                                             # (b*n, dq)
    out_ref[...] = jnp.dot(o, wp, preferred_element_type=jnp.float32) + bp
    attn_ref[...] = p                        # head-major; wrapper transposes


def multi_head_attention(query, key_value, params):
    """Wrapper: pack params into two slabs, one pallas_call, layout glue."""
    wq, bq, wkv, bkv, wp, bp = params
    b, n, dq = query.shape
    _, m, dkv = key_value.shape
    heads, hd = H, HD

    # Host-side param packing -> 2 parameter DMAs instead of 8.
    rows = max(dq, dkv)

    def pad_rows(w):
        if w.shape[0] == rows:
            return w
        return jnp.pad(w, ((0, rows - w.shape[0]), (0, 0)))

    w_packed = jnp.concatenate([pad_rows(wq), pad_rows(wkv), pad_rows(wp)],
                               axis=1)                                   # (rows, 4*dq) = (32, 128)
    b_packed = jnp.concatenate([bq, bkv, bp], axis=1)                    # (1, 4*dq)  = (1, 128)

    q2 = query.reshape(b * n, dq)
    kv2 = key_value.reshape(b * m, dkv)

    kernel = functools.partial(_mha_kernel, b=b, n=n, m=m, dq=dq, dkv=dkv,
                               heads=heads, hd=hd)

    out2, attn_hm = pl.pallas_call(
        kernel,
        out_shape=(
            jax.ShapeDtypeStruct((b * n, dq), jnp.float32),
            jax.ShapeDtypeStruct((b * heads, n, m), jnp.float32),
        ),
        grid=(1,),
        in_specs=[
            pl.BlockSpec((b * n, dq), lambda i: (0, 0)),          # query
            pl.BlockSpec((b * m, dkv), lambda i: (0, 0)),         # key_value
            pl.BlockSpec((rows, 4 * dq), lambda i: (0, 0)),       # packed weights
            pl.BlockSpec((1, 4 * dq), lambda i: (0, 0)),          # packed biases
        ],
        out_specs=(
            pl.BlockSpec((b * n, dq), lambda i: (0, 0)),
            pl.BlockSpec((b * heads, n, m), lambda i: (0, 0, 0)),
        ),
        compiler_params=pltpu.CompilerParams(
            dimension_semantics=("arbitrary",)),
    )(q2, kv2, w_packed, b_packed)

    # XLA-side glue back to PyTorch layouts.
    out = out2.reshape(b, n, dq)
    attn = jnp.transpose(attn_hm.reshape(b, heads, n, m), (0, 2, 3, 1))  # (B,N,M,H)
    return out, attn


def reference(query, key_value, params):
    """Pure-JAX reference mirroring the PyTorch forward exactly."""
    wq, bq, wkv, bkv, wp, bp = params
    b, n, dq = query.shape
    _, m, _ = key_value.shape
    queries = (query @ wq + bq).reshape(b, n, H, HD)
    kvs = (key_value @ wkv + bkv).reshape(b, m, 2, H, HD)
    keys, values = kvs[:, :, 0], kvs[:, :, 1]
    attention = jnp.einsum('bnhd,bmhd->bnmh', queries, keys) * SCALE
    attention = jax.nn.softmax(attention, axis=2)
    outputs = jnp.einsum('bnmh,bmhd->bnhd', attention, values).reshape(b, n, dq)
    outputs = outputs @ wp + bp
    return outputs, attention


def init_params(key):
    ks = jax.random.split(key, 6)
    scale_q = 1.0 / np.sqrt(DQ)
    scale_kv = 1.0 / np.sqrt(DKV)
    wq = jax.random.uniform(ks[0], (DQ, DQ), jnp.float32, -scale_q, scale_q)
    bq = jax.random.uniform(ks[1], (1, DQ), jnp.float32, -scale_q, scale_q)
    wkv = jax.random.uniform(ks[2], (DKV, 2 * DQ), jnp.float32, -scale_kv, scale_kv)
    bkv = jax.random.uniform(ks[3], (1, 2 * DQ), jnp.float32, -scale_kv, scale_kv)
    wp = jax.random.uniform(ks[4], (DQ, DQ), jnp.float32, -scale_q, scale_q)
    bp = jax.random.uniform(ks[5], (1, DQ), jnp.float32, -scale_q, scale_q)
    return (wq, bq, wkv, bkv, wp, bp)


if __name__ == "__main__":
    root = jax.random.PRNGKey(0)
    k_param, k_q, k_kv = jax.random.split(root, 3)

    params = init_params(k_param)
    query = jax.random.normal(k_q, (B, N, DQ), jnp.float32)
    key_value = jax.random.normal(k_kv, (B, M, DKV), jnp.float32)

    out, attn = multi_head_attention(query, key_value, params)
    out = jax.block_until_ready(out)
    attn = jax.block_until_ready(attn)

    ref_out, ref_attn = reference(query, key_value, params)
    np.testing.assert_allclose(np.asarray(out), np.asarray(ref_out),
                               rtol=1e-5, atol=1e-5)
    np.testing.assert_allclose(np.asarray(attn), np.asarray(ref_attn),
                               rtol=1e-5, atol=1e-5)

    print("KERNEL_OK")
</pallas_src>

<mosaic_0001>
module attributes {stable_mosaic.version = 11 : i64} {
  func.func @_mha_kernel(%arg0: i32, %arg1: memref<16x32xf32, #tpu.memory_space<vmem>>, %arg2: memref<16x32xf32, #tpu.memory_space<vmem>>, %arg3: memref<32x128xf32, #tpu.memory_space<vmem>>, %arg4: memref<1x128xf32, #tpu.memory_space<vmem>>, %arg5: memref<16x32xf32, #tpu.memory_space<vmem>>, %arg6: memref<8x8x8xf32, #tpu.memory_space<vmem>>) attributes {dimension_semantics = [#tpu.dimension_semantics<arbitrary>], iteration_bounds = array<i64: 1>, scalar_prefetch = 0 : i64, scratch_operands = 0 : i64, tpu.core_type = #tpu.core_type<tc>, window_params = [{pipeline_mode = #tpu.pipeline_mode<synchronous>, transform_indices = @transform_0, window_bounds = array<i64: 16, 32>}, {pipeline_mode = #tpu.pipeline_mode<synchronous>, transform_indices = @transform_1, window_bounds = array<i64: 16, 32>}, {pipeline_mode = #tpu.pipeline_mode<synchronous>, transform_indices = @transform_2, window_bounds = array<i64: 32, 128>}, {pipeline_mode = #tpu.pipeline_mode<synchronous>, transform_indices = @transform_3, window_bounds = array<i64: 1, 128>}, {pipeline_mode = #tpu.pipeline_mode<synchronous>, transform_indices = @transform_4, window_bounds = array<i64: 16, 32>}, {pipeline_mode = #tpu.pipeline_mode<synchronous>, transform_indices = @transform_5, window_bounds = array<i64: 8, 8, 8>}]} {
    %c0 = arith.constant 0 : index
    %c0_0 = arith.constant 0 : index
    %0 = vector.load %arg3[%c0, %c0_0] : memref<32x128xf32, #tpu.memory_space<vmem>>, vector<32x32xf32>
    %c0_1 = arith.constant 0 : index
    %c32 = arith.constant 32 : index
    %1 = vector.load %arg3[%c0_1, %c32] : memref<32x128xf32, #tpu.memory_space<vmem>>, vector<32x64xf32>
    %c0_2 = arith.constant 0 : index
    %c96 = arith.constant 96 : index
    %2 = vector.load %arg3[%c0_2, %c96] : memref<32x128xf32, #tpu.memory_space<vmem>>, vector<32x32xf32>
    %c0_3 = arith.constant 0 : index
    %c0_4 = arith.constant 0 : index
    %3 = vector.load %arg4[%c0_3, %c0_4] : memref<1x128xf32, #tpu.memory_space<vmem>>, vector<1x32xf32>
    %c0_5 = arith.constant 0 : index
    %c32_6 = arith.constant 32 : index
    %4 = vector.load %arg4[%c0_5, %c32_6] : memref<1x128xf32, #tpu.memory_space<vmem>>, vector<1x64xf32>
    %c0_7 = arith.constant 0 : index
    %c96_8 = arith.constant 96 : index
    %5 = vector.load %arg4[%c0_7, %c96_8] : memref<1x128xf32, #tpu.memory_space<vmem>>, vector<1x32xf32>
    %c0_9 = arith.constant 0 : index
    %c0_10 = arith.constant 0 : index
    %6 = vector.load %arg1[%c0_9, %c0_10] : memref<16x32xf32, #tpu.memory_space<vmem>>, vector<16x32xf32>
    %c0_11 = arith.constant 0 : index
    %c0_12 = arith.constant 0 : index
    %7 = vector.load %arg2[%c0_11, %c0_12] : memref<16x32xf32, #tpu.memory_space<vmem>>, vector<16x32xf32>
    %cst = arith.constant dense<0.000000e+00> : vector<16x32xf32>
    %8 = tpu.matmul %6, %0, %cst {dimension_numbers = #tpu.dot_dimension_numbers<[1], [0], [0], [1], [0, 0, 1, 1], [], []>, precision = #tpu.contract_precision<fp32>} : vector<16x32xf32>, vector<32x32xf32>, vector<16x32xf32> -> vector<16x32xf32>
    %9 = vector.broadcast %3 : vector<1x32xf32> to vector<16x32xf32>
    %10 = arith.addf %8, %9 : vector<16x32xf32>
    %cst_13 = arith.constant dense<0.000000e+00> : vector<16x64xf32>
    %11 = tpu.matmul %7, %1, %cst_13 {dimension_numbers = #tpu.dot_dimension_numbers<[1], [0], [0], [1], [0, 0, 1, 1], [], []>, precision = #tpu.contract_precision<fp32>} : vector<16x32xf32>, vector<32x64xf32>, vector<16x64xf32> -> vector<16x64xf32>
    %12 = vector.broadcast %4 : vector<1x64xf32> to vector<16x64xf32>
    %13 = arith.addf %11, %12 : vector<16x64xf32>
    %14 = vector.extract_strided_slice %13 {offsets = [0, 0], sizes = [16, 32], strides = [1, 1]} : vector<16x64xf32> to vector<16x32xf32>
    %15 = vector.extract_strided_slice %13 {offsets = [0, 32], sizes = [16, 32], strides = [1, 1]} : vector<16x64xf32> to vector<16x32xf32>
    %16 = vector.shape_cast %10 : vector<16x32xf32> to vector<2x8x4x8xf32>
    %17 = tpu.transpose %16, [0, 2, 1, 3] : vector<2x8x4x8xf32> -> vector<2x4x8x8xf32>
    %18 = vector.shape_cast %17 : vector<2x4x8x8xf32> to vector<8x8x8xf32>
    %19 = vector.shape_cast %14 : vector<16x32xf32> to vector<2x8x4x8xf32>
    %20 = tpu.transpose %19, [0, 2, 1, 3] : vector<2x8x4x8xf32> -> vector<2x4x8x8xf32>
    %21 = vector.shape_cast %20 : vector<2x4x8x8xf32> to vector<8x8x8xf32>
    %22 = vector.shape_cast %15 : vector<16x32xf32> to vector<2x8x4x8xf32>
    %23 = tpu.transpose %22, [0, 2, 1, 3] : vector<2x8x4x8xf32> -> vector<2x4x8x8xf32>
    %24 = vector.shape_cast %23 : vector<2x4x8x8xf32> to vector<8x8x8xf32>
    "tpu.trace_start"() <{level = 10 : i32, message = "bnk,bmk->bnm"}> : () -> ()
    %cst_14 = arith.constant dense<0.000000e+00> : vector<8x8x8xf32>
    %25 = tpu.matmul %18, %21, %cst_14 {dimension_numbers = #tpu.dot_dimension_numbers<[2], [2], [1], [1], [0, 0, 0, 1, 1, 1], [0], [0]>, precision = #tpu.contract_precision<fp32>} : vector<8x8x8xf32>, vector<8x8x8xf32>, vector<8x8x8xf32> -> vector<8x8x8xf32>
    "tpu.trace_stop"() : () -> ()
    %cst_15 = arith.constant 0.353553385 : f32
    %26 = vector.broadcast %cst_15 : f32 to vector<8x8x8xf32>
    %27 = arith.mulf %25, %26 : vector<8x8x8xf32>
    %cst_16 = arith.constant dense<0xFF800000> : vector<8x8xf32>
    %28 = vector.multi_reduction <maximumf>, %27, %cst_16 [2] : vector<8x8x8xf32> to vector<8x8xf32>
    %29 = vector.shape_cast %28 : vector<8x8xf32> to vector<8x8x1xf32>
    %30 = vector.broadcast %29 : vector<8x8x1xf32> to vector<8x8x8xf32>
    %31 = arith.subf %27, %30 : vector<8x8x8xf32>
    %32 = math.exp %31 : vector<8x8x8xf32>
    %cst_17 = arith.constant dense<0.000000e+00> : vector<8x8xf32>
    %33 = vector.multi_reduction <add>, %32, %cst_17 [2] : vector<8x8x8xf32> to vector<8x8xf32>
    %34 = vector.shape_cast %33 : vector<8x8xf32> to vector<8x8x1xf32>
    %35 = tpu.reciprocal %34 : vector<8x8x1xf32> -> vector<8x8x1xf32>
    %36 = vector.broadcast %35 : vector<8x8x1xf32> to vector<8x8x8xf32>
    %37 = arith.mulf %32, %36 : vector<8x8x8xf32>
    "tpu.trace_start"() <{level = 10 : i32, message = "bnm,bmk->bnk"}> : () -> ()
    %cst_18 = arith.constant dense<0.000000e+00> : vector<8x8x8xf32>
    %38 = tpu.matmul %37, %24, %cst_18 {dimension_numbers = #tpu.dot_dimension_numbers<[2], [1], [1], [2], [0, 0, 0, 1, 1, 2], [0], [0]>, precision = #tpu.contract_precision<fp32>} : vector<8x8x8xf32>, vector<8x8x8xf32>, vector<8x8x8xf32> -> vector<8x8x8xf32>
    "tpu.trace_stop"() : () -> ()
    %39 = vector.shape_cast %38 : vector<8x8x8xf32> to vector<2x4x8x8xf32>
    %40 = tpu.transpose %39, [0, 2, 1, 3] : vector<2x4x8x8xf32> -> vector<2x8x4x8xf32>
    %41 = vector.shape_cast %40 : vector<2x8x4x8xf32> to vector<16x32xf32>
    %cst_19 = arith.constant dense<0.000000e+00> : vector<16x32xf32>
    %42 = tpu.matmul %41, %2, %cst_19 {dimension_numbers = #tpu.dot_dimension_numbers<[1], [0], [0], [1], [0, 0, 1, 1], [], []>, precision = #tpu.contract_precision<fp32>} : vector<16x32xf32>, vector<32x32xf32>, vector<16x32xf32> -> vector<16x32xf32>
    %43 = vector.broadcast %5 : vector<1x32xf32> to vector<16x32xf32>
    %44 = arith.addf %42, %43 : vector<16x32xf32>
    %c0_20 = arith.constant 0 : index
    %c0_21 = arith.constant 0 : index
    %45 = vector.load %arg5[%c0_20, %c0_21] : memref<16x32xf32, #tpu.memory_space<vmem>>, vector<16x32xf32>
    tpu.vector_store %arg5[%c0_20, %c0_21], %44 {strides = array<i32>} : memref<16x32xf32, #tpu.memory_space<vmem>>, vector<16x32xf32>,
    %c0_22 = arith.constant 0 : index
    %c0_23 = arith.constant 0 : index
    %c0_24 = arith.constant 0 : index
    %46 = vector.load %arg6[%c0_22, %c0_23, %c0_24] : memref<8x8x8xf32, #tpu.memory_space<vmem>>, vector<8x8x8xf32>
    tpu.vector_store %arg6[%c0_22, %c0_23, %c0_24], %37 {strides = array<i32>} : memref<8x8x8xf32, #tpu.memory_space<vmem>>, vector<8x8x8xf32>,
    return
  }
  func.func @transform_0(%arg0: i32) -> (i32, i32) {
    %c0_i32 = arith.constant 0 : i32
    %c0_i32_0 = arith.constant 0 : i32
    %c0_i32_1 = arith.constant 0 : i32
    return %c0_i32, %c0_i32_0 : i32, i32
  }
  func.func @transform_1(%arg0: i32) -> (i32, i32) {
    %c0_i32 = arith.constant 0 : i32
    %c0_i32_0 = arith.constant 0 : i32
    %c0_i32_1 = arith.constant 0 : i32
    return %c0_i32, %c0_i32_0 : i32, i32
  }
  func.func @transform_2(%arg0: i32) -> (i32, i32) {
    %c0_i32 = arith.constant 0 : i32
    %c0_i32_0 = arith.constant 0 : i32
    %c0_i32_1 = arith.constant 0 : i32
    return %c0_i32, %c0_i32_0 : i32, i32
  }
  func.func @transform_3(%arg0: i32) -> (i32, i32) {
    %c0_i32 = arith.constant 0 : i32
    %c0_i32_0 = arith.constant 0 : i32
    %c0_i32_1 = arith.constant 0 : i32
    return %c0_i32, %c0_i32_0 : i32, i32
  }
  func.func @transform_4(%arg0: i32) -> (i32, i32) {
    %c0_i32 = arith.constant 0 : i32
    %c0_i32_0 = arith.constant 0 : i32
    %c0_i32_1 = arith.constant 0 : i32
    return %c0_i32, %c0_i32_0 : i32, i32
  }
  func.func @transform_5(%arg0: i32) -> (i32, i32, i32) {
    %c0_i32 = arith.constant 0 : i32
    %c0_i32_0 = arith.constant 0 : i32
    %c0_i32_1 = arith.constant 0 : i32
    %c0_i32_2 = arith.constant 0 : i32
    return %c0_i32, %c0_i32_0, %c0_i32_1 : i32, i32, i32
  }
}

</mosaic_0001>

<llo_original>
// kernel: tpu_custom_call.1
$region0: #{tpu_custom_call.1}
  #allocation0 [shape = 'u32[]', space=smem, size = 0x4, offset = 0x4, fixed_abs, tag = 'smem constant byte address 0x4 - core index']
  #allocation1 [shape = 'u32[144,128]{1,0:T(1,128)}', space=vmem, size = 0x12000, scoped, tag = 'internal scratch']
  %s0 = inlined_call_operand.hbm [shape: f32[16,32], index: 0, kind: input, shape index: {}]
  %s1 = inlined_call_operand.hbm [shape: f32[16,32], index: 1, kind: input, shape index: {}]
  %s2 = inlined_call_operand.hbm [shape: f32[32,128], index: 2, kind: input, shape index: {}]
  %s3 = inlined_call_operand.vmem [shape: f32[1,128], index: 3, kind: input, shape index: {}]
  %s4 = inlined_call_operand.hbm [shape: f32[16,32], index: 4, kind: output, shape index: {0}]
  %s5 = inlined_call_operand.hbm [shape: f32[8,8,8], index: 5, kind: output, shape index: {1}]
  %6 = xla_tuple %s4, %s5
  %s7 = sld [smem:[#allocation0]]
  $region46: #{tpu_custom_call.1} parent=0
    _
  %s9 = ssub.s32 1, %s7
  %s10 = scalar_select 0, %s9, %s7
  $region1: #{tpu_custom_call.1} parent=0
    #allocation2 [shape = 'u8[8192]{0}', space=vmem, size = 0x2000, scoped, tag = 'input window, operand 0, single buffered']
    #allocation3 [shape = 's32[1]{0}', space=sflag, size = 0x4, scoped, tag = 'scoped memory for tpu_custom_call.1']
    #allocation4 [shape = 's32[1]{0}', space=sflag, size = 0x4, scoped, tag = 'scoped memory for tpu_custom_call.1']
    #allocation5 [shape = 'u8[8192]{0}', space=vmem, size = 0x2000, scoped, tag = 'input window, operand 1, single buffered']
    #allocation6 [shape = 's32[1]{0}', space=sflag, size = 0x4, scoped, tag = 'scoped memory for tpu_custom_call.1']
    #allocation7 [shape = 'u8[16384]{0}', space=vmem, size = 0x4000, scoped, tag = 'input window, operand 2, single buffered']
    #allocation8 [shape = 'u8[8192]{0}', space=vmem, size = 0x2000, scoped, tag = 'output window, operand 0, single buffered']
    #allocation9 [shape = 'u8[32768]{0}', space=vmem, size = 0x8000, scoped, tag = 'output window, operand 1, single buffered']
    #allocation10 [shape = 's32[1]{0}', space=sflag, size = 0x4, scoped, tag = 'scoped memory for tpu_custom_call.1']
    %11 = vsyncpa [#allocation3], 0
    %12 = vsyncpa [#allocation6], 0
    %13 = vsyncpa [#allocation4], 0
    %14 = vsyncpa [#allocation10], 0
    // Predicated region
    $region2: #{tpu_custom_call.1} parent=1 // pred_check
      _
    $region3: #{tpu_custom_call.1} parent=1 // pred_check_branch
      %16 = sbr.rel (0) target = $region5
    $region4: #{tpu_custom_call.1} parent=1 // pred_region
      %s18 = ssub.s32 256, 256
      %19 = vsyncadd [#allocation3], %s18
      %s20 = sshll.u32 [#allocation2], 4
      %s21 = int_to_ptr.vmem [resolvable:$true] %s20
      %26 = dma.hbm_to_vmem [thread:$0]  %s0, 256, %s21, [#allocation3], 128, 128, 8
    $region5: #{tpu_custom_call.1} parent=1 // pred_fallthru
      _
    // Predicated region
    $region6: #{tpu_custom_call.1} parent=1 // pred_check
      _
    $region7: #{tpu_custom_call.1} parent=1 // pred_check_branch
      %28 = sbr.rel (0) target = $region9
    $region8: #{tpu_custom_call.1} parent=1 // pred_region
      %s30 = ssub.s32 256, 256
      %31 = vsyncadd [#allocation6], %s30
      %s32 = sshll.u32 [#allocation5], 4
      %s33 = int_to_ptr.vmem [resolvable:$true] %s32
      %38 = dma.hbm_to_vmem [thread:$0]  %s1, 256, %s33, [#allocation6], 128, 128, 8
    $region9: #{tpu_custom_call.1} parent=1 // pred_fallthru
      _
    // Predicated region
    $region10: #{tpu_custom_call.1} parent=1 // pred_check
      _
    $region11: #{tpu_custom_call.1} parent=1 // pred_check_branch
      %40 = sbr.rel (0) target = $region13
    $region12: #{tpu_custom_call.1} parent=1 // pred_region
      %s42 = ssub.s32 512, 512
      %43 = vsyncadd [#allocation6], %s42
      %s44 = sshll.u32 [#allocation7], 4
      %s45 = int_to_ptr.vmem [resolvable:$true] %s44
      %50 = dma.hbm_to_vmem [thread:$0]  %s2, 512, %s45, [#allocation6], 128, 128, 8
    $region13: #{tpu_custom_call.1} parent=1 // pred_fallthru
      _
    // Predicated region
    $region14: #{tpu_custom_call.1} parent=1 // pred_check
      _
    $region15: #{tpu_custom_call.1} parent=1 // pred_check_branch
      %52 = sbr.rel (0) target = $region17
    $region16: #{tpu_custom_call.1} parent=1 // pred_region
      _
    $region17: #{tpu_custom_call.1} parent=1 // pred_fallthru
      _
    // Predicated region
    $region18: #{tpu_custom_call.1} parent=1 // pred_check
      _
    $region19: #{tpu_custom_call.1} parent=1 // pred_check_branch
      %54 = sbr.rel (0) target = $region21
    $region20: #{tpu_custom_call.1} parent=1 // pred_region
      %55 = dma.done [#allocation3], 256
    $region21: #{tpu_custom_call.1} parent=1 // pred_fallthru
      _
    // Predicated region
    $region22: #{tpu_custom_call.1} parent=1 // pred_check
      _
    $region23: #{tpu_custom_call.1} parent=1 // pred_check_branch
      %57 = sbr.rel (0) target = $region25
    $region24: #{tpu_custom_call.1} parent=1 // pred_region
      %58 = dma.done [#allocation6], 256
    $region25: #{tpu_custom_call.1} parent=1 // pred_fallthru
      _
    // Predicated region
    $region26: #{tpu_custom_call.1} parent=1 // pred_check
      _
    $region27: #{tpu_custom_call.1} parent=1 // pred_check_branch
      %60 = sbr.rel (0) target = $region29
    $region28: #{tpu_custom_call.1} parent=1 // pred_region
      %61 = dma.done [#allocation6], 512
    $region29: #{tpu_custom_call.1} parent=1 // pred_fallthru
      _
    %v62 = vld [vmem:[#allocation7] sm:$0xff]
    %v63 = vld [vmem:[#allocation7 + $0x8] sm:$0xff]
    %v64 = vld [vmem:[#allocation7 + $0x10] sm:$0xff]
    %v65 = vld [vmem:[#allocation7 + $0x18] sm:$0xff]
    %v66 = vld [vmem:[%s3] sm:$0x1]
    %v67 = vld [vmem:[#allocation2] sm:$0xff]
    %v68 = vld [vmem:[#allocation2 + $0x8] sm:$0xff]
    %v69 = vld [vmem:[#allocation5] sm:$0xff]
    %v70 = vld [vmem:[#allocation5 + $0x8] sm:$0xff]
    %v72 = vlaneseq
    %v73 = vshrl.u32 %v72, 7
    %v74 = vsub.s32 0, %v73
    %v75 = vrot.slane %v66, %v74
    %vm77 = vcmask 261120
    %v79 = vsel %vm77, %v67, 0
    %v82 = vsel %vm77, %v68, 0
    %84 = vmatprep.subr.mxu0 0.0
    %v85 = vand.u32 %v62, 4294901760
    %86 = vmatpush1.msra.mxu0 %v85
    %87 = vmatprep.subr.mxu0 0.0
    %v88 = vand.u32 %v63, 4294901760
    %89 = vmatpush1.msra.mxu0 %v88
    %90 = vmatprep.subr.mxu0 0.0
    %v91 = vand.u32 %v64, 4294901760
    %92 = vmatpush1.msra.mxu0 %v91
    %93 = vmatprep.subr.mxu0 0.0
    %v94 = vand.u32 %v65, 4294901760
    %95 = vmatpush1.msra.mxu0 %v94
    %96 = vmatprep.subr.mxu0 0.0
    %97 = vmatpush1.msra.mxu0 0.0
    %98 = vmatprep.subr.mxu0 0.0
    %99 = vmatpush1.msra.mxu0 0.0
    %100 = vmatprep.subr.mxu0 0.0
    %101 = vmatpush1.msra.mxu0 0.0
    %102 = vmatprep.subr.mxu0 0.0
    %103 = vmatpush1.msra.mxu0 0.0
    %104 = vmatprep.subr.mxu0 0.0
    %105 = vmatpush1.msra.mxu0 0.0
    %106 = vmatprep.subr.mxu0 0.0
    %107 = vmatpush1.msra.mxu0 0.0
    %108 = vmatprep.subr.mxu0 0.0
    %109 = vmatpush1.msra.mxu0 0.0
    %110 = vmatprep.subr.mxu0 0.0
    %111 = vmatpush1.msra.mxu0 0.0
    %112 = vmatprep.subr.mxu0 0.0
    %113 = vmatpush1.msra.mxu0 0.0
    %114 = vmatprep.subr.mxu0 0.0
    %115 = vmatpush1.msra.mxu0 0.0
    %116 = vmatprep.subr.mxu0 0.0
    %117 = vmatpush1.msra.mxu0 0.0
    %118 = vmatprep.subr.mxu0 0.0
    %119 = vmatpush1.msra.mxu0 0.0
    %120 = vmatprep.subr.mxu0 0.0
    %121 = vmatpush1.msra.mxu0 0.0
    %122 = vmatprep.subr.mxu0 0.0
    %123 = vmatpush1.msra.mxu0 0.0
    %124 = vmatprep.subr.mxu0 0.0
    %125 = vmatpush1.msra.mxu0 0.0
    %126 = vmatprep.subr.mxu0 0.0
    %127 = vmatpush1.msra.mxu0 0.0
    %128 = vmatprep.subr.mxu0 0.0
    %129 = vmatpush1.msra.mxu0 0.0
    %130 = vmatprep.subr.mxu0 0.0
    %131 = vmatpush1.msra.mxu0 0.0
    %132 = vmatprep.subr.mxu0 0.0
    %133 = vmatpush1.msra.mxu0 0.0
    %134 = vmatprep.subr.mxu0 0.0
    %135 = vmatpush1.msra.mxu0 0.0
    %136 = vmatprep.subr.mxu0 0.0
    %137 = vmatpush1.msra.mxu0 0.0
    %138 = vmatprep.subr.mxu0 0.0
    %139 = vmatpush1.msra.mxu0 0.0
    %140 = vmatprep.subr.mxu0 0.0
    %141 = vmatpush1.msra.mxu0 0.0
    %142 = vmatprep.subr.mxu0 0.0
    %143 = vmatpush1.msra.mxu0 0.0
    %144 = vmatprep.subr.mxu0 0.0
    %145 = vmatpush1.msra.mxu0 0.0
    %146 = vmatprep.subr.mxu0 0.0
    %147 = vmatpush1.msra.mxu0 0.0
    %148 = vmatprep.subr.mxu0 0.0
    %149 = vmatpush1.msra.mxu0 0.0
    %150 = vmatprep.subr.mxu0 0.0
    %151 = vmatpush1.msra.mxu0 0.0
    %152 = vmatprep.mubr.f32.mxu0 0.0
    %v153 = vand.u32 %v79, 4294901760
    %v154 = vsub.f32 %v79, %v153
    %v155 = vand.u32 %v154, 4294901760
    %v156 = vsub.f32 %v154, %v155
    %v157 = vand.u32 %v156, 4294901760
    %158 = vmatmul.mubr.f32.gmra.mrb[0].mxu0 %v157
    %v159 = vpop.f32.mrb[0].mxu0
    %v160 = vadd.f32 %v75, %v159
    %v161 = vpop.f32.mrb[0].mxu0
    %162 = vmatprep.mubr.f32.mxu0 0.0
    %v163 = vand.u32 %v82, 4294901760
    %v164 = vsub.f32 %v82, %v163
    %v165 = vand.u32 %v164, 4294901760
    %v166 = vsub.f32 %v164, %v165
    %v167 = vand.u32 %v166, 4294901760
    %168 = vmatmul.mubr.f32.gmra.mrb[0].mxu0 %v167
    %v169 = vpop.f32.mrb[0].mxu0
    %v170 = vadd.f32 %v75, %v169
    %v171 = vpop.f32.mrb[0].mxu0
    %172 = vdwg.mxu0
    %173 = vmatprep.subr.mxu0 0.0
    %v174 = vand.u32 %v62, 4294901760
    %v175 = vsub.f32 %v62, %v174
    %v176 = vand.u32 %v175, 4294901760
    %v177 = vsub.f32 %v175, %v176
    %v178 = vand.u32 %v177, 4294901760
    %179 = vmatpush1.msra.mxu0 %v178
    %180 = vmatprep.subr.mxu0 0.0
    %v181 = vand.u32 %v63, 4294901760
    %v182 = vsub.f32 %v63, %v181
    %v183 = vand.u32 %v182, 4294901760
    %v184 = vsub.f32 %v182, %v183
    %v185 = vand.u32 %v184, 4294901760
    %186 = vmatpush1.msra.mxu0 %v185
    %187 = vmatprep.subr.mxu0 0.0
    %v188 = vand.u32 %v64, 4294901760
    %v189 = vsub.f32 %v64, %v188
    %v190 = vand.u32 %v189, 4294901760
    %v191 = vsub.f32 %v189, %v190
    %v192 = vand.u32 %v191, 4294901760
    %193 = vmatpush1.msra.mxu0 %v192
    %194 = vmatprep.subr.mxu0 0.0
    %v195 = vand.u32 %v65, 4294901760
    %v196 = vsub.f32 %v65, %v195
    %v197 = vand.u32 %v196, 4294901760
    %v198 = vsub.f32 %v196, %v197
    %v199 = vand.u32 %v198, 4294901760
    %200 = vmatpush1.msra.mxu0 %v199
    %201 = vmatprep.subr.mxu0 0.0
    %202 = vmatpush1.msra.mxu0 0.0
    %203 = vmatprep.subr.mxu0 0.0
    %204 = vmatpush1.msra.mxu0 0.0
    %205 = vmatprep.subr.mxu0 0.0
    %206 = vmatpush1.msra.mxu0 0.0
    %207 = vmatprep.subr.mxu0 0.0
    %208 = vmatpush1.msra.mxu0 0.0
    %209 = vmatprep.subr.mxu0 0.0
    %210 = vmatpush1.msra.mxu0 0.0
    %211 = vmatprep.subr.mxu0 0.0
    %212 = vmatpush1.msra.mxu0 0.0
    %213 = vmatprep.subr.mxu0 0.0
    %214 = vmatpush1.msra.mxu0 0.0
    %215 = vmatprep.subr.mxu0 0.0
    %216 = vmatpush1.msra.mxu0 0.0
    %217 = vmatprep.subr.mxu0 0.0
    %218 = vmatpush1.msra.mxu0 0.0
    %219 = vmatprep.subr.mxu0 0.0
    %220 = vmatpush1.msra.mxu0 0.0
    %221 = vmatprep.subr.mxu0 0.0
    %222 = vmatpush1.msra.mxu0 0.0
    %223 = vmatprep.subr.mxu0 0.0
    %224 = vmatpush1.msra.mxu0 0.0
    %225 = vmatprep.subr.mxu0 0.0
    %226 = vmatpush1.msra.mxu0 0.0
    %227 = vmatprep.subr.mxu0 0.0
    %228 = vmatpush1.msra.mxu0 0.0
    %229 = vmatprep.subr.mxu0 0.0
    %230 = vmatpush1.msra.mxu0 0.0
    %231 = vmatprep.subr.mxu0 0.0
    %232 = vmatpush1.msra.mxu0 0.0
    %233 = vmatprep.subr.mxu0 0.0
    %234 = vmatpush1.msra.mxu0 0.0
    %235 = vmatprep.subr.mxu0 0.0
    %236 = vmatpush1.msra.mxu0 0.0
    %237 = vmatprep.subr.mxu0 0.0
    %238 = vmatpush1.msra.mxu0 0.0
    %239 = vmatprep.subr.mxu0 0.0
    %240 = vmatpush1.msra.mxu0 0.0
    %241 = vmatprep.subr.mxu0 0.0
    %242 = vmatpush1.msra.mxu0 0.0
    %243 = vmatprep.subr.mxu0 0.0
    %244 = vmatpush1.msra.mxu0 0.0
    %245 = vmatprep.subr.mxu0 0.0
    %246 = vmatpush1.msra.mxu0 0.0
    %247 = vmatprep.subr.mxu0 0.0
    %248 = vmatpush1.msra.mxu0 0.0
    %249 = vmatprep.subr.mxu0 0.0
    %250 = vmatpush1.msra.mxu0 0.0
    %251 = vmatprep.subr.mxu0 0.0
    %252 = vmatpush1.msra.mxu0 0.0
    %253 = vmatprep.subr.mxu0 0.0
    %254 = vmatpush1.msra.mxu0 0.0
    %255 = vmatprep.subr.mxu0 0.0
    %256 = vmatpush1.msra.mxu0 0.0
    %257 = vmatprep.mubr.f32.mxu0 0.0
    %v258 = vand.u32 %v79, 4294901760
    %259 = vmatmul.mubr.f32.gmra.mrb[0].mxu0 %v258
    %v260 = vpop.f32.mrb[0].mxu0
    %v261 = vadd.f32 %v160, %v260
    %v262 = vpop.f32.mrb[0].mxu0
    %263 = vmatprep.mubr.f32.mxu0 0.0
    %v264 = vand.u32 %v82, 4294901760
    %265 = vmatmul.mubr.f32.gmra.mrb[0].mxu0 %v264
    %v266 = vpop.f32.mrb[0].mxu0
    %v267 = vadd.f32 %v170, %v266
    %v268 = vpop.f32.mrb[0].mxu0
    %269 = vdwg.mxu0
    %270 = vmatprep.subr.mxu0 0.0
    %v271 = vand.u32 %v62, 4294901760
    %v272 = vsub.f32 %v62, %v271
    %273 = vmatpush1.msra.mxu0 %v272
    %274 = vmatprep.subr.mxu0 0.0
    %v275 = vand.u32 %v63, 4294901760
    %v276 = vsub.f32 %v63, %v275
    %277 = vmatpush1.msra.mxu0 %v276
    %278 = vmatprep.subr.mxu0 0.0
    %v279 = vand.u32 %v64, 4294901760
    %v280 = vsub.f32 %v64, %v279
    %281 = vmatpush1.msra.mxu0 %v280
    %282 = vmatprep.subr.mxu0 0.0
    %v283 = vand.u32 %v65, 4294901760
    %v284 = vsub.f32 %v65, %v283
    %285 = vmatpush1.msra.mxu0 %v284
    %286 = vmatprep.subr.mxu0 0.0
    %287 = vmatpush1.msra.mxu0 0.0
    %288 = vmatprep.subr.mxu0 0.0
    %289 = vmatpush1.msra.mxu0 0.0
    %290 = vmatprep.subr.mxu0 0.0
    %291 = vmatpush1.msra.mxu0 0.0
    %292 = vmatprep.subr.mxu0 0.0
    %293 = vmatpush1.msra.mxu0 0.0
    %294 = vmatprep.subr.mxu0 0.0
    %295 = vmatpush1.msra.mxu0 0.0
    %296 = vmatprep.subr.mxu0 0.0
    %297 = vmatpush1.msra.mxu0 0.0
    %298 = vmatprep.subr.mxu0 0.0
    %299 = vmatpush1.msra.mxu0 0.0
    %300 = vmatprep.subr.mxu0 0.0
    %301 = vmatpush1.msra.mxu0 0.0
    %302 = vmatprep.subr.mxu0 0.0
    %303 = vmatpush1.msra.mxu0 0.0
    %304 = vmatprep.subr.mxu0 0.0
    %305 = vmatpush1.msra.mxu0 0.0
    %306 = vmatprep.subr.mxu0 0.0
    %307 = vmatpush1.msra.mxu0 0.0
    %308 = vmatprep.subr.mxu0 0.0
    %309 = vmatpush1.msra.mxu0 0.0
    %310 = vmatprep.subr.mxu0 0.0
    %311 = vmatpush1.msra.mxu0 0.0
    %312 = vmatprep.subr.mxu0 0.0
    %313 = vmatpush1.msra.mxu0 0.0
    %314 = vmatprep.subr.mxu0 0.0
    %315 = vmatpush1.msra.mxu0 0.0
    %316 = vmatprep.subr.mxu0 0.0
    %317 = vmatpush1.msra.mxu0 0.0
    %318 = vmatprep.subr.mxu0 0.0
    %319 = vmatpush1.msra.mxu0 0.0
    %320 = vmatprep.subr.mxu0 0.0
    %321 = vmatpush1.msra.mxu0 0.0
    %322 = vmatprep.subr.mxu0 0.0
    %323 = vmatpush1.msra.mxu0 0.0
    %324 = vmatprep.subr.mxu0 0.0
    %325 = vmatpush1.msra.mxu0 0.0
    %326 = vmatprep.subr.mxu0 0.0
    %327 = vmatpush1.msra.mxu0 0.0
    %328 = vmatprep.subr.mxu0 0.0
    %329 = vmatpush1.msra.mxu0 0.0
    %330 = vmatprep.subr.mxu0 0.0
    %331 = vmatpush1.msra.mxu0 0.0
    %332 = vmatprep.subr.mxu0 0.0
    %333 = vmatpush1.msra.mxu0 0.0
    %334 = vmatprep.subr.mxu0 0.0
    %335 = vmatpush1.msra.mxu0 0.0
    %336 = vmatprep.subr.mxu0 0.0
    %337 = vmatpush1.msra.mxu0 0.0
    %338 = vmatprep.subr.mxu0 0.0
    %339 = vmatpush1.msra.mxu0 0.0
    %340 = vmatprep.subr.mxu0 0.0
    %341 = vmatpush1.msra.mxu0 0.0
    %342 = vmatprep.mubr.f32.mxu0 0.0
    %v343 = vand.u32 %v79, 4294901760
    %v344 = vsub.f32 %v79, %v343
    %345 = vmatmul.mubr.f32.gmra.mrb[0].mxu0 %v344
    %v346 = vpop.f32.mrb[0].mxu0
    %v347 = vadd.f32 %v261, %v346
    %v348 = vpop.f32.mrb[0].mxu0
    %349 = vmatprep.mubr.f32.mxu0 0.0
    %v350 = vand.u32 %v82, 4294901760
    %v351 = vsub.f32 %v82, %v350
    %352 = vmatmul.mubr.f32.gmra.mrb[0].mxu0 %v351
    %v353 = vpop.f32.mrb[0].mxu0
    %v354 = vadd.f32 %v267, %v353
    %v355 = vpop.f32.mrb[0].mxu0
    %356 = vdwg.mxu0
    %357 = vmatprep.subr.mxu0 0.0
    %v358 = vand.u32 %v62, 4294901760
    %359 = vmatpush1.msra.mxu0 %v358
    %360 = vmatprep.subr.mxu0 0.0
    %v361 = vand.u32 %v63, 4294901760
    %362 = vmatpush1.msra.mxu0 %v361
    %363 = vmatprep.subr.mxu0 0.0
    %v364 = vand.u32 %v64, 4294901760
    %365 = vmatpush1.msra.mxu0 %v364
    %366 = vmatprep.subr.mxu0 0.0
    %v367 = vand.u32 %v65, 4294901760
    %368 = vmatpush1.msra.mxu0 %v367
    %369 = vmatprep.subr.mxu0 0.0
    %370 = vmatpush1.msra.mxu0 0.0
    %371 = vmatprep.subr.mxu0 0.0
    %372 = vmatpush1.msra.mxu0 0.0
    %373 = vmatprep.subr.mxu0 0.0
    %374 = vmatpush1.msra.mxu0 0.0
    %375 = vmatprep.subr.mxu0 0.0
    %376 = vmatpush1.msra.mxu0 0.0
    %377 = vmatprep.subr.mxu0 0.0
    %378 = vmatpush1.msra.mxu0 0.0
    %379 = vmatprep.subr.mxu0 0.0
    %380 = vmatpush1.msra.mxu0 0.0
    %381 = vmatprep.subr.mxu0 0.0
    %382 = vmatpush1.msra.mxu0 0.0
    %383 = vmatprep.subr.mxu0 0.0
    %384 = vmatpush1.msra.mxu0 0.0
    %385 = vmatprep.subr.mxu0 0.0
    %386 = vmatpush1.msra.mxu0 0.0
    %387 = vmatprep.subr.mxu0 0.0
    %388 = vmatpush1.msra.mxu0 0.0
    %389 = vmatprep.subr.mxu0 0.0
    %390 = vmatpush1.msra.mxu0 0.0
    %391 = vmatprep.subr.mxu0 0.0
    %392 = vmatpush1.msra.mxu0 0.0
    %393 = vmatprep.subr.mxu0 0.0
    %394 = vmatpush1.msra.mxu0 0.0
    %395 = vmatprep.subr.mxu0 0.0
    %396 = vmatpush1.msra.mxu0 0.0
    %397 = vmatprep.subr.mxu0 0.0
    %398 = vmatpush1.msra.mxu0 0.0
    %399 = vmatprep.subr.mxu0 0.0
    %400 = vmatpush1.msra.mxu0 0.0
    %401 = vmatprep.subr.mxu0 0.0
    %402 = vmatpush1.msra.mxu0 0.0
    %403 = vmatprep.subr.mxu0 0.0
    %404 = vmatpush1.msra.mxu0 0.0
    %405 = vmatprep.subr.mxu0 0.0
    %406 = vmatpush1.msra.mxu0 0.0
    %407 = vmatprep.subr.mxu0 0.0
    %408 = vmatpush1.msra.mxu0 0.0
    %409 = vmatprep.subr.mxu0 0.0
    %410 = vmatpush1.msra.mxu0 0.0
    %411 = vmatprep.subr.mxu0 0.0
    %412 = vmatpush1.msra.mxu0 0.0
    %413 = vmatprep.subr.mxu0 0.0
    %414 = vmatpush1.msra.mxu0 0.0
    %415 = vmatprep.subr.mxu0 0.0
    %416 = vmatpush1.msra.mxu0 0.0
    %417 = vmatprep.subr.mxu0 0.0
    %418 = vmatpush1.msra.mxu0 0.0
    %419 = vmatprep.subr.mxu0 0.0
    %420 = vmatpush1.msra.mxu0 0.0
    %421 = vmatprep.subr.mxu0 0.0
    %422 = vmatpush1.msra.mxu0 0.0
    %423 = vmatprep.subr.mxu0 0.0
    %424 = vmatpush1.msra.mxu0 0.0
    %425 = vmatprep.mubr.f32.mxu0 0.0
    %v426 = vand.u32 %v79, 4294901760
    %v427 = vsub.f32 %v79, %v426
    %v428 = vand.u32 %v427, 4294901760
    %429 = vmatmul.mubr.f32.gmra.mrb[0].mxu0 %v428
    %v430 = vpop.f32.mrb[0].mxu0
    %v431 = vadd.f32 %v347, %v430
    %v432 = vpop.f32.mrb[0].mxu0
    %433 = vmatprep.mubr.f32.mxu0 0.0
    %v434 = vand.u32 %v82, 4294901760
    %v435 = vsub.f32 %v82, %v434
    %v436 = vand.u32 %v435, 4294901760
    %437 = vmatmul.mubr.f32.gmra.mrb[0].mxu0 %v436
    %v438 = vpop.f32.mrb[0].mxu0
    %v439 = vadd.f32 %v354, %v438
    %v440 = vpop.f32.mrb[0].mxu0
    %441 = vdwg.mxu0
    %442 = vmatprep.subr.mxu0 0.0
    %v443 = vand.u32 %v62, 4294901760
    %v444 = vsub.f32 %v62, %v443
    %v445 = vand.u32 %v444, 4294901760
    %446 = vmatpush1.msra.mxu0 %v445
    %447 = vmatprep.subr.mxu0 0.0
    %v448 = vand.u32 %v63, 4294901760
    %v449 = vsub.f32 %v63, %v448
    %v450 = vand.u32 %v449, 4294901760
    %451 = vmatpush1.msra.mxu0 %v450
    %452 = vmatprep.subr.mxu0 0.0
    %v453 = vand.u32 %v64, 4294901760
    %v454 = vsub.f32 %v64, %v453
    %v455 = vand.u32 %v454, 4294901760
    %456 = vmatpush1.msra.mxu0 %v455
    %457 = vmatprep.subr.mxu0 0.0
    %v458 = vand.u32 %v65, 4294901760
    %v459 = vsub.f32 %v65, %v458
    %v460 = vand.u32 %v459, 4294901760
    %461 = vmatpush1.msra.mxu0 %v460
    %462 = vmatprep.subr.mxu0 0.0
    %463 = vmatpush1.msra.mxu0 0.0
    %464 = vmatprep.subr.mxu0 0.0
    %465 = vmatpush1.msra.mxu0 0.0
    %466 = vmatprep.subr.mxu0 0.0
    %467 = vmatpush1.msra.mxu0 0.0
    %468 = vmatprep.subr.mxu0 0.0
    %469 = vmatpush1.msra.mxu0 0.0
    %470 = vmatprep.subr.mxu0 0.0
    %471 = vmatpush1.msra.mxu0 0.0
    %472 = vmatprep.subr.mxu0 0.0
    %473 = vmatpush1.msra.mxu0 0.0
    %474 = vmatprep.subr.mxu0 0.0
    %475 = vmatpush1.msra.mxu0 0.0
    %476 = vmatprep.subr.mxu0 0.0
    %477 = vmatpush1.msra.mxu0 0.0
    %478 = vmatprep.subr.mxu0 0.0
    %479 = vmatpush1.msra.mxu0 0.0
    %480 = vmatprep.subr.mxu0 0.0
    %481 = vmatpush1.msra.mxu0 0.0
    %482 = vmatprep.subr.mxu0 0.0
    %483 = vmatpush1.msra.mxu0 0.0
    %484 = vmatprep.subr.mxu0 0.0
    %485 = vmatpush1.msra.mxu0 0.0
    %486 = vmatprep.subr.mxu0 0.0
    %487 = vmatpush1.msra.mxu0 0.0
    %488 = vmatprep.subr.mxu0 0.0
    %489 = vmatpush1.msra.mxu0 0.0
    %490 = vmatprep.subr.mxu0 0.0
    %491 = vmatpush1.msra.mxu0 0.0
    %492 = vmatprep.subr.mxu0 0.0
    %493 = vmatpush1.msra.mxu0 0.0
    %494 = vmatprep.subr.mxu0 0.0
    %495 = vmatpush1.msra.mxu0 0.0
    %496 = vmatprep.subr.mxu0 0.0
    %497 = vmatpush1.msra.mxu0 0.0
    %498 = vmatprep.subr.mxu0 0.0
    %499 = vmatpush1.msra.mxu0 0.0
    %500 = vmatprep.subr.mxu0 0.0
    %501 = vmatpush1.msra.mxu0 0.0
    %502 = vmatprep.subr.mxu0 0.0
    %503 = vmatpush1.msra.mxu0 0.0
    %504 = vmatprep.subr.mxu0 0.0
    %505 = vmatpush1.msra.mxu0 0.0
    %506 = vmatprep.subr.mxu0 0.0
    %507 = vmatpush1.msra.mxu0 0.0
    %508 = vmatprep.subr.mxu0 0.0
    %509 = vmatpush1.msra.mxu0 0.0
    %510 = vmatprep.subr.mxu0 0.0
    %511 = vmatpush1.msra.mxu0 0.0
    %512 = vmatprep.subr.mxu0 0.0
    %513 = vmatpush1.msra.mxu0 0.0
    %514 = vmatprep.subr.mxu0 0.0
    %515 = vmatpush1.msra.mxu0 0.0
    %516 = vmatprep.subr.mxu0 0.0
    %517 = vmatpush1.msra.mxu0 0.0
    %518 = vmatprep.mubr.f32.mxu0 0.0
    %v519 = vand.u32 %v79, 4294901760
    %520 = vmatmul.mubr.f32.gmra.mrb[0].mxu0 %v519
    %v521 = vpop.f32.mrb[0].mxu0
    %v522 = vadd.f32 %v431, %v521
    %v523 = vpop.f32.mrb[0].mxu0
    %524 = vmatprep.mubr.f32.mxu0 0.0
    %v525 = vand.u32 %v82, 4294901760
    %526 = vmatmul.mubr.f32.gmra.mrb[0].mxu0 %v525
    %v527 = vpop.f32.mrb[0].mxu0
    %v528 = vadd.f32 %v439, %v527
    %v529 = vpop.f32.mrb[0].mxu0
    %530 = vdwg.mxu0
    %531 = vmatprep.subr.mxu0 0.0
    %v532 = vand.u32 %v62, 4294901760
    %533 = vmatpush1.msra.mxu0 %v532
    %534 = vmatprep.subr.mxu0 0.0
    %v535 = vand.u32 %v63, 4294901760
    %536 = vmatpush1.msra.mxu0 %v535
    %537 = vmatprep.subr.mxu0 0.0
    %v538 = vand.u32 %v64, 4294901760
    %539 = vmatpush1.msra.mxu0 %v538
    %540 = vmatprep.subr.mxu0 0.0
    %v541 = vand.u32 %v65, 4294901760
    %542 = vmatpush1.msra.mxu0 %v541
    %543 = vmatprep.subr.mxu0 0.0
    %544 = vmatpush1.msra.mxu0 0.0
    %545 = vmatprep.subr.mxu0 0.0
    %546 = vmatpush1.msra.mxu0 0.0
    %547 = vmatprep.subr.mxu0 0.0
    %548 = vmatpush1.msra.mxu0 0.0
    %549 = vmatprep.subr.mxu0 0.0
    %550 = vmatpush1.msra.mxu0 0.0
    %551 = vmatprep.subr.mxu0 0.0
    %552 = vmatpush1.msra.mxu0 0.0
    %553 = vmatprep.subr.mxu0 0.0
    %554 = vmatpush1.msra.mxu0 0.0
    %555 = vmatprep.subr.mxu0 0.0
    %556 = vmatpush1.msra.mxu0 0.0
    %557 = vmatprep.subr.mxu0 0.0
    %558 = vmatpush1.msra.mxu0 0.0
    %559 = vmatprep.subr.mxu0 0.0
    %560 = vmatpush1.msra.mxu0 0.0
    %561 = vmatprep.subr.mxu0 0.0
    %562 = vmatpush1.msra.mxu0 0.0
    %563 = vmatprep.subr.mxu0 0.0
    %564 = vmatpush1.msra.mxu0 0.0
    %565 = vmatprep.subr.mxu0 0.0
    %566 = vmatpush1.msra.mxu0 0.0
    %567 = vmatprep.subr.mxu0 0.0
    %568 = vmatpush1.msra.mxu0 0.0
    %569 = vmatprep.subr.mxu0 0.0
    %570 = vmatpush1.msra.mxu0 0.0
    %571 = vmatprep.subr.mxu0 0.0
    %572 = vmatpush1.msra.mxu0 0.0
    %573 = vmatprep.subr.mxu0 0.0
    %574 = vmatpush1.msra.mxu0 0.0
    %575 = vmatprep.subr.mxu0 0.0
    %576 = vmatpush1.msra.mxu0 0.0
    %577 = vmatprep.subr.mxu0 0.0
    %578 = vmatpush1.msra.mxu0 0.0
    %579 = vmatprep.subr.mxu0 0.0
    %580 = vmatpush1.msra.mxu0 0.0
    %581 = vmatprep.subr.mxu0 0.0
    %582 = vmatpush1.msra.mxu0 0.0
    %583 = vmatprep.subr.mxu0 0.0
    %584 = vmatpush1.msra.mxu0 0.0
    %585 = vmatprep.subr.mxu0 0.0
    %586 = vmatpush1.msra.mxu0 0.0
    %587 = vmatprep.subr.mxu0 0.0
    %588 = vmatpush1.msra.mxu0 0.0
    %589 = vmatprep.subr.mxu0 0.0
    %590 = vmatpush1.msra.mxu0 0.0
    %591 = vmatprep.subr.mxu0 0.0
    %592 = vmatpush1.msra.mxu0 0.0
    %593 = vmatprep.subr.mxu0 0.0
    %594 = vmatpush1.msra.mxu0 0.0
    %595 = vmatprep.subr.mxu0 0.0
    %596 = vmatpush1.msra.mxu0 0.0
    %597 = vmatprep.subr.mxu0 0.0
    %598 = vmatpush1.msra.mxu0 0.0
    %599 = vmatprep.mubr.f32.mxu0 0.0
    %v600 = vand.u32 %v79, 4294901760
    %601 = vmatmul.mubr.f32.gmra.mrb[0].mxu0 %v600
    %v602 = vpop.f32.mrb[0].mxu0
    %v603 = vadd.f32 %v522, %v602
    %v604 = vpop.f32.mrb[0].mxu0
    %605 = vmatprep.mubr.f32.mxu0 0.0
    %v606 = vand.u32 %v82, 4294901760
    %607 = vmatmul.mubr.f32.gmra.mrb[0].mxu0 %v606
    %v608 = vpop.f32.mrb[0].mxu0
    %v609 = vadd.f32 %v528, %v608
    %v610 = vpop.f32.mrb[0].mxu0
    %611 = vdwg.mxu0
    %616 = vrot.lane.b32.xlu0 %v62, 96
    %v617 = vpop.permute.xlu0 %616
    %618 = vrot.lane.b32.xlu0 %v63, 96
    %v619 = vpop.permute.xlu0 %618
    %620 = vrot.lane.b32.xlu0 %v64, 96
    %v621 = vpop.permute.xlu0 %620
    %622 = vrot.lane.b32.xlu0 %v65, 96
    %v623 = vpop.permute.xlu0 %622
    %628 = vrot.lane.b32.xlu0 %v75, 96
    %v629 = vpop.permute.xlu0 %628
    %v632 = vsel %vm77, %v69, 0
    %v635 = vsel %vm77, %v70, 0
    %637 = vmatprep.subr.mxu0 0.0
    %v638 = vand.u32 %v617, 4294901760
    %639 = vmatpush1.msra.mxu0 %v638
    %640 = vmatprep.subr.mxu0 0.0
    %v641 = vand.u32 %v619, 4294901760
    %642 = vmatpush1.msra.mxu0 %v641
    %643 = vmatprep.subr.mxu0 0.0
    %v644 = vand.u32 %v621, 4294901760
    %645 = vmatpush1.msra.mxu0 %v644
    %646 = vmatprep.subr.mxu0 0.0
    %v647 = vand.u32 %v623, 4294901760
    %648 = vmatpush1.msra.mxu0 %v647
    %649 = vmatprep.subr.mxu0 0.0
    %650 = vmatpush1.msra.mxu0 0.0
    %651 = vmatprep.subr.mxu0 0.0
    %652 = vmatpush1.msra.mxu0 0.0
    %653 = vmatprep.subr.mxu0 0.0
    %654 = vmatpush1.msra.mxu0 0.0
    %655 = vmatprep.subr.mxu0 0.0
    %656 = vmatpush1.msra.mxu0 0.0
    %657 = vmatprep.subr.mxu0 0.0
    %658 = vmatpush1.msra.mxu0 0.0
    %659 = vmatprep.subr.mxu0 0.0
    %660 = vmatpush1.msra.mxu0 0.0
    %661 = vmatprep.subr.mxu0 0.0
    %662 = vmatpush1.msra.mxu0 0.0
    %663 = vmatprep.subr.mxu0 0.0
    %664 = vmatpush1.msra.mxu0 0.0
    %665 = vmatprep.subr.mxu0 0.0
    %666 = vmatpush1.msra.mxu0 0.0
    %667 = vmatprep.subr.mxu0 0.0
    %668 = vmatpush1.msra.mxu0 0.0
    %669 = vmatprep.subr.mxu0 0.0
    %670 = vmatpush1.msra.mxu0 0.0
    %671 = vmatprep.subr.mxu0 0.0
    %672 = vmatpush1.msra.mxu0 0.0
    %673 = vmatprep.subr.mxu0 0.0
    %674 = vmatpush1.msra.mxu0 0.0
    %675 = vmatprep.subr.mxu0 0.0
    %676 = vmatpush1.msra.mxu0 0.0
    %677 = vmatprep.subr.mxu0 0.0
    %678 = vmatpush1.msra.mxu0 0.0
    %679 = vmatprep.subr.mxu0 0.0
    %680 = vmatpush1.msra.mxu0 0.0
    %681 = vmatprep.subr.mxu0 0.0
    %682 = vmatpush1.msra.mxu0 0.0
    %683 = vmatprep.subr.mxu0 0.0
    %684 = vmatpush1.msra.mxu0 0.0
    %685 = vmatprep.subr.mxu0 0.0
    %686 = vmatpush1.msra.mxu0 0.0
    %687 = vmatprep.subr.mxu0 0.0
    %688 = vmatpush1.msra.mxu0 0.0
    %689 = vmatprep.subr.mxu0 0.0
    %690 = vmatpush1.msra.mxu0 0.0
    %691 = vmatprep.subr.mxu0 0.0
    %692 = vmatpush1.msra.mxu0 0.0
    %693 = vmatprep.subr.mxu0 0.0
    %694 = vmatpush1.msra.mxu0 0.0
    %695 = vmatprep.subr.mxu0 0.0
    %696 = vmatpush1.msra.mxu0 0.0
    %697 = vmatprep.subr.mxu0 0.0
    %698 = vmatpush1.msra.mxu0 0.0
    %699 = vmatprep.subr.mxu0 0.0
    %700 = vmatpush1.msra.mxu0 0.0
    %701 = vmatprep.subr.mxu0 0.0
    %702 = vmatpush1.msra.mxu0 0.0
    %703 = vmatprep.subr.mxu0 0.0
    %704 = vmatpush1.msra.mxu0 0.0
    %705 = vmatprep.mubr.f32.mxu0 0.0
    %v706 = vand.u32 %v632, 4294901760
    %v707 = vsub.f32 %v632, %v706
    %v708 = vand.u32 %v707, 4294901760
    %v709 = vsub.f32 %v707, %v708
    %v710 = vand.u32 %v709, 4294901760
    %711 = vmatmul.mubr.f32.gmra.mrb[0].mxu0 %v710
    %v712 = vpop.f32.mrb[0].mxu0
    %v713 = vadd.f32 %v629, %v712
    %v714 = vpop.f32.mrb[0].mxu0
    %715 = vmatprep.mubr.f32.mxu0 0.0
    %v716 = vand.u32 %v635, 4294901760
    %v717 = vsub.f32 %v635, %v716
    %v718 = vand.u32 %v717, 4294901760
    %v719 = vsub.f32 %v717, %v718
    %v720 = vand.u32 %v719, 4294901760
    %721 = vmatmul.mubr.f32.gmra.mrb[0].mxu0 %v720
    %v722 = vpop.f32.mrb[0].mxu0
    %v723 = vadd.f32 %v629, %v722
    %v724 = vpop.f32.mrb[0].mxu0
    %725 = vdwg.mxu0
    %726 = vmatprep.subr.mxu0 0.0
    %v727 = vand.u32 %v617, 4294901760
    %v728 = vsub.f32 %v617, %v727
    %v729 = vand.u32 %v728, 4294901760
    %v730 = vsub.f32 %v728, %v729
    %v731 = vand.u32 %v730, 4294901760
    %732 = vmatpush1.msra.mxu0 %v731
    %733 = vmatprep.subr.mxu0 0.0
    %v734 = vand.u32 %v619, 4294901760
    %v735 = vsub.f32 %v619, %v734
    %v736 = vand.u32 %v735, 4294901760
    %v737 = vsub.f32 %v735, %v736
    %v738 = vand.u32 %v737, 4294901760
    %739 = vmatpush1.msra.mxu0 %v738
    %740 = vmatprep.subr.mxu0 0.0
    %v741 = vand.u32 %v621, 4294901760
    %v742 = vsub.f32 %v621, %v741
    %v743 = vand.u32 %v742, 4294901760
    %v744 = vsub.f32 %v742, %v743
    %v745 = vand.u32 %v744, 4294901760
    %746 = vmatpush1.msra.mxu0 %v745
    %747 = vmatprep.subr.mxu0 0.0
    %v748 = vand.u32 %v623, 4294901760
    %v749 = vsub.f32 %v623, %v748
    %v750 = vand.u32 %v749, 4294901760
    %v751 = vsub.f32 %v749, %v750
    %v752 = vand.u32 %v751, 4294901760
    %753 = vmatpush1.msra.mxu0 %v752
    %754 = vmatprep.subr.mxu0 0.0
    %755 = vmatpush1.msra.mxu0 0.0
    %756 = vmatprep.subr.mxu0 0.0
    %757 = vmatpush1.msra.mxu0 0.0
    %758 = vmatprep.subr.mxu0 0.0
    %759 = vmatpush1.msra.mxu0 0.0
    %760 = vmatprep.subr.mxu0 0.0
    %761 = vmatpush1.msra.mxu0 0.0
    %762 = vmatprep.subr.mxu0 0.0
    %763 = vmatpush1.msra.mxu0 0.0
    %764 = vmatprep.subr.mxu0 0.0
    %765 = vmatpush1.msra.mxu0 0.0
    %766 = vmatprep.subr.mxu0 0.0
    %767 = vmatpush1.msra.mxu0 0.0
    %768 = vmatprep.subr.mxu0 0.0
    %769 = vmatpush1.msra.mxu0 0.0
    %770 = vmatprep.subr.mxu0 0.0
    %771 = vmatpush1.msra.mxu0 0.0
    %772 = vmatprep.subr.mxu0 0.0
    %773 = vmatpush1.msra.mxu0 0.0
    %774 = vmatprep.subr.mxu0 0.0
    %775 = vmatpush1.msra.mxu0 0.0
    %776 = vmatprep.subr.mxu0 0.0
    %777 = vmatpush1.msra.mxu0 0.0
    %778 = vmatprep.subr.mxu0 0.0
    %779 = vmatpush1.msra.mxu0 0.0
    %780 = vmatprep.subr.mxu0 0.0
    %781 = vmatpush1.msra.mxu0 0.0
    %782 = vmatprep.subr.mxu0 0.0
    %783 = vmatpush1.msra.mxu0 0.0
    %784 = vmatprep.subr.mxu0 0.0
    %785 = vmatpush1.msra.mxu0 0.0
    %786 = vmatprep.subr.mxu0 0.0
    %787 = vmatpush1.msra.mxu0 0.0
    %788 = vmatprep.subr.mxu0 0.0
    %789 = vmatpush1.msra.mxu0 0.0
    %790 = vmatprep.subr.mxu0 0.0
    %791 = vmatpush1.msra.mxu0 0.0
    %792 = vmatprep.subr.mxu0 0.0
    %793 = vmatpush1.msra.mxu0 0.0
    %794 = vmatprep.subr.mxu0 0.0
    %795 = vmatpush1.msra.mxu0 0.0
    %796 = vmatprep.subr.mxu0 0.0
    %797 = vmatpush1.msra.mxu0 0.0
    %798 = vmatprep.subr.mxu0 0.0
    %799 = vmatpush1.msra.mxu0 0.0
    %800 = vmatprep.subr.mxu0 0.0
    %801 = vmatpush1.msra.mxu0 0.0
    %802 = vmatprep.subr.mxu0 0.0
    %803 = vmatpush1.msra.mxu0 0.0
    %804 = vmatprep.subr.mxu0 0.0
    %805 = vmatpush1.msra.mxu0 0.0
    %806 = vmatprep.subr.mxu0 0.0
    %807 = vmatpush1.msra.mxu0 0.0
    %808 = vmatprep.subr.mxu0 0.0
    %809 = vmatpush1.msra.mxu0 0.0
    %810 = vmatprep.mubr.f32.mxu0 0.0
    %v811 = vand.u32 %v632, 4294901760
    %812 = vmatmul.mubr.f32.gmra.mrb[0].mxu0 %v811
    %v813 = vpop.f32.mrb[0].mxu0
    %v814 = vadd.f32 %v713, %v813
    %v815 = vpop.f32.mrb[0].mxu0
    %816 = vmatprep.mubr.f32.mxu0 0.0
    %v817 = vand.u32 %v635, 4294901760
    %818 = vmatmul.mubr.f32.gmra.mrb[0].mxu0 %v817
    %v819 = vpop.f32.mrb[0].mxu0
    %v820 = vadd.f32 %v723, %v819
    %v821 = vpop.f32.mrb[0].mxu0
    %822 = vdwg.mxu0
    %823 = vmatprep.subr.mxu0 0.0
    %v824 = vand.u32 %v617, 4294901760
    %v825 = vsub.f32 %v617, %v824
    %826 = vmatpush1.msra.mxu0 %v825
    %827 = vmatprep.subr.mxu0 0.0
    %v828 = vand.u32 %v619, 4294901760
    %v829 = vsub.f32 %v619, %v828
    %830 = vmatpush1.msra.mxu0 %v829
    %831 = vmatprep.subr.mxu0 0.0
    %v832 = vand.u32 %v621, 4294901760
    %v833 = vsub.f32 %v621, %v832
    %834 = vmatpush1.msra.mxu0 %v833
    %835 = vmatprep.subr.mxu0 0.0
    %v836 = vand.u32 %v623, 4294901760
    %v837 = vsub.f32 %v623, %v836
    %838 = vmatpush1.msra.mxu0 %v837
    %839 = vmatprep.subr.mxu0 0.0
    %840 = vmatpush1.msra.mxu0 0.0
    %841 = vmatprep.subr.mxu0 0.0
    %842 = vmatpush1.msra.mxu0 0.0
    %843 = vmatprep.subr.mxu0 0.0
    %844 = vmatpush1.msra.mxu0 0.0
    %845 = vmatprep.subr.mxu0 0.0
    %846 = vmatpush1.msra.mxu0 0.0
    %847 = vmatprep.subr.mxu0 0.0
    %848 = vmatpush1.msra.mxu0 0.0
    %849 = vmatprep.subr.mxu0 0.0
    %850 = vmatpush1.msra.mxu0 0.0
    %851 = vmatprep.subr.mxu0 0.0
    %852 = vmatpush1.msra.mxu0 0.0
    %853 = vmatprep.subr.mxu0 0.0
    %854 = vmatpush1.msra.mxu0 0.0
    %855 = vmatprep.subr.mxu0 0.0
    %856 = vmatpush1.msra.mxu0 0.0
    %857 = vmatprep.subr.mxu0 0.0
    %858 = vmatpush1.msra.mxu0 0.0
    %859 = vmatprep.subr.mxu0 0.0
    %860 = vmatpush1.msra.mxu0 0.0
    %861 = vmatprep.subr.mxu0 0.0
    %862 = vmatpush1.msra.mxu0 0.0
    %863 = vmatprep.subr.mxu0 0.0
    %864 = vmatpush1.msra.mxu0 0.0
    %865 = vmatprep.subr.mxu0 0.0
    %866 = vmatpush1.msra.mxu0 0.0
    %867 = vmatprep.subr.mxu0 0.0
    %868 = vmatpush1.msra.mxu0 0.0
    %869 = vmatprep.subr.mxu0 0.0
    %870 = vmatpush1.msra.mxu0 0.0
    %871 = vmatprep.subr.mxu0 0.0
    %872 = vmatpush1.msra.mxu0 0.0
    %873 = vmatprep.subr.mxu0 0.0
    %874 = vmatpush1.msra.mxu0 0.0
    %875 = vmatprep.subr.mxu0 0.0
    %876 = vmatpush1.msra.mxu0 0.0
    %877 = vmatprep.subr.mxu0 0.0
    %878 = vmatpush1.msra.mxu0 0.0
    %879 = vmatprep.subr.mxu0 0.0
    %880 = vmatpush1.msra.mxu0 0.0
    %881 = vmatprep.subr.mxu0 0.0
    %882 = vmatpush1.msra.mxu0 0.0
    %883 = vmatprep.subr.mxu0 0.0
    %884 = vmatpush1.msra.mxu0 0.0
    %885 = vmatprep.subr.mxu0 0.0
    %886 = vmatpush1.msra.mxu0 0.0
    %887 = vmatprep.subr.mxu0 0.0
    %888 = vmatpush1.msra.mxu0 0.0
    %889 = vmatprep.subr.mxu0 0.0
    %890 = vmatpush1.msra.mxu0 0.0
    %891 = vmatprep.subr.mxu0 0.0
    %892 = vmatpush1.msra.mxu0 0.0
    %893 = vmatprep.subr.mxu0 0.0
    %894 = vmatpush1.msra.mxu0 0.0
    %895 = vmatprep.mubr.f32.mxu0 0.0
    %v896 = vand.u32 %v632, 4294901760
    %v897 = vsub.f32 %v632, %v896
    %898 = vmatmul.mubr.f32.gmra.mrb[0].mxu0 %v897
    %v899 = vpop.f32.mrb[0].mxu0
    %v900 = vadd.f32 %v814, %v899
    %v901 = vpop.f32.mrb[0].mxu0
    %902 = vmatprep.mubr.f32.mxu0 0.0
    %v903 = vand.u32 %v635, 4294901760
    %v904 = vsub.f32 %v635, %v903
    %905 = vmatmul.mubr.f32.gmra.mrb[0].mxu0 %v904
    %v906 = vpop.f32.mrb[0].mxu0
    %v907 = vadd.f32 %v820, %v906
    %v908 = vpop.f32.mrb[0].mxu0
    %909 = vdwg.mxu0
    %910 = vmatprep.subr.mxu0 0.0
    %v911 = vand.u32 %v617, 4294901760
    %912 = vmatpush1.msra.mxu0 %v911
    %913 = vmatprep.subr.mxu0 0.0
    %v914 = vand.u32 %v619, 4294901760
    %915 = vmatpush1.msra.mxu0 %v914
    %916 = vmatprep.subr.mxu0 0.0
    %v917 = vand.u32 %v621, 4294901760
    %918 = vmatpush1.msra.mxu0 %v917
    %919 = vmatprep.subr.mxu0 0.0
    %v920 = vand.u32 %v623, 4294901760
    %921 = vmatpush1.msra.mxu0 %v920
    %922 = vmatprep.subr.mxu0 0.0
    %923 = vmatpush1.msra.mxu0 0.0
    %924 = vmatprep.subr.mxu0 0.0
    %925 = vmatpush1.msra.mxu0 0.0
    %926 = vmatprep.subr.mxu0 0.0
    %927 = vmatpush1.msra.mxu0 0.0
    %928 = vmatprep.subr.mxu0 0.0
    %929 = vmatpush1.msra.mxu0 0.0
    %930 = vmatprep.subr.mxu0 0.0
    %931 = vmatpush1.msra.mxu0 0.0
    %932 = vmatprep.subr.mxu0 0.0
    %933 = vmatpush1.msra.mxu0 0.0
    %934 = vmatprep.subr.mxu0 0.0
    %935 = vmatpush1.msra.mxu0 0.0
    %936 = vmatprep.subr.mxu0 0.0
    %937 = vmatpush1.msra.mxu0 0.0
    %938 = vmatprep.subr.mxu0 0.0
    %939 = vmatpush1.msra.mxu0 0.0
    %940 = vmatprep.subr.mxu0 0.0
    %941 = vmatpush1.msra.mxu0 0.0
    %942 = vmatprep.subr.mxu0 0.0
    %943 = vmatpush1.msra.mxu0 0.0
    %944 = vmatprep.subr.mxu0 0.0
    %945 = vmatpush1.msra.mxu0 0.0
    %946 = vmatprep.subr.mxu0 0.0
    %947 = vmatpush1.msra.mxu0 0.0
    %948 = vmatprep.subr.mxu0 0.0
    %949 = vmatpush1.msra.mxu0 0.0
    %950 = vmatprep.subr.mxu0 0.0
    %951 = vmatpush1.msra.mxu0 0.0
    %952 = vmatprep.subr.mxu0 0.0
    %953 = vmatpush1.msra.mxu0 0.0
    %954 = vmatprep.subr.mxu0 0.0
    %955 = vmatpush1.msra.mxu0 0.0
    %956 = vmatprep.subr.mxu0 0.0
    %957 = vmatpush1.msra.mxu0 0.0
    %958 = vmatprep.subr.mxu0 0.0
    %959 = vmatpush1.msra.mxu0 0.0
    %960 = vmatprep.subr.mxu0 0.0
    %961 = vmatpush1.msra.mxu0 0.0
    %962 = vmatprep.subr.mxu0 0.0
    %963 = vmatpush1.msra.mxu0 0.0
    %964 = vmatprep.subr.mxu0 0.0
    %965 = vmatpush1.msra.mxu0 0.0
    %966 = vmatprep.subr.mxu0 0.0
    %967 = vmatpush1.msra.mxu0 0.0
    %968 = vmatprep.subr.mxu0 0.0
    %969 = vmatpush1.msra.mxu0 0.0
    %970 = vmatprep.subr.mxu0 0.0
    %971 = vmatpush1.msra.mxu0 0.0
    %972 = vmatprep.subr.mxu0 0.0
    %973 = vmatpush1.msra.mxu0 0.0
    %974 = vmatprep.subr.mxu0 0.0
    %975 = vmatpush1.msra.mxu0 0.0
    %976 = vmatprep.subr.mxu0 0.0
    %977 = vmatpush1.msra.mxu0 0.0
    %978 = vmatprep.mubr.f32.mxu0 0.0
    %v979 = vand.u32 %v632, 4294901760
    %v980 = vsub.f32 %v632, %v979
    %v981 = vand.u32 %v980, 4294901760
    %982 = vmatmul.mubr.f32.gmra.mrb[0].mxu0 %v981
    %v983 = vpop.f32.mrb[0].mxu0
    %v984 = vadd.f32 %v900, %v983
    %v985 = vpop.f32.mrb[0].mxu0
    %986 = vmatprep.mubr.f32.mxu0 0.0
    %v987 = vand.u32 %v635, 4294901760
    %v988 = vsub.f32 %v635, %v987
    %v989 = vand.u32 %v988, 4294901760
    %990 = vmatmul.mubr.f32.gmra.mrb[0].mxu0 %v989
    %v991 = vpop.f32.mrb[0].mxu0
    %v992 = vadd.f32 %v907, %v991
    %v993 = vpop.f32.mrb[0].mxu0
    %994 = vdwg.mxu0
    %995 = vmatprep.subr.mxu0 0.0
    %v996 = vand.u32 %v617, 4294901760
    %v997 = vsub.f32 %v617, %v996
    %v998 = vand.u32 %v997, 4294901760
    %999 = vmatpush1.msra.mxu0 %v998
    %1000 = vmatprep.subr.mxu0 0.0
    %v1001 = vand.u32 %v619, 4294901760
    %v1002 = vsub.f32 %v619, %v1001
    %v1003 = vand.u32 %v1002, 4294901760
    %1004 = vmatpush1.msra.mxu0 %v1003
    %1005 = vmatprep.subr.mxu0 0.0
    %v1006 = vand.u32 %v621, 4294901760
    %v1007 = vsub.f32 %v621, %v1006
    %v1008 = vand.u32 %v1007, 4294901760
    %1009 = vmatpush1.msra.mxu0 %v1008
    %1010 = vmatprep.subr.mxu0 0.0
    %v1011 = vand.u32 %v623, 4294901760
    %v1012 = vsub.f32 %v623, %v1011
    %v1013 = vand.u32 %v1012, 4294901760
    %1014 = vmatpush1.msra.mxu0 %v1013
    %1015 = vmatprep.subr.mxu0 0.0
    %1016 = vmatpush1.msra.mxu0 0.0
    %1017 = vmatprep.subr.mxu0 0.0
    %1018 = vmatpush1.msra.mxu0 0.0
    %1019 = vmatprep.subr.mxu0 0.0
    %1020 = vmatpush1.msra.mxu0 0.0
    %1021 = vmatprep.subr.mxu0 0.0
    %1022 = vmatpush1.msra.mxu0 0.0
    %1023 = vmatprep.subr.mxu0 0.0
    %1024 = vmatpush1.msra.mxu0 0.0
    %1025 = vmatprep.subr.mxu0 0.0
    %1026 = vmatpush1.msra.mxu0 0.0
    %1027 = vmatprep.subr.mxu0 0.0
    %1028 = vmatpush1.msra.mxu0 0.0
    %1029 = vmatprep.subr.mxu0 0.0
    %1030 = vmatpush1.msra.mxu0 0.0
    %1031 = vmatprep.subr.mxu0 0.0
    %1032 = vmatpush1.msra.mxu0 0.0
    %1033 = vmatprep.subr.mxu0 0.0
    %1034 = vmatpush1.msra.mxu0 0.0
    %1035 = vmatprep.subr.mxu0 0.0
    %1036 = vmatpush1.msra.mxu0 0.0
    %1037 = vmatprep.subr.mxu0 0.0
    %1038 = vmatpush1.msra.mxu0 0.0
    %1039 = vmatprep.subr.mxu0 0.0
    %1040 = vmatpush1.msra.mxu0 0.0
    %1041 = vmatprep.subr.mxu0 0.0
    %1042 = vmatpush1.msra.mxu0 0.0
    %1043 = vmatprep.subr.mxu0 0.0
    %1044 = vmatpush1.msra.mxu0 0.0
    %1045 = vmatprep.subr.mxu0 0.0
    %1046 = vmatpush1.msra.mxu0 0.0
    %1047 = vmatprep.subr.mxu0 0.0
    %1048 = vmatpush1.msra.mxu0 0.0
    %1049 = vmatprep.subr.mxu0 0.0
    %1050 = vmatpush1.msra.mxu0 0.0
    %1051 = vmatprep.subr.mxu0 0.0
    %1052 = vmatpush1.msra.mxu0 0.0
    %1053 = vmatprep.subr.mxu0 0.0
    %1054 = vmatpush1.msra.mxu0 0.0
    %1055 = vmatprep.subr.mxu0 0.0
    %1056 = vmatpush1.msra.mxu0 0.0
    %1057 = vmatprep.subr.mxu0 0.0
    %1058 = vmatpush1.msra.mxu0 0.0
    %1059 = vmatprep.subr.mxu0 0.0
    %1060 = vmatpush1.msra.mxu0 0.0
    %1061 = vmatprep.subr.mxu0 0.0
    %1062 = vmatpush1.msra.mxu0 0.0
    %1063 = vmatprep.subr.mxu0 0.0
    %1064 = vmatpush1.msra.mxu0 0.0
    %1065 = vmatprep.subr.mxu0 0.0
    %1066 = vmatpush1.msra.mxu0 0.0
    %1067 = vmatprep.subr.mxu0 0.0
    %1068 = vmatpush1.msra.mxu0 0.0
    %1069 = vmatprep.subr.mxu0 0.0
    %1070 = vmatpush1.msra.mxu0 0.0
    %1071 = vmatprep.mubr.f32.mxu0 0.0
    %v1072 = vand.u32 %v632, 4294901760
    %1073 = vmatmul.mubr.f32.gmra.mrb[0].mxu0 %v1072
    %v1074 = vpop.f32.mrb[0].mxu0
    %v1075 = vadd.f32 %v984, %v1074
    %v1076 = vpop.f32.mrb[0].mxu0
    %1077 = vmatprep.mubr.f32.mxu0 0.0
    %v1078 = vand.u32 %v635, 4294901760
    %1079 = vmatmul.mubr.f32.gmra.mrb[0].mxu0 %v1078
    %v1080 = vpop.f32.mrb[0].mxu0
    %v1081 = vadd.f32 %v992, %v1080
    %v1082 = vpop.f32.mrb[0].mxu0
    %1083 = vdwg.mxu0
    %1084 = vmatprep.subr.mxu0 0.0
    %v1085 = vand.u32 %v617, 4294901760
    %1086 = vmatpush1.msra.mxu0 %v1085
    %1087 = vmatprep.subr.mxu0 0.0
    %v1088 = vand.u32 %v619, 4294901760
    %1089 = vmatpush1.msra.mxu0 %v1088
    %1090 = vmatprep.subr.mxu0 0.0
    %v1091 = vand.u32 %v621, 4294901760
    %1092 = vmatpush1.msra.mxu0 %v1091
    %1093 = vmatprep.subr.mxu0 0.0
    %v1094 = vand.u32 %v623, 4294901760
    %1095 = vmatpush1.msra.mxu0 %v1094
    %1096 = vmatprep.subr.mxu0 0.0
    %1097 = vmatpush1.msra.mxu0 0.0
    %1098 = vmatprep.subr.mxu0 0.0
    %1099 = vmatpush1.msra.mxu0 0.0
    %1100 = vmatprep.subr.mxu0 0.0
    %1101 = vmatpush1.msra.mxu0 0.0
    %1102 = vmatprep.subr.mxu0 0.0
    %1103 = vmatpush1.msra.mxu0 0.0
    %1104 = vmatprep.subr.mxu0 0.0
    %1105 = vmatpush1.msra.mxu0 0.0
    %1106 = vmatprep.subr.mxu0 0.0
    %1107 = vmatpush1.msra.mxu0 0.0
    %1108 = vmatprep.subr.mxu0 0.0
    %1109 = vmatpush1.msra.mxu0 0.0
    %1110 = vmatprep.subr.mxu0 0.0
    %1111 = vmatpush1.msra.mxu0 0.0
    %1112 = vmatprep.subr.mxu0 0.0
    %1113 = vmatpush1.msra.mxu0 0.0
    %1114 = vmatprep.subr.mxu0 0.0
    %1115 = vmatpush1.msra.mxu0 0.0
    %1116 = vmatprep.subr.mxu0 0.0
    %1117 = vmatpush1.msra.mxu0 0.0
    %1118 = vmatprep.subr.mxu0 0.0
    %1119 = vmatpush1.msra.mxu0 0.0
    %1120 = vmatprep.subr.mxu0 0.0
    %1121 = vmatpush1.msra.mxu0 0.0
    %1122 = vmatprep.subr.mxu0 0.0
    %1123 = vmatpush1.msra.mxu0 0.0
    %1124 = vmatprep.subr.mxu0 0.0
    %1125 = vmatpush1.msra.mxu0 0.0
    %1126 = vmatprep.subr.mxu0 0.0
    %1127 = vmatpush1.msra.mxu0 0.0
    %1128 = vmatprep.subr.mxu0 0.0
    %1129 = vmatpush1.msra.mxu0 0.0
    %1130 = vmatprep.subr.mxu0 0.0
    %1131 = vmatpush1.msra.mxu0 0.0
    %1132 = vmatprep.subr.mxu0 0.0
    %1133 = vmatpush1.msra.mxu0 0.0
    %1134 = vmatprep.subr.mxu0 0.0
    %1135 = vmatpush1.msra.mxu0 0.0
    %1136 = vmatprep.subr.mxu0 0.0
    %1137 = vmatpush1.msra.mxu0 0.0
    %1138 = vmatprep.subr.mxu0 0.0
    %1139 = vmatpush1.msra.mxu0 0.0
    %1140 = vmatprep.subr.mxu0 0.0
    %1141 = vmatpush1.msra.mxu0 0.0
    %1142 = vmatprep.subr.mxu0 0.0
    %1143 = vmatpush1.msra.mxu0 0.0
    %1144 = vmatprep.subr.mxu0 0.0
    %1145 = vmatpush1.msra.mxu0 0.0
    %1146 = vmatprep.subr.mxu0 0.0
    %1147 = vmatpush1.msra.mxu0 0.0
    %1148 = vmatprep.subr.mxu0 0.0
    %1149 = vmatpush1.msra.mxu0 0.0
    %1150 = vmatprep.subr.mxu0 0.0
    %1151 = vmatpush1.msra.mxu0 0.0
    %1152 = vmatprep.mubr.f32.mxu0 0.0
    %v1153 = vand.u32 %v632, 4294901760
    %1154 = vmatmul.mubr.f32.gmra.mrb[0].mxu0 %v1153
    %v1155 = vpop.f32.mrb[0].mxu0
    %v1156 = vadd.f32 %v1075, %v1155
    %v1157 = vpop.f32.mrb[0].mxu0
    %1158 = vmatprep.mubr.f32.mxu0 0.0
    %v1159 = vand.u32 %v635, 4294901760
    %1160 = vmatmul.mubr.f32.gmra.mrb[0].mxu0 %v1159
    %v1161 = vpop.f32.mrb[0].mxu0
    %v1162 = vadd.f32 %v1081, %v1161
    %v1163 = vpop.f32.mrb[0].mxu0
    %1164 = vdwg.mxu0
    %1167 = vrot.lane.b32.xlu0 %v603, 120
    %v1168 = vpop.permute.xlu0 %1167
    %1169 = vrot.lane.b32.xlu0 %v609, 120
    %v1170 = vpop.permute.xlu0 %1169
    %1173 = vrot.lane.b32.xlu0 %v603, 112
    %v1174 = vpop.permute.xlu0 %1173
    %1175 = vrot.lane.b32.xlu0 %v609, 112
    %v1176 = vpop.permute.xlu0 %1175
    %1179 = vrot.lane.b32.xlu0 %v603, 104
    %v1180 = vpop.permute.xlu0 %1179
    %1181 = vrot.lane.b32.xlu0 %v609, 104
    %v1182 = vpop.permute.xlu0 %1181
    %v1185 = vcombine.low %v603, %v1174
    %v1186 = vcombine.high %v603, %v1174
    %v1188 = vunpack.c.l.s4 1983009808
    %v1189 = vunpack.c.0.s8 %v1188
    %v1190 = vlaneseq
    %v1191 = vshrl.u32 %v1190, 7
    %v1192 = vsub.s32 %v1189, %v1191
    %v1193 = vrot.slane %v1185, %v1192
    %v1195 = vunpack.c.l.s4 1983009808
    %v1196 = vunpack.c.0.s8 %v1195
    %v1197 = vlaneseq
    %v1198 = vshrl.u32 %v1197, 7
    %v1199 = vsub.s32 %v1196, %v1198
    %v1200 = vrot.slane %v1186, %v1199
    %v1201 = vcombine.low %v1168, %v1180
    %v1202 = vcombine.high %v1168, %v1180
    %v1204 = vunpack.c.l.s4 1983009808
    %v1205 = vunpack.c.0.s8 %v1204
    %v1206 = vlaneseq
    %v1207 = vshrl.u32 %v1206, 7
    %v1208 = vsub.s32 %v1205, %v1207
    %v1209 = vrot.slane %v1201, %v1208
    %v1211 = vunpack.c.l.s4 1983009808
    %v1212 = vunpack.c.0.s8 %v1211
    %v1213 = vlaneseq
    %v1214 = vshrl.u32 %v1213, 7
    %v1215 = vsub.s32 %v1212, %v1214
    %v1216 = vrot.slane %v1202, %v1215
    %v1217 = vcombine.low %v1193, %v1209
    %v1218 = vcombine.high %v1193, %v1209
    %v1220 = vunpack.c.l.s4 1934713408
    %v1221 = vunpack.c.0.s8 %v1220
    %v1222 = vlaneseq
    %v1223 = vshrl.u32 %v1222, 7
    %v1224 = vsub.s32 %v1221, %v1223
    %v1225 = vrot.slane %v1217, %v1224
    %v1227 = vunpack.c.l.s4 1934713408
    %v1228 = vunpack.c.0.s8 %v1227
    %v1229 = vlaneseq
    %v1230 = vshrl.u32 %v1229, 7
    %v1231 = vsub.s32 %v1228, %v1230
    %v1232 = vrot.slane %v1218, %v1231
    %v1233 = vcombine.low %v1200, %v1216
    %v1234 = vcombine.high %v1200, %v1216
    %v1236 = vunpack.c.l.s4 1934713408
    %v1237 = vunpack.c.0.s8 %v1236
    %v1238 = vlaneseq
    %v1239 = vshrl.u32 %v1238, 7
    %v1240 = vsub.s32 %v1237, %v1239
    %v1241 = vrot.slane %v1233, %v1240
    %v1243 = vunpack.c.l.s4 1934713408
    %v1244 = vunpack.c.0.s8 %v1243
    %v1245 = vlaneseq
    %v1246 = vshrl.u32 %v1245, 7
    %v1247 = vsub.s32 %v1244, %v1246
    %v1248 = vrot.slane %v1234, %v1247
    %v1249 = vcombine.high %v1225, 0.0
    %v1250 = vcombine.high %v1232, 0.0
    %v1251 = vcombine.high %v1241, 0.0
    %v1252 = vcombine.high %v1248, 0.0
    %v1253 = vcombine.low %v609, %v1176
    %v1254 = vcombine.high %v609, %v1176
    %v1256 = vunpack.c.l.s4 1983009808
    %v1257 = vunpack.c.0.s8 %v1256
    %v1258 = vlaneseq
    %v1259 = vshrl.u32 %v1258, 7
    %v1260 = vsub.s32 %v1257, %v1259
    %v1261 = vrot.slane %v1253, %v1260
    %v1263 = vunpack.c.l.s4 1983009808
    %v1264 = vunpack.c.0.s8 %v1263
    %v1265 = vlaneseq
    %v1266 = vshrl.u32 %v1265, 7
    %v1267 = vsub.s32 %v1264, %v1266
    %v1268 = vrot.slane %v1254, %v1267
    %v1269 = vcombine.low %v1170, %v1182
    %v1270 = vcombine.high %v1170, %v1182
    %v1272 = vunpack.c.l.s4 1983009808
    %v1273 = vunpack.c.0.s8 %v1272
    %v1274 = vlaneseq
    %v1275 = vshrl.u32 %v1274, 7
    %v1276 = vsub.s32 %v1273, %v1275
    %v1277 = vrot.slane %v1269, %v1276
    %v1279 = vunpack.c.l.s4 1983009808
    %v1280 = vunpack.c.0.s8 %v1279
    %v1281 = vlaneseq
    %v1282 = vshrl.u32 %v1281, 7
    %v1283 = vsub.s32 %v1280, %v1282
    %v1284 = vrot.slane %v1270, %v1283
    %v1285 = vcombine.low %v1261, %v1277
    %v1286 = vcombine.high %v1261, %v1277
    %v1288 = vunpack.c.l.s4 1934713408
    %v1289 = vunpack.c.0.s8 %v1288
    %v1290 = vlaneseq
    %v1291 = vshrl.u32 %v1290, 7
    %v1292 = vsub.s32 %v1289, %v1291
    %v1293 = vrot.slane %v1285, %v1292
    %v1295 = vunpack.c.l.s4 1934713408
    %v1296 = vunpack.c.0.s8 %v1295
    %v1297 = vlaneseq
    %v1298 = vshrl.u32 %v1297, 7
    %v1299 = vsub.s32 %v1296, %v1298
    %v1300 = vrot.slane %v1286, %v1299
    %v1301 = vcombine.low %v1268, %v1284
    %v1302 = vcombine.high %v1268, %v1284
    %v1304 = vunpack.c.l.s4 1934713408
    %v1305 = vunpack.c.0.s8 %v1304
    %v1306 = vlaneseq
    %v1307 = vshrl.u32 %v1306, 7
    %v1308 = vsub.s32 %v1305, %v1307
    %v1309 = vrot.slane %v1301, %v1308
    %v1311 = vunpack.c.l.s4 1934713408
    %v1312 = vunpack.c.0.s8 %v1311
    %v1313 = vlaneseq
    %v1314 = vshrl.u32 %v1313, 7
    %v1315 = vsub.s32 %v1312, %v1314
    %v1316 = vrot.slane %v1302, %v1315
    %v1317 = vcombine.high %v1293, 0.0
    %v1318 = vcombine.high %v1300, 0.0
    %v1319 = vcombine.high %v1309, 0.0
    %v1320 = vcombine.high %v1316, 0.0
    %v1321 = vcombine.low %v1225, %v1232
    %v1323 = vunpack.c.l.s4 1983009808
    %v1324 = vunpack.c.0.s8 %v1323
    %v1325 = vlaneseq
    %v1326 = vshrl.u32 %v1325, 7
    %v1327 = vsub.s32 %v1324, %v1326
    %v1328 = vrot.slane %v1321, %v1327
    %v1329 = vcombine.low %v1249, %v1250
    %v1331 = vunpack.c.l.s4 1983009808
    %v1332 = vunpack.c.0.s8 %v1331
    %v1333 = vlaneseq
    %v1334 = vshrl.u32 %v1333, 7
    %v1335 = vsub.s32 %v1332, %v1334
    %v1336 = vrot.slane %v1329, %v1335
    %v1337 = vcombine.low %v1241, %v1248
    %v1339 = vunpack.c.l.s4 1983009808
    %v1340 = vunpack.c.0.s8 %v1339
    %v1341 = vlaneseq
    %v1342 = vshrl.u32 %v1341, 7
    %v1343 = vsub.s32 %v1340, %v1342
    %v1344 = vrot.slane %v1337, %v1343
    %v1345 = vcombine.low %v1251, %v1252
    %v1347 = vunpack.c.l.s4 1983009808
    %v1348 = vunpack.c.0.s8 %v1347
    %v1349 = vlaneseq
    %v1350 = vshrl.u32 %v1349, 7
    %v1351 = vsub.s32 %v1348, %v1350
    %v1352 = vrot.slane %v1345, %v1351
    %v1353 = vcombine.low %v1328, %v1336
    %v1354 = vcombine.high %v1328, %v1336
    %v1356 = vunpack.c.l.s4 1934713408
    %v1357 = vunpack.c.0.s8 %v1356
    %v1358 = vlaneseq
    %v1359 = vshrl.u32 %v1358, 7
    %v1360 = vsub.s32 %v1357, %v1359
    %v1361 = vrot.slane %v1353, %v1360
    %v1363 = vunpack.c.l.s4 1934713408
    %v1364 = vunpack.c.0.s8 %v1363
    %v1365 = vlaneseq
    %v1366 = vshrl.u32 %v1365, 7
    %v1367 = vsub.s32 %v1364, %v1366
    %v1368 = vrot.slane %v1354, %v1367
    %v1369 = vcombine.low %v1344, %v1352
    %v1370 = vcombine.high %v1344, %v1352
    %v1372 = vunpack.c.l.s4 1934713408
    %v1373 = vunpack.c.0.s8 %v1372
    %v1374 = vlaneseq
    %v1375 = vshrl.u32 %v1374, 7
    %v1376 = vsub.s32 %v1373, %v1375
    %v1377 = vrot.slane %v1369, %v1376
    %v1379 = vunpack.c.l.s4 1934713408
    %v1380 = vunpack.c.0.s8 %v1379
    %v1381 = vlaneseq
    %v1382 = vshrl.u32 %v1381, 7
    %v1383 = vsub.s32 %v1380, %v1382
    %v1384 = vrot.slane %v1370, %v1383
    %v1385 = vcombine.low %v1361, %v1377
    %v1386 = vcombine.high %v1361, %v1377
    %v1387 = vcombine.low %v1368, %v1384
    %v1388 = vcombine.high %v1368, %v1384
    %v1389 = vcombine.low %v1293, %v1300
    %v1391 = vunpack.c.l.s4 1983009808
    %v1392 = vunpack.c.0.s8 %v1391
    %v1393 = vlaneseq
    %v1394 = vshrl.u32 %v1393, 7
    %v1395 = vsub.s32 %v1392, %v1394
    %v1396 = vrot.slane %v1389, %v1395
    %v1397 = vcombine.low %v1317, %v1318
    %v1399 = vunpack.c.l.s4 1983009808
    %v1400 = vunpack.c.0.s8 %v1399
    %v1401 = vlaneseq
    %v1402 = vshrl.u32 %v1401, 7
    %v1403 = vsub.s32 %v1400, %v1402
    %v1404 = vrot.slane %v1397, %v1403
    %v1405 = vcombine.low %v1309, %v1316
    %v1407 = vunpack.c.l.s4 1983009808
    %v1408 = vunpack.c.0.s8 %v1407
    %v1409 = vlaneseq
    %v1410 = vshrl.u32 %v1409, 7
    %v1411 = vsub.s32 %v1408, %v1410
    %v1412 = vrot.slane %v1405, %v1411
    %v1413 = vcombine.low %v1319, %v1320
    %v1415 = vunpack.c.l.s4 1983009808
    %v1416 = vunpack.c.0.s8 %v1415
    %v1417 = vlaneseq
    %v1418 = vshrl.u32 %v1417, 7
    %v1419 = vsub.s32 %v1416, %v1418
    %v1420 = vrot.slane %v1413, %v1419
    %v1421 = vcombine.low %v1396, %v1404
    %v1422 = vcombine.high %v1396, %v1404
    %v1424 = vunpack.c.l.s4 1934713408
    %v1425 = vunpack.c.0.s8 %v1424
    %v1426 = vlaneseq
    %v1427 = vshrl.u32 %v1426, 7
    %v1428 = vsub.s32 %v1425, %v1427
    %v1429 = vrot.slane %v1421, %v1428
    %v1431 = vunpack.c.l.s4 1934713408
    %v1432 = vunpack.c.0.s8 %v1431
    %v1433 = vlaneseq
    %v1434 = vshrl.u32 %v1433, 7
    %v1435 = vsub.s32 %v1432, %v1434
    %v1436 = vrot.slane %v1422, %v1435
    %v1437 = vcombine.low %v1412, %v1420
    %v1438 = vcombine.high %v1412, %v1420
    %v1440 = vunpack.c.l.s4 1934713408
    %v1441 = vunpack.c.0.s8 %v1440
    %v1442 = vlaneseq
    %v1443 = vshrl.u32 %v1442, 7
    %v1444 = vsub.s32 %v1441, %v1443
    %v1445 = vrot.slane %v1437, %v1444
    %v1447 = vunpack.c.l.s4 1934713408
    %v1448 = vunpack.c.0.s8 %v1447
    %v1449 = vlaneseq
    %v1450 = vshrl.u32 %v1449, 7
    %v1451 = vsub.s32 %v1448, %v1450
    %v1452 = vrot.slane %v1438, %v1451
    %v1453 = vcombine.low %v1429, %v1445
    %v1454 = vcombine.high %v1429, %v1445
    %v1455 = vcombine.low %v1436, %v1452
    %v1456 = vcombine.high %v1436, %v1452
    %1459 = vrot.lane.b32.xlu0 %v1156, 120
    %v1460 = vpop.permute.xlu0 %1459
    %1461 = vrot.lane.b32.xlu0 %v1162, 120
    %v1462 = vpop.permute.xlu0 %1461
    %1465 = vrot.lane.b32.xlu0 %v1156, 112
    %v1466 = vpop.permute.xlu0 %1465
    %1467 = vrot.lane.b32.xlu0 %v1162, 112
    %v1468 = vpop.permute.xlu0 %1467
    %1471 = vrot.lane.b32.xlu0 %v1156, 104
    %v1472 = vpop.permute.xlu0 %1471
    %1473 = vrot.lane.b32.xlu0 %v1162, 104
    %v1474 = vpop.permute.xlu0 %1473
    %v1477 = vcombine.low %v1156, %v1466
    %v1478 = vcombine.high %v1156, %v1466
    %v1480 = vunpack.c.l.s4 1983009808
    %v1481 = vunpack.c.0.s8 %v1480
    %v1482 = vlaneseq
    %v1483 = vshrl.u32 %v1482, 7
    %v1484 = vsub.s32 %v1481, %v1483
    %v1485 = vrot.slane %v1477, %v1484
    %v1487 = vunpack.c.l.s4 1983009808
    %v1488 = vunpack.c.0.s8 %v1487
    %v1489 = vlaneseq
    %v1490 = vshrl.u32 %v1489, 7
    %v1491 = vsub.s32 %v1488, %v1490
    %v1492 = vrot.slane %v1478, %v1491
    %v1493 = vcombine.low %v1460, %v1472
    %v1494 = vcombine.high %v1460, %v1472
    %v1496 = vunpack.c.l.s4 1983009808
    %v1497 = vunpack.c.0.s8 %v1496
    %v1498 = vlaneseq
    %v1499 = vshrl.u32 %v1498, 7
    %v1500 = vsub.s32 %v1497, %v1499
    %v1501 = vrot.slane %v1493, %v1500
    %v1503 = vunpack.c.l.s4 1983009808
    %v1504 = vunpack.c.0.s8 %v1503
    %v1505 = vlaneseq
    %v1506 = vshrl.u32 %v1505, 7
    %v1507 = vsub.s32 %v1504, %v1506
    %v1508 = vrot.slane %v1494, %v1507
    %v1509 = vcombine.low %v1485, %v1501
    %v1510 = vcombine.high %v1485, %v1501
    %v1512 = vunpack.c.l.s4 1934713408
    %v1513 = vunpack.c.0.s8 %v1512
    %v1514 = vlaneseq
    %v1515 = vshrl.u32 %v1514, 7
    %v1516 = vsub.s32 %v1513, %v1515
    %v1517 = vrot.slane %v1509, %v1516
    %v1519 = vunpack.c.l.s4 1934713408
    %v1520 = vunpack.c.0.s8 %v1519
    %v1521 = vlaneseq
    %v1522 = vshrl.u32 %v1521, 7
    %v1523 = vsub.s32 %v1520, %v1522
    %v1524 = vrot.slane %v1510, %v1523
    %v1525 = vcombine.low %v1492, %v1508
    %v1526 = vcombine.high %v1492, %v1508
    %v1528 = vunpack.c.l.s4 1934713408
    %v1529 = vunpack.c.0.s8 %v1528
    %v1530 = vlaneseq
    %v1531 = vshrl.u32 %v1530, 7
    %v1532 = vsub.s32 %v1529, %v1531
    %v1533 = vrot.slane %v1525, %v1532
    %v1535 = vunpack.c.l.s4 1934713408
    %v1536 = vunpack.c.0.s8 %v1535
    %v1537 = vlaneseq
    %v1538 = vshrl.u32 %v1537, 7
    %v1539 = vsub.s32 %v1536, %v1538
    %v1540 = vrot.slane %v1526, %v1539
    %v1541 = vcombine.high %v1517, 0.0
    %v1542 = vcombine.high %v1524, 0.0
    %v1543 = vcombine.high %v1533, 0.0
    %v1544 = vcombine.high %v1540, 0.0
    %v1545 = vcombine.low %v1162, %v1468
    %v1546 = vcombine.high %v1162, %v1468
    %v1548 = vunpack.c.l.s4 1983009808
    %v1549 = vunpack.c.0.s8 %v1548
    %v1550 = vlaneseq
    %v1551 = vshrl.u32 %v1550, 7
    %v1552 = vsub.s32 %v1549, %v1551
    %v1553 = vrot.slane %v1545, %v1552
    %v1555 = vunpack.c.l.s4 1983009808
    %v1556 = vunpack.c.0.s8 %v1555
    %v1557 = vlaneseq
    %v1558 = vshrl.u32 %v1557, 7
    %v1559 = vsub.s32 %v1556, %v1558
    %v1560 = vrot.slane %v1546, %v1559
    %v1561 = vcombine.low %v1462, %v1474
    %v1562 = vcombine.high %v1462, %v1474
    %v1564 = vunpack.c.l.s4 1983009808
    %v1565 = vunpack.c.0.s8 %v1564
    %v1566 = vlaneseq
    %v1567 = vshrl.u32 %v1566, 7
    %v1568 = vsub.s32 %v1565, %v1567
    %v1569 = vrot.slane %v1561, %v1568
    %v1571 = vunpack.c.l.s4 1983009808
    %v1572 = vunpack.c.0.s8 %v1571
    %v1573 = vlaneseq
    %v1574 = vshrl.u32 %v1573, 7
    %v1575 = vsub.s32 %v1572, %v1574
    %v1576 = vrot.slane %v1562, %v1575
    %v1577 = vcombine.low %v1553, %v1569
    %v1578 = vcombine.high %v1553, %v1569
    %v1580 = vunpack.c.l.s4 1934713408
    %v1581 = vunpack.c.0.s8 %v1580
    %v1582 = vlaneseq
    %v1583 = vshrl.u32 %v1582, 7
    %v1584 = vsub.s32 %v1581, %v1583
    %v1585 = vrot.slane %v1577, %v1584
    %v1587 = vunpack.c.l.s4 1934713408
    %v1588 = vunpack.c.0.s8 %v1587
    %v1589 = vlaneseq
    %v1590 = vshrl.u32 %v1589, 7
    %v1591 = vsub.s32 %v1588, %v1590
    %v1592 = vrot.slane %v1578, %v1591
    %v1593 = vcombine.low %v1560, %v1576
    %v1594 = vcombine.high %v1560, %v1576
    %v1596 = vunpack.c.l.s4 1934713408
    %v1597 = vunpack.c.0.s8 %v1596
    %v1598 = vlaneseq
    %v1599 = vshrl.u32 %v1598, 7
    %v1600 = vsub.s32 %v1597, %v1599
    %v1601 = vrot.slane %v1593, %v1600
    %v1603 = vunpack.c.l.s4 1934713408
    %v1604 = vunpack.c.0.s8 %v1603
    %v1605 = vlaneseq
    %v1606 = vshrl.u32 %v1605, 7
    %v1607 = vsub.s32 %v1604, %v1606
    %v1608 = vrot.slane %v1594, %v1607
    %v1609 = vcombine.high %v1585, 0.0
    %v1610 = vcombine.high %v1592, 0.0
    %v1611 = vcombine.high %v1601, 0.0
    %v1612 = vcombine.high %v1608, 0.0
    %v1613 = vcombine.low %v1517, %v1524
    %v1615 = vunpack.c.l.s4 1983009808
    %v1616 = vunpack.c.0.s8 %v1615
    %v1617 = vlaneseq
    %v1618 = vshrl.u32 %v1617, 7
    %v1619 = vsub.s32 %v1616, %v1618
    %v1620 = vrot.slane %v1613, %v1619
    %v1621 = vcombine.low %v1541, %v1542
    %v1623 = vunpack.c.l.s4 1983009808
    %v1624 = vunpack.c.0.s8 %v1623
    %v1625 = vlaneseq
    %v1626 = vshrl.u32 %v1625, 7
    %v1627 = vsub.s32 %v1624, %v1626
    %v1628 = vrot.slane %v1621, %v1627
    %v1629 = vcombine.low %v1533, %v1540
    %v1631 = vunpack.c.l.s4 1983009808
    %v1632 = vunpack.c.0.s8 %v1631
    %v1633 = vlaneseq
    %v1634 = vshrl.u32 %v1633, 7
    %v1635 = vsub.s32 %v1632, %v1634
    %v1636 = vrot.slane %v1629, %v1635
    %v1637 = vcombine.low %v1543, %v1544
    %v1639 = vunpack.c.l.s4 1983009808
    %v1640 = vunpack.c.0.s8 %v1639
    %v1641 = vlaneseq
    %v1642 = vshrl.u32 %v1641, 7
    %v1643 = vsub.s32 %v1640, %v1642
    %v1644 = vrot.slane %v1637, %v1643
    %v1645 = vcombine.low %v1620, %v1628
    %v1646 = vcombine.high %v1620, %v1628
    %v1648 = vunpack.c.l.s4 1934713408
    %v1649 = vunpack.c.0.s8 %v1648
    %v1650 = vlaneseq
    %v1651 = vshrl.u32 %v1650, 7
    %v1652 = vsub.s32 %v1649, %v1651
    %v1653 = vrot.slane %v1645, %v1652
    %v1655 = vunpack.c.l.s4 1934713408
    %v1656 = vunpack.c.0.s8 %v1655
    %v1657 = vlaneseq
    %v1658 = vshrl.u32 %v1657, 7
    %v1659 = vsub.s32 %v1656, %v1658
    %v1660 = vrot.slane %v1646, %v1659
    %v1661 = vcombine.low %v1636, %v1644
    %v1662 = vcombine.high %v1636, %v1644
    %v1664 = vunpack.c.l.s4 1934713408
    %v1665 = vunpack.c.0.s8 %v1664
    %v1666 = vlaneseq
    %v1667 = vshrl.u32 %v1666, 7
    %v1668 = vsub.s32 %v1665, %v1667
    %v1669 = vrot.slane %v1661, %v1668
    %v1671 = vunpack.c.l.s4 1934713408
    %v1672 = vunpack.c.0.s8 %v1671
    %v1673 = vlaneseq
    %v1674 = vshrl.u32 %v1673, 7
    %v1675 = vsub.s32 %v1672, %v1674
    %v1676 = vrot.slane %v1662, %v1675
    %v1677 = vcombine.low %v1653, %v1669
    %v1678 = vcombine.high %v1653, %v1669
    %v1679 = vcombine.low %v1660, %v1676
    %v1680 = vcombine.high %v1660, %v1676
    %v1681 = vcombine.low %v1585, %v1592
    %v1683 = vunpack.c.l.s4 1983009808
    %v1684 = vunpack.c.0.s8 %v1683
    %v1685 = vlaneseq
    %v1686 = vshrl.u32 %v1685, 7
    %v1687 = vsub.s32 %v1684, %v1686
    %v1688 = vrot.slane %v1681, %v1687
    %v1689 = vcombine.low %v1609, %v1610
    %v1691 = vunpack.c.l.s4 1983009808
    %v1692 = vunpack.c.0.s8 %v1691
    %v1693 = vlaneseq
    %v1694 = vshrl.u32 %v1693, 7
    %v1695 = vsub.s32 %v1692, %v1694
    %v1696 = vrot.slane %v1689, %v1695
    %v1697 = vcombine.low %v1601, %v1608
    %v1699 = vunpack.c.l.s4 1983009808
    %v1700 = vunpack.c.0.s8 %v1699
    %v1701 = vlaneseq
    %v1702 = vshrl.u32 %v1701, 7
    %v1703 = vsub.s32 %v1700, %v1702
    %v1704 = vrot.slane %v1697, %v1703
    %v1705 = vcombine.low %v1611, %v1612
    %v1707 = vunpack.c.l.s4 1983009808
    %v1708 = vunpack.c.0.s8 %v1707
    %v1709 = vlaneseq
    %v1710 = vshrl.u32 %v1709, 7
    %v1711 = vsub.s32 %v1708, %v1710
    %v1712 = vrot.slane %v1705, %v1711
    %v1713 = vcombine.low %v1688, %v1696
    %v1714 = vcombine.high %v1688, %v1696
    %v1716 = vunpack.c.l.s4 1934713408
    %v1717 = vunpack.c.0.s8 %v1716
    %v1718 = vlaneseq
    %v1719 = vshrl.u32 %v1718, 7
    %v1720 = vsub.s32 %v1717, %v1719
    %v1721 = vrot.slane %v1713, %v1720
    %v1723 = vunpack.c.l.s4 1934713408
    %v1724 = vunpack.c.0.s8 %v1723
    %v1725 = vlaneseq
    %v1726 = vshrl.u32 %v1725, 7
    %v1727 = vsub.s32 %v1724, %v1726
    %v1728 = vrot.slane %v1714, %v1727
    %v1729 = vcombine.low %v1704, %v1712
    %v1730 = vcombine.high %v1704, %v1712
    %v1732 = vunpack.c.l.s4 1934713408
    %v1733 = vunpack.c.0.s8 %v1732
    %v1734 = vlaneseq
    %v1735 = vshrl.u32 %v1734, 7
    %v1736 = vsub.s32 %v1733, %v1735
    %v1737 = vrot.slane %v1729, %v1736
    %v1739 = vunpack.c.l.s4 1934713408
    %v1740 = vunpack.c.0.s8 %v1739
    %v1741 = vlaneseq
    %v1742 = vshrl.u32 %v1741, 7
    %v1743 = vsub.s32 %v1740, %v1742
    %v1744 = vrot.slane %v1730, %v1743
    %v1745 = vcombine.low %v1721, %v1737
    %v1746 = vcombine.high %v1721, %v1737
    %v1747 = vcombine.low %v1728, %v1744
    %v1748 = vcombine.high %v1728, %v1744
    %1749 = vrot.lane.b32.xlu0 %v1156, 96
    %v1750 = vpop.permute.xlu0 %1749
    %1751 = vrot.lane.b32.xlu0 %v1162, 96
    %v1752 = vpop.permute.xlu0 %1751
    %1753 = vrot.lane.b32.xlu0 %v1460, 96
    %v1754 = vpop.permute.xlu0 %1753
    %1755 = vrot.lane.b32.xlu0 %v1462, 96
    %v1756 = vpop.permute.xlu0 %1755
    %1757 = vrot.lane.b32.xlu0 %v1466, 96
    %v1758 = vpop.permute.xlu0 %1757
    %1759 = vrot.lane.b32.xlu0 %v1468, 96
    %v1760 = vpop.permute.xlu0 %1759
    %1761 = vrot.lane.b32.xlu0 %v1472, 96
    %v1762 = vpop.permute.xlu0 %1761
    %1763 = vrot.lane.b32.xlu0 %v1474, 96
    %v1764 = vpop.permute.xlu0 %1763
    %v1773 = vcombine.low %v1750, %v1758
    %v1774 = vcombine.high %v1750, %v1758
    %v1776 = vunpack.c.l.s4 1983009808
    %v1777 = vunpack.c.0.s8 %v1776
    %v1778 = vlaneseq
    %v1779 = vshrl.u32 %v1778, 7
    %v1780 = vsub.s32 %v1777, %v1779
    %v1781 = vrot.slane %v1773, %v1780
    %v1783 = vunpack.c.l.s4 1983009808
    %v1784 = vunpack.c.0.s8 %v1783
    %v1785 = vlaneseq
    %v1786 = vshrl.u32 %v1785, 7
    %v1787 = vsub.s32 %v1784, %v1786
    %v1788 = vrot.slane %v1774, %v1787
    %v1789 = vcombine.low %v1754, %v1762
    %v1790 = vcombine.high %v1754, %v1762
    %v1792 = vunpack.c.l.s4 1983009808
    %v1793 = vunpack.c.0.s8 %v1792
    %v1794 = vlaneseq
    %v1795 = vshrl.u32 %v1794, 7
    %v1796 = vsub.s32 %v1793, %v1795
    %v1797 = vrot.slane %v1789, %v1796
    %v1799 = vunpack.c.l.s4 1983009808
    %v1800 = vunpack.c.0.s8 %v1799
    %v1801 = vlaneseq
    %v1802 = vshrl.u32 %v1801, 7
    %v1803 = vsub.s32 %v1800, %v1802
    %v1804 = vrot.slane %v1790, %v1803
    %v1805 = vcombine.low %v1781, %v1797
    %v1806 = vcombine.high %v1781, %v1797
    %v1808 = vunpack.c.l.s4 1934713408
    %v1809 = vunpack.c.0.s8 %v1808
    %v1810 = vlaneseq
    %v1811 = vshrl.u32 %v1810, 7
    %v1812 = vsub.s32 %v1809, %v1811
    %v1813 = vrot.slane %v1805, %v1812
    %v1815 = vunpack.c.l.s4 1934713408
    %v1816 = vunpack.c.0.s8 %v1815
    %v1817 = vlaneseq
    %v1818 = vshrl.u32 %v1817, 7
    %v1819 = vsub.s32 %v1816, %v1818
    %v1820 = vrot.slane %v1806, %v1819
    %v1821 = vcombine.low %v1788, %v1804
    %v1822 = vcombine.high %v1788, %v1804
    %v1824 = vunpack.c.l.s4 1934713408
    %v1825 = vunpack.c.0.s8 %v1824
    %v1826 = vlaneseq
    %v1827 = vshrl.u32 %v1826, 7
    %v1828 = vsub.s32 %v1825, %v1827
    %v1829 = vrot.slane %v1821, %v1828
    %v1831 = vunpack.c.l.s4 1934713408
    %v1832 = vunpack.c.0.s8 %v1831
    %v1833 = vlaneseq
    %v1834 = vshrl.u32 %v1833, 7
    %v1835 = vsub.s32 %v1832, %v1834
    %v1836 = vrot.slane %v1822, %v1835
    %v1837 = vcombine.high %v1813, 0.0
    %v1838 = vcombine.high %v1820, 0.0
    %v1839 = vcombine.high %v1829, 0.0
    %v1840 = vcombine.high %v1836, 0.0
    %v1841 = vcombine.low %v1752, %v1760
    %v1842 = vcombine.high %v1752, %v1760
    %v1844 = vunpack.c.l.s4 1983009808
    %v1845 = vunpack.c.0.s8 %v1844
    %v1846 = vlaneseq
    %v1847 = vshrl.u32 %v1846, 7
    %v1848 = vsub.s32 %v1845, %v1847
    %v1849 = vrot.slane %v1841, %v1848
    %v1851 = vunpack.c.l.s4 1983009808
    %v1852 = vunpack.c.0.s8 %v1851
    %v1853 = vlaneseq
    %v1854 = vshrl.u32 %v1853, 7
    %v1855 = vsub.s32 %v1852, %v1854
    %v1856 = vrot.slane %v1842, %v1855
    %v1857 = vcombine.low %v1756, %v1764
    %v1858 = vcombine.high %v1756, %v1764
    %v1860 = vunpack.c.l.s4 1983009808
    %v1861 = vunpack.c.0.s8 %v1860
    %v1862 = vlaneseq
    %v1863 = vshrl.u32 %v1862, 7
    %v1864 = vsub.s32 %v1861, %v1863
    %v1865 = vrot.slane %v1857, %v1864
    %v1867 = vunpack.c.l.s4 1983009808
    %v1868 = vunpack.c.0.s8 %v1867
    %v1869 = vlaneseq
    %v1870 = vshrl.u32 %v1869, 7
    %v1871 = vsub.s32 %v1868, %v1870
    %v1872 = vrot.slane %v1858, %v1871
    %v1873 = vcombine.low %v1849, %v1865
    %v1874 = vcombine.high %v1849, %v1865
    %v1876 = vunpack.c.l.s4 1934713408
    %v1877 = vunpack.c.0.s8 %v1876
    %v1878 = vlaneseq
    %v1879 = vshrl.u32 %v1878, 7
    %v1880 = vsub.s32 %v1877, %v1879
    %v1881 = vrot.slane %v1873, %v1880
    %v1883 = vunpack.c.l.s4 1934713408
    %v1884 = vunpack.c.0.s8 %v1883
    %v1885 = vlaneseq
    %v1886 = vshrl.u32 %v1885, 7
    %v1887 = vsub.s32 %v1884, %v1886
    %v1888 = vrot.slane %v1874, %v1887
    %v1889 = vcombine.low %v1856, %v1872
    %v1890 = vcombine.high %v1856, %v1872
    %v1892 = vunpack.c.l.s4 1934713408
    %v1893 = vunpack.c.0.s8 %v1892
    %v1894 = vlaneseq
    %v1895 = vshrl.u32 %v1894, 7
    %v1896 = vsub.s32 %v1893, %v1895
    %v1897 = vrot.slane %v1889, %v1896
    %v1899 = vunpack.c.l.s4 1934713408
    %v1900 = vunpack.c.0.s8 %v1899
    %v1901 = vlaneseq
    %v1902 = vshrl.u32 %v1901, 7
    %v1903 = vsub.s32 %v1900, %v1902
    %v1904 = vrot.slane %v1890, %v1903
    %v1905 = vcombine.high %v1881, 0.0
    %v1906 = vcombine.high %v1888, 0.0
    %v1907 = vcombine.high %v1897, 0.0
    %v1908 = vcombine.high %v1904, 0.0
    %v1909 = vcombine.low %v1813, %v1820
    %v1911 = vunpack.c.l.s4 1983009808
    %v1912 = vunpack.c.0.s8 %v1911
    %v1913 = vlaneseq
    %v1914 = vshrl.u32 %v1913, 7
    %v1915 = vsub.s32 %v1912, %v1914
    %v1916 = vrot.slane %v1909, %v1915
    %v1917 = vcombine.low %v1837, %v1838
    %v1919 = vunpack.c.l.s4 1983009808
    %v1920 = vunpack.c.0.s8 %v1919
    %v1921 = vlaneseq
    %v1922 = vshrl.u32 %v1921, 7
    %v1923 = vsub.s32 %v1920, %v1922
    %v1924 = vrot.slane %v1917, %v1923
    %v1925 = vcombine.low %v1829, %v1836
    %v1927 = vunpack.c.l.s4 1983009808
    %v1928 = vunpack.c.0.s8 %v1927
    %v1929 = vlaneseq
    %v1930 = vshrl.u32 %v1929, 7
    %v1931 = vsub.s32 %v1928, %v1930
    %v1932 = vrot.slane %v1925, %v1931
    %v1933 = vcombine.low %v1839, %v1840
    %v1935 = vunpack.c.l.s4 1983009808
    %v1936 = vunpack.c.0.s8 %v1935
    %v1937 = vlaneseq
    %v1938 = vshrl.u32 %v1937, 7
    %v1939 = vsub.s32 %v1936, %v1938
    %v1940 = vrot.slane %v1933, %v1939
    %v1941 = vcombine.low %v1916, %v1924
    %v1942 = vcombine.high %v1916, %v1924
    %v1944 = vunpack.c.l.s4 1934713408
    %v1945 = vunpack.c.0.s8 %v1944
    %v1946 = vlaneseq
    %v1947 = vshrl.u32 %v1946, 7
    %v1948 = vsub.s32 %v1945, %v1947
    %v1949 = vrot.slane %v1941, %v1948
    %v1951 = vunpack.c.l.s4 1934713408
    %v1952 = vunpack.c.0.s8 %v1951
    %v1953 = vlaneseq
    %v1954 = vshrl.u32 %v1953, 7
    %v1955 = vsub.s32 %v1952, %v1954
    %v1956 = vrot.slane %v1942, %v1955
    %v1957 = vcombine.low %v1932, %v1940
    %v1958 = vcombine.high %v1932, %v1940
    %v1960 = vunpack.c.l.s4 1934713408
    %v1961 = vunpack.c.0.s8 %v1960
    %v1962 = vlaneseq
    %v1963 = vshrl.u32 %v1962, 7
    %v1964 = vsub.s32 %v1961, %v1963
    %v1965 = vrot.slane %v1957, %v1964
    %v1967 = vunpack.c.l.s4 1934713408
    %v1968 = vunpack.c.0.s8 %v1967
    %v1969 = vlaneseq
    %v1970 = vshrl.u32 %v1969, 7
    %v1971 = vsub.s32 %v1968, %v1970
    %v1972 = vrot.slane %v1958, %v1971
    %v1973 = vcombine.low %v1949, %v1965
    %v1974 = vcombine.high %v1949, %v1965
    %v1975 = vcombine.low %v1956, %v1972
    %v1976 = vcombine.high %v1956, %v1972
    %v1977 = vcombine.low %v1881, %v1888
    %v1979 = vunpack.c.l.s4 1983009808
    %v1980 = vunpack.c.0.s8 %v1979
    %v1981 = vlaneseq
    %v1982 = vshrl.u32 %v1981, 7
    %v1983 = vsub.s32 %v1980, %v1982
    %v1984 = vrot.slane %v1977, %v1983
    %v1985 = vcombine.low %v1905, %v1906
    %v1987 = vunpack.c.l.s4 1983009808
    %v1988 = vunpack.c.0.s8 %v1987
    %v1989 = vlaneseq
    %v1990 = vshrl.u32 %v1989, 7
    %v1991 = vsub.s32 %v1988, %v1990
    %v1992 = vrot.slane %v1985, %v1991
    %v1993 = vcombine.low %v1897, %v1904
    %v1995 = vunpack.c.l.s4 1983009808
    %v1996 = vunpack.c.0.s8 %v1995
    %v1997 = vlaneseq
    %v1998 = vshrl.u32 %v1997, 7
    %v1999 = vsub.s32 %v1996, %v1998
    %v2000 = vrot.slane %v1993, %v1999
    %v2001 = vcombine.low %v1907, %v1908
    %v2003 = vunpack.c.l.s4 1983009808
    %v2004 = vunpack.c.0.s8 %v2003
    %v2005 = vlaneseq
    %v2006 = vshrl.u32 %v2005, 7
    %v2007 = vsub.s32 %v2004, %v2006
    %v2008 = vrot.slane %v2001, %v2007
    %v2009 = vcombine.low %v1984, %v1992
    %v2010 = vcombine.high %v1984, %v1992
    %v2012 = vunpack.c.l.s4 1934713408
    %v2013 = vunpack.c.0.s8 %v2012
    %v2014 = vlaneseq
    %v2015 = vshrl.u32 %v2014, 7
    %v2016 = vsub.s32 %v2013, %v2015
    %v2017 = vrot.slane %v2009, %v2016
    %v2019 = vunpack.c.l.s4 1934713408
    %v2020 = vunpack.c.0.s8 %v2019
    %v2021 = vlaneseq
    %v2022 = vshrl.u32 %v2021, 7
    %v2023 = vsub.s32 %v2020, %v2022
    %v2024 = vrot.slane %v2010, %v2023
    %v2025 = vcombine.low %v2000, %v2008
    %v2026 = vcombine.high %v2000, %v2008
    %v2028 = vunpack.c.l.s4 1934713408
    %v2029 = vunpack.c.0.s8 %v2028
    %v2030 = vlaneseq
    %v2031 = vshrl.u32 %v2030, 7
    %v2032 = vsub.s32 %v2029, %v2031
    %v2033 = vrot.slane %v2025, %v2032
    %v2035 = vunpack.c.l.s4 1934713408
    %v2036 = vunpack.c.0.s8 %v2035
    %v2037 = vlaneseq
    %v2038 = vshrl.u32 %v2037, 7
    %v2039 = vsub.s32 %v2036, %v2038
    %v2040 = vrot.slane %v2026, %v2039
    %v2041 = vcombine.low %v2017, %v2033
    %v2042 = vcombine.high %v2017, %v2033
    %v2043 = vcombine.low %v2024, %v2040
    %v2044 = vcombine.high %v2024, %v2040
    %vm2045 = vcmask 64512
    %v2047 = vsel %vm2045, %v1385, 0
    %v2050 = vsel %vm2045, %v1677, 0
    %2052 = vmatprep.subr.mxu0 0.0
    %v2053 = vand.u32 %v2050, 4294901760
    %2054 = vmatpush1.xpose.msra.mxu0 %v2053
    %2055 = vmatprep.subr.mxu0 0.0
    %2056 = vmatpush1.xpose.msra.mxu0 0.0
    %2057 = vmatprep.subr.mxu0 0.0
    %2058 = vmatpush1.xpose.msra.mxu0 0.0
    %2059 = vmatprep.subr.mxu0 0.0
    %2060 = vmatpush1.xpose.msra.mxu0 0.0
    %2061 = vmatprep.subr.mxu0 0.0
    %2062 = vmatpush1.xpose.msra.mxu0 0.0
    %2063 = vmatprep.subr.mxu0 0.0
    %2064 = vmatpush1.xpose.msra.mxu0 0.0
    %2065 = vmatprep.subr.mxu0 0.0
    %2066 = vmatpush1.xpose.msra.mxu0 0.0
    %2067 = vmatprep.subr.mxu0 0.0
    %2068 = vmatpush1.xpose.msra.mxu0 0.0
    %2069 = vmatprep.subr.mxu0 0.0
    %2070 = vmatpush1.xpose.msra.mxu0 0.0
    %2071 = vmatprep.subr.mxu0 0.0
    %2072 = vmatpush1.xpose.msra.mxu0 0.0
    %2073 = vmatprep.subr.mxu0 0.0
    %2074 = vmatpush1.xpose.msra.mxu0 0.0
    %2075 = vmatprep.subr.mxu0 0.0
    %2076 = vmatpush1.xpose.msra.mxu0 0.0
    %2077 = vmatprep.subr.mxu0 0.0
    %2078 = vmatpush1.xpose.msra.mxu0 0.0
    %2079 = vmatprep.subr.mxu0 0.0
    %2080 = vmatpush1.xpose.msra.mxu0 0.0
    %2081 = vmatprep.subr.mxu0 0.0
    %2082 = vmatpush1.xpose.msra.mxu0 0.0
    %2083 = vmatprep.subr.mxu0 0.0
    %2084 = vmatpush1.xpose.msra.mxu0 0.0
    %2085 = vmatprep.subr.mxu0 0.0
    %2086 = vmatpush1.xpose.msra.mxu0 0.0
    %2087 = vmatprep.subr.mxu0 0.0
    %2088 = vmatpush1.xpose.msra.mxu0 0.0
    %2089 = vmatprep.subr.mxu0 0.0
    %2090 = vmatpush1.xpose.msra.mxu0 0.0
    %2091 = vmatprep.subr.mxu0 0.0
    %2092 = vmatpush1.xpose.msra.mxu0 0.0
    %2093 = vmatprep.subr.mxu0 0.0
    %2094 = vmatpush1.xpose.msra.mxu0 0.0
    %2095 = vmatprep.subr.mxu0 0.0
    %2096 = vmatpush1.xpose.msra.mxu0 0.0
    %2097 = vmatprep.subr.mxu0 0.0
    %2098 = vmatpush1.xpose.msra.mxu0 0.0
    %2099 = vmatprep.subr.mxu0 0.0
    %2100 = vmatpush1.xpose.msra.mxu0 0.0
    %2101 = vmatprep.subr.mxu0 0.0
    %2102 = vmatpush1.xpose.msra.mxu0 0.0
    %2103 = vmatprep.subr.mxu0 0.0
    %2104 = vmatpush1.xpose.msra.mxu0 0.0
    %2105 = vmatprep.subr.mxu0 0.0
    %2106 = vmatpush1.xpose.msra.mxu0 0.0
    %2107 = vmatprep.subr.mxu0 0.0
    %2108 = vmatpush1.xpose.msra.mxu0 0.0
    %2109 = vmatprep.subr.mxu0 0.0
    %2110 = vmatpush1.xpose.msra.mxu0 0.0
    %2111 = vmatprep.subr.mxu0 0.0
    %2112 = vmatpush1.xpose.msra.mxu0 0.0
    %2113 = vmatprep.subr.mxu0 0.0
    %2114 = vmatpush1.xpose.msra.mxu0 0.0
    %2115 = vmatprep.subr.mxu0 0.0
    %2116 = vmatpush1.xpose.msra.mxu0 0.0
    %2117 = vmatprep.mubr.f32.mxu0 0.0
    %v2118 = vand.u32 %v2047, 4294901760
    %v2119 = vsub.f32 %v2047, %v2118
    %v2120 = vand.u32 %v2119, 4294901760
    %v2121 = vsub.f32 %v2119, %v2120
    %v2122 = vand.u32 %v2121, 4294901760
    %2123 = vmatmul.mubr.f32.gmra.mrb[0].mxu0 %v2122
    %v2124 = vpop.f32.mrb[0].mxu0
    %v2125 = vadd.f32 0.0, %v2124
    %v2126 = vpop.f32.mrb[0].mxu0
    %2127 = vdwg.mxu0
    %2128 = vmatprep.subr.mxu0 0.0
    %v2129 = vand.u32 %v2050, 4294901760
    %v2130 = vsub.f32 %v2050, %v2129
    %v2131 = vand.u32 %v2130, 4294901760
    %v2132 = vsub.f32 %v2130, %v2131
    %v2133 = vand.u32 %v2132, 4294901760
    %2134 = vmatpush1.xpose.msra.mxu0 %v2133
    %2135 = vmatprep.subr.mxu0 0.0
    %2136 = vmatpush1.xpose.msra.mxu0 0.0
    %2137 = vmatprep.subr.mxu0 0.0
    %2138 = vmatpush1.xpose.msra.mxu0 0.0
    %2139 = vmatprep.subr.mxu0 0.0
    %2140 = vmatpush1.xpose.msra.mxu0 0.0
    %2141 = vmatprep.subr.mxu0 0.0
    %2142 = vmatpush1.xpose.msra.mxu0 0.0
    %2143 = vmatprep.subr.mxu0 0.0
    %2144 = vmatpush1.xpose.msra.mxu0 0.0
    %2145 = vmatprep.subr.mxu0 0.0
    %2146 = vmatpush1.xpose.msra.mxu0 0.0
    %2147 = vmatprep.subr.mxu0 0.0
    %2148 = vmatpush1.xpose.msra.mxu0 0.0
    %2149 = vmatprep.subr.mxu0 0.0
    %2150 = vmatpush1.xpose.msra.mxu0 0.0
    %2151 = vmatprep.subr.mxu0 0.0
    %2152 = vmatpush1.xpose.msra.mxu0 0.0
    %2153 = vmatprep.subr.mxu0 0.0
    %2154 = vmatpush1.xpose.msra.mxu0 0.0
    %2155 = vmatprep.subr.mxu0 0.0
    %2156 = vmatpush1.xpose.msra.mxu0 0.0
    %2157 = vmatprep.subr.mxu0 0.0
    %2158 = vmatpush1.xpose.msra.mxu0 0.0
    %2159 = vmatprep.subr.mxu0 0.0
    %2160 = vmatpush1.xpose.msra.mxu0 0.0
    %2161 = vmatprep.subr.mxu0 0.0
    %2162 = vmatpush1.xpose.msra.mxu0 0.0
    %2163 = vmatprep.subr.mxu0 0.0
    %2164 = vmatpush1.xpose.msra.mxu0 0.0
    %2165 = vmatprep.subr.mxu0 0.0
    %2166 = vmatpush1.xpose.msra.mxu0 0.0
    %2167 = vmatprep.subr.mxu0 0.0
    %2168 = vmatpush1.xpose.msra.mxu0 0.0
    %2169 = vmatprep.subr.mxu0 0.0
    %2170 = vmatpush1.xpose.msra.mxu0 0.0
    %2171 = vmatprep.subr.mxu0 0.0
    %2172 = vmatpush1.xpose.msra.mxu0 0.0
    %2173 = vmatprep.subr.mxu0 0.0
    %2174 = vmatpush1.xpose.msra.mxu0 0.0
    %2175 = vmatprep.subr.mxu0 0.0
    %2176 = vmatpush1.xpose.msra.mxu0 0.0
    %2177 = vmatprep.subr.mxu0 0.0
    %2178 = vmatpush1.xpose.msra.mxu0 0.0
    %2179 = vmatprep.subr.mxu0 0.0
    %2180 = vmatpush1.xpose.msra.mxu0 0.0
    %2181 = vmatprep.subr.mxu0 0.0
    %2182 = vmatpush1.xpose.msra.mxu0 0.0
    %2183 = vmatprep.subr.mxu0 0.0
    %2184 = vmatpush1.xpose.msra.mxu0 0.0
    %2185 = vmatprep.subr.mxu0 0.0
    %2186 = vmatpush1.xpose.msra.mxu0 0.0
    %2187 = vmatprep.subr.mxu0 0.0
    %2188 = vmatpush1.xpose.msra.mxu0 0.0
    %2189 = vmatprep.subr.mxu0 0.0
    %2190 = vmatpush1.xpose.msra.mxu0 0.0
    %2191 = vmatprep.subr.mxu0 0.0
    %2192 = vmatpush1.xpose.msra.mxu0 0.0
    %2193 = vmatprep.subr.mxu0 0.0
    %2194 = vmatpush1.xpose.msra.mxu0 0.0
    %2195 = vmatprep.subr.mxu0 0.0
    %2196 = vmatpush1.xpose.msra.mxu0 0.0
    %2197 = vmatprep.mubr.f32.mxu0 0.0
    %v2198 = vand.u32 %v2047, 4294901760
    %2199 = vmatmul.mubr.f32.gmra.mrb[0].mxu0 %v2198
    %v2200 = vpop.f32.mrb[0].mxu0
    %v2201 = vadd.f32 %v2125, %v2200
    %v2202 = vpop.f32.mrb[0].mxu0
    %2203 = vdwg.mxu0
    %2204 = vmatprep.subr.mxu0 0.0
    %v2205 = vand.u32 %v2050, 4294901760
    %v2206 = vsub.f32 %v2050, %v2205
    %2207 = vmatpush1.xpose.msra.mxu0 %v2206
    %2208 = vmatprep.subr.mxu0 0.0
    %2209 = vmatpush1.xpose.msra.mxu0 0.0
    %2210 = vmatprep.subr.mxu0 0.0
    %2211 = vmatpush1.xpose.msra.mxu0 0.0
    %2212 = vmatprep.subr.mxu0 0.0
    %2213 = vmatpush1.xpose.msra.mxu0 0.0
    %2214 = vmatprep.subr.mxu0 0.0
    %2215 = vmatpush1.xpose.msra.mxu0 0.0
    %2216 = vmatprep.subr.mxu0 0.0
    %2217 = vmatpush1.xpose.msra.mxu0 0.0
    %2218 = vmatprep.subr.mxu0 0.0
    %2219 = vmatpush1.xpose.msra.mxu0 0.0
    %2220 = vmatprep.subr.mxu0 0.0
    %2221 = vmatpush1.xpose.msra.mxu0 0.0
    %2222 = vmatprep.subr.mxu0 0.0
    %2223 = vmatpush1.xpose.msra.mxu0 0.0
    %2224 = vmatprep.subr.mxu0 0.0
    %2225 = vmatpush1.xpose.msra.mxu0 0.0
    %2226 = vmatprep.subr.mxu0 0.0
    %2227 = vmatpush1.xpose.msra.mxu0 0.0
    %2228 = vmatprep.subr.mxu0 0.0
    %2229 = vmatpush1.xpose.msra.mxu0 0.0
    %2230 = vmatprep.subr.mxu0 0.0
    %2231 = vmatpush1.xpose.msra.mxu0 0.0
    %2232 = vmatprep.subr.mxu0 0.0
    %2233 = vmatpush1.xpose.msra.mxu0 0.0
    %2234 = vmatprep.subr.mxu0 0.0
    %2235 = vmatpush1.xpose.msra.mxu0 0.0
    %2236 = vmatprep.subr.mxu0 0.0
    %2237 = vmatpush1.xpose.msra.mxu0 0.0
    %2238 = vmatprep.subr.mxu0 0.0
    %2239 = vmatpush1.xpose.msra.mxu0 0.0
    %2240 = vmatprep.subr.mxu0 0.0
    %2241 = vmatpush1.xpose.msra.mxu0 0.0
    %2242 = vmatprep.subr.mxu0 0.0
    %2243 = vmatpush1.xpose.msra.mxu0 0.0
    %2244 = vmatprep.subr.mxu0 0.0
    %2245 = vmatpush1.xpose.msra.mxu0 0.0
    %2246 = vmatprep.subr.mxu0 0.0
    %2247 = vmatpush1.xpose.msra.mxu0 0.0
    %2248 = vmatprep.subr.mxu0 0.0
    %2249 = vmatpush1.xpose.msra.mxu0 0.0
    %2250 = vmatprep.subr.mxu0 0.0
    %2251 = vmatpush1.xpose.msra.mxu0 0.0
    %2252 = vmatprep.subr.mxu0 0.0
    %2253 = vmatpush1.xpose.msra.mxu0 0.0
    %2254 = vmatprep.subr.mxu0 0.0
    %2255 = vmatpush1.xpose.msra.mxu0 0.0
    %2256 = vmatprep.subr.mxu0 0.0
    %2257 = vmatpush1.xpose.msra.mxu0 0.0
    %2258 = vmatprep.subr.mxu0 0.0
    %2259 = vmatpush1.xpose.msra.mxu0 0.0
    %2260 = vmatprep.subr.mxu0 0.0
    %2261 = vmatpush1.xpose.msra.mxu0 0.0
    %2262 = vmatprep.subr.mxu0 0.0
    %2263 = vmatpush1.xpose.msra.mxu0 0.0
    %2264 = vmatprep.subr.mxu0 0.0
    %2265 = vmatpush1.xpose.msra.mxu0 0.0
    %2266 = vmatprep.subr.mxu0 0.0
    %2267 = vmatpush1.xpose.msra.mxu0 0.0
    %2268 = vmatprep.subr.mxu0 0.0
    %2269 = vmatpush1.xpose.msra.mxu0 0.0
    %2270 = vmatprep.mubr.f32.mxu0 0.0
    %v2271 = vand.u32 %v2047, 4294901760
    %v2272 = vsub.f32 %v2047, %v2271
    %2273 = vmatmul.mubr.f32.gmra.mrb[0].mxu0 %v2272
    %v2274 = vpop.f32.mrb[0].mxu0
    %v2275 = vadd.f32 %v2201, %v2274
    %v2276 = vpop.f32.mrb[0].mxu0
    %2277 = vdwg.mxu0
    %2278 = vmatprep.subr.mxu0 0.0
    %v2279 = vand.u32 %v2050, 4294901760
    %2280 = vmatpush1.xpose.msra.mxu0 %v2279
    %2281 = vmatprep.subr.mxu0 0.0
    %2282 = vmatpush1.xpose.msra.mxu0 0.0
    %2283 = vmatprep.subr.mxu0 0.0
    %2284 = vmatpush1.xpose.msra.mxu0 0.0
    %2285 = vmatprep.subr.mxu0 0.0
    %2286 = vmatpush1.xpose.msra.mxu0 0.0
    %2287 = vmatprep.subr.mxu0 0.0
    %2288 = vmatpush1.xpose.msra.mxu0 0.0
    %2289 = vmatprep.subr.mxu0 0.0
    %2290 = vmatpush1.xpose.msra.mxu0 0.0
    %2291 = vmatprep.subr.mxu0 0.0
    %2292 = vmatpush1.xpose.msra.mxu0 0.0
    %2293 = vmatprep.subr.mxu0 0.0
    %2294 = vmatpush1.xpose.msra.mxu0 0.0
    %2295 = vmatprep.subr.mxu0 0.0
    %2296 = vmatpush1.xpose.msra.mxu0 0.0
    %2297 = vmatprep.subr.mxu0 0.0
    %2298 = vmatpush1.xpose.msra.mxu0 0.0
    %2299 = vmatprep.subr.mxu0 0.0
    %2300 = vmatpush1.xpose.msra.mxu0 0.0
    %2301 = vmatprep.subr.mxu0 0.0
    %2302 = vmatpush1.xpose.msra.mxu0 0.0
    %2303 = vmatprep.subr.mxu0 0.0
    %2304 = vmatpush1.xpose.msra.mxu0 0.0
    %2305 = vmatprep.subr.mxu0 0.0
    %2306 = vmatpush1.xpose.msra.mxu0 0.0
    %2307 = vmatprep.subr.mxu0 0.0
    %2308 = vmatpush1.xpose.msra.mxu0 0.0
    %2309 = vmatprep.subr.mxu0 0.0
    %2310 = vmatpush1.xpose.msra.mxu0 0.0
    %2311 = vmatprep.subr.mxu0 0.0
    %2312 = vmatpush1.xpose.msra.mxu0 0.0
    %2313 = vmatprep.subr.mxu0 0.0
    %2314 = vmatpush1.xpose.msra.mxu0 0.0
    %2315 = vmatprep.subr.mxu0 0.0
    %2316 = vmatpush1.xpose.msra.mxu0 0.0
    %2317 = vmatprep.subr.mxu0 0.0
    %2318 = vmatpush1.xpose.msra.mxu0 0.0
    %2319 = vmatprep.subr.mxu0 0.0
    %2320 = vmatpush1.xpose.msra.mxu0 0.0
    %2321 = vmatprep.subr.mxu0 0.0
    %2322 = vmatpush1.xpose.msra.mxu0 0.0
    %2323 = vmatprep.subr.mxu0 0.0
    %2324 = vmatpush1.xpose.msra.mxu0 0.0
    %2325 = vmatprep.subr.mxu0 0.0
    %2326 = vmatpush1.xpose.msra.mxu0 0.0
    %2327 = vmatprep.subr.mxu0 0.0
    %2328 = vmatpush1.xpose.msra.mxu0 0.0
    %2329 = vmatprep.subr.mxu0 0.0
    %2330 = vmatpush1.xpose.msra.mxu0 0.0
    %2331 = vmatprep.subr.mxu0 0.0
    %2332 = vmatpush1.xpose.msra.mxu0 0.0
    %2333 = vmatprep.subr.mxu0 0.0
    %2334 = vmatpush1.xpose.msra.mxu0 0.0
    %2335 = vmatprep.subr.mxu0 0.0
    %2336 = vmatpush1.xpose.msra.mxu0 0.0
    %2337 = vmatprep.subr.mxu0 0.0
    %2338 = vmatpush1.xpose.msra.mxu0 0.0
    %2339 = vmatprep.subr.mxu0 0.0
    %2340 = vmatpush1.xpose.msra.mxu0 0.0
    %2341 = vmatprep.subr.mxu0 0.0
    %2342 = vmatpush1.xpose.msra.mxu0 0.0
    %2343 = vmatprep.mubr.f32.mxu0 0.0
    %v2344 = vand.u32 %v2047, 4294901760
    %v2345 = vsub.f32 %v2047, %v2344
    %v2346 = vand.u32 %v2345, 4294901760
    %2347 = vmatmul.mubr.f32.gmra.mrb[0].mxu0 %v2346
    %v2348 = vpop.f32.mrb[0].mxu0
    %v2349 = vadd.f32 %v2275, %v2348
    %v2350 = vpop.f32.mrb[0].mxu0
    %2351 = vdwg.mxu0
    %2352 = vmatprep.subr.mxu0 0.0
    %v2353 = vand.u32 %v2050, 4294901760
    %v2354 = vsub.f32 %v2050, %v2353
    %v2355 = vand.u32 %v2354, 4294901760
    %2356 = vmatpush1.xpose.msra.mxu0 %v2355
    %2357 = vmatprep.subr.mxu0 0.0
    %2358 = vmatpush1.xpose.msra.mxu0 0.0
    %2359 = vmatprep.subr.mxu0 0.0
    %2360 = vmatpush1.xpose.msra.mxu0 0.0
    %2361 = vmatprep.subr.mxu0 0.0
    %2362 = vmatpush1.xpose.msra.mxu0 0.0
    %2363 = vmatprep.subr.mxu0 0.0
    %2364 = vmatpush1.xpose.msra.mxu0 0.0
    %2365 = vmatprep.subr.mxu0 0.0
    %2366 = vmatpush1.xpose.msra.mxu0 0.0
    %2367 = vmatprep.subr.mxu0 0.0
    %2368 = vmatpush1.xpose.msra.mxu0 0.0
    %2369 = vmatprep.subr.mxu0 0.0
    %2370 = vmatpush1.xpose.msra.mxu0 0.0
    %2371 = vmatprep.subr.mxu0 0.0
    %2372 = vmatpush1.xpose.msra.mxu0 0.0
    %2373 = vmatprep.subr.mxu0 0.0
    %2374 = vmatpush1.xpose.msra.mxu0 0.0
    %2375 = vmatprep.subr.mxu0 0.0
    %2376 = vmatpush1.xpose.msra.mxu0 0.0
    %2377 = vmatprep.subr.mxu0 0.0
    %2378 = vmatpush1.xpose.msra.mxu0 0.0
    %2379 = vmatprep.subr.mxu0 0.0
    %2380 = vmatpush1.xpose.msra.mxu0 0.0
    %2381 = vmatprep.subr.mxu0 0.0
    %2382 = vmatpush1.xpose.msra.mxu0 0.0
    %2383 = vmatprep.subr.mxu0 0.0
    %2384 = vmatpush1.xpose.msra.mxu0 0.0
    %2385 = vmatprep.subr.mxu0 0.0
    %2386 = vmatpush1.xpose.msra.mxu0 0.0
    %2387 = vmatprep.subr.mxu0 0.0
    %2388 = vmatpush1.xpose.msra.mxu0 0.0
    %2389 = vmatprep.subr.mxu0 0.0
    %2390 = vmatpush1.xpose.msra.mxu0 0.0
    %2391 = vmatprep.subr.mxu0 0.0
    %2392 = vmatpush1.xpose.msra.mxu0 0.0
    %2393 = vmatprep.subr.mxu0 0.0
    %2394 = vmatpush1.xpose.msra.mxu0 0.0
    %2395 = vmatprep.subr.mxu0 0.0
    %2396 = vmatpush1.xpose.msra.mxu0 0.0
    %2397 = vmatprep.subr.mxu0 0.0
    %2398 = vmatpush1.xpose.msra.mxu0 0.0
    %2399 = vmatprep.subr.mxu0 0.0
    %2400 = vmatpush1.xpose.msra.mxu0 0.0
    %2401 = vmatprep.subr.mxu0 0.0
    %2402 = vmatpush1.xpose.msra.mxu0 0.0
    %2403 = vmatprep.subr.mxu0 0.0
    %2404 = vmatpush1.xpose.msra.mxu0 0.0
    %2405 = vmatprep.subr.mxu0 0.0
    %2406 = vmatpush1.xpose.msra.mxu0 0.0
    %2407 = vmatprep.subr.mxu0 0.0
    %2408 = vmatpush1.xpose.msra.mxu0 0.0
    %2409 = vmatprep.subr.mxu0 0.0
    %2410 = vmatpush1.xpose.msra.mxu0 0.0
    %2411 = vmatprep.subr.mxu0 0.0
    %2412 = vmatpush1.xpose.msra.mxu0 0.0
    %2413 = vmatprep.subr.mxu0 0.0
    %2414 = vmatpush1.xpose.msra.mxu0 0.0
    %2415 = vmatprep.subr.mxu0 0.0
    %2416 = vmatpush1.xpose.msra.mxu0 0.0
    %2417 = vmatprep.subr.mxu0 0.0
    %2418 = vmatpush1.xpose.msra.mxu0 0.0
    %2419 = vmatprep.mubr.f32.mxu0 0.0
    %v2420 = vand.u32 %v2047, 4294901760
    %2421 = vmatmul.mubr.f32.gmra.mrb[0].mxu0 %v2420
    %v2422 = vpop.f32.mrb[0].mxu0
    %v2423 = vadd.f32 %v2349, %v2422
    %v2424 = vpop.f32.mrb[0].mxu0
    %2425 = vdwg.mxu0
    %2426 = vmatprep.subr.mxu0 0.0
    %v2427 = vand.u32 %v2050, 4294901760
    %2428 = vmatpush1.xpose.msra.mxu0 %v2427
    %2429 = vmatprep.subr.mxu0 0.0
    %2430 = vmatpush1.xpose.msra.mxu0 0.0
    %2431 = vmatprep.subr.mxu0 0.0
    %2432 = vmatpush1.xpose.msra.mxu0 0.0
    %2433 = vmatprep.subr.mxu0 0.0
    %2434 = vmatpush1.xpose.msra.mxu0 0.0
    %2435 = vmatprep.subr.mxu0 0.0
    %2436 = vmatpush1.xpose.msra.mxu0 0.0
    %2437 = vmatprep.subr.mxu0 0.0
    %2438 = vmatpush1.xpose.msra.mxu0 0.0
    %2439 = vmatprep.subr.mxu0 0.0
    %2440 = vmatpush1.xpose.msra.mxu0 0.0
    %2441 = vmatprep.subr.mxu0 0.0
    %2442 = vmatpush1.xpose.msra.mxu0 0.0
    %2443 = vmatprep.subr.mxu0 0.0
    %2444 = vmatpush1.xpose.msra.mxu0 0.0
    %2445 = vmatprep.subr.mxu0 0.0
    %2446 = vmatpush1.xpose.msra.mxu0 0.0
    %2447 = vmatprep.subr.mxu0 0.0
    %2448 = vmatpush1.xpose.msra.mxu0 0.0
    %2449 = vmatprep.subr.mxu0 0.0
    %2450 = vmatpush1.xpose.msra.mxu0 0.0
    %2451 = vmatprep.subr.mxu0 0.0
    %2452 = vmatpush1.xpose.msra.mxu0 0.0
    %2453 = vmatprep.subr.mxu0 0.0
    %2454 = vmatpush1.xpose.msra.mxu0 0.0
    %2455 = vmatprep.subr.mxu0 0.0
    %2456 = vmatpush1.xpose.msra.mxu0 0.0
    %2457 = vmatprep.subr.mxu0 0.0
    %2458 = vmatpush1.xpose.msra.mxu0 0.0
    %2459 = vmatprep.subr.mxu0 0.0
    %2460 = vmatpush1.xpose.msra.mxu0 0.0
    %2461 = vmatprep.subr.mxu0 0.0
    %2462 = vmatpush1.xpose.msra.mxu0 0.0
    %2463 = vmatprep.subr.mxu0 0.0
    %2464 = vmatpush1.xpose.msra.mxu0 0.0
    %2465 = vmatprep.subr.mxu0 0.0
    %2466 = vmatpush1.xpose.msra.mxu0 0.0
    %2467 = vmatprep.subr.mxu0 0.0
    %2468 = vmatpush1.xpose.msra.mxu0 0.0
    %2469 = vmatprep.subr.mxu0 0.0
    %2470 = vmatpush1.xpose.msra.mxu0 0.0
    %2471 = vmatprep.subr.mxu0 0.0
    %2472 = vmatpush1.xpose.msra.mxu0 0.0
    %2473 = vmatprep.subr.mxu0 0.0
    %2474 = vmatpush1.xpose.msra.mxu0 0.0
    %2475 = vmatprep.subr.mxu0 0.0
    %2476 = vmatpush1.xpose.msra.mxu0 0.0
    %2477 = vmatprep.subr.mxu0 0.0
    %2478 = vmatpush1.xpose.msra.mxu0 0.0
    %2479 = vmatprep.subr.mxu0 0.0
    %2480 = vmatpush1.xpose.msra.mxu0 0.0
    %2481 = vmatprep.subr.mxu0 0.0
    %2482 = vmatpush1.xpose.msra.mxu0 0.0
    %2483 = vmatprep.subr.mxu0 0.0
    %2484 = vmatpush1.xpose.msra.mxu0 0.0
    %2485 = vmatprep.subr.mxu0 0.0
    %2486 = vmatpush1.xpose.msra.mxu0 0.0
    %2487 = vmatprep.subr.mxu0 0.0
    %2488 = vmatpush1.xpose.msra.mxu0 0.0
    %2489 = vmatprep.subr.mxu0 0.0
    %2490 = vmatpush1.xpose.msra.mxu0 0.0
    %2491 = vmatprep.mubr.f32.mxu0 0.0
    %v2492 = vand.u32 %v2047, 4294901760
    %2493 = vmatmul.mubr.f32.gmra.mrb[0].mxu0 %v2492
    %v2494 = vpop.f32.mrb[0].mxu0
    %v2495 = vadd.f32 %v2423, %v2494
    %v2496 = vpop.f32.mrb[0].mxu0
    %2497 = vdwg.mxu0
    %v2499 = vsel %vm2045, %v1386, 0
    %v2502 = vsel %vm2045, %v1678, 0
    %2504 = vmatprep.subr.mxu0 0.0
    %v2505 = vand.u32 %v2502, 4294901760
    %2506 = vmatpush1.xpose.msra.mxu0 %v2505
    %2507 = vmatprep.subr.mxu0 0.0
    %2508 = vmatpush1.xpose.msra.mxu0 0.0
    %2509 = vmatprep.subr.mxu0 0.0
    %2510 = vmatpush1.xpose.msra.mxu0 0.0
    %2511 = vmatprep.subr.mxu0 0.0
    %2512 = vmatpush1.xpose.msra.mxu0 0.0
    %2513 = vmatprep.subr.mxu0 0.0
    %2514 = vmatpush1.xpose.msra.mxu0 0.0
    %2515 = vmatprep.subr.mxu0 0.0
    %2516 = vmatpush1.xpose.msra.mxu0 0.0
    %2517 = vmatprep.subr.mxu0 0.0
    %2518 = vmatpush1.xpose.msra.mxu0 0.0
    %2519 = vmatprep.subr.mxu0 0.0
    %2520 = vmatpush1.xpose.msra.mxu0 0.0
    %2521 = vmatprep.subr.mxu0 0.0
    %2522 = vmatpush1.xpose.msra.mxu0 0.0
    %2523 = vmatprep.subr.mxu0 0.0
    %2524 = vmatpush1.xpose.msra.mxu0 0.0
    %2525 = vmatprep.subr.mxu0 0.0
    %2526 = vmatpush1.xpose.msra.mxu0 0.0
    %2527 = vmatprep.subr.mxu0 0.0
    %2528 = vmatpush1.xpose.msra.mxu0 0.0
    %2529 = vmatprep.subr.mxu0 0.0
    %2530 = vmatpush1.xpose.msra.mxu0 0.0
    %2531 = vmatprep.subr.mxu0 0.0
    %2532 = vmatpush1.xpose.msra.mxu0 0.0
    %2533 = vmatprep.subr.mxu0 0.0
    %2534 = vmatpush1.xpose.msra.mxu0 0.0
    %2535 = vmatprep.subr.mxu0 0.0
    %2536 = vmatpush1.xpose.msra.mxu0 0.0
    %2537 = vmatprep.subr.mxu0 0.0
    %2538 = vmatpush1.xpose.msra.mxu0 0.0
    %2539 = vmatprep.subr.mxu0 0.0
    %2540 = vmatpush1.xpose.msra.mxu0 0.0
    %2541 = vmatprep.subr.mxu0 0.0
    %2542 = vmatpush1.xpose.msra.mxu0 0.0
    %2543 = vmatprep.subr.mxu0 0.0
    %2544 = vmatpush1.xpose.msra.mxu0 0.0
    %2545 = vmatprep.subr.mxu0 0.0
    %2546 = vmatpush1.xpose.msra.mxu0 0.0
    %2547 = vmatprep.subr.mxu0 0.0
    %2548 = vmatpush1.xpose.msra.mxu0 0.0
    %2549 = vmatprep.subr.mxu0 0.0
    %2550 = vmatpush1.xpose.msra.mxu0 0.0
    %2551 = vmatprep.subr.mxu0 0.0
    %2552 = vmatpush1.xpose.msra.mxu0 0.0
    %2553 = vmatprep.subr.mxu0 0.0
    %2554 = vmatpush1.xpose.msra.mxu0 0.0
    %2555 = vmatprep.subr.mxu0 0.0
    %2556 = vmatpush1.xpose.msra.mxu0 0.0
    %2557 = vmatprep.subr.mxu0 0.0
    %2558 = vmatpush1.xpose.msra.mxu0 0.0
    %2559 = vmatprep.subr.mxu0 0.0
    %2560 = vmatpush1.xpose.msra.mxu0 0.0
    %2561 = vmatprep.subr.mxu0 0.0
    %2562 = vmatpush1.xpose.msra.mxu0 0.0
    %2563 = vmatprep.subr.mxu0 0.0
    %2564 = vmatpush1.xpose.msra.mxu0 0.0
    %2565 = vmatprep.subr.mxu0 0.0
    %2566 = vmatpush1.xpose.msra.mxu0 0.0
    %2567 = vmatprep.subr.mxu0 0.0
    %2568 = vmatpush1.xpose.msra.mxu0 0.0
    %2569 = vmatprep.mubr.f32.mxu0 0.0
    %v2570 = vand.u32 %v2499, 4294901760
    %v2571 = vsub.f32 %v2499, %v2570
    %v2572 = vand.u32 %v2571, 4294901760
    %v2573 = vsub.f32 %v2571, %v2572
    %v2574 = vand.u32 %v2573, 4294901760
    %2575 = vmatmul.mubr.f32.gmra.mrb[0].mxu0 %v2574
    %v2576 = vpop.f32.mrb[0].mxu0
    %v2577 = vadd.f32 0.0, %v2576
    %v2578 = vpop.f32.mrb[0].mxu0
    %2579 = vdwg.mxu0
    %2580 = vmatprep.subr.mxu0 0.0
    %v2581 = vand.u32 %v2502, 4294901760
    %v2582 = vsub.f32 %v2502, %v2581
    %v2583 = vand.u32 %v2582, 4294901760
    %v2584 = vsub.f32 %v2582, %v2583
    %v2585 = vand.u32 %v2584, 4294901760
    %2586 = vmatpush1.xpose.msra.mxu0 %v2585
    %2587 = vmatprep.subr.mxu0 0.0
    %2588 = vmatpush1.xpose.msra.mxu0 0.0
    %2589 = vmatprep.subr.mxu0 0.0
    %2590 = vmatpush1.xpose.msra.mxu0 0.0
    %2591 = vmatprep.subr.mxu0 0.0
    %2592 = vmatpush1.xpose.msra.mxu0 0.0
    %2593 = vmatprep.subr.mxu0 0.0
    %2594 = vmatpush1.xpose.msra.mxu0 0.0
    %2595 = vmatprep.subr.mxu0 0.0
    %2596 = vmatpush1.xpose.msra.mxu0 0.0
    %2597 = vmatprep.subr.mxu0 0.0
    %2598 = vmatpush1.xpose.msra.mxu0 0.0
    %2599 = vmatprep.subr.mxu0 0.0
    %2600 = vmatpush1.xpose.msra.mxu0 0.0
    %2601 = vmatprep.subr.mxu0 0.0
    %2602 = vmatpush1.xpose.msra.mxu0 0.0
    %2603 = vmatprep.subr.mxu0 0.0
    %2604 = vmatpush1.xpose.msra.mxu0 0.0
    %2605 = vmatprep.subr.mxu0 0.0
    %2606 = vmatpush1.xpose.msra.mxu0 0.0
    %2607 = vmatprep.subr.mxu0 0.0
    %2608 = vmatpush1.xpose.msra.mxu0 0.0
    %2609 = vmatprep.subr.mxu0 0.0
    %2610 = vmatpush1.xpose.msra.mxu0 0.0
    %2611 = vmatprep.subr.mxu0 0.0
    %2612 = vmatpush1.xpose.msra.mxu0 0.0
    %2613 = vmatprep.subr.mxu0 0.0
    %2614 = vmatpush1.xpose.msra.mxu0 0.0
    %2615 = vmatprep.subr.mxu0 0.0
    %2616 = vmatpush1.xpose.msra.mxu0 0.0
    %2617 = vmatprep.subr.mxu0 0.0
    %2618 = vmatpush1.xpose.msra.mxu0 0.0
    %2619 = vmatprep.subr.mxu0 0.0
    %2620 = vmatpush1.xpose.msra.mxu0 0.0
    %2621 = vmatprep.subr.mxu0 0.0
    %2622 = vmatpush1.xpose.msra.mxu0 0.0
    %2623 = vmatprep.subr.mxu0 0.0
    %2624 = vmatpush1.xpose.msra.mxu0 0.0
    %2625 = vmatprep.subr.mxu0 0.0
    %2626 = vmatpush1.xpose.msra.mxu0 0.0
    %2627 = vmatprep.subr.mxu0 0.0
    %2628 = vmatpush1.xpose.msra.mxu0 0.0
    %2629 = vmatprep.subr.mxu0 0.0
    %2630 = vmatpush1.xpose.msra.mxu0 0.0
    %2631 = vmatprep.subr.mxu0 0.0
    %2632 = vmatpush1.xpose.msra.mxu0 0.0
    %2633 = vmatprep.subr.mxu0 0.0
    %2634 = vmatpush1.xpose.msra.mxu0 0.0
    %2635 = vmatprep.subr.mxu0 0.0
    %2636 = vmatpush1.xpose.msra.mxu0 0.0
    %2637 = vmatprep.subr.mxu0 0.0
    %2638 = vmatpush1.xpose.msra.mxu0 0.0
    %2639 = vmatprep.subr.mxu0 0.0
    %2640 = vmatpush1.xpose.msra.mxu0 0.0
    %2641 = vmatprep.subr.mxu0 0.0
    %2642 = vmatpush1.xpose.msra.mxu0 0.0
    %2643 = vmatprep.subr.mxu0 0.0
    %2644 = vmatpush1.xpose.msra.mxu0 0.0
    %2645 = vmatprep.subr.mxu0 0.0
    %2646 = vmatpush1.xpose.msra.mxu0 0.0
    %2647 = vmatprep.subr.mxu0 0.0
    %2648 = vmatpush1.xpose.msra.mxu0 0.0
    %2649 = vmatprep.mubr.f32.mxu0 0.0
    %v2650 = vand.u32 %v2499, 4294901760
    %2651 = vmatmul.mubr.f32.gmra.mrb[0].mxu0 %v2650
    %v2652 = vpop.f32.mrb[0].mxu0
    %v2653 = vadd.f32 %v2577, %v2652
    %v2654 = vpop.f32.mrb[0].mxu0
    %2655 = vdwg.mxu0
    %2656 = vmatprep.subr.mxu0 0.0
    %v2657 = vand.u32 %v2502, 4294901760
    %v2658 = vsub.f32 %v2502, %v2657
    %2659 = vmatpush1.xpose.msra.mxu0 %v2658
    %2660 = vmatprep.subr.mxu0 0.0
    %2661 = vmatpush1.xpose.msra.mxu0 0.0
    %2662 = vmatprep.subr.mxu0 0.0
    %2663 = vmatpush1.xpose.msra.mxu0 0.0
    %2664 = vmatprep.subr.mxu0 0.0
    %2665 = vmatpush1.xpose.msra.mxu0 0.0
    %2666 = vmatprep.subr.mxu0 0.0
    %2667 = vmatpush1.xpose.msra.mxu0 0.0
    %2668 = vmatprep.subr.mxu0 0.0
    %2669 = vmatpush1.xpose.msra.mxu0 0.0
    %2670 = vmatprep.subr.mxu0 0.0
    %2671 = vmatpush1.xpose.msra.mxu0 0.0
    %2672 = vmatprep.subr.mxu0 0.0
    %2673 = vmatpush1.xpose.msra.mxu0 0.0
    %2674 = vmatprep.subr.mxu0 0.0
    %2675 = vmatpush1.xpose.msra.mxu0 0.0
    %2676 = vmatprep.subr.mxu0 0.0
    %2677 = vmatpush1.xpose.msra.mxu0 0.0
    %2678 = vmatprep.subr.mxu0 0.0
    %2679 = vmatpush1.xpose.msra.mxu0 0.0
    %2680 = vmatprep.subr.mxu0 0.0
    %2681 = vmatpush1.xpose.msra.mxu0 0.0
    %2682 = vmatprep.subr.mxu0 0.0
    %2683 = vmatpush1.xpose.msra.mxu0 0.0
    %2684 = vmatprep.subr.mxu0 0.0
    %2685 = vmatpush1.xpose.msra.mxu0 0.0
    %2686 = vmatprep.subr.mxu0 0.0
    %2687 = vmatpush1.xpose.msra.mxu0 0.0
    %2688 = vmatprep.subr.mxu0 0.0
    %2689 = vmatpush1.xpose.msra.mxu0 0.0
    %2690 = vmatprep.subr.mxu0 0.0
    %2691 = vmatpush1.xpose.msra.mxu0 0.0
    %2692 = vmatprep.subr.mxu0 0.0
    %2693 = vmatpush1.xpose.msra.mxu0 0.0
    %2694 = vmatprep.subr.mxu0 0.0
    %2695 = vmatpush1.xpose.msra.mxu0 0.0
    %2696 = vmatprep.subr.mxu0 0.0
    %2697 = vmatpush1.xpose.msra.mxu0 0.0
    %2698 = vmatprep.subr.mxu0 0.0
    %2699 = vmatpush1.xpose.msra.mxu0 0.0
    %2700 = vmatprep.subr.mxu0 0.0
    %2701 = vmatpush1.xpose.msra.mxu0 0.0
    %2702 = vmatprep.subr.mxu0 0.0
    %2703 = vmatpush1.xpose.msra.mxu0 0.0
    %2704 = vmatprep.subr.mxu0 0.0
    %2705 = vmatpush1.xpose.msra.mxu0 0.0
    %2706 = vmatprep.subr.mxu0 0.0
    %2707 = vmatpush1.xpose.msra.mxu0 0.0
    %2708 = vmatprep.subr.mxu0 0.0
    %2709 = vmatpush1.xpose.msra.mxu0 0.0
    %2710 = vmatprep.subr.mxu0 0.0
    %2711 = vmatpush1.xpose.msra.mxu0 0.0
    %2712 = vmatprep.subr.mxu0 0.0
    %2713 = vmatpush1.xpose.msra.mxu0 0.0
    %2714 = vmatprep.subr.mxu0 0.0
    %2715 = vmatpush1.xpose.msra.mxu0 0.0
    %2716 = vmatprep.subr.mxu0 0.0
    %2717 = vmatpush1.xpose.msra.mxu0 0.0
    %2718 = vmatprep.subr.mxu0 0.0
    %2719 = vmatpush1.xpose.msra.mxu0 0.0
    %2720 = vmatprep.subr.mxu0 0.0
    %2721 = vmatpush1.xpose.msra.mxu0 0.0
    %2722 = vmatprep.mubr.f32.mxu0 0.0
    %v2723 = vand.u32 %v2499, 4294901760
    %v2724 = vsub.f32 %v2499, %v2723
    %2725 = vmatmul.mubr.f32.gmra.mrb[0].mxu0 %v2724
    %v2726 = vpop.f32.mrb[0].mxu0
    %v2727 = vadd.f32 %v2653, %v2726
    %v2728 = vpop.f32.mrb[0].mxu0
    %2729 = vdwg.mxu0
    %2730 = vmatprep.subr.mxu0 0.0
    %v2731 = vand.u32 %v2502, 4294901760
    %2732 = vmatpush1.xpose.msra.mxu0 %v2731
    %2733 = vmatprep.subr.mxu0 0.0
    %2734 = vmatpush1.xpose.msra.mxu0 0.0
    %2735 = vmatprep.subr.mxu0 0.0
    %2736 = vmatpush1.xpose.msra.mxu0 0.0
    %2737 = vmatprep.subr.mxu0 0.0
    %2738 = vmatpush1.xpose.msra.mxu0 0.0
    %2739 = vmatprep.subr.mxu0 0.0
    %2740 = vmatpush1.xpose.msra.mxu0 0.0
    %2741 = vmatprep.subr.mxu0 0.0
    %2742 = vmatpush1.xpose.msra.mxu0 0.0
    %2743 = vmatprep.subr.mxu0 0.0
    %2744 = vmatpush1.xpose.msra.mxu0 0.0
    %2745 = vmatprep.subr.mxu0 0.0
    %2746 = vmatpush1.xpose.msra.mxu0 0.0
    %2747 = vmatprep.subr.mxu0 0.0
    %2748 = vmatpush1.xpose.msra.mxu0 0.0
    %2749 = vmatprep.subr.mxu0 0.0
    %2750 = vmatpush1.xpose.msra.mxu0 0.0
    %2751 = vmatprep.subr.mxu0 0.0
    %2752 = vmatpush1.xpose.msra.mxu0 0.0
    %2753 = vmatprep.subr.mxu0 0.0
    %2754 = vmatpush1.xpose.msra.mxu0 0.0
    %2755 = vmatprep.subr.mxu0 0.0
    %2756 = vmatpush1.xpose.msra.mxu0 0.0
    %2757 = vmatprep.subr.mxu0 0.0
    %2758 = vmatpush1.xpose.msra.mxu0 0.0
    %2759 = vmatprep.subr.mxu0 0.0
    %2760 = vmatpush1.xpose.msra.mxu0 0.0
    %2761 = vmatprep.subr.mxu0 0.0
    %2762 = vmatpush1.xpose.msra.mxu0 0.0
    %2763 = vmatprep.subr.mxu0 0.0
    %2764 = vmatpush1.xpose.msra.mxu0 0.0
    %2765 = vmatprep.subr.mxu0 0.0
    %2766 = vmatpush1.xpose.msra.mxu0 0.0
    %2767 = vmatprep.subr.mxu0 0.0
    %2768 = vmatpush1.xpose.msra.mxu0 0.0
    %2769 = vmatprep.subr.mxu0 0.0
    %2770 = vmatpush1.xpose.msra.mxu0 0.0
    %2771 = vmatprep.subr.mxu0 0.0
    %2772 = vmatpush1.xpose.msra.mxu0 0.0
    %2773 = vmatprep.subr.mxu0 0.0
    %2774 = vmatpush1.xpose.msra.mxu0 0.0
    %2775 = vmatprep.subr.mxu0 0.0
    %2776 = vmatpush1.xpose.msra.mxu0 0.0
    %2777 = vmatprep.subr.mxu0 0.0
    %2778 = vmatpush1.xpose.msra.mxu0 0.0
    %2779 = vmatprep.subr.mxu0 0.0
    %2780 = vmatpush1.xpose.msra.mxu0 0.0
    %2781 = vmatprep.subr.mxu0 0.0
    %2782 = vmatpush1.xpose.msra.mxu0 0.0
    %2783 = vmatprep.subr.mxu0 0.0
    %2784 = vmatpush1.xpose.msra.mxu0 0.0
    %2785 = vmatprep.subr.mxu0 0.0
    %2786 = vmatpush1.xpose.msra.mxu0 0.0
    %2787 = vmatprep.subr.mxu0 0.0
    %2788 = vmatpush1.xpose.msra.mxu0 0.0
    %2789 = vmatprep.subr.mxu0 0.0
    %2790 = vmatpush1.xpose.msra.mxu0 0.0
    %2791 = vmatprep.subr.mxu0 0.0
    %2792 = vmatpush1.xpose.msra.mxu0 0.0
    %2793 = vmatprep.subr.mxu0 0.0
    %2794 = vmatpush1.xpose.msra.mxu0 0.0
    %2795 = vmatprep.mubr.f32.mxu0 0.0
    %v2796 = vand.u32 %v2499, 4294901760
    %v2797 = vsub.f32 %v2499, %v2796
    %v2798 = vand.u32 %v2797, 4294901760
    %2799 = vmatmul.mubr.f32.gmra.mrb[0].mxu0 %v2798
    %v2800 = vpop.f32.mrb[0].mxu0
    %v2801 = vadd.f32 %v2727, %v2800
    %v2802 = vpop.f32.mrb[0].mxu0
    %2803 = vdwg.mxu0
    %2804 = vmatprep.subr.mxu0 0.0
    %v2805 = vand.u32 %v2502, 4294901760
    %v2806 = vsub.f32 %v2502, %v2805
    %v2807 = vand.u32 %v2806, 4294901760
    %2808 = vmatpush1.xpose.msra.mxu0 %v2807
    %2809 = vmatprep.subr.mxu0 0.0
    %2810 = vmatpush1.xpose.msra.mxu0 0.0
    %2811 = vmatprep.subr.mxu0 0.0
    %2812 = vmatpush1.xpose.msra.mxu0 0.0
    %2813 = vmatprep.subr.mxu0 0.0
    %2814 = vmatpush1.xpose.msra.mxu0 0.0
    %2815 = vmatprep.subr.mxu0 0.0
    %2816 = vmatpush1.xpose.msra.mxu0 0.0
    %2817 = vmatprep.subr.mxu0 0.0
    %2818 = vmatpush1.xpose.msra.mxu0 0.0
    %2819 = vmatprep.subr.mxu0 0.0
    %2820 = vmatpush1.xpose.msra.mxu0 0.0
    %2821 = vmatprep.subr.mxu0 0.0
    %2822 = vmatpush1.xpose.msra.mxu0 0.0
    %2823 = vmatprep.subr.mxu0 0.0
    %2824 = vmatpush1.xpose.msra.mxu0 0.0
    %2825 = vmatprep.subr.mxu0 0.0
    %2826 = vmatpush1.xpose.msra.mxu0 0.0
    %2827 = vmatprep.subr.mxu0 0.0
    %2828 = vmatpush1.xpose.msra.mxu0 0.0
    %2829 = vmatprep.subr.mxu0 0.0
    %2830 = vmatpush1.xpose.msra.mxu0 0.0
    %2831 = vmatprep.subr.mxu0 0.0
    %2832 = vmatpush1.xpose.msra.mxu0 0.0
    %2833 = vmatprep.subr.mxu0 0.0
    %2834 = vmatpush1.xpose.msra.mxu0 0.0
    %2835 = vmatprep.subr.mxu0 0.0
    %2836 = vmatpush1.xpose.msra.mxu0 0.0
    %2837 = vmatprep.subr.mxu0 0.0
    %2838 = vmatpush1.xpose.msra.mxu0 0.0
    %2839 = vmatprep.subr.mxu0 0.0
    %2840 = vmatpush1.xpose.msra.mxu0 0.0
    %2841 = vmatprep.subr.mxu0 0.0
    %2842 = vmatpush1.xpose.msra.mxu0 0.0
    %2843 = vmatprep.subr.mxu0 0.0
    %2844 = vmatpush1.xpose.msra.mxu0 0.0
    %2845 = vmatprep.subr.mxu0 0.0
    %2846 = vmatpush1.xpose.msra.mxu0 0.0
    %2847 = vmatprep.subr.mxu0 0.0
    %2848 = vmatpush1.xpose.msra.mxu0 0.0
    %2849 = vmatprep.subr.mxu0 0.0
    %2850 = vmatpush1.xpose.msra.mxu0 0.0
    %2851 = vmatprep.subr.mxu0 0.0
    %2852 = vmatpush1.xpose.msra.mxu0 0.0
    %2853 = vmatprep.subr.mxu0 0.0
    %2854 = vmatpush1.xpose.msra.mxu0 0.0
    %2855 = vmatprep.subr.mxu0 0.0
    %2856 = vmatpush1.xpose.msra.mxu0 0.0
    %2857 = vmatprep.subr.mxu0 0.0
    %2858 = vmatpush1.xpose.msra.mxu0 0.0
    %2859 = vmatprep.subr.mxu0 0.0
    %2860 = vmatpush1.xpose.msra.mxu0 0.0
    %2861 = vmatprep.subr.mxu0 0.0
    %2862 = vmatpush1.xpose.msra.mxu0 0.0
    %2863 = vmatprep.subr.mxu0 0.0
    %2864 = vmatpush1.xpose.msra.mxu0 0.0
    %2865 = vmatprep.subr.mxu0 0.0
    %2866 = vmatpush1.xpose.msra.mxu0 0.0
    %2867 = vmatprep.subr.mxu0 0.0
    %2868 = vmatpush1.xpose.msra.mxu0 0.0
    %2869 = vmatprep.subr.mxu0 0.0
    %2870 = vmatpush1.xpose.msra.mxu0 0.0
    %2871 = vmatprep.mubr.f32.mxu0 0.0
    %v2872 = vand.u32 %v2499, 4294901760
    %2873 = vmatmul.mubr.f32.gmra.mrb[0].mxu0 %v2872
    %v2874 = vpop.f32.mrb[0].mxu0
    %v2875 = vadd.f32 %v2801, %v2874
    %v2876 = vpop.f32.mrb[0].mxu0
    %2877 = vdwg.mxu0
    %2878 = vmatprep.subr.mxu0 0.0
    %v2879 = vand.u32 %v2502, 4294901760
    %2880 = vmatpush1.xpose.msra.mxu0 %v2879
    %2881 = vmatprep.subr.mxu0 0.0
    %2882 = vmatpush1.xpose.msra.mxu0 0.0
    %2883 = vmatprep.subr.mxu0 0.0
    %2884 = vmatpush1.xpose.msra.mxu0 0.0
    %2885 = vmatprep.subr.mxu0 0.0
    %2886 = vmatpush1.xpose.msra.mxu0 0.0
    %2887 = vmatprep.subr.mxu0 0.0
    %2888 = vmatpush1.xpose.msra.mxu0 0.0
    %2889 = vmatprep.subr.mxu0 0.0
    %2890 = vmatpush1.xpose.msra.mxu0 0.0
    %2891 = vmatprep.subr.mxu0 0.0
    %2892 = vmatpush1.xpose.msra.mxu0 0.0
    %2893 = vmatprep.subr.mxu0 0.0
    %2894 = vmatpush1.xpose.msra.mxu0 0.0
    %2895 = vmatprep.subr.mxu0 0.0
    %2896 = vmatpush1.xpose.msra.mxu0 0.0
    %2897 = vmatprep.subr.mxu0 0.0
    %2898 = vmatpush1.xpose.msra.mxu0 0.0
    %2899 = vmatprep.subr.mxu0 0.0
    %2900 = vmatpush1.xpose.msra.mxu0 0.0
    %2901 = vmatprep.subr.mxu0 0.0
    %2902 = vmatpush1.xpose.msra.mxu0 0.0
    %2903 = vmatprep.subr.mxu0 0.0
    %2904 = vmatpush1.xpose.msra.mxu0 0.0
    %2905 = vmatprep.subr.mxu0 0.0
    %2906 = vmatpush1.xpose.msra.mxu0 0.0
    %2907 = vmatprep.subr.mxu0 0.0
    %2908 = vmatpush1.xpose.msra.mxu0 0.0
    %2909 = vmatprep.subr.mxu0 0.0
    %2910 = vmatpush1.xpose.msra.mxu0 0.0
    %2911 = vmatprep.subr.mxu0 0.0
    %2912 = vmatpush1.xpose.msra.mxu0 0.0
    %2913 = vmatprep.subr.mxu0 0.0
    %2914 = vmatpush1.xpose.msra.mxu0 0.0
    %2915 = vmatprep.subr.mxu0 0.0
    %2916 = vmatpush1.xpose.msra.mxu0 0.0
    %2917 = vmatprep.subr.mxu0 0.0
    %2918 = vmatpush1.xpose.msra.mxu0 0.0
    %2919 = vmatprep.subr.mxu0 0.0
    %2920 = vmatpush1.xpose.msra.mxu0 0.0
    %2921 = vmatprep.subr.mxu0 0.0
    %2922 = vmatpush1.xpose.msra.mxu0 0.0
    %2923 = vmatprep.subr.mxu0 0.0
    %2924 = vmatpush1.xpose.msra.mxu0 0.0
    %2925 = vmatprep.subr.mxu0 0.0
    %2926 = vmatpush1.xpose.msra.mxu0 0.0
    %2927 = vmatprep.subr.mxu0 0.0
    %2928 = vmatpush1.xpose.msra.mxu0 0.0
    %2929 = vmatprep.subr.mxu0 0.0
    %2930 = vmatpush1.xpose.msra.mxu0 0.0
    %2931 = vmatprep.subr.mxu0 0.0
    %2932 = vmatpush1.xpose.msra.mxu0 0.0
    %2933 = vmatprep.subr.mxu0 0.0
    %2934 = vmatpush1.xpose.msra.mxu0 0.0
    %2935 = vmatprep.subr.mxu0 0.0
    %2936 = vmatpush1.xpose.msra.mxu0 0.0
    %2937 = vmatprep.subr.mxu0 0.0
    %2938 = vmatpush1.xpose.msra.mxu0 0.0
    %2939 = vmatprep.subr.mxu0 0.0
    %2940 = vmatpush1.xpose.msra.mxu0 0.0
    %2941 = vmatprep.subr.mxu0 0.0
    %2942 = vmatpush1.xpose.msra.mxu0 0.0
    %2943 = vmatprep.mubr.f32.mxu0 0.0
    %v2944 = vand.u32 %v2499, 4294901760
    %2945 = vmatmul.mubr.f32.gmra.mrb[0].mxu0 %v2944
    %v2946 = vpop.f32.mrb[0].mxu0
    %v2947 = vadd.f32 %v2875, %v2946
    %v2948 = vpop.f32.mrb[0].mxu0
    %2949 = vdwg.mxu0
    %v2951 = vsel %vm2045, %v1387, 0
    %v2954 = vsel %vm2045, %v1679, 0
    %2956 = vmatprep.subr.mxu0 0.0
    %v2957 = vand.u32 %v2954, 4294901760
    %2958 = vmatpush1.xpose.msra.mxu0 %v2957
    %2959 = vmatprep.subr.mxu0 0.0
    %2960 = vmatpush1.xpose.msra.mxu0 0.0
    %2961 = vmatprep.subr.mxu0 0.0
    %2962 = vmatpush1.xpose.msra.mxu0 0.0
    %2963 = vmatprep.subr.mxu0 0.0
    %2964 = vmatpush1.xpose.msra.mxu0 0.0
    %2965 = vmatprep.subr.mxu0 0.0
    %2966 = vmatpush1.xpose.msra.mxu0 0.0
    %2967 = vmatprep.subr.mxu0 0.0
    %2968 = vmatpush1.xpose.msra.mxu0 0.0
    %2969 = vmatprep.subr.mxu0 0.0
    %2970 = vmatpush1.xpose.msra.mxu0 0.0
    %2971 = vmatprep.subr.mxu0 0.0
    %2972 = vmatpush1.xpose.msra.mxu0 0.0
    %2973 = vmatprep.subr.mxu0 0.0
    %2974 = vmatpush1.xpose.msra.mxu0 0.0
    %2975 = vmatprep.subr.mxu0 0.0
    %2976 = vmatpush1.xpose.msra.mxu0 0.0
    %2977 = vmatprep.subr.mxu0 0.0
    %2978 = vmatpush1.xpose.msra.mxu0 0.0
    %2979 = vmatprep.subr.mxu0 0.0
    %2980 = vmatpush1.xpose.msra.mxu0 0.0
    %2981 = vmatprep.subr.mxu0 0.0
    %2982 = vmatpush1.xpose.msra.mxu0 0.0
    %2983 = vmatprep.subr.mxu0 0.0
    %2984 = vmatpush1.xpose.msra.mxu0 0.0
    %2985 = vmatprep.subr.mxu0 0.0
    %2986 = vmatpush1.xpose.msra.mxu0 0.0
    %2987 = vmatprep.subr.mxu0 0.0
    %2988 = vmatpush1.xpose.msra.mxu0 0.0
    %2989 = vmatprep.subr.mxu0 0.0
    %2990 = vmatpush1.xpose.msra.mxu0 0.0
    %2991 = vmatprep.subr.mxu0 0.0
    %2992 = vmatpush1.xpose.msra.mxu0 0.0
    %2993 = vmatprep.subr.mxu0 0.0
    %2994 = vmatpush1.xpose.msra.mxu0 0.0
    %2995 = vmatprep.subr.mxu0 0.0
    %2996 = vmatpush1.xpose.msra.mxu0 0.0
    %2997 = vmatprep.subr.mxu0 0.0
    %2998 = vmatpush1.xpose.msra.mxu0 0.0
    %2999 = vmatprep.subr.mxu0 0.0
    %3000 = vmatpush1.xpose.msra.mxu0 0.0
    %3001 = vmatprep.subr.mxu0 0.0
    %3002 = vmatpush1.xpose.msra.mxu0 0.0
    %3003 = vmatprep.subr.mxu0 0.0
    %3004 = vmatpush1.xpose.msra.mxu0 0.0
    %3005 = vmatprep.subr.mxu0 0.0
    %3006 = vmatpush1.xpose.msra.mxu0 0.0
    %3007 = vmatprep.subr.mxu0 0.0
    %3008 = vmatpush1.xpose.msra.mxu0 0.0
    %3009 = vmatprep.subr.mxu0 0.0
    %3010 = vmatpush1.xpose.msra.mxu0 0.0
    %3011 = vmatprep.subr.mxu0 0.0
    %3012 = vmatpush1.xpose.msra.mxu0 0.0
    %3013 = vmatprep.subr.mxu0 0.0
    %3014 = vmatpush1.xpose.msra.mxu0 0.0
    %3015 = vmatprep.subr.mxu0 0.0
    %3016 = vmatpush1.xpose.msra.mxu0 0.0
    %3017 = vmatprep.subr.mxu0 0.0
    %3018 = vmatpush1.xpose.msra.mxu0 0.0
    %3019 = vmatprep.subr.mxu0 0.0
    %3020 = vmatpush1.xpose.msra.mxu0 0.0
    %3021 = vmatprep.mubr.f32.mxu0 0.0
    %v3022 = vand.u32 %v2951, 4294901760
    %v3023 = vsub.f32 %v2951, %v3022
    %v3024 = vand.u32 %v3023, 4294901760
    %v3025 = vsub.f32 %v3023, %v3024
    %v3026 = vand.u32 %v3025, 4294901760
    %3027 = vmatmul.mubr.f32.gmra.mrb[0].mxu0 %v3026
    %v3028 = vpop.f32.mrb[0].mxu0
    %v3029 = vadd.f32 0.0, %v3028
    %v3030 = vpop.f32.mrb[0].mxu0
    %3031 = vdwg.mxu0
    %3032 = vmatprep.subr.mxu0 0.0
    %v3033 = vand.u32 %v2954, 4294901760
    %v3034 = vsub.f32 %v2954, %v3033
    %v3035 = vand.u32 %v3034, 4294901760
    %v3036 = vsub.f32 %v3034, %v3035
    %v3037 = vand.u32 %v3036, 4294901760
    %3038 = vmatpush1.xpose.msra.mxu0 %v3037
    %3039 = vmatprep.subr.mxu0 0.0
    %3040 = vmatpush1.xpose.msra.mxu0 0.0
    %3041 = vmatprep.subr.mxu0 0.0
    %3042 = vmatpush1.xpose.msra.mxu0 0.0
    %3043 = vmatprep.subr.mxu0 0.0
    %3044 = vmatpush1.xpose.msra.mxu0 0.0
    %3045 = vmatprep.subr.mxu0 0.0
    %3046 = vmatpush1.xpose.msra.mxu0 0.0
    %3047 = vmatprep.subr.mxu0 0.0
    %3048 = vmatpush1.xpose.msra.mxu0 0.0
    %3049 = vmatprep.subr.mxu0 0.0
    %3050 = vmatpush1.xpose.msra.mxu0 0.0
    %3051 = vmatprep.subr.mxu0 0.0
    %3052 = vmatpush1.xpose.msra.mxu0 0.0
    %3053 = vmatprep.subr.mxu0 0.0
    %3054 = vmatpush1.xpose.msra.mxu0 0.0
    %3055 = vmatprep.subr.mxu0 0.0
    %3056 = vmatpush1.xpose.msra.mxu0 0.0
    %3057 = vmatprep.subr.mxu0 0.0
    %3058 = vmatpush1.xpose.msra.mxu0 0.0
    %3059 = vmatprep.subr.mxu0 0.0
    %3060 = vmatpush1.xpose.msra.mxu0 0.0
    %3061 = vmatprep.subr.mxu0 0.0
    %3062 = vmatpush1.xpose.msra.mxu0 0.0
    %3063 = vmatprep.subr.mxu0 0.0
    %3064 = vmatpush1.xpose.msra.mxu0 0.0
    %3065 = vmatprep.subr.mxu0 0.0
    %3066 = vmatpush1.xpose.msra.mxu0 0.0
    %3067 = vmatprep.subr.mxu0 0.0
    %3068 = vmatpush1.xpose.msra.mxu0 0.0
    %3069 = vmatprep.subr.mxu0 0.0
    %3070 = vmatpush1.xpose.msra.mxu0 0.0
    %3071 = vmatprep.subr.mxu0 0.0
    %3072 = vmatpush1.xpose.msra.mxu0 0.0
    %3073 = vmatprep.subr.mxu0 0.0
    %3074 = vmatpush1.xpose.msra.mxu0 0.0
    %3075 = vmatprep.subr.mxu0 0.0
    %3076 = vmatpush1.xpose.msra.mxu0 0.0
    %3077 = vmatprep.subr.mxu0 0.0
    %3078 = vmatpush1.xpose.msra.mxu0 0.0
    %3079 = vmatprep.subr.mxu0 0.0
    %3080 = vmatpush1.xpose.msra.mxu0 0.0
    %3081 = vmatprep.subr.mxu0 0.0
    %3082 = vmatpush1.xpose.msra.mxu0 0.0
    %3083 = vmatprep.subr.mxu0 0.0
    %3084 = vmatpush1.xpose.msra.mxu0 0.0
    %3085 = vmatprep.subr.mxu0 0.0
    %3086 = vmatpush1.xpose.msra.mxu0 0.0
    %3087 = vmatprep.subr.mxu0 0.0
    %3088 = vmatpush1.xpose.msra.mxu0 0.0
    %3089 = vmatprep.subr.mxu0 0.0
    %3090 = vmatpush1.xpose.msra.mxu0 0.0
    %3091 = vmatprep.subr.mxu0 0.0
    %3092 = vmatpush1.xpose.msra.mxu0 0.0
    %3093 = vmatprep.subr.mxu0 0.0
    %3094 = vmatpush1.xpose.msra.mxu0 0.0
    %3095 = vmatprep.subr.mxu0 0.0
    %3096 = vmatpush1.xpose.msra.mxu0 0.0
    %3097 = vmatprep.subr.mxu0 0.0
    %3098 = vmatpush1.xpose.msra.mxu0 0.0
    %3099 = vmatprep.subr.mxu0 0.0
    %3100 = vmatpush1.xpose.msra.mxu0 0.0
    %3101 = vmatprep.mubr.f32.mxu0 0.0
    %v3102 = vand.u32 %v2951, 4294901760
    %3103 = vmatmul.mubr.f32.gmra.mrb[0].mxu0 %v3102
    %v3104 = vpop.f32.mrb[0].mxu0
    %v3105 = vadd.f32 %v3029, %v3104
    %v3106 = vpop.f32.mrb[0].mxu0
    %3107 = vdwg.mxu0
    %3108 = vmatprep.subr.mxu0 0.0
    %v3109 = vand.u32 %v2954, 4294901760
    %v3110 = vsub.f32 %v2954, %v3109
    %3111 = vmatpush1.xpose.msra.mxu0 %v3110
    %3112 = vmatprep.subr.mxu0 0.0
    %3113 = vmatpush1.xpose.msra.mxu0 0.0
    %3114 = vmatprep.subr.mxu0 0.0
    %3115 = vmatpush1.xpose.msra.mxu0 0.0
    %3116 = vmatprep.subr.mxu0 0.0
    %3117 = vmatpush1.xpose.msra.mxu0 0.0
    %3118 = vmatprep.subr.mxu0 0.0
    %3119 = vmatpush1.xpose.msra.mxu0 0.0
    %3120 = vmatprep.subr.mxu0 0.0
    %3121 = vmatpush1.xpose.msra.mxu0 0.0
    %3122 = vmatprep.subr.mxu0 0.0
    %3123 = vmatpush1.xpose.msra.mxu0 0.0
    %3124 = vmatprep.subr.mxu0 0.0
    %3125 = vmatpush1.xpose.msra.mxu0 0.0
    %3126 = vmatprep.subr.mxu0 0.0
    %3127 = vmatpush1.xpose.msra.mxu0 0.0
    %3128 = vmatprep.subr.mxu0 0.0
    %3129 = vmatpush1.xpose.msra.mxu0 0.0
    %3130 = vmatprep.subr.mxu0 0.0
    %3131 = vmatpush1.xpose.msra.mxu0 0.0
    %3132 = vmatprep.subr.mxu0 0.0
    %3133 = vmatpush1.xpose.msra.mxu0 0.0
    %3134 = vmatprep.subr.mxu0 0.0
    %3135 = vmatpush1.xpose.msra.mxu0 0.0
    %3136 = vmatprep.subr.mxu0 0.0
    %3137 = vmatpush1.xpose.msra.mxu0 0.0
    %3138 = vmatprep.subr.mxu0 0.0
    %3139 = vmatpush1.xpose.msra.mxu0 0.0
    %3140 = vmatprep.subr.mxu0 0.0
    %3141 = vmatpush1.xpose.msra.mxu0 0.0
    %3142 = vmatprep.subr.mxu0 0.0
    %3143 = vmatpush1.xpose.msra.mxu0 0.0
    %3144 = vmatprep.subr.mxu0 0.0
    %3145 = vmatpush1.xpose.msra.mxu0 0.0
    %3146 = vmatprep.subr.mxu0 0.0
    %3147 = vmatpush1.xpose.msra.mxu0 0.0
    %3148 = vmatprep.subr.mxu0 0.0
    %3149 = vmatpush1.xpose.msra.mxu0 0.0
    %3150 = vmatprep.subr.mxu0 0.0
    %3151 = vmatpush1.xpose.msra.mxu0 0.0
    %3152 = vmatprep.subr.mxu0 0.0
    %3153 = vmatpush1.xpose.msra.mxu0 0.0
    %3154 = vmatprep.subr.mxu0 0.0
    %3155 = vmatpush1.xpose.msra.mxu0 0.0
    %3156 = vmatprep.subr.mxu0 0.0
    %3157 = vmatpush1.xpose.msra.mxu0 0.0
    %3158 = vmatprep.subr.mxu0 0.0
    %3159 = vmatpush1.xpose.msra.mxu0 0.0
    %3160 = vmatprep.subr.mxu0 0.0
    %3161 = vmatpush1.xpose.msra.mxu0 0.0
    %3162 = vmatprep.subr.mxu0 0.0
    %3163 = vmatpush1.xpose.msra.mxu0 0.0
    %3164 = vmatprep.subr.mxu0 0.0
    %3165 = vmatpush1.xpose.msra.mxu0 0.0
    %3166 = vmatprep.subr.mxu0 0.0
    %3167 = vmatpush1.xpose.msra.mxu0 0.0
    %3168 = vmatprep.subr.mxu0 0.0
    %3169 = vmatpush1.xpose.msra.mxu0 0.0
    %3170 = vmatprep.subr.mxu0 0.0
    %3171 = vmatpush1.xpose.msra.mxu0 0.0
    %3172 = vmatprep.subr.mxu0 0.0
    %3173 = vmatpush1.xpose.msra.mxu0 0.0
    %3174 = vmatprep.mubr.f32.mxu0 0.0
    %v3175 = vand.u32 %v2951, 4294901760
    %v3176 = vsub.f32 %v2951, %v3175
    %3177 = vmatmul.mubr.f32.gmra.mrb[0].mxu0 %v3176
    %v3178 = vpop.f32.mrb[0].mxu0
    %v3179 = vadd.f32 %v3105, %v3178
    %v3180 = vpop.f32.mrb[0].mxu0
    %3181 = vdwg.mxu0
    %3182 = vmatprep.subr.mxu0 0.0
    %v3183 = vand.u32 %v2954, 4294901760
    %3184 = vmatpush1.xpose.msra.mxu0 %v3183
    %3185 = vmatprep.subr.mxu0 0.0
    %3186 = vmatpush1.xpose.msra.mxu0 0.0
    %3187 = vmatprep.subr.mxu0 0.0
    %3188 = vmatpush1.xpose.msra.mxu0 0.0
    %3189 = vmatprep.subr.mxu0 0.0
    %3190 = vmatpush1.xpose.msra.mxu0 0.0
    %3191 = vmatprep.subr.mxu0 0.0
    %3192 = vmatpush1.xpose.msra.mxu0 0.0
    %3193 = vmatprep.subr.mxu0 0.0
    %3194 = vmatpush1.xpose.msra.mxu0 0.0
    %3195 = vmatprep.subr.mxu0 0.0
    %3196 = vmatpush1.xpose.msra.mxu0 0.0
    %3197 = vmatprep.subr.mxu0 0.0
    %3198 = vmatpush1.xpose.msra.mxu0 0.0
    %3199 = vmatprep.subr.mxu0 0.0
    %3200 = vmatpush1.xpose.msra.mxu0 0.0
    %3201 = vmatprep.subr.mxu0 0.0
    %3202 = vmatpush1.xpose.msra.mxu0 0.0
    %3203 = vmatprep.subr.mxu0 0.0
    %3204 = vmatpush1.xpose.msra.mxu0 0.0
    %3205 = vmatprep.subr.mxu0 0.0
    %3206 = vmatpush1.xpose.msra.mxu0 0.0
    %3207 = vmatprep.subr.mxu0 0.0
    %3208 = vmatpush1.xpose.msra.mxu0 0.0
    %3209 = vmatprep.subr.mxu0 0.0
    %3210 = vmatpush1.xpose.msra.mxu0 0.0
    %3211 = vmatprep.subr.mxu0 0.0
    %3212 = vmatpush1.xpose.msra.mxu0 0.0
    %3213 = vmatprep.subr.mxu0 0.0
    %3214 = vmatpush1.xpose.msra.mxu0 0.0
    %3215 = vmatprep.subr.mxu0 0.0
    %3216 = vmatpush1.xpose.msra.mxu0 0.0
    %3217 = vmatprep.subr.mxu0 0.0
    %3218 = vmatpush1.xpose.msra.mxu0 0.0
    %3219 = vmatprep.subr.mxu0 0.0
    %3220 = vmatpush1.xpose.msra.mxu0 0.0
    %3221 = vmatprep.subr.mxu0 0.0
    %3222 = vmatpush1.xpose.msra.mxu0 0.0
    %3223 = vmatprep.subr.mxu0 0.0
    %3224 = vmatpush1.xpose.msra.mxu0 0.0
    %3225 = vmatprep.subr.mxu0 0.0
    %3226 = vmatpush1.xpose.msra.mxu0 0.0
    %3227 = vmatprep.subr.mxu0 0.0
    %3228 = vmatpush1.xpose.msra.mxu0 0.0
    %3229 = vmatprep.subr.mxu0 0.0
    %3230 = vmatpush1.xpose.msra.mxu0 0.0
    %3231 = vmatprep.subr.mxu0 0.0
    %3232 = vmatpush1.xpose.msra.mxu0 0.0
    %3233 = vmatprep.subr.mxu0 0.0
    %3234 = vmatpush1.xpose.msra.mxu0 0.0
    %3235 = vmatprep.subr.mxu0 0.0
    %3236 = vmatpush1.xpose.msra.mxu0 0.0
    %3237 = vmatprep.subr.mxu0 0.0
    %3238 = vmatpush1.xpose.msra.mxu0 0.0
    %3239 = vmatprep.subr.mxu0 0.0
    %3240 = vmatpush1.xpose.msra.mxu0 0.0
    %3241 = vmatprep.subr.mxu0 0.0
    %3242 = vmatpush1.xpose.msra.mxu0 0.0
    %3243 = vmatprep.subr.mxu0 0.0
    %3244 = vmatpush1.xpose.msra.mxu0 0.0
    %3245 = vmatprep.subr.mxu0 0.0
    %3246 = vmatpush1.xpose.msra.mxu0 0.0
    %3247 = vmatprep.mubr.f32.mxu0 0.0
    %v3248 = vand.u32 %v2951, 4294901760
    %v3249 = vsub.f32 %v2951, %v3248
    %v3250 = vand.u32 %v3249, 4294901760
    %3251 = vmatmul.mubr.f32.gmra.mrb[0].mxu0 %v3250
    %v3252 = vpop.f32.mrb[0].mxu0
    %v3253 = vadd.f32 %v3179, %v3252
    %v3254 = vpop.f32.mrb[0].mxu0
    %3255 = vdwg.mxu0
    %3256 = vmatprep.subr.mxu0 0.0
    %v3257 = vand.u32 %v2954, 4294901760
    %v3258 = vsub.f32 %v2954, %v3257
    %v3259 = vand.u32 %v3258, 4294901760
    %3260 = vmatpush1.xpose.msra.mxu0 %v3259
    %3261 = vmatprep.subr.mxu0 0.0
    %3262 = vmatpush1.xpose.msra.mxu0 0.0
    %3263 = vmatprep.subr.mxu0 0.0
    %3264 = vmatpush1.xpose.msra.mxu0 0.0
    %3265 = vmatprep.subr.mxu0 0.0
    %3266 = vmatpush1.xpose.msra.mxu0 0.0
    %3267 = vmatprep.subr.mxu0 0.0
    %3268 = vmatpush1.xpose.msra.mxu0 0.0
    %3269 = vmatprep.subr.mxu0 0.0
    %3270 = vmatpush1.xpose.msra.mxu0 0.0
    %3271 = vmatprep.subr.mxu0 0.0
    %3272 = vmatpush1.xpose.msra.mxu0 0.0
    %3273 = vmatprep.subr.mxu0 0.0
    %3274 = vmatpush1.xpose.msra.mxu0 0.0
    %3275 = vmatprep.subr.mxu0 0.0
    %3276 = vmatpush1.xpose.msra.mxu0 0.0
    %3277 = vmatprep.subr.mxu0 0.0
    %3278 = vmatpush1.xpose.msra.mxu0 0.0
    %3279 = vmatprep.subr.mxu0 0.0
    %3280 = vmatpush1.xpose.msra.mxu0 0.0
    %3281 = vmatprep.subr.mxu0 0.0
    %3282 = vmatpush1.xpose.msra.mxu0 0.0
    %3283 = vmatprep.subr.mxu0 0.0
    %3284 = vmatpush1.xpose.msra.mxu0 0.0
    %3285 = vmatprep.subr.mxu0 0.0
    %3286 = vmatpush1.xpose.msra.mxu0 0.0
    %3287 = vmatprep.subr.mxu0 0.0
    %3288 = vmatpush1.xpose.msra.mxu0 0.0
    %3289 = vmatprep.subr.mxu0 0.0
    %3290 = vmatpush1.xpose.msra.mxu0 0.0
    %3291 = vmatprep.subr.mxu0 0.0
    %3292 = vmatpush1.xpose.msra.mxu0 0.0
    %3293 = vmatprep.subr.mxu0 0.0
    %3294 = vmatpush1.xpose.msra.mxu0 0.0
    %3295 = vmatprep.subr.mxu0 0.0
    %3296 = vmatpush1.xpose.msra.mxu0 0.0
    %3297 = vmatprep.subr.mxu0 0.0
    %3298 = vmatpush1.xpose.msra.mxu0 0.0
    %3299 = vmatprep.subr.mxu0 0.0
    %3300 = vmatpush1.xpose.msra.mxu0 0.0
    %3301 = vmatprep.subr.mxu0 0.0
    %3302 = vmatpush1.xpose.msra.mxu0 0.0
    %3303 = vmatprep.subr.mxu0 0.0
    %3304 = vmatpush1.xpose.msra.mxu0 0.0
    %3305 = vmatprep.subr.mxu0 0.0
    %3306 = vmatpush1.xpose.msra.mxu0 0.0
    %3307 = vmatprep.subr.mxu0 0.0
    %3308 = vmatpush1.xpose.msra.mxu0 0.0
    %3309 = vmatprep.subr.mxu0 0.0
    %3310 = vmatpush1.xpose.msra.mxu0 0.0
    %3311 = vmatprep.subr.mxu0 0.0
    %3312 = vmatpush1.xpose.msra.mxu0 0.0
    %3313 = vmatprep.subr.mxu0 0.0
    %3314 = vmatpush1.xpose.msra.mxu0 0.0
    %3315 = vmatprep.subr.mxu0 0.0
    %3316 = vmatpush1.xpose.msra.mxu0 0.0
    %3317 = vmatprep.subr.mxu0 0.0
    %3318 = vmatpush1.xpose.msra.mxu0 0.0
    %3319 = vmatprep.subr.mxu0 0.0
    %3320 = vmatpush1.xpose.msra.mxu0 0.0
    %3321 = vmatprep.subr.mxu0 0.0
    %3322 = vmatpush1.xpose.msra.mxu0 0.0
    %3323 = vmatprep.mubr.f32.mxu0 0.0
    %v3324 = vand.u32 %v2951, 4294901760
    %3325 = vmatmul.mubr.f32.gmra.mrb[0].mxu0 %v3324
    %v3326 = vpop.f32.mrb[0].mxu0
    %v3327 = vadd.f32 %v3253, %v3326
    %v3328 = vpop.f32.mrb[0].mxu0
    %3329 = vdwg.mxu0
    %3330 = vmatprep.subr.mxu0 0.0
    %v3331 = vand.u32 %v2954, 4294901760
    %3332 = vmatpush1.xpose.msra.mxu0 %v3331
    %3333 = vmatprep.subr.mxu0 0.0
    %3334 = vmatpush1.xpose.msra.mxu0 0.0
    %3335 = vmatprep.subr.mxu0 0.0
    %3336 = vmatpush1.xpose.msra.mxu0 0.0
    %3337 = vmatprep.subr.mxu0 0.0
    %3338 = vmatpush1.xpose.msra.mxu0 0.0
    %3339 = vmatprep.subr.mxu0 0.0
    %3340 = vmatpush1.xpose.msra.mxu0 0.0
    %3341 = vmatprep.subr.mxu0 0.0
    %3342 = vmatpush1.xpose.msra.mxu0 0.0
    %3343 = vmatprep.subr.mxu0 0.0
    %3344 = vmatpush1.xpose.msra.mxu0 0.0
    %3345 = vmatprep.subr.mxu0 0.0
    %3346 = vmatpush1.xpose.msra.mxu0 0.0
    %3347 = vmatprep.subr.mxu0 0.0
    %3348 = vmatpush1.xpose.msra.mxu0 0.0
    %3349 = vmatprep.subr.mxu0 0.0
    %3350 = vmatpush1.xpose.msra.mxu0 0.0
    %3351 = vmatprep.subr.mxu0 0.0
    %3352 = vmatpush1.xpose.msra.mxu0 0.0
    %3353 = vmatprep.subr.mxu0 0.0
    %3354 = vmatpush1.xpose.msra.mxu0 0.0
    %3355 = vmatprep.subr.mxu0 0.0
    %3356 = vmatpush1.xpose.msra.mxu0 0.0
    %3357 = vmatprep.subr.mxu0 0.0
    %3358 = vmatpush1.xpose.msra.mxu0 0.0
    %3359 = vmatprep.subr.mxu0 0.0
    %3360 = vmatpush1.xpose.msra.mxu0 0.0
    %3361 = vmatprep.subr.mxu0 0.0
    %3362 = vmatpush1.xpose.msra.mxu0 0.0
    %3363 = vmatprep.subr.mxu0 0.0
    %3364 = vmatpush1.xpose.msra.mxu0 0.0
    %3365 = vmatprep.subr.mxu0 0.0
    %3366 = vmatpush1.xpose.msra.mxu0 0.0
    %3367 = vmatprep.subr.mxu0 0.0
    %3368 = vmatpush1.xpose.msra.mxu0 0.0
    %3369 = vmatprep.subr.mxu0 0.0
    %3370 = vmatpush1.xpose.msra.mxu0 0.0
    %3371 = vmatprep.subr.mxu0 0.0
    %3372 = vmatpush1.xpose.msra.mxu0 0.0
    %3373 = vmatprep.subr.mxu0 0.0
    %3374 = vmatpush1.xpose.msra.mxu0 0.0
    %3375 = vmatprep.subr.mxu0 0.0
    %3376 = vmatpush1.xpose.msra.mxu0 0.0
    %3377 = vmatprep.subr.mxu0 0.0
    %3378 = vmatpush1.xpose.msra.mxu0 0.0
    %3379 = vmatprep.subr.mxu0 0.0
    %3380 = vmatpush1.xpose.msra.mxu0 0.0
    %3381 = vmatprep.subr.mxu0 0.0
    %3382 = vmatpush1.xpose.msra.mxu0 0.0
    %3383 = vmatprep.subr.mxu0 0.0
    %3384 = vmatpush1.xpose.msra.mxu0 0.0
    %3385 = vmatprep.subr.mxu0 0.0
    %3386 = vmatpush1.xpose.msra.mxu0 0.0
    %3387 = vmatprep.subr.mxu0 0.0
    %3388 = vmatpush1.xpose.msra.mxu0 0.0
    %3389 = vmatprep.subr.mxu0 0.0
    %3390 = vmatpush1.xpose.msra.mxu0 0.0
    %3391 = vmatprep.subr.mxu0 0.0
    %3392 = vmatpush1.xpose.msra.mxu0 0.0
    %3393 = vmatprep.subr.mxu0 0.0
    %3394 = vmatpush1.xpose.msra.mxu0 0.0
    %3395 = vmatprep.mubr.f32.mxu0 0.0
    %v3396 = vand.u32 %v2951, 4294901760
    %3397 = vmatmul.mubr.f32.gmra.mrb[0].mxu0 %v3396
    %v3398 = vpop.f32.mrb[0].mxu0
    %v3399 = vadd.f32 %v3327, %v3398
    %v3400 = vpop.f32.mrb[0].mxu0
    %3401 = vdwg.mxu0
    %v3403 = vsel %vm2045, %v1388, 0
    %v3406 = vsel %vm2045, %v1680, 0
    %3408 = vmatprep.subr.mxu0 0.0
    %v3409 = vand.u32 %v3406, 4294901760
    %3410 = vmatpush1.xpose.msra.mxu0 %v3409
    %3411 = vmatprep.subr.mxu0 0.0
    %3412 = vmatpush1.xpose.msra.mxu0 0.0
    %3413 = vmatprep.subr.mxu0 0.0
    %3414 = vmatpush1.xpose.msra.mxu0 0.0
    %3415 = vmatprep.subr.mxu0 0.0
    %3416 = vmatpush1.xpose.msra.mxu0 0.0
    %3417 = vmatprep.subr.mxu0 0.0
    %3418 = vmatpush1.xpose.msra.mxu0 0.0
    %3419 = vmatprep.subr.mxu0 0.0
    %3420 = vmatpush1.xpose.msra.mxu0 0.0
    %3421 = vmatprep.subr.mxu0 0.0
    %3422 = vmatpush1.xpose.msra.mxu0 0.0
    %3423 = vmatprep.subr.mxu0 0.0
    %3424 = vmatpush1.xpose.msra.mxu0 0.0
    %3425 = vmatprep.subr.mxu0 0.0
    %3426 = vmatpush1.xpose.msra.mxu0 0.0
    %3427 = vmatprep.subr.mxu0 0.0
    %3428 = vmatpush1.xpose.msra.mxu0 0.0
    %3429 = vmatprep.subr.mxu0 0.0
    %3430 = vmatpush1.xpose.msra.mxu0 0.0
    %3431 = vmatprep.subr.mxu0 0.0
    %3432 = vmatpush1.xpose.msra.mxu0 0.0
    %3433 = vmatprep.subr.mxu0 0.0
    %3434 = vmatpush1.xpose.msra.mxu0 0.0
    %3435 = vmatprep.subr.mxu0 0.0
    %3436 = vmatpush1.xpose.msra.mxu0 0.0
    %3437 = vmatprep.subr.mxu0 0.0
    %3438 = vmatpush1.xpose.msra.mxu0 0.0
    %3439 = vmatprep.subr.mxu0 0.0
    %3440 = vmatpush1.xpose.msra.mxu0 0.0
    %3441 = vmatprep.subr.mxu0 0.0
    %3442 = vmatpush1.xpose.msra.mxu0 0.0
    %3443 = vmatprep.subr.mxu0 0.0
    %3444 = vmatpush1.xpose.msra.mxu0 0.0
    %3445 = vmatprep.subr.mxu0 0.0
    %3446 = vmatpush1.xpose.msra.mxu0 0.0
    %3447 = vmatprep.subr.mxu0 0.0
    %3448 = vmatpush1.xpose.msra.mxu0 0.0
    %3449 = vmatprep.subr.mxu0 0.0
    %3450 = vmatpush1.xpose.msra.mxu0 0.0
    %3451 = vmatprep.subr.mxu0 0.0
    %3452 = vmatpush1.xpose.msra.mxu0 0.0
    %3453 = vmatprep.subr.mxu0 0.0
    %3454 = vmatpush1.xpose.msra.mxu0 0.0
    %3455 = vmatprep.subr.mxu0 0.0
    %3456 = vmatpush1.xpose.msra.mxu0 0.0
    %3457 = vmatprep.subr.mxu0 0.0
    %3458 = vmatpush1.xpose.msra.mxu0 0.0
    %3459 = vmatprep.subr.mxu0 0.0
    %3460 = vmatpush1.xpose.msra.mxu0 0.0
    %3461 = vmatprep.subr.mxu0 0.0
    %3462 = vmatpush1.xpose.msra.mxu0 0.0
    %3463 = vmatprep.subr.mxu0 0.0
    %3464 = vmatpush1.xpose.msra.mxu0 0.0
    %3465 = vmatprep.subr.mxu0 0.0
    %3466 = vmatpush1.xpose.msra.mxu0 0.0
    %3467 = vmatprep.subr.mxu0 0.0
    %3468 = vmatpush1.xpose.msra.mxu0 0.0
    %3469 = vmatprep.subr.mxu0 0.0
    %3470 = vmatpush1.xpose.msra.mxu0 0.0
    %3471 = vmatprep.subr.mxu0 0.0
    %3472 = vmatpush1.xpose.msra.mxu0 0.0
    %3473 = vmatprep.mubr.f32.mxu0 0.0
    %v3474 = vand.u32 %v3403, 4294901760
    %v3475 = vsub.f32 %v3403, %v3474
    %v3476 = vand.u32 %v3475, 4294901760
    %v3477 = vsub.f32 %v3475, %v3476
    %v3478 = vand.u32 %v3477, 4294901760
    %3479 = vmatmul.mubr.f32.gmra.mrb[0].mxu0 %v3478
    %v3480 = vpop.f32.mrb[0].mxu0
    %v3481 = vadd.f32 0.0, %v3480
    %v3482 = vpop.f32.mrb[0].mxu0
    %3483 = vdwg.mxu0
    %3484 = vmatprep.subr.mxu0 0.0
    %v3485 = vand.u32 %v3406, 4294901760
    %v3486 = vsub.f32 %v3406, %v3485
    %v3487 = vand.u32 %v3486, 4294901760
    %v3488 = vsub.f32 %v3486, %v3487
    %v3489 = vand.u32 %v3488, 4294901760
    %3490 = vmatpush1.xpose.msra.mxu0 %v3489
    %3491 = vmatprep.subr.mxu0 0.0
    %3492 = vmatpush1.xpose.msra.mxu0 0.0
    %3493 = vmatprep.subr.mxu0 0.0
    %3494 = vmatpush1.xpose.msra.mxu0 0.0
    %3495 = vmatprep.subr.mxu0 0.0
    %3496 = vmatpush1.xpose.msra.mxu0 0.0
    %3497 = vmatprep.subr.mxu0 0.0
    %3498 = vmatpush1.xpose.msra.mxu0 0.0
    %3499 = vmatprep.subr.mxu0 0.0
    %3500 = vmatpush1.xpose.msra.mxu0 0.0
    %3501 = vmatprep.subr.mxu0 0.0
    %3502 = vmatpush1.xpose.msra.mxu0 0.0
    %3503 = vmatprep.subr.mxu0 0.0
    %3504 = vmatpush1.xpose.msra.mxu0 0.0
    %3505 = vmatprep.subr.mxu0 0.0
    %3506 = vmatpush1.xpose.msra.mxu0 0.0
    %3507 = vmatprep.subr.mxu0 0.0
    %3508 = vmatpush1.xpose.msra.mxu0 0.0
    %3509 = vmatprep.subr.mxu0 0.0
    %3510 = vmatpush1.xpose.msra.mxu0 0.0
    %3511 = vmatprep.subr.mxu0 0.0
    %3512 = vmatpush1.xpose.msra.mxu0 0.0
    %3513 = vmatprep.subr.mxu0 0.0
    %3514 = vmatpush1.xpose.msra.mxu0 0.0
    %3515 = vmatprep.subr.mxu0 0.0
    %3516 = vmatpush1.xpose.msra.mxu0 0.0
    %3517 = vmatprep.subr.mxu0 0.0
    %3518 = vmatpush1.xpose.msra.mxu0 0.0
    %3519 = vmatprep.subr.mxu0 0.0
    %3520 = vmatpush1.xpose.msra.mxu0 0.0
    %3521 = vmatprep.subr.mxu0 0.0
    %3522 = vmatpush1.xpose.msra.mxu0 0.0
    %3523 = vmatprep.subr.mxu0 0.0
    %3524 = vmatpush1.xpose.msra.mxu0 0.0
    %3525 = vmatprep.subr.mxu0 0.0
    %3526 = vmatpush1.xpose.msra.mxu0 0.0
    %3527 = vmatprep.subr.mxu0 0.0
    %3528 = vmatpush1.xpose.msra.mxu0 0.0
    %3529 = vmatprep.subr.mxu0 0.0
    %3530 = vmatpush1.xpose.msra.mxu0 0.0
    %3531 = vmatprep.subr.mxu0 0.0
    %3532 = vmatpush1.xpose.msra.mxu0 0.0
    %3533 = vmatprep.subr.mxu0 0.0
    %3534 = vmatpush1.xpose.msra.mxu0 0.0
    %3535 = vmatprep.subr.mxu0 0.0
    %3536 = vmatpush1.xpose.msra.mxu0 0.0
    %3537 = vmatprep.subr.mxu0 0.0
    %3538 = vmatpush1.xpose.msra.mxu0 0.0
    %3539 = vmatprep.subr.mxu0 0.0
    %3540 = vmatpush1.xpose.msra.mxu0 0.0
    %3541 = vmatprep.subr.mxu0 0.0
    %3542 = vmatpush1.xpose.msra.mxu0 0.0
    %3543 = vmatprep.subr.mxu0 0.0
    %3544 = vmatpush1.xpose.msra.mxu0 0.0
    %3545 = vmatprep.subr.mxu0 0.0
    %3546 = vmatpush1.xpose.msra.mxu0 0.0
    %3547 = vmatprep.subr.mxu0 0.0
    %3548 = vmatpush1.xpose.msra.mxu0 0.0
    %3549 = vmatprep.subr.mxu0 0.0
    %3550 = vmatpush1.xpose.msra.mxu0 0.0
    %3551 = vmatprep.subr.mxu0 0.0
    %3552 = vmatpush1.xpose.msra.mxu0 0.0
    %3553 = vmatprep.mubr.f32.mxu0 0.0
    %v3554 = vand.u32 %v3403, 4294901760
    %3555 = vmatmul.mubr.f32.gmra.mrb[0].mxu0 %v3554
    %v3556 = vpop.f32.mrb[0].mxu0
    %v3557 = vadd.f32 %v3481, %v3556
    %v3558 = vpop.f32.mrb[0].mxu0
    %3559 = vdwg.mxu0
    %3560 = vmatprep.subr.mxu0 0.0
    %v3561 = vand.u32 %v3406, 4294901760
    %v3562 = vsub.f32 %v3406, %v3561
    %3563 = vmatpush1.xpose.msra.mxu0 %v3562
    %3564 = vmatprep.subr.mxu0 0.0
    %3565 = vmatpush1.xpose.msra.mxu0 0.0
    %3566 = vmatprep.subr.mxu0 0.0
    %3567 = vmatpush1.xpose.msra.mxu0 0.0
    %3568 = vmatprep.subr.mxu0 0.0
    %3569 = vmatpush1.xpose.msra.mxu0 0.0
    %3570 = vmatprep.subr.mxu0 0.0
    %3571 = vmatpush1.xpose.msra.mxu0 0.0
    %3572 = vmatprep.subr.mxu0 0.0
    %3573 = vmatpush1.xpose.msra.mxu0 0.0
    %3574 = vmatprep.subr.mxu0 0.0
    %3575 = vmatpush1.xpose.msra.mxu0 0.0
    %3576 = vmatprep.subr.mxu0 0.0
    %3577 = vmatpush1.xpose.msra.mxu0 0.0
    %3578 = vmatprep.subr.mxu0 0.0
    %3579 = vmatpush1.xpose.msra.mxu0 0.0
    %3580 = vmatprep.subr.mxu0 0.0
    %3581 = vmatpush1.xpose.msra.mxu0 0.0
    %3582 = vmatprep.subr.mxu0 0.0
    %3583 = vmatpush1.xpose.msra.mxu0 0.0
    %3584 = vmatprep.subr.mxu0 0.0
    %3585 = vmatpush1.xpose.msra.mxu0 0.0
    %3586 = vmatprep.subr.mxu0 0.0
    %3587 = vmatpush1.xpose.msra.mxu0 0.0
    %3588 = vmatprep.subr.mxu0 0.0
    %3589 = vmatpush1.xpose.msra.mxu0 0.0
    %3590 = vmatprep.subr.mxu0 0.0
    %3591 = vmatpush1.xpose.msra.mxu0 0.0
    %3592 = vmatprep.subr.mxu0 0.0
    %3593 = vmatpush1.xpose.msra.mxu0 0.0
    %3594 = vmatprep.subr.mxu0 0.0
    %3595 = vmatpush1.xpose.msra.mxu0 0.0
    %3596 = vmatprep.subr.mxu0 0.0
    %3597 = vmatpush1.xpose.msra.mxu0 0.0
    %3598 = vmatprep.subr.mxu0 0.0
    %3599 = vmatpush1.xpose.msra.mxu0 0.0
    %3600 = vmatprep.subr.mxu0 0.0
    %3601 = vmatpush1.xpose.msra.mxu0 0.0
    %3602 = vmatprep.subr.mxu0 0.0
    %3603 = vmatpush1.xpose.msra.mxu0 0.0
    %3604 = vmatprep.subr.mxu0 0.0
    %3605 = vmatpush1.xpose.msra.mxu0 0.0
    %3606 = vmatprep.subr.mxu0 0.0
    %3607 = vmatpush1.xpose.msra.mxu0 0.0
    %3608 = vmatprep.subr.mxu0 0.0
    %3609 = vmatpush1.xpose.msra.mxu0 0.0
    %3610 = vmatprep.subr.mxu0 0.0
    %3611 = vmatpush1.xpose.msra.mxu0 0.0
    %3612 = vmatprep.subr.mxu0 0.0
    %3613 = vmatpush1.xpose.msra.mxu0 0.0
    %3614 = vmatprep.subr.mxu0 0.0
    %3615 = vmatpush1.xpose.msra.mxu0 0.0
    %3616 = vmatprep.subr.mxu0 0.0
    %3617 = vmatpush1.xpose.msra.mxu0 0.0
    %3618 = vmatprep.subr.mxu0 0.0
    %3619 = vmatpush1.xpose.msra.mxu0 0.0
    %3620 = vmatprep.subr.mxu0 0.0
    %3621 = vmatpush1.xpose.msra.mxu0 0.0
    %3622 = vmatprep.subr.mxu0 0.0
    %3623 = vmatpush1.xpose.msra.mxu0 0.0
    %3624 = vmatprep.subr.mxu0 0.0
    %3625 = vmatpush1.xpose.msra.mxu0 0.0
    %3626 = vmatprep.mubr.f32.mxu0 0.0
    %v3627 = vand.u32 %v3403, 4294901760
    %v3628 = vsub.f32 %v3403, %v3627
    %3629 = vmatmul.mubr.f32.gmra.mrb[0].mxu0 %v3628
    %v3630 = vpop.f32.mrb[0].mxu0
    %v3631 = vadd.f32 %v3557, %v3630
    %v3632 = vpop.f32.mrb[0].mxu0
    %3633 = vdwg.mxu0
    %3634 = vmatprep.subr.mxu0 0.0
    %v3635 = vand.u32 %v3406, 4294901760
    %3636 = vmatpush1.xpose.msra.mxu0 %v3635
    %3637 = vmatprep.subr.mxu0 0.0
    %3638 = vmatpush1.xpose.msra.mxu0 0.0
    %3639 = vmatprep.subr.mxu0 0.0
    %3640 = vmatpush1.xpose.msra.mxu0 0.0
    %3641 = vmatprep.subr.mxu0 0.0
    %3642 = vmatpush1.xpose.msra.mxu0 0.0
    %3643 = vmatprep.subr.mxu0 0.0
    %3644 = vmatpush1.xpose.msra.mxu0 0.0
    %3645 = vmatprep.subr.mxu0 0.0
    %3646 = vmatpush1.xpose.msra.mxu0 0.0
    %3647 = vmatprep.subr.mxu0 0.0
    %3648 = vmatpush1.xpose.msra.mxu0 0.0
    %3649 = vmatprep.subr.mxu0 0.0
    %3650 = vmatpush1.xpose.msra.mxu0 0.0
    %3651 = vmatprep.subr.mxu0 0.0
    %3652 = vmatpush1.xpose.msra.mxu0 0.0
    %3653 = vmatprep.subr.mxu0 0.0
    %3654 = vmatpush1.xpose.msra.mxu0 0.0
    %3655 = vmatprep.subr.mxu0 0.0
    %3656 = vmatpush1.xpose.msra.mxu0 0.0
    %3657 = vmatprep.subr.mxu0 0.0
    %3658 = vmatpush1.xpose.msra.mxu0 0.0
    %3659 = vmatprep.subr.mxu0 0.0
    %3660 = vmatpush1.xpose.msra.mxu0 0.0
    %3661 = vmatprep.subr.mxu0 0.0
    %3662 = vmatpush1.xpose.msra.mxu0 0.0
    %3663 = vmatprep.subr.mxu0 0.0
    %3664 = vmatpush1.xpose.msra.mxu0 0.0
    %3665 = vmatprep.subr.mxu0 0.0
    %3666 = vmatpush1.xpose.msra.mxu0 0.0
    %3667 = vmatprep.subr.mxu0 0.0
    %3668 = vmatpush1.xpose.msra.mxu0 0.0
    %3669 = vmatprep.subr.mxu0 0.0
    %3670 = vmatpush1.xpose.msra.mxu0 0.0
    %3671 = vmatprep.subr.mxu0 0.0
    %3672 = vmatpush1.xpose.msra.mxu0 0.0
    %3673 = vmatprep.subr.mxu0 0.0
    %3674 = vmatpush1.xpose.msra.mxu0 0.0
    %3675 = vmatprep.subr.mxu0 0.0
    %3676 = vmatpush1.xpose.msra.mxu0 0.0
    %3677 = vmatprep.subr.mxu0 0.0
    %3678 = vmatpush1.xpose.msra.mxu0 0.0
    %3679 = vmatprep.subr.mxu0 0.0
    %3680 = vmatpush1.xpose.msra.mxu0 0.0
    %3681 = vmatprep.subr.mxu0 0.0
    %3682 = vmatpush1.xpose.msra.mxu0 0.0
    %3683 = vmatprep.subr.mxu0 0.0
    %3684 = vmatpush1.xpose.msra.mxu0 0.0
    %3685 = vmatprep.subr.mxu0 0.0
    %3686 = vmatpush1.xpose.msra.mxu0 0.0
    %3687 = vmatprep.subr.mxu0 0.0
    %3688 = vmatpush1.xpose.msra.mxu0 0.0
    %3689 = vmatprep.subr.mxu0 0.0
    %3690 = vmatpush1.xpose.msra.mxu0 0.0
    %3691 = vmatprep.subr.mxu0 0.0
    %3692 = vmatpush1.xpose.msra.mxu0 0.0
    %3693 = vmatprep.subr.mxu0 0.0
    %3694 = vmatpush1.xpose.msra.mxu0 0.0
    %3695 = vmatprep.subr.mxu0 0.0
    %3696 = vmatpush1.xpose.msra.mxu0 0.0
    %3697 = vmatprep.subr.mxu0 0.0
    %3698 = vmatpush1.xpose.msra.mxu0 0.0
    %3699 = vmatprep.mubr.f32.mxu0 0.0
    %v3700 = vand.u32 %v3403, 4294901760
    %v3701 = vsub.f32 %v3403, %v3700
    %v3702 = vand.u32 %v3701, 4294901760
    %3703 = vmatmul.mubr.f32.gmra.mrb[0].mxu0 %v3702
    %v3704 = vpop.f32.mrb[0].mxu0
    %v3705 = vadd.f32 %v3631, %v3704
    %v3706 = vpop.f32.mrb[0].mxu0
    %3707 = vdwg.mxu0
    %3708 = vmatprep.subr.mxu0 0.0
    %v3709 = vand.u32 %v3406, 4294901760
    %v3710 = vsub.f32 %v3406, %v3709
    %v3711 = vand.u32 %v3710, 4294901760
    %3712 = vmatpush1.xpose.msra.mxu0 %v3711
    %3713 = vmatprep.subr.mxu0 0.0
    %3714 = vmatpush1.xpose.msra.mxu0 0.0
    %3715 = vmatprep.subr.mxu0 0.0
    %3716 = vmatpush1.xpose.msra.mxu0 0.0
    %3717 = vmatprep.subr.mxu0 0.0
    %3718 = vmatpush1.xpose.msra.mxu0 0.0
    %3719 = vmatprep.subr.mxu0 0.0
    %3720 = vmatpush1.xpose.msra.mxu0 0.0
    %3721 = vmatprep.subr.mxu0 0.0
    %3722 = vmatpush1.xpose.msra.mxu0 0.0
    %3723 = vmatprep.subr.mxu0 0.0
    %3724 = vmatpush1.xpose.msra.mxu0 0.0
    %3725 = vmatprep.subr.mxu0 0.0
    %3726 = vmatpush1.xpose.msra.mxu0 0.0
    %3727 = vmatprep.subr.mxu0 0.0
    %3728 = vmatpush1.xpose.msra.mxu0 0.0
    %3729 = vmatprep.subr.mxu0 0.0
    %3730 = vmatpush1.xpose.msra.mxu0 0.0
    %3731 = vmatprep.subr.mxu0 0.0
    %3732 = vmatpush1.xpose.msra.mxu0 0.0
    %3733 = vmatprep.subr.mxu0 0.0
    %3734 = vmatpush1.xpose.msra.mxu0 0.0
    %3735 = vmatprep.subr.mxu0 0.0
    %3736 = vmatpush1.xpose.msra.mxu0 0.0
    %3737 = vmatprep.subr.mxu0 0.0
    %3738 = vmatpush1.xpose.msra.mxu0 0.0
    %3739 = vmatprep.subr.mxu0 0.0
    %3740 = vmatpush1.xpose.msra.mxu0 0.0
    %3741 = vmatprep.subr.mxu0 0.0
    %3742 = vmatpush1.xpose.msra.mxu0 0.0
    %3743 = vmatprep.subr.mxu0 0.0
    %3744 = vmatpush1.xpose.msra.mxu0 0.0
    %3745 = vmatprep.subr.mxu0 0.0
    %3746 = vmatpush1.xpose.msra.mxu0 0.0
    %3747 = vmatprep.subr.mxu0 0.0
    %3748 = vmatpush1.xpose.msra.mxu0 0.0
    %3749 = vmatprep.subr.mxu0 0.0
    %3750 = vmatpush1.xpose.msra.mxu0 0.0
    %3751 = vmatprep.subr.mxu0 0.0
    %3752 = vmatpush1.xpose.msra.mxu0 0.0
    %3753 = vmatprep.subr.mxu0 0.0
    %3754 = vmatpush1.xpose.msra.mxu0 0.0
    %3755 = vmatprep.subr.mxu0 0.0
    %3756 = vmatpush1.xpose.msra.mxu0 0.0
    %3757 = vmatprep.subr.mxu0 0.0
    %3758 = vmatpush1.xpose.msra.mxu0 0.0
    %3759 = vmatprep.subr.mxu0 0.0
    %3760 = vmatpush1.xpose.msra.mxu0 0.0
    %3761 = vmatprep.subr.mxu0 0.0
    %3762 = vmatpush1.xpose.msra.mxu0 0.0
    %3763 = vmatprep.subr.mxu0 0.0
    %3764 = vmatpush1.xpose.msra.mxu0 0.0
    %3765 = vmatprep.subr.mxu0 0.0
    %3766 = vmatpush1.xpose.msra.mxu0 0.0
    %3767 = vmatprep.subr.mxu0 0.0
    %3768 = vmatpush1.xpose.msra.mxu0 0.0
    %3769 = vmatprep.subr.mxu0 0.0
    %3770 = vmatpush1.xpose.msra.mxu0 0.0
    %3771 = vmatprep.subr.mxu0 0.0
    %3772 = vmatpush1.xpose.msra.mxu0 0.0
    %3773 = vmatprep.subr.mxu0 0.0
    %3774 = vmatpush1.xpose.msra.mxu0 0.0
    %3775 = vmatprep.mubr.f32.mxu0 0.0
    %v3776 = vand.u32 %v3403, 4294901760
    %3777 = vmatmul.mubr.f32.gmra.mrb[0].mxu0 %v3776
    %v3778 = vpop.f32.mrb[0].mxu0
    %v3779 = vadd.f32 %v3705, %v3778
    %v3780 = vpop.f32.mrb[0].mxu0
    %3781 = vdwg.mxu0
    %3782 = vmatprep.subr.mxu0 0.0
    %v3783 = vand.u32 %v3406, 4294901760
    %3784 = vmatpush1.xpose.msra.mxu0 %v3783
    %3785 = vmatprep.subr.mxu0 0.0
    %3786 = vmatpush1.xpose.msra.mxu0 0.0
    %3787 = vmatprep.subr.mxu0 0.0
    %3788 = vmatpush1.xpose.msra.mxu0 0.0
    %3789 = vmatprep.subr.mxu0 0.0
    %3790 = vmatpush1.xpose.msra.mxu0 0.0
    %3791 = vmatprep.subr.mxu0 0.0
    %3792 = vmatpush1.xpose.msra.mxu0 0.0
    %3793 = vmatprep.subr.mxu0 0.0
    %3794 = vmatpush1.xpose.msra.mxu0 0.0
    %3795 = vmatprep.subr.mxu0 0.0
    %3796 = vmatpush1.xpose.msra.mxu0 0.0
    %3797 = vmatprep.subr.mxu0 0.0
    %3798 = vmatpush1.xpose.msra.mxu0 0.0
    %3799 = vmatprep.subr.mxu0 0.0
    %3800 = vmatpush1.xpose.msra.mxu0 0.0
    %3801 = vmatprep.subr.mxu0 0.0
    %3802 = vmatpush1.xpose.msra.mxu0 0.0
    %3803 = vmatprep.subr.mxu0 0.0
    %3804 = vmatpush1.xpose.msra.mxu0 0.0
    %3805 = vmatprep.subr.mxu0 0.0
    %3806 = vmatpush1.xpose.msra.mxu0 0.0
    %3807 = vmatprep.subr.mxu0 0.0
    %3808 = vmatpush1.xpose.msra.mxu0 0.0
    %3809 = vmatprep.subr.mxu0 0.0
    %3810 = vmatpush1.xpose.msra.mxu0 0.0
    %3811 = vmatprep.subr.mxu0 0.0
    %3812 = vmatpush1.xpose.msra.mxu0 0.0
    %3813 = vmatprep.subr.mxu0 0.0
    %3814 = vmatpush1.xpose.msra.mxu0 0.0
    %3815 = vmatprep.subr.mxu0 0.0
    %3816 = vmatpush1.xpose.msra.mxu0 0.0
    %3817 = vmatprep.subr.mxu0 0.0
    %3818 = vmatpush1.xpose.msra.mxu0 0.0
    %3819 = vmatprep.subr.mxu0 0.0
    %3820 = vmatpush1.xpose.msra.mxu0 0.0
    %3821 = vmatprep.subr.mxu0 0.0
    %3822 = vmatpush1.xpose.msra.mxu0 0.0
    %3823 = vmatprep.subr.mxu0 0.0
    %3824 = vmatpush1.xpose.msra.mxu0 0.0
    %3825 = vmatprep.subr.mxu0 0.0
    %3826 = vmatpush1.xpose.msra.mxu0 0.0
    %3827 = vmatprep.subr.mxu0 0.0
    %3828 = vmatpush1.xpose.msra.mxu0 0.0
    %3829 = vmatprep.subr.mxu0 0.0
    %3830 = vmatpush1.xpose.msra.mxu0 0.0
    %3831 = vmatprep.subr.mxu0 0.0
    %3832 = vmatpush1.xpose.msra.mxu0 0.0
    %3833 = vmatprep.subr.mxu0 0.0
    %3834 = vmatpush1.xpose.msra.mxu0 0.0
    %3835 = vmatprep.subr.mxu0 0.0
    %3836 = vmatpush1.xpose.msra.mxu0 0.0
    %3837 = vmatprep.subr.mxu0 0.0
    %3838 = vmatpush1.xpose.msra.mxu0 0.0
    %3839 = vmatprep.subr.mxu0 0.0
    %3840 = vmatpush1.xpose.msra.mxu0 0.0
    %3841 = vmatprep.subr.mxu0 0.0
    %3842 = vmatpush1.xpose.msra.mxu0 0.0
    %3843 = vmatprep.subr.mxu0 0.0
    %3844 = vmatpush1.xpose.msra.mxu0 0.0
    %3845 = vmatprep.subr.mxu0 0.0
    %3846 = vmatpush1.xpose.msra.mxu0 0.0
    %3847 = vmatprep.mubr.f32.mxu0 0.0
    %v3848 = vand.u32 %v3403, 4294901760
    %3849 = vmatmul.mubr.f32.gmra.mrb[0].mxu0 %v3848
    %v3850 = vpop.f32.mrb[0].mxu0
    %v3851 = vadd.f32 %v3779, %v3850
    %v3852 = vpop.f32.mrb[0].mxu0
    %3853 = vdwg.mxu0
    %v3855 = vsel %vm2045, %v1453, 0
    %v3858 = vsel %vm2045, %v1745, 0
    %3860 = vmatprep.subr.mxu0 0.0
    %v3861 = vand.u32 %v3858, 4294901760
    %3862 = vmatpush1.xpose.msra.mxu0 %v3861
    %3863 = vmatprep.subr.mxu0 0.0
    %3864 = vmatpush1.xpose.msra.mxu0 0.0
    %3865 = vmatprep.subr.mxu0 0.0
    %3866 = vmatpush1.xpose.msra.mxu0 0.0
    %3867 = vmatprep.subr.mxu0 0.0
    %3868 = vmatpush1.xpose.msra.mxu0 0.0
    %3869 = vmatprep.subr.mxu0 0.0
    %3870 = vmatpush1.xpose.msra.mxu0 0.0
    %3871 = vmatprep.subr.mxu0 0.0
    %3872 = vmatpush1.xpose.msra.mxu0 0.0
    %3873 = vmatprep.subr.mxu0 0.0
    %3874 = vmatpush1.xpose.msra.mxu0 0.0
    %3875 = vmatprep.subr.mxu0 0.0
    %3876 = vmatpush1.xpose.msra.mxu0 0.0
    %3877 = vmatprep.subr.mxu0 0.0
    %3878 = vmatpush1.xpose.msra.mxu0 0.0
    %3879 = vmatprep.subr.mxu0 0.0
    %3880 = vmatpush1.xpose.msra.mxu0 0.0
    %3881 = vmatprep.subr.mxu0 0.0
    %3882 = vmatpush1.xpose.msra.mxu0 0.0
    %3883 = vmatprep.subr.mxu0 0.0
    %3884 = vmatpush1.xpose.msra.mxu0 0.0
    %3885 = vmatprep.subr.mxu0 0.0
    %3886 = vmatpush1.xpose.msra.mxu0 0.0
    %3887 = vmatprep.subr.mxu0 0.0
    %3888 = vmatpush1.xpose.msra.mxu0 0.0
    %3889 = vmatprep.subr.mxu0 0.0
    %3890 = vmatpush1.xpose.msra.mxu0 0.0
    %3891 = vmatprep.subr.mxu0 0.0
    %3892 = vmatpush1.xpose.msra.mxu0 0.0
    %3893 = vmatprep.subr.mxu0 0.0
    %3894 = vmatpush1.xpose.msra.mxu0 0.0
    %3895 = vmatprep.subr.mxu0 0.0
    %3896 = vmatpush1.xpose.msra.mxu0 0.0
    %3897 = vmatprep.subr.mxu0 0.0
    %3898 = vmatpush1.xpose.msra.mxu0 0.0
    %3899 = vmatprep.subr.mxu0 0.0
    %3900 = vmatpush1.xpose.msra.mxu0 0.0
    %3901 = vmatprep.subr.mxu0 0.0
    %3902 = vmatpush1.xpose.msra.mxu0 0.0
    %3903 = vmatprep.subr.mxu0 0.0
    %3904 = vmatpush1.xpose.msra.mxu0 0.0
    %3905 = vmatprep.subr.mxu0 0.0
    %3906 = vmatpush1.xpose.msra.mxu0 0.0
    %3907 = vmatprep.subr.mxu0 0.0
    %3908 = vmatpush1.xpose.msra.mxu0 0.0
    %3909 = vmatprep.subr.mxu0 0.0
    %3910 = vmatpush1.xpose.msra.mxu0 0.0
    %3911 = vmatprep.subr.mxu0 0.0
    %3912 = vmatpush1.xpose.msra.mxu0 0.0
    %3913 = vmatprep.subr.mxu0 0.0
    %3914 = vmatpush1.xpose.msra.mxu0 0.0
    %3915 = vmatprep.subr.mxu0 0.0
    %3916 = vmatpush1.xpose.msra.mxu0 0.0
    %3917 = vmatprep.subr.mxu0 0.0
    %3918 = vmatpush1.xpose.msra.mxu0 0.0
    %3919 = vmatprep.subr.mxu0 0.0
    %3920 = vmatpush1.xpose.msra.mxu0 0.0
    %3921 = vmatprep.subr.mxu0 0.0
    %3922 = vmatpush1.xpose.msra.mxu0 0.0
    %3923 = vmatprep.subr.mxu0 0.0
    %3924 = vmatpush1.xpose.msra.mxu0 0.0
    %3925 = vmatprep.mubr.f32.mxu0 0.0
    %v3926 = vand.u32 %v3855, 4294901760
    %v3927 = vsub.f32 %v3855, %v3926
    %v3928 = vand.u32 %v3927, 4294901760
    %v3929 = vsub.f32 %v3927, %v3928
    %v3930 = vand.u32 %v3929, 4294901760
    %3931 = vmatmul.mubr.f32.gmra.mrb[0].mxu0 %v3930
    %v3932 = vpop.f32.mrb[0].mxu0
    %v3933 = vadd.f32 0.0, %v3932
    %v3934 = vpop.f32.mrb[0].mxu0
    %3935 = vdwg.mxu0
    %3936 = vmatprep.subr.mxu0 0.0
    %v3937 = vand.u32 %v3858, 4294901760
    %v3938 = vsub.f32 %v3858, %v3937
    %v3939 = vand.u32 %v3938, 4294901760
    %v3940 = vsub.f32 %v3938, %v3939
    %v3941 = vand.u32 %v3940, 4294901760
    %3942 = vmatpush1.xpose.msra.mxu0 %v3941
    %3943 = vmatprep.subr.mxu0 0.0
    %3944 = vmatpush1.xpose.msra.mxu0 0.0
    %3945 = vmatprep.subr.mxu0 0.0
    %3946 = vmatpush1.xpose.msra.mxu0 0.0
    %3947 = vmatprep.subr.mxu0 0.0
    %3948 = vmatpush1.xpose.msra.mxu0 0.0
    %3949 = vmatprep.subr.mxu0 0.0
    %3950 = vmatpush1.xpose.msra.mxu0 0.0
    %3951 = vmatprep.subr.mxu0 0.0
    %3952 = vmatpush1.xpose.msra.mxu0 0.0
    %3953 = vmatprep.subr.mxu0 0.0
    %3954 = vmatpush1.xpose.msra.mxu0 0.0
    %3955 = vmatprep.subr.mxu0 0.0
    %3956 = vmatpush1.xpose.msra.mxu0 0.0
    %3957 = vmatprep.subr.mxu0 0.0
    %3958 = vmatpush1.xpose.msra.mxu0 0.0
    %3959 = vmatprep.subr.mxu0 0.0
    %3960 = vmatpush1.xpose.msra.mxu0 0.0
    %3961 = vmatprep.subr.mxu0 0.0
    %3962 = vmatpush1.xpose.msra.mxu0 0.0
    %3963 = vmatprep.subr.mxu0 0.0
    %3964 = vmatpush1.xpose.msra.mxu0 0.0
    %3965 = vmatprep.subr.mxu0 0.0
    %3966 = vmatpush1.xpose.msra.mxu0 0.0
    %3967 = vmatprep.subr.mxu0 0.0
    %3968 = vmatpush1.xpose.msra.mxu0 0.0
    %3969 = vmatprep.subr.mxu0 0.0
    %3970 = vmatpush1.xpose.msra.mxu0 0.0
    %3971 = vmatprep.subr.mxu0 0.0
    %3972 = vmatpush1.xpose.msra.mxu0 0.0
    %3973 = vmatprep.subr.mxu0 0.0
    %3974 = vmatpush1.xpose.msra.mxu0 0.0
    %3975 = vmatprep.subr.mxu0 0.0
    %3976 = vmatpush1.xpose.msra.mxu0 0.0
    %3977 = vmatprep.subr.mxu0 0.0
    %3978 = vmatpush1.xpose.msra.mxu0 0.0
    %3979 = vmatprep.subr.mxu0 0.0
    %3980 = vmatpush1.xpose.msra.mxu0 0.0
    %3981 = vmatprep.subr.mxu0 0.0
    %3982 = vmatpush1.xpose.msra.mxu0 0.0
    %3983 = vmatprep.subr.mxu0 0.0
    %3984 = vmatpush1.xpose.msra.mxu0 0.0
    %3985 = vmatprep.subr.mxu0 0.0
    %3986 = vmatpush1.xpose.msra.mxu0 0.0
    %3987 = vmatprep.subr.mxu0 0.0
    %3988 = vmatpush1.xpose.msra.mxu0 0.0
    %3989 = vmatprep.subr.mxu0 0.0
    %3990 = vmatpush1.xpose.msra.mxu0 0.0
    %3991 = vmatprep.subr.mxu0 0.0
    %3992 = vmatpush1.xpose.msra.mxu0 0.0
    %3993 = vmatprep.subr.mxu0 0.0
    %3994 = vmatpush1.xpose.msra.mxu0 0.0
    %3995 = vmatprep.subr.mxu0 0.0
    %3996 = vmatpush1.xpose.msra.mxu0 0.0
    %3997 = vmatprep.subr.mxu0 0.0
    %3998 = vmatpush1.xpose.msra.mxu0 0.0
    %3999 = vmatprep.subr.mxu0 0.0
    %4000 = vmatpush1.xpose.msra.mxu0 0.0
    %4001 = vmatprep.subr.mxu0 0.0
    %4002 = vmatpush1.xpose.msra.mxu0 0.0
    %4003 = vmatprep.subr.mxu0 0.0
    %4004 = vmatpush1.xpose.msra.mxu0 0.0
    %4005 = vmatprep.mubr.f32.mxu0 0.0
    %v4006 = vand.u32 %v3855, 4294901760
    %4007 = vmatmul.mubr.f32.gmra.mrb[0].mxu0 %v4006
    %v4008 = vpop.f32.mrb[0].mxu0
    %v4009 = vadd.f32 %v3933, %v4008
    %v4010 = vpop.f32.mrb[0].mxu0
    %4011 = vdwg.mxu0
    %4012 = vmatprep.subr.mxu0 0.0
    %v4013 = vand.u32 %v3858, 4294901760
    %v4014 = vsub.f32 %v3858, %v4013
    %4015 = vmatpush1.xpose.msra.mxu0 %v4014
    %4016 = vmatprep.subr.mxu0 0.0
    %4017 = vmatpush1.xpose.msra.mxu0 0.0
    %4018 = vmatprep.subr.mxu0 0.0
    %4019 = vmatpush1.xpose.msra.mxu0 0.0
    %4020 = vmatprep.subr.mxu0 0.0
    %4021 = vmatpush1.xpose.msra.mxu0 0.0
    %4022 = vmatprep.subr.mxu0 0.0
    %4023 = vmatpush1.xpose.msra.mxu0 0.0
    %4024 = vmatprep.subr.mxu0 0.0
    %4025 = vmatpush1.xpose.msra.mxu0 0.0
    %4026 = vmatprep.subr.mxu0 0.0
    %4027 = vmatpush1.xpose.msra.mxu0 0.0
    %4028 = vmatprep.subr.mxu0 0.0
    %4029 = vmatpush1.xpose.msra.mxu0 0.0
    %4030 = vmatprep.subr.mxu0 0.0
    %4031 = vmatpush1.xpose.msra.mxu0 0.0
    %4032 = vmatprep.subr.mxu0 0.0
    %4033 = vmatpush1.xpose.msra.mxu0 0.0
    %4034 = vmatprep.subr.mxu0 0.0
    %4035 = vmatpush1.xpose.msra.mxu0 0.0
    %4036 = vmatprep.subr.mxu0 0.0
    %4037 = vmatpush1.xpose.msra.mxu0 0.0
    %4038 = vmatprep.subr.mxu0 0.0
    %4039 = vmatpush1.xpose.msra.mxu0 0.0
    %4040 = vmatprep.subr.mxu0 0.0
    %4041 = vmatpush1.xpose.msra.mxu0 0.0
    %4042 = vmatprep.subr.mxu0 0.0
    %4043 = vmatpush1.xpose.msra.mxu0 0.0
    %4044 = vmatprep.subr.mxu0 0.0
    %4045 = vmatpush1.xpose.msra.mxu0 0.0
    %4046 = vmatprep.subr.mxu0 0.0
    %4047 = vmatpush1.xpose.msra.mxu0 0.0
    %4048 = vmatprep.subr.mxu0 0.0
    %4049 = vmatpush1.xpose.msra.mxu0 0.0
    %4050 = vmatprep.subr.mxu0 0.0
    %4051 = vmatpush1.xpose.msra.mxu0 0.0
    %4052 = vmatprep.subr.mxu0 0.0
    %4053 = vmatpush1.xpose.msra.mxu0 0.0
    %4054 = vmatprep.subr.mxu0 0.0
    %4055 = vmatpush1.xpose.msra.mxu0 0.0
    %4056 = vmatprep.subr.mxu0 0.0
    %4057 = vmatpush1.xpose.msra.mxu0 0.0
    %4058 = vmatprep.subr.mxu0 0.0
    %4059 = vmatpush1.xpose.msra.mxu0 0.0
    %4060 = vmatprep.subr.mxu0 0.0
    %4061 = vmatpush1.xpose.msra.mxu0 0.0
    %4062 = vmatprep.subr.mxu0 0.0
    %4063 = vmatpush1.xpose.msra.mxu0 0.0
    %4064 = vmatprep.subr.mxu0 0.0
    %4065 = vmatpush1.xpose.msra.mxu0 0.0
    %4066 = vmatprep.subr.mxu0 0.0
    %4067 = vmatpush1.xpose.msra.mxu0 0.0
    %4068 = vmatprep.subr.mxu0 0.0
    %4069 = vmatpush1.xpose.msra.mxu0 0.0
    %4070 = vmatprep.subr.mxu0 0.0
    %4071 = vmatpush1.xpose.msra.mxu0 0.0
    %4072 = vmatprep.subr.mxu0 0.0
    %4073 = vmatpush1.xpose.msra.mxu0 0.0
    %4074 = vmatprep.subr.mxu0 0.0
    %4075 = vmatpush1.xpose.msra.mxu0 0.0
    %4076 = vmatprep.subr.mxu0 0.0
    %4077 = vmatpush1.xpose.msra.mxu0 0.0
    %4078 = vmatprep.mubr.f32.mxu0 0.0
    %v4079 = vand.u32 %v3855, 4294901760
    %v4080 = vsub.f32 %v3855, %v4079
    %4081 = vmatmul.mubr.f32.gmra.mrb[0].mxu0 %v4080
    %v4082 = vpop.f32.mrb[0].mxu0
    %v4083 = vadd.f32 %v4009, %v4082
    %v4084 = vpop.f32.mrb[0].mxu0
    %4085 = vdwg.mxu0
    %4086 = vmatprep.subr.mxu0 0.0
    %v4087 = vand.u32 %v3858, 4294901760
    %4088 = vmatpush1.xpose.msra.mxu0 %v4087
    %4089 = vmatprep.subr.mxu0 0.0
    %4090 = vmatpush1.xpose.msra.mxu0 0.0
    %4091 = vmatprep.subr.mxu0 0.0
    %4092 = vmatpush1.xpose.msra.mxu0 0.0
    %4093 = vmatprep.subr.mxu0 0.0
    %4094 = vmatpush1.xpose.msra.mxu0 0.0
    %4095 = vmatprep.subr.mxu0 0.0
    %4096 = vmatpush1.xpose.msra.mxu0 0.0
    %4097 = vmatprep.subr.mxu0 0.0
    %4098 = vmatpush1.xpose.msra.mxu0 0.0
    %4099 = vmatprep.subr.mxu0 0.0
    %4100 = vmatpush1.xpose.msra.mxu0 0.0
    %4101 = vmatprep.subr.mxu0 0.0
    %4102 = vmatpush1.xpose.msra.mxu0 0.0
    %4103 = vmatprep.subr.mxu0 0.0
    %4104 = vmatpush1.xpose.msra.mxu0 0.0
    %4105 = vmatprep.subr.mxu0 0.0
    %4106 = vmatpush1.xpose.msra.mxu0 0.0
    %4107 = vmatprep.subr.mxu0 0.0
    %4108 = vmatpush1.xpose.msra.mxu0 0.0
    %4109 = vmatprep.subr.mxu0 0.0
    %4110 = vmatpush1.xpose.msra.mxu0 0.0
    %4111 = vmatprep.subr.mxu0 0.0
    %4112 = vmatpush1.xpose.msra.mxu0 0.0
    %4113 = vmatprep.subr.mxu0 0.0
    %4114 = vmatpush1.xpose.msra.mxu0 0.0
    %4115 = vmatprep.subr.mxu0 0.0
    %4116 = vmatpush1.xpose.msra.mxu0 0.0
    %4117 = vmatprep.subr.mxu0 0.0
    %4118 = vmatpush1.xpose.msra.mxu0 0.0
    %4119 = vmatprep.subr.mxu0 0.0
    %4120 = vmatpush1.xpose.msra.mxu0 0.0
    %4121 = vmatprep.subr.mxu0 0.0
    %4122 = vmatpush1.xpose.msra.mxu0 0.0
    %4123 = vmatprep.subr.mxu0 0.0
    %4124 = vmatpush1.xpose.msra.mxu0 0.0
    %4125 = vmatprep.subr.mxu0 0.0
    %4126 = vmatpush1.xpose.msra.mxu0 0.0
    %4127 = vmatprep.subr.mxu0 0.0
    %4128 = vmatpush1.xpose.msra.mxu0 0.0
    %4129 = vmatprep.subr.mxu0 0.0
    %4130 = vmatpush1.xpose.msra.mxu0 0.0
    %4131 = vmatprep.subr.mxu0 0.0
    %4132 = vmatpush1.xpose.msra.mxu0 0.0
    %4133 = vmatprep.subr.mxu0 0.0
    %4134 = vmatpush1.xpose.msra.mxu0 0.0
    %4135 = vmatprep.subr.mxu0 0.0
    %4136 = vmatpush1.xpose.msra.mxu0 0.0
    %4137 = vmatprep.subr.mxu0 0.0
    %4138 = vmatpush1.xpose.msra.mxu0 0.0
    %4139 = vmatprep.subr.mxu0 0.0
    %4140 = vmatpush1.xpose.msra.mxu0 0.0
    %4141 = vmatprep.subr.mxu0 0.0
    %4142 = vmatpush1.xpose.msra.mxu0 0.0
    %4143 = vmatprep.subr.mxu0 0.0
    %4144 = vmatpush1.xpose.msra.mxu0 0.0
    %4145 = vmatprep.subr.mxu0 0.0
    %4146 = vmatpush1.xpose.msra.mxu0 0.0
    %4147 = vmatprep.subr.mxu0 0.0
    %4148 = vmatpush1.xpose.msra.mxu0 0.0
    %4149 = vmatprep.subr.mxu0 0.0
    %4150 = vmatpush1.xpose.msra.mxu0 0.0
    %4151 = vmatprep.mubr.f32.mxu0 0.0
    %v4152 = vand.u32 %v3855, 4294901760
    %v4153 = vsub.f32 %v3855, %v4152
    %v4154 = vand.u32 %v4153, 4294901760
    %4155 = vmatmul.mubr.f32.gmra.mrb[0].mxu0 %v4154
    %v4156 = vpop.f32.mrb[0].mxu0
    %v4157 = vadd.f32 %v4083, %v4156
    %v4158 = vpop.f32.mrb[0].mxu0
    %4159 = vdwg.mxu0
    %4160 = vmatprep.subr.mxu0 0.0
    %v4161 = vand.u32 %v3858, 4294901760
    %v4162 = vsub.f32 %v3858, %v4161
    %v4163 = vand.u32 %v4162, 4294901760
    %4164 = vmatpush1.xpose.msra.mxu0 %v4163
    %4165 = vmatprep.subr.mxu0 0.0
    %4166 = vmatpush1.xpose.msra.mxu0 0.0
    %4167 = vmatprep.subr.mxu0 0.0
    %4168 = vmatpush1.xpose.msra.mxu0 0.0
    %4169 = vmatprep.subr.mxu0 0.0
    %4170 = vmatpush1.xpose.msra.mxu0 0.0
    %4171 = vmatprep.subr.mxu0 0.0
    %4172 = vmatpush1.xpose.msra.mxu0 0.0
    %4173 = vmatprep.subr.mxu0 0.0
    %4174 = vmatpush1.xpose.msra.mxu0 0.0
    %4175 = vmatprep.subr.mxu0 0.0
    %4176 = vmatpush1.xpose.msra.mxu0 0.0
    %4177 = vmatprep.subr.mxu0 0.0
    %4178 = vmatpush1.xpose.msra.mxu0 0.0
    %4179 = vmatprep.subr.mxu0 0.0
    %4180 = vmatpush1.xpose.msra.mxu0 0.0
    %4181 = vmatprep.subr.mxu0 0.0
    %4182 = vmatpush1.xpose.msra.mxu0 0.0
    %4183 = vmatprep.subr.mxu0 0.0
    %4184 = vmatpush1.xpose.msra.mxu0 0.0
    %4185 = vmatprep.subr.mxu0 0.0
    %4186 = vmatpush1.xpose.msra.mxu0 0.0
    %4187 = vmatprep.subr.mxu0 0.0
    %4188 = vmatpush1.xpose.msra.mxu0 0.0
    %4189 = vmatprep.subr.mxu0 0.0
    %4190 = vmatpush1.xpose.msra.mxu0 0.0
    %4191 = vmatprep.subr.mxu0 0.0
    %4192 = vmatpush1.xpose.msra.mxu0 0.0
    %4193 = vmatprep.subr.mxu0 0.0
    %4194 = vmatpush1.xpose.msra.mxu0 0.0
    %4195 = vmatprep.subr.mxu0 0.0
    %4196 = vmatpush1.xpose.msra.mxu0 0.0
    %4197 = vmatprep.subr.mxu0 0.0
    %4198 = vmatpush1.xpose.msra.mxu0 0.0
    %4199 = vmatprep.subr.mxu0 0.0
    %4200 = vmatpush1.xpose.msra.mxu0 0.0
    %4201 = vmatprep.subr.mxu0 0.0
    %4202 = vmatpush1.xpose.msra.mxu0 0.0
    %4203 = vmatprep.subr.mxu0 0.0
    %4204 = vmatpush1.xpose.msra.mxu0 0.0
    %4205 = vmatprep.subr.mxu0 0.0
    %4206 = vmatpush1.xpose.msra.mxu0 0.0
    %4207 = vmatprep.subr.mxu0 0.0
    %4208 = vmatpush1.xpose.msra.mxu0 0.0
    %4209 = vmatprep.subr.mxu0 0.0
    %4210 = vmatpush1.xpose.msra.mxu0 0.0
    %4211 = vmatprep.subr.mxu0 0.0
    %4212 = vmatpush1.xpose.msra.mxu0 0.0
    %4213 = vmatprep.subr.mxu0 0.0
    %4214 = vmatpush1.xpose.msra.mxu0 0.0
    %4215 = vmatprep.subr.mxu0 0.0
    %4216 = vmatpush1.xpose.msra.mxu0 0.0
    %4217 = vmatprep.subr.mxu0 0.0
    %4218 = vmatpush1.xpose.msra.mxu0 0.0
    %4219 = vmatprep.subr.mxu0 0.0
    %4220 = vmatpush1.xpose.msra.mxu0 0.0
    %4221 = vmatprep.subr.mxu0 0.0
    %4222 = vmatpush1.xpose.msra.mxu0 0.0
    %4223 = vmatprep.subr.mxu0 0.0
    %4224 = vmatpush1.xpose.msra.mxu0 0.0
    %4225 = vmatprep.subr.mxu0 0.0
    %4226 = vmatpush1.xpose.msra.mxu0 0.0
    %4227 = vmatprep.mubr.f32.mxu0 0.0
    %v4228 = vand.u32 %v3855, 4294901760
    %4229 = vmatmul.mubr.f32.gmra.mrb[0].mxu0 %v4228
    %v4230 = vpop.f32.mrb[0].mxu0
    %v4231 = vadd.f32 %v4157, %v4230
    %v4232 = vpop.f32.mrb[0].mxu0
    %4233 = vdwg.mxu0
    %4234 = vmatprep.subr.mxu0 0.0
    %v4235 = vand.u32 %v3858, 4294901760
    %4236 = vmatpush1.xpose.msra.mxu0 %v4235
    %4237 = vmatprep.subr.mxu0 0.0
    %4238 = vmatpush1.xpose.msra.mxu0 0.0
    %4239 = vmatprep.subr.mxu0 0.0
    %4240 = vmatpush1.xpose.msra.mxu0 0.0
    %4241 = vmatprep.subr.mxu0 0.0
    %4242 = vmatpush1.xpose.msra.mxu0 0.0
    %4243 = vmatprep.subr.mxu0 0.0
    %4244 = vmatpush1.xpose.msra.mxu0 0.0
    %4245 = vmatprep.subr.mxu0 0.0
    %4246 = vmatpush1.xpose.msra.mxu0 0.0
    %4247 = vmatprep.subr.mxu0 0.0
    %4248 = vmatpush1.xpose.msra.mxu0 0.0
    %4249 = vmatprep.subr.mxu0 0.0
    %4250 = vmatpush1.xpose.msra.mxu0 0.0
    %4251 = vmatprep.subr.mxu0 0.0
    %4252 = vmatpush1.xpose.msra.mxu0 0.0
    %4253 = vmatprep.subr.mxu0 0.0
    %4254 = vmatpush1.xpose.msra.mxu0 0.0
    %4255 = vmatprep.subr.mxu0 0.0
    %4256 = vmatpush1.xpose.msra.mxu0 0.0
    %4257 = vmatprep.subr.mxu0 0.0
    %4258 = vmatpush1.xpose.msra.mxu0 0.0
    %4259 = vmatprep.subr.mxu0 0.0
    %4260 = vmatpush1.xpose.msra.mxu0 0.0
    %4261 = vmatprep.subr.mxu0 0.0
    %4262 = vmatpush1.xpose.msra.mxu0 0.0
    %4263 = vmatprep.subr.mxu0 0.0
    %4264 = vmatpush1.xpose.msra.mxu0 0.0
    %4265 = vmatprep.subr.mxu0 0.0
    %4266 = vmatpush1.xpose.msra.mxu0 0.0
    %4267 = vmatprep.subr.mxu0 0.0
    %4268 = vmatpush1.xpose.msra.mxu0 0.0
    %4269 = vmatprep.subr.mxu0 0.0
    %4270 = vmatpush1.xpose.msra.mxu0 0.0
    %4271 = vmatprep.subr.mxu0 0.0
    %4272 = vmatpush1.xpose.msra.mxu0 0.0
    %4273 = vmatprep.subr.mxu0 0.0
    %4274 = vmatpush1.xpose.msra.mxu0 0.0
    %4275 = vmatprep.subr.mxu0 0.0
    %4276 = vmatpush1.xpose.msra.mxu0 0.0
    %4277 = vmatprep.subr.mxu0 0.0
    %4278 = vmatpush1.xpose.msra.mxu0 0.0
    %4279 = vmatprep.subr.mxu0 0.0
    %4280 = vmatpush1.xpose.msra.mxu0 0.0
    %4281 = vmatprep.subr.mxu0 0.0
    %4282 = vmatpush1.xpose.msra.mxu0 0.0
    %4283 = vmatprep.subr.mxu0 0.0
    %4284 = vmatpush1.xpose.msra.mxu0 0.0
    %4285 = vmatprep.subr.mxu0 0.0
    %4286 = vmatpush1.xpose.msra.mxu0 0.0
    %4287 = vmatprep.subr.mxu0 0.0
    %4288 = vmatpush1.xpose.msra.mxu0 0.0
    %4289 = vmatprep.subr.mxu0 0.0
    %4290 = vmatpush1.xpose.msra.mxu0 0.0
    %4291 = vmatprep.subr.mxu0 0.0
    %4292 = vmatpush1.xpose.msra.mxu0 0.0
    %4293 = vmatprep.subr.mxu0 0.0
    %4294 = vmatpush1.xpose.msra.mxu0 0.0
    %4295 = vmatprep.subr.mxu0 0.0
    %4296 = vmatpush1.xpose.msra.mxu0 0.0
    %4297 = vmatprep.subr.mxu0 0.0
    %4298 = vmatpush1.xpose.msra.mxu0 0.0
    %4299 = vmatprep.mubr.f32.mxu0 0.0
    %v4300 = vand.u32 %v3855, 4294901760
    %4301 = vmatmul.mubr.f32.gmra.mrb[0].mxu0 %v4300
    %v4302 = vpop.f32.mrb[0].mxu0
    %v4303 = vadd.f32 %v4231, %v4302
    %v4304 = vpop.f32.mrb[0].mxu0
    %4305 = vdwg.mxu0
    %v4307 = vsel %vm2045, %v1454, 0
    %v4310 = vsel %vm2045, %v1746, 0
    %4312 = vmatprep.subr.mxu0 0.0
    %v4313 = vand.u32 %v4310, 4294901760
    %4314 = vmatpush1.xpose.msra.mxu0 %v4313
    %4315 = vmatprep.subr.mxu0 0.0
    %4316 = vmatpush1.xpose.msra.mxu0 0.0
    %4317 = vmatprep.subr.mxu0 0.0
    %4318 = vmatpush1.xpose.msra.mxu0 0.0
    %4319 = vmatprep.subr.mxu0 0.0
    %4320 = vmatpush1.xpose.msra.mxu0 0.0
    %4321 = vmatprep.subr.mxu0 0.0
    %4322 = vmatpush1.xpose.msra.mxu0 0.0
    %4323 = vmatprep.subr.mxu0 0.0
    %4324 = vmatpush1.xpose.msra.mxu0 0.0
    %4325 = vmatprep.subr.mxu0 0.0
    %4326 = vmatpush1.xpose.msra.mxu0 0.0
    %4327 = vmatprep.subr.mxu0 0.0
    %4328 = vmatpush1.xpose.msra.mxu0 0.0
    %4329 = vmatprep.subr.mxu0 0.0
    %4330 = vmatpush1.xpose.msra.mxu0 0.0
    %4331 = vmatprep.subr.mxu0 0.0
    %4332 = vmatpush1.xpose.msra.mxu0 0.0
    %4333 = vmatprep.subr.mxu0 0.0
    %4334 = vmatpush1.xpose.msra.mxu0 0.0
    %4335 = vmatprep.subr.mxu0 0.0
    %4336 = vmatpush1.xpose.msra.mxu0 0.0
    %4337 = vmatprep.subr.mxu0 0.0
    %4338 = vmatpush1.xpose.msra.mxu0 0.0
    %4339 = vmatprep.subr.mxu0 0.0
    %4340 = vmatpush1.xpose.msra.mxu0 0.0
    %4341 = vmatprep.subr.mxu0 0.0
    %4342 = vmatpush1.xpose.msra.mxu0 0.0
    %4343 = vmatprep.subr.mxu0 0.0
    %4344 = vmatpush1.xpose.msra.mxu0 0.0
    %4345 = vmatprep.subr.mxu0 0.0
    %4346 = vmatpush1.xpose.msra.mxu0 0.0
    %4347 = vmatprep.subr.mxu0 0.0
    %4348 = vmatpush1.xpose.msra.mxu0 0.0
    %4349 = vmatprep.subr.mxu0 0.0
    %4350 = vmatpush1.xpose.msra.mxu0 0.0
    %4351 = vmatprep.subr.mxu0 0.0
    %4352 = vmatpush1.xpose.msra.mxu0 0.0
    %4353 = vmatprep.subr.mxu0 0.0
    %4354 = vmatpush1.xpose.msra.mxu0 0.0
    %4355 = vmatprep.subr.mxu0 0.0
    %4356 = vmatpush1.xpose.msra.mxu0 0.0
    %4357 = vmatprep.subr.mxu0 0.0
    %4358 = vmatpush1.xpose.msra.mxu0 0.0
    %4359 = vmatprep.subr.mxu0 0.0
    %4360 = vmatpush1.xpose.msra.mxu0 0.0
    %4361 = vmatprep.subr.mxu0 0.0
    %4362 = vmatpush1.xpose.msra.mxu0 0.0
    %4363 = vmatprep.subr.mxu0 0.0
    %4364 = vmatpush1.xpose.msra.mxu0 0.0
    %4365 = vmatprep.subr.mxu0 0.0
    %4366 = vmatpush1.xpose.msra.mxu0 0.0
    %4367 = vmatprep.subr.mxu0 0.0
    %4368 = vmatpush1.xpose.msra.mxu0 0.0
    %4369 = vmatprep.subr.mxu0 0.0
    %4370 = vmatpush1.xpose.msra.mxu0 0.0
    %4371 = vmatprep.subr.mxu0 0.0
    %4372 = vmatpush1.xpose.msra.mxu0 0.0
    %4373 = vmatprep.subr.mxu0 0.0
    %4374 = vmatpush1.xpose.msra.mxu0 0.0
    %4375 = vmatprep.subr.mxu0 0.0
    %4376 = vmatpush1.xpose.msra.mxu0 0.0
    %4377 = vmatprep.mubr.f32.mxu0 0.0
    %v4378 = vand.u32 %v4307, 4294901760
    %v4379 = vsub.f32 %v4307, %v4378
    %v4380 = vand.u32 %v4379, 4294901760
    %v4381 = vsub.f32 %v4379, %v4380
    %v4382 = vand.u32 %v4381, 4294901760
    %4383 = vmatmul.mubr.f32.gmra.mrb[0].mxu0 %v4382
    %v4384 = vpop.f32.mrb[0].mxu0
    %v4385 = vadd.f32 0.0, %v4384
    %v4386 = vpop.f32.mrb[0].mxu0
    %4387 = vdwg.mxu0
    %4388 = vmatprep.subr.mxu0 0.0
    %v4389 = vand.u32 %v4310, 4294901760
    %v4390 = vsub.f32 %v4310, %v4389
    %v4391 = vand.u32 %v4390, 4294901760
    %v4392 = vsub.f32 %v4390, %v4391
    %v4393 = vand.u32 %v4392, 4294901760
    %4394 = vmatpush1.xpose.msra.mxu0 %v4393
    %4395 = vmatprep.subr.mxu0 0.0
    %4396 = vmatpush1.xpose.msra.mxu0 0.0
    %4397 = vmatprep.subr.mxu0 0.0
    %4398 = vmatpush1.xpose.msra.mxu0 0.0
    %4399 = vmatprep.subr.mxu0 0.0
    %4400 = vmatpush1.xpose.msra.mxu0 0.0
    %4401 = vmatprep.subr.mxu0 0.0
    %4402 = vmatpush1.xpose.msra.mxu0 0.0
    %4403 = vmatprep.subr.mxu0 0.0
    %4404 = vmatpush1.xpose.msra.mxu0 0.0
    %4405 = vmatprep.subr.mxu0 0.0
    %4406 = vmatpush1.xpose.msra.mxu0 0.0
    %4407 = vmatprep.subr.mxu0 0.0
    %4408 = vmatpush1.xpose.msra.mxu0 0.0
    %4409 = vmatprep.subr.mxu0 0.0
    %4410 = vmatpush1.xpose.msra.mxu0 0.0
    %4411 = vmatprep.subr.mxu0 0.0
    %4412 = vmatpush1.xpose.msra.mxu0 0.0
    %4413 = vmatprep.subr.mxu0 0.0
    %4414 = vmatpush1.xpose.msra.mxu0 0.0
    %4415 = vmatprep.subr.mxu0 0.0
    %4416 = vmatpush1.xpose.msra.mxu0 0.0
    %4417 = vmatprep.subr.mxu0 0.0
    %4418 = vmatpush1.xpose.msra.mxu0 0.0
    %4419 = vmatprep.subr.mxu0 0.0
    %4420 = vmatpush1.xpose.msra.mxu0 0.0
    %4421 = vmatprep.subr.mxu0 0.0
    %4422 = vmatpush1.xpose.msra.mxu0 0.0
    %4423 = vmatprep.subr.mxu0 0.0
    %4424 = vmatpush1.xpose.msra.mxu0 0.0
    %4425 = vmatprep.subr.mxu0 0.0
    %4426 = vmatpush1.xpose.msra.mxu0 0.0
    %4427 = vmatprep.subr.mxu0 0.0
    %4428 = vmatpush1.xpose.msra.mxu0 0.0
    %4429 = vmatprep.subr.mxu0 0.0
    %4430 = vmatpush1.xpose.msra.mxu0 0.0
    %4431 = vmatprep.subr.mxu0 0.0
    %4432 = vmatpush1.xpose.msra.mxu0 0.0
    %4433 = vmatprep.subr.mxu0 0.0
    %4434 = vmatpush1.xpose.msra.mxu0 0.0
    %4435 = vmatprep.subr.mxu0 0.0
    %4436 = vmatpush1.xpose.msra.mxu0 0.0
    %4437 = vmatprep.subr.mxu0 0.0
    %4438 = vmatpush1.xpose.msra.mxu0 0.0
    %4439 = vmatprep.subr.mxu0 0.0
    %4440 = vmatpush1.xpose.msra.mxu0 0.0
    %4441 = vmatprep.subr.mxu0 0.0
    %4442 = vmatpush1.xpose.msra.mxu0 0.0
    %4443 = vmatprep.subr.mxu0 0.0
    %4444 = vmatpush1.xpose.msra.mxu0 0.0
    %4445 = vmatprep.subr.mxu0 0.0
    %4446 = vmatpush1.xpose.msra.mxu0 0.0
    %4447 = vmatprep.subr.mxu0 0.0
    %4448 = vmatpush1.xpose.msra.mxu0 0.0
    %4449 = vmatprep.subr.mxu0 0.0
    %4450 = vmatpush1.xpose.msra.mxu0 0.0
    %4451 = vmatprep.subr.mxu0 0.0
    %4452 = vmatpush1.xpose.msra.mxu0 0.0
    %4453 = vmatprep.subr.mxu0 0.0
    %4454 = vmatpush1.xpose.msra.mxu0 0.0
    %4455 = vmatprep.subr.mxu0 0.0
    %4456 = vmatpush1.xpose.msra.mxu0 0.0
    %4457 = vmatprep.mubr.f32.mxu0 0.0
    %v4458 = vand.u32 %v4307, 4294901760
    %4459 = vmatmul.mubr.f32.gmra.mrb[0].mxu0 %v4458
    %v4460 = vpop.f32.mrb[0].mxu0
    %v4461 = vadd.f32 %v4385, %v4460
    %v4462 = vpop.f32.mrb[0].mxu0
    %4463 = vdwg.mxu0
    %4464 = vmatprep.subr.mxu0 0.0
    %v4465 = vand.u32 %v4310, 4294901760
    %v4466 = vsub.f32 %v4310, %v4465
    %4467 = vmatpush1.xpose.msra.mxu0 %v4466
    %4468 = vmatprep.subr.mxu0 0.0
    %4469 = vmatpush1.xpose.msra.mxu0 0.0
    %4470 = vmatprep.subr.mxu0 0.0
    %4471 = vmatpush1.xpose.msra.mxu0 0.0
    %4472 = vmatprep.subr.mxu0 0.0
    %4473 = vmatpush1.xpose.msra.mxu0 0.0
    %4474 = vmatprep.subr.mxu0 0.0
    %4475 = vmatpush1.xpose.msra.mxu0 0.0
    %4476 = vmatprep.subr.mxu0 0.0
    %4477 = vmatpush1.xpose.msra.mxu0 0.0
    %4478 = vmatprep.subr.mxu0 0.0
    %4479 = vmatpush1.xpose.msra.mxu0 0.0
    %4480 = vmatprep.subr.mxu0 0.0
    %4481 = vmatpush1.xpose.msra.mxu0 0.0
    %4482 = vmatprep.subr.mxu0 0.0
    %4483 = vmatpush1.xpose.msra.mxu0 0.0
    %4484 = vmatprep.subr.mxu0 0.0
    %4485 = vmatpush1.xpose.msra.mxu0 0.0
    %4486 = vmatprep.subr.mxu0 0.0
    %4487 = vmatpush1.xpose.msra.mxu0 0.0
    %4488 = vmatprep.subr.mxu0 0.0
    %4489 = vmatpush1.xpose.msra.mxu0 0.0
    %4490 = vmatprep.subr.mxu0 0.0
    %4491 = vmatpush1.xpose.msra.mxu0 0.0
    %4492 = vmatprep.subr.mxu0 0.0
    %4493 = vmatpush1.xpose.msra.mxu0 0.0
    %4494 = vmatprep.subr.mxu0 0.0
    %4495 = vmatpush1.xpose.msra.mxu0 0.0
    %4496 = vmatprep.subr.mxu0 0.0
    %4497 = vmatpush1.xpose.msra.mxu0 0.0
    %4498 = vmatprep.subr.mxu0 0.0
    %4499 = vmatpush1.xpose.msra.mxu0 0.0
    %4500 = vmatprep.subr.mxu0 0.0
    %4501 = vmatpush1.xpose.msra.mxu0 0.0
    %4502 = vmatprep.subr.mxu0 0.0
    %4503 = vmatpush1.xpose.msra.mxu0 0.0
    %4504 = vmatprep.subr.mxu0 0.0
    %4505 = vmatpush1.xpose.msra.mxu0 0.0
    %4506 = vmatprep.subr.mxu0 0.0
    %4507 = vmatpush1.xpose.msra.mxu0 0.0
    %4508 = vmatprep.subr.mxu0 0.0
    %4509 = vmatpush1.xpose.msra.mxu0 0.0
    %4510 = vmatprep.subr.mxu0 0.0
    %4511 = vmatpush1.xpose.msra.mxu0 0.0
    %4512 = vmatprep.subr.mxu0 0.0
    %4513 = vmatpush1.xpose.msra.mxu0 0.0
    %4514 = vmatprep.subr.mxu0 0.0
    %4515 = vmatpush1.xpose.msra.mxu0 0.0
    %4516 = vmatprep.subr.mxu0 0.0
    %4517 = vmatpush1.xpose.msra.mxu0 0.0
    %4518 = vmatprep.subr.mxu0 0.0
    %4519 = vmatpush1.xpose.msra.mxu0 0.0
    %4520 = vmatprep.subr.mxu0 0.0
    %4521 = vmatpush1.xpose.msra.mxu0 0.0
    %4522 = vmatprep.subr.mxu0 0.0
    %4523 = vmatpush1.xpose.msra.mxu0 0.0
    %4524 = vmatprep.subr.mxu0 0.0
    %4525 = vmatpush1.xpose.msra.mxu0 0.0
    %4526 = vmatprep.subr.mxu0 0.0
    %4527 = vmatpush1.xpose.msra.mxu0 0.0
    %4528 = vmatprep.subr.mxu0 0.0
    %4529 = vmatpush1.xpose.msra.mxu0 0.0
    %4530 = vmatprep.mubr.f32.mxu0 0.0
    %v4531 = vand.u32 %v4307, 4294901760
    %v4532 = vsub.f32 %v4307, %v4531
    %4533 = vmatmul.mubr.f32.gmra.mrb[0].mxu0 %v4532
    %v4534 = vpop.f32.mrb[0].mxu0
    %v4535 = vadd.f32 %v4461, %v4534
    %v4536 = vpop.f32.mrb[0].mxu0
    %4537 = vdwg.mxu0
    %4538 = vmatprep.subr.mxu0 0.0
    %v4539 = vand.u32 %v4310, 4294901760
    %4540 = vmatpush1.xpose.msra.mxu0 %v4539
    %4541 = vmatprep.subr.mxu0 0.0
    %4542 = vmatpush1.xpose.msra.mxu0 0.0
    %4543 = vmatprep.subr.mxu0 0.0
    %4544 = vmatpush1.xpose.msra.mxu0 0.0
    %4545 = vmatprep.subr.mxu0 0.0
    %4546 = vmatpush1.xpose.msra.mxu0 0.0
    %4547 = vmatprep.subr.mxu0 0.0
    %4548 = vmatpush1.xpose.msra.mxu0 0.0
    %4549 = vmatprep.subr.mxu0 0.0
    %4550 = vmatpush1.xpose.msra.mxu0 0.0
    %4551 = vmatprep.subr.mxu0 0.0
    %4552 = vmatpush1.xpose.msra.mxu0 0.0
    %4553 = vmatprep.subr.mxu0 0.0
    %4554 = vmatpush1.xpose.msra.mxu0 0.0
    %4555 = vmatprep.subr.mxu0 0.0
    %4556 = vmatpush1.xpose.msra.mxu0 0.0
    %4557 = vmatprep.subr.mxu0 0.0
    %4558 = vmatpush1.xpose.msra.mxu0 0.0
    %4559 = vmatprep.subr.mxu0 0.0
    %4560 = vmatpush1.xpose.msra.mxu0 0.0
    %4561 = vmatprep.subr.mxu0 0.0
    %4562 = vmatpush1.xpose.msra.mxu0 0.0
    %4563 = vmatprep.subr.mxu0 0.0
    %4564 = vmatpush1.xpose.msra.mxu0 0.0
    %4565 = vmatprep.subr.mxu0 0.0
    %4566 = vmatpush1.xpose.msra.mxu0 0.0
    %4567 = vmatprep.subr.mxu0 0.0
    %4568 = vmatpush1.xpose.msra.mxu0 0.0
    %4569 = vmatprep.subr.mxu0 0.0
    %4570 = vmatpush1.xpose.msra.mxu0 0.0
    %4571 = vmatprep.subr.mxu0 0.0
    %4572 = vmatpush1.xpose.msra.mxu0 0.0
    %4573 = vmatprep.subr.mxu0 0.0
    %4574 = vmatpush1.xpose.msra.mxu0 0.0
    %4575 = vmatprep.subr.mxu0 0.0
    %4576 = vmatpush1.xpose.msra.mxu0 0.0
    %4577 = vmatprep.subr.mxu0 0.0
    %4578 = vmatpush1.xpose.msra.mxu0 0.0
    %4579 = vmatprep.subr.mxu0 0.0
    %4580 = vmatpush1.xpose.msra.mxu0 0.0
    %4581 = vmatprep.subr.mxu0 0.0
    %4582 = vmatpush1.xpose.msra.mxu0 0.0
    %4583 = vmatprep.subr.mxu0 0.0
    %4584 = vmatpush1.xpose.msra.mxu0 0.0
    %4585 = vmatprep.subr.mxu0 0.0
    %4586 = vmatpush1.xpose.msra.mxu0 0.0
    %4587 = vmatprep.subr.mxu0 0.0
    %4588 = vmatpush1.xpose.msra.mxu0 0.0
    %4589 = vmatprep.subr.mxu0 0.0
    %4590 = vmatpush1.xpose.msra.mxu0 0.0
    %4591 = vmatprep.subr.mxu0 0.0
    %4592 = vmatpush1.xpose.msra.mxu0 0.0
    %4593 = vmatprep.subr.mxu0 0.0
    %4594 = vmatpush1.xpose.msra.mxu0 0.0
    %4595 = vmatprep.subr.mxu0 0.0
    %4596 = vmatpush1.xpose.msra.mxu0 0.0
    %4597 = vmatprep.subr.mxu0 0.0
    %4598 = vmatpush1.xpose.msra.mxu0 0.0
    %4599 = vmatprep.subr.mxu0 0.0
    %4600 = vmatpush1.xpose.msra.mxu0 0.0
    %4601 = vmatprep.subr.mxu0 0.0
    %4602 = vmatpush1.xpose.msra.mxu0 0.0
    %4603 = vmatprep.mubr.f32.mxu0 0.0
    %v4604 = vand.u32 %v4307, 4294901760
    %v4605 = vsub.f32 %v4307, %v4604
    %v4606 = vand.u32 %v4605, 4294901760
    %4607 = vmatmul.mubr.f32.gmra.mrb[0].mxu0 %v4606
    %v4608 = vpop.f32.mrb[0].mxu0
    %v4609 = vadd.f32 %v4535, %v4608
    %v4610 = vpop.f32.mrb[0].mxu0
    %4611 = vdwg.mxu0
    %4612 = vmatprep.subr.mxu0 0.0
    %v4613 = vand.u32 %v4310, 4294901760
    %v4614 = vsub.f32 %v4310, %v4613
    %v4615 = vand.u32 %v4614, 4294901760
    %4616 = vmatpush1.xpose.msra.mxu0 %v4615
    %4617 = vmatprep.subr.mxu0 0.0
    %4618 = vmatpush1.xpose.msra.mxu0 0.0
    %4619 = vmatprep.subr.mxu0 0.0
    %4620 = vmatpush1.xpose.msra.mxu0 0.0
    %4621 = vmatprep.subr.mxu0 0.0
    %4622 = vmatpush1.xpose.msra.mxu0 0.0
    %4623 = vmatprep.subr.mxu0 0.0
    %4624 = vmatpush1.xpose.msra.mxu0 0.0
    %4625 = vmatprep.subr.mxu0 0.0
    %4626 = vmatpush1.xpose.msra.mxu0 0.0
    %4627 = vmatprep.subr.mxu0 0.0
    %4628 = vmatpush1.xpose.msra.mxu0 0.0
    %4629 = vmatprep.subr.mxu0 0.0
    %4630 = vmatpush1.xpose.msra.mxu0 0.0
    %4631 = vmatprep.subr.mxu0 0.0
    %4632 = vmatpush1.xpose.msra.mxu0 0.0
    %4633 = vmatprep.subr.mxu0 0.0
    %4634 = vmatpush1.xpose.msra.mxu0 0.0
    %4635 = vmatprep.subr.mxu0 0.0
    %4636 = vmatpush1.xpose.msra.mxu0 0.0
    %4637 = vmatprep.subr.mxu0 0.0
    %4638 = vmatpush1.xpose.msra.mxu0 0.0
    %4639 = vmatprep.subr.mxu0 0.0
    %4640 = vmatpush1.xpose.msra.mxu0 0.0
    %4641 = vmatprep.subr.mxu0 0.0
    %4642 = vmatpush1.xpose.msra.mxu0 0.0
    %4643 = vmatprep.subr.mxu0 0.0
    %4644 = vmatpush1.xpose.msra.mxu0 0.0
    %4645 = vmatprep.subr.mxu0 0.0
    %4646 = vmatpush1.xpose.msra.mxu0 0.0
    %4647 = vmatprep.subr.mxu0 0.0
    %4648 = vmatpush1.xpose.msra.mxu0 0.0
    %4649 = vmatprep.subr.mxu0 0.0
    %4650 = vmatpush1.xpose.msra.mxu0 0.0
    %4651 = vmatprep.subr.mxu0 0.0
    %4652 = vmatpush1.xpose.msra.mxu0 0.0
    %4653 = vmatprep.subr.mxu0 0.0
    %4654 = vmatpush1.xpose.msra.mxu0 0.0
    %4655 = vmatprep.subr.mxu0 0.0
    %4656 = vmatpush1.xpose.msra.mxu0 0.0
    %4657 = vmatprep.subr.mxu0 0.0
    %4658 = vmatpush1.xpose.msra.mxu0 0.0
    %4659 = vmatprep.subr.mxu0 0.0
    %4660 = vmatpush1.xpose.msra.mxu0 0.0
    %4661 = vmatprep.subr.mxu0 0.0
    %4662 = vmatpush1.xpose.msra.mxu0 0.0
    %4663 = vmatprep.subr.mxu0 0.0
    %4664 = vmatpush1.xpose.msra.mxu0 0.0
    %4665 = vmatprep.subr.mxu0 0.0
    %4666 = vmatpush1.xpose.msra.mxu0 0.0
    %4667 = vmatprep.subr.mxu0 0.0
    %4668 = vmatpush1.xpose.msra.mxu0 0.0
    %4669 = vmatprep.subr.mxu0 0.0
    %4670 = vmatpush1.xpose.msra.mxu0 0.0
    %4671 = vmatprep.subr.mxu0 0.0
    %4672 = vmatpush1.xpose.msra.mxu0 0.0
    %4673 = vmatprep.subr.mxu0 0.0
    %4674 = vmatpush1.xpose.msra.mxu0 0.0
    %4675 = vmatprep.subr.mxu0 0.0
    %4676 = vmatpush1.xpose.msra.mxu0 0.0
    %4677 = vmatprep.subr.mxu0 0.0
    %4678 = vmatpush1.xpose.msra.mxu0 0.0
    %4679 = vmatprep.mubr.f32.mxu0 0.0
    %v4680 = vand.u32 %v4307, 4294901760
    %4681 = vmatmul.mubr.f32.gmra.mrb[0].mxu0 %v4680
    %v4682 = vpop.f32.mrb[0].mxu0
    %v4683 = vadd.f32 %v4609, %v4682
    %v4684 = vpop.f32.mrb[0].mxu0
    %4685 = vdwg.mxu0
    %4686 = vmatprep.subr.mxu0 0.0
    %v4687 = vand.u32 %v4310, 4294901760
    %4688 = vmatpush1.xpose.msra.mxu0 %v4687
    %4689 = vmatprep.subr.mxu0 0.0
    %4690 = vmatpush1.xpose.msra.mxu0 0.0
    %4691 = vmatprep.subr.mxu0 0.0
    %4692 = vmatpush1.xpose.msra.mxu0 0.0
    %4693 = vmatprep.subr.mxu0 0.0
    %4694 = vmatpush1.xpose.msra.mxu0 0.0
    %4695 = vmatprep.subr.mxu0 0.0
    %4696 = vmatpush1.xpose.msra.mxu0 0.0
    %4697 = vmatprep.subr.mxu0 0.0
    %4698 = vmatpush1.xpose.msra.mxu0 0.0
    %4699 = vmatprep.subr.mxu0 0.0
    %4700 = vmatpush1.xpose.msra.mxu0 0.0
    %4701 = vmatprep.subr.mxu0 0.0
    %4702 = vmatpush1.xpose.msra.mxu0 0.0
    %4703 = vmatprep.subr.mxu0 0.0
    %4704 = vmatpush1.xpose.msra.mxu0 0.0
    %4705 = vmatprep.subr.mxu0 0.0
    %4706 = vmatpush1.xpose.msra.mxu0 0.0
    %4707 = vmatprep.subr.mxu0 0.0
    %4708 = vmatpush1.xpose.msra.mxu0 0.0
    %4709 = vmatprep.subr.mxu0 0.0
    %4710 = vmatpush1.xpose.msra.mxu0 0.0
    %4711 = vmatprep.subr.mxu0 0.0
    %4712 = vmatpush1.xpose.msra.mxu0 0.0
    %4713 = vmatprep.subr.mxu0 0.0
    %4714 = vmatpush1.xpose.msra.mxu0 0.0
    %4715 = vmatprep.subr.mxu0 0.0
    %4716 = vmatpush1.xpose.msra.mxu0 0.0
    %4717 = vmatprep.subr.mxu0 0.0
    %4718 = vmatpush1.xpose.msra.mxu0 0.0
    %4719 = vmatprep.subr.mxu0 0.0
    %4720 = vmatpush1.xpose.msra.mxu0 0.0
    %4721 = vmatprep.subr.mxu0 0.0
    %4722 = vmatpush1.xpose.msra.mxu0 0.0
    %4723 = vmatprep.subr.mxu0 0.0
    %4724 = vmatpush1.xpose.msra.mxu0 0.0
    %4725 = vmatprep.subr.mxu0 0.0
    %4726 = vmatpush1.xpose.msra.mxu0 0.0
    %4727 = vmatprep.subr.mxu0 0.0
    %4728 = vmatpush1.xpose.msra.mxu0 0.0
    %4729 = vmatprep.subr.mxu0 0.0
    %4730 = vmatpush1.xpose.msra.mxu0 0.0
    %4731 = vmatprep.subr.mxu0 0.0
    %4732 = vmatpush1.xpose.msra.mxu0 0.0
    %4733 = vmatprep.subr.mxu0 0.0
    %4734 = vmatpush1.xpose.msra.mxu0 0.0
    %4735 = vmatprep.subr.mxu0 0.0
    %4736 = vmatpush1.xpose.msra.mxu0 0.0
    %4737 = vmatprep.subr.mxu0 0.0
    %4738 = vmatpush1.xpose.msra.mxu0 0.0
    %4739 = vmatprep.subr.mxu0 0.0
    %4740 = vmatpush1.xpose.msra.mxu0 0.0
    %4741 = vmatprep.subr.mxu0 0.0
    %4742 = vmatpush1.xpose.msra.mxu0 0.0
    %4743 = vmatprep.subr.mxu0 0.0
    %4744 = vmatpush1.xpose.msra.mxu0 0.0
    %4745 = vmatprep.subr.mxu0 0.0
    %4746 = vmatpush1.xpose.msra.mxu0 0.0
    %4747 = vmatprep.subr.mxu0 0.0
    %4748 = vmatpush1.xpose.msra.mxu0 0.0
    %4749 = vmatprep.subr.mxu0 0.0
    %4750 = vmatpush1.xpose.msra.mxu0 0.0
    %4751 = vmatprep.mubr.f32.mxu0 0.0
    %v4752 = vand.u32 %v4307, 4294901760
    %4753 = vmatmul.mubr.f32.gmra.mrb[0].mxu0 %v4752
    %v4754 = vpop.f32.mrb[0].mxu0
    %v4755 = vadd.f32 %v4683, %v4754
    %v4756 = vpop.f32.mrb[0].mxu0
    %4757 = vdwg.mxu0
    %v4759 = vsel %vm2045, %v1455, 0
    %v4762 = vsel %vm2045, %v1747, 0
    %4764 = vmatprep.subr.mxu0 0.0
    %v4765 = vand.u32 %v4762, 4294901760
    %4766 = vmatpush1.xpose.msra.mxu0 %v4765
    %4767 = vmatprep.subr.mxu0 0.0
    %4768 = vmatpush1.xpose.msra.mxu0 0.0
    %4769 = vmatprep.subr.mxu0 0.0
    %4770 = vmatpush1.xpose.msra.mxu0 0.0
    %4771 = vmatprep.subr.mxu0 0.0
    %4772 = vmatpush1.xpose.msra.mxu0 0.0
    %4773 = vmatprep.subr.mxu0 0.0
    %4774 = vmatpush1.xpose.msra.mxu0 0.0
    %4775 = vmatprep.subr.mxu0 0.0
    %4776 = vmatpush1.xpose.msra.mxu0 0.0
    %4777 = vmatprep.subr.mxu0 0.0
    %4778 = vmatpush1.xpose.msra.mxu0 0.0
    %4779 = vmatprep.subr.mxu0 0.0
    %4780 = vmatpush1.xpose.msra.mxu0 0.0
    %4781 = vmatprep.subr.mxu0 0.0
    %4782 = vmatpush1.xpose.msra.mxu0 0.0
    %4783 = vmatprep.subr.mxu0 0.0
    %4784 = vmatpush1.xpose.msra.mxu0 0.0
    %4785 = vmatprep.subr.mxu0 0.0
    %4786 = vmatpush1.xpose.msra.mxu0 0.0
    %4787 = vmatprep.subr.mxu0 0.0
    %4788 = vmatpush1.xpose.msra.mxu0 0.0
    %4789 = vmatprep.subr.mxu0 0.0
    %4790 = vmatpush1.xpose.msra.mxu0 0.0
    %4791 = vmatprep.subr.mxu0 0.0
    %4792 = vmatpush1.xpose.msra.mxu0 0.0
    %4793 = vmatprep.subr.mxu0 0.0
    %4794 = vmatpush1.xpose.msra.mxu0 0.0
    %4795 = vmatprep.subr.mxu0 0.0
    %4796 = vmatpush1.xpose.msra.mxu0 0.0
    %4797 = vmatprep.subr.mxu0 0.0
    %4798 = vmatpush1.xpose.msra.mxu0 0.0
    %4799 = vmatprep.subr.mxu0 0.0
    %4800 = vmatpush1.xpose.msra.mxu0 0.0
    %4801 = vmatprep.subr.mxu0 0.0
    %4802 = vmatpush1.xpose.msra.mxu0 0.0
    %4803 = vmatprep.subr.mxu0 0.0
    %4804 = vmatpush1.xpose.msra.mxu0 0.0
    %4805 = vmatprep.subr.mxu0 0.0
    %4806 = vmatpush1.xpose.msra.mxu0 0.0
    %4807 = vmatprep.subr.mxu0 0.0
    %4808 = vmatpush1.xpose.msra.mxu0 0.0
    %4809 = vmatprep.subr.mxu0 0.0
    %4810 = vmatpush1.xpose.msra.mxu0 0.0
    %4811 = vmatprep.subr.mxu0 0.0
    %4812 = vmatpush1.xpose.msra.mxu0 0.0
    %4813 = vmatprep.subr.mxu0 0.0
    %4814 = vmatpush1.xpose.msra.mxu0 0.0
    %4815 = vmatprep.subr.mxu0 0.0
    %4816 = vmatpush1.xpose.msra.mxu0 0.0
    %4817 = vmatprep.subr.mxu0 0.0
    %4818 = vmatpush1.xpose.msra.mxu0 0.0
    %4819 = vmatprep.subr.mxu0 0.0
    %4820 = vmatpush1.xpose.msra.mxu0 0.0
    %4821 = vmatprep.subr.mxu0 0.0
    %4822 = vmatpush1.xpose.msra.mxu0 0.0
    %4823 = vmatprep.subr.mxu0 0.0
    %4824 = vmatpush1.xpose.msra.mxu0 0.0
    %4825 = vmatprep.subr.mxu0 0.0
    %4826 = vmatpush1.xpose.msra.mxu0 0.0
    %4827 = vmatprep.subr.mxu0 0.0
    %4828 = vmatpush1.xpose.msra.mxu0 0.0
    %4829 = vmatprep.mubr.f32.mxu0 0.0
    %v4830 = vand.u32 %v4759, 4294901760
    %v4831 = vsub.f32 %v4759, %v4830
    %v4832 = vand.u32 %v4831, 4294901760
    %v4833 = vsub.f32 %v4831, %v4832
    %v4834 = vand.u32 %v4833, 4294901760
    %4835 = vmatmul.mubr.f32.gmra.mrb[0].mxu0 %v4834
    %v4836 = vpop.f32.mrb[0].mxu0
    %v4837 = vadd.f32 0.0, %v4836
    %v4838 = vpop.f32.mrb[0].mxu0
    %4839 = vdwg.mxu0
    %4840 = vmatprep.subr.mxu0 0.0
    %v4841 = vand.u32 %v4762, 4294901760
    %v4842 = vsub.f32 %v4762, %v4841
    %v4843 = vand.u32 %v4842, 4294901760
    %v4844 = vsub.f32 %v4842, %v4843
    %v4845 = vand.u32 %v4844, 4294901760
    %4846 = vmatpush1.xpose.msra.mxu0 %v4845
    %4847 = vmatprep.subr.mxu0 0.0
    %4848 = vmatpush1.xpose.msra.mxu0 0.0
    %4849 = vmatprep.subr.mxu0 0.0
    %4850 = vmatpush1.xpose.msra.mxu0 0.0
    %4851 = vmatprep.subr.mxu0 0.0
    %4852 = vmatpush1.xpose.msra.mxu0 0.0
    %4853 = vmatprep.subr.mxu0 0.0
    %4854 = vmatpush1.xpose.msra.mxu0 0.0
    %4855 = vmatprep.subr.mxu0 0.0
    %4856 = vmatpush1.xpose.msra.mxu0 0.0
    %4857 = vmatprep.subr.mxu0 0.0
    %4858 = vmatpush1.xpose.msra.mxu0 0.0
    %4859 = vmatprep.subr.mxu0 0.0
    %4860 = vmatpush1.xpose.msra.mxu0 0.0
    %4861 = vmatprep.subr.mxu0 0.0
    %4862 = vmatpush1.xpose.msra.mxu0 0.0
    %4863 = vmatprep.subr.mxu0 0.0
    %4864 = vmatpush1.xpose.msra.mxu0 0.0
    %4865 = vmatprep.subr.mxu0 0.0
    %4866 = vmatpush1.xpose.msra.mxu0 0.0
    %4867 = vmatprep.subr.mxu0 0.0
    %4868 = vmatpush1.xpose.msra.mxu0 0.0
    %4869 = vmatprep.subr.mxu0 0.0
    %4870 = vmatpush1.xpose.msra.mxu0 0.0
    %4871 = vmatprep.subr.mxu0 0.0
    %4872 = vmatpush1.xpose.msra.mxu0 0.0
    %4873 = vmatprep.subr.mxu0 0.0
    %4874 = vmatpush1.xpose.msra.mxu0 0.0
    %4875 = vmatprep.subr.mxu0 0.0
    %4876 = vmatpush1.xpose.msra.mxu0 0.0
    %4877 = vmatprep.subr.mxu0 0.0
    %4878 = vmatpush1.xpose.msra.mxu0 0.0
    %4879 = vmatprep.subr.mxu0 0.0
    %4880 = vmatpush1.xpose.msra.mxu0 0.0
    %4881 = vmatprep.subr.mxu0 0.0
    %4882 = vmatpush1.xpose.msra.mxu0 0.0
    %4883 = vmatprep.subr.mxu0 0.0
    %4884 = vmatpush1.xpose.msra.mxu0 0.0
    %4885 = vmatprep.subr.mxu0 0.0
    %4886 = vmatpush1.xpose.msra.mxu0 0.0
    %4887 = vmatprep.subr.mxu0 0.0
    %4888 = vmatpush1.xpose.msra.mxu0 0.0
    %4889 = vmatprep.subr.mxu0 0.0
    %4890 = vmatpush1.xpose.msra.mxu0 0.0
    %4891 = vmatprep.subr.mxu0 0.0
    %4892 = vmatpush1.xpose.msra.mxu0 0.0
    %4893 = vmatprep.subr.mxu0 0.0
    %4894 = vmatpush1.xpose.msra.mxu0 0.0
    %4895 = vmatprep.subr.mxu0 0.0
    %4896 = vmatpush1.xpose.msra.mxu0 0.0
    %4897 = vmatprep.subr.mxu0 0.0
    %4898 = vmatpush1.xpose.msra.mxu0 0.0
    %4899 = vmatprep.subr.mxu0 0.0
    %4900 = vmatpush1.xpose.msra.mxu0 0.0
    %4901 = vmatprep.subr.mxu0 0.0
    %4902 = vmatpush1.xpose.msra.mxu0 0.0
    %4903 = vmatprep.subr.mxu0 0.0
    %4904 = vmatpush1.xpose.msra.mxu0 0.0
    %4905 = vmatprep.subr.mxu0 0.0
    %4906 = vmatpush1.xpose.msra.mxu0 0.0
    %4907 = vmatprep.subr.mxu0 0.0
    %4908 = vmatpush1.xpose.msra.mxu0 0.0
    %4909 = vmatprep.mubr.f32.mxu0 0.0
    %v4910 = vand.u32 %v4759, 4294901760
    %4911 = vmatmul.mubr.f32.gmra.mrb[0].mxu0 %v4910
    %v4912 = vpop.f32.mrb[0].mxu0
    %v4913 = vadd.f32 %v4837, %v4912
    %v4914 = vpop.f32.mrb[0].mxu0
    %4915 = vdwg.mxu0
    %4916 = vmatprep.subr.mxu0 0.0
    %v4917 = vand.u32 %v4762, 4294901760
    %v4918 = vsub.f32 %v4762, %v4917
    %4919 = vmatpush1.xpose.msra.mxu0 %v4918
    %4920 = vmatprep.subr.mxu0 0.0
    %4921 = vmatpush1.xpose.msra.mxu0 0.0
    %4922 = vmatprep.subr.mxu0 0.0
    %4923 = vmatpush1.xpose.msra.mxu0 0.0
    %4924 = vmatprep.subr.mxu0 0.0
    %4925 = vmatpush1.xpose.msra.mxu0 0.0
    %4926 = vmatprep.subr.mxu0 0.0
    %4927 = vmatpush1.xpose.msra.mxu0 0.0
    %4928 = vmatprep.subr.mxu0 0.0
    %4929 = vmatpush1.xpose.msra.mxu0 0.0
    %4930 = vmatprep.subr.mxu0 0.0
    %4931 = vmatpush1.xpose.msra.mxu0 0.0
    %4932 = vmatprep.subr.mxu0 0.0
    %4933 = vmatpush1.xpose.msra.mxu0 0.0
    %4934 = vmatprep.subr.mxu0 0.0
    %4935 = vmatpush1.xpose.msra.mxu0 0.0
    %4936 = vmatprep.subr.mxu0 0.0
    %4937 = vmatpush1.xpose.msra.mxu0 0.0
    %4938 = vmatprep.subr.mxu0 0.0
    %4939 = vmatpush1.xpose.msra.mxu0 0.0
    %4940 = vmatprep.subr.mxu0 0.0
    %4941 = vmatpush1.xpose.msra.mxu0 0.0
    %4942 = vmatprep.subr.mxu0 0.0
    %4943 = vmatpush1.xpose.msra.mxu0 0.0
    %4944 = vmatprep.subr.mxu0 0.0
    %4945 = vmatpush1.xpose.msra.mxu0 0.0
    %4946 = vmatprep.subr.mxu0 0.0
    %4947 = vmatpush1.xpose.msra.mxu0 0.0
    %4948 = vmatprep.subr.mxu0 0.0
    %4949 = vmatpush1.xpose.msra.mxu0 0.0
    %4950 = vmatprep.subr.mxu0 0.0
    %4951 = vmatpush1.xpose.msra.mxu0 0.0
    %4952 = vmatprep.subr.mxu0 0.0
    %4953 = vmatpush1.xpose.msra.mxu0 0.0
    %4954 = vmatprep.subr.mxu0 0.0
    %4955 = vmatpush1.xpose.msra.mxu0 0.0
    %4956 = vmatprep.subr.mxu0 0.0
    %4957 = vmatpush1.xpose.msra.mxu0 0.0
    %4958 = vmatprep.subr.mxu0 0.0
    %4959 = vmatpush1.xpose.msra.mxu0 0.0
    %4960 = vmatprep.subr.mxu0 0.0
    %4961 = vmatpush1.xpose.msra.mxu0 0.0
    %4962 = vmatprep.subr.mxu0 0.0
    %4963 = vmatpush1.xpose.msra.mxu0 0.0
    %4964 = vmatprep.subr.mxu0 0.0
    %4965 = vmatpush1.xpose.msra.mxu0 0.0
    %4966 = vmatprep.subr.mxu0 0.0
    %4967 = vmatpush1.xpose.msra.mxu0 0.0
    %4968 = vmatprep.subr.mxu0 0.0
    %4969 = vmatpush1.xpose.msra.mxu0 0.0
    %4970 = vmatprep.subr.mxu0 0.0
    %4971 = vmatpush1.xpose.msra.mxu0 0.0
    %4972 = vmatprep.subr.mxu0 0.0
    %4973 = vmatpush1.xpose.msra.mxu0 0.0
    %4974 = vmatprep.subr.mxu0 0.0
    %4975 = vmatpush1.xpose.msra.mxu0 0.0
    %4976 = vmatprep.subr.mxu0 0.0
    %4977 = vmatpush1.xpose.msra.mxu0 0.0
    %4978 = vmatprep.subr.mxu0 0.0
    %4979 = vmatpush1.xpose.msra.mxu0 0.0
    %4980 = vmatprep.subr.mxu0 0.0
    %4981 = vmatpush1.xpose.msra.mxu0 0.0
    %4982 = vmatprep.mubr.f32.mxu0 0.0
    %v4983 = vand.u32 %v4759, 4294901760
    %v4984 = vsub.f32 %v4759, %v4983
    %4985 = vmatmul.mubr.f32.gmra.mrb[0].mxu0 %v4984
    %v4986 = vpop.f32.mrb[0].mxu0
    %v4987 = vadd.f32 %v4913, %v4986
    %v4988 = vpop.f32.mrb[0].mxu0
    %4989 = vdwg.mxu0
    %4990 = vmatprep.subr.mxu0 0.0
    %v4991 = vand.u32 %v4762, 4294901760
    %4992 = vmatpush1.xpose.msra.mxu0 %v4991
    %4993 = vmatprep.subr.mxu0 0.0
    %4994 = vmatpush1.xpose.msra.mxu0 0.0
    %4995 = vmatprep.subr.mxu0 0.0
    %4996 = vmatpush1.xpose.msra.mxu0 0.0
    %4997 = vmatprep.subr.mxu0 0.0
    %4998 = vmatpush1.xpose.msra.mxu0 0.0
    %4999 = vmatprep.subr.mxu0 0.0
    %5000 = vmatpush1.xpose.msra.mxu0 0.0
    %5001 = vmatprep.subr.mxu0 0.0
    %5002 = vmatpush1.xpose.msra.mxu0 0.0
    %5003 = vmatprep.subr.mxu0 0.0
    %5004 = vmatpush1.xpose.msra.mxu0 0.0
    %5005 = vmatprep.subr.mxu0 0.0
    %5006 = vmatpush1.xpose.msra.mxu0 0.0
    %5007 = vmatprep.subr.mxu0 0.0
    %5008 = vmatpush1.xpose.msra.mxu0 0.0
    %5009 = vmatprep.subr.mxu0 0.0
    %5010 = vmatpush1.xpose.msra.mxu0 0.0
    %5011 = vmatprep.subr.mxu0 0.0
    %5012 = vmatpush1.xpose.msra.mxu0 0.0
    %5013 = vmatprep.subr.mxu0 0.0
    %5014 = vmatpush1.xpose.msra.mxu0 0.0
    %5015 = vmatprep.subr.mxu0 0.0
    %5016 = vmatpush1.xpose.msra.mxu0 0.0
    %5017 = vmatprep.subr.mxu0 0.0
    %5018 = vmatpush1.xpose.msra.mxu0 0.0
    %5019 = vmatprep.subr.mxu0 0.0
    %5020 = vmatpush1.xpose.msra.mxu0 0.0
    %5021 = vmatprep.subr.mxu0 0.0
    %5022 = vmatpush1.xpose.msra.mxu0 0.0
    %5023 = vmatprep.subr.mxu0 0.0
    %5024 = vmatpush1.xpose.msra.mxu0 0.0
    %5025 = vmatprep.subr.mxu0 0.0
    %5026 = vmatpush1.xpose.msra.mxu0 0.0
    %5027 = vmatprep.subr.mxu0 0.0
    %5028 = vmatpush1.xpose.msra.mxu0 0.0
    %5029 = vmatprep.subr.mxu0 0.0
    %5030 = vmatpush1.xpose.msra.mxu0 0.0
    %5031 = vmatprep.subr.mxu0 0.0
    %5032 = vmatpush1.xpose.msra.mxu0 0.0
    %5033 = vmatprep.subr.mxu0 0.0
    %5034 = vmatpush1.xpose.msra.mxu0 0.0
    %5035 = vmatprep.subr.mxu0 0.0
    %5036 = vmatpush1.xpose.msra.mxu0 0.0
    %5037 = vmatprep.subr.mxu0 0.0
    %5038 = vmatpush1.xpose.msra.mxu0 0.0
    %5039 = vmatprep.subr.mxu0 0.0
    %5040 = vmatpush1.xpose.msra.mxu0 0.0
    %5041 = vmatprep.subr.mxu0 0.0
    %5042 = vmatpush1.xpose.msra.mxu0 0.0
    %5043 = vmatprep.subr.mxu0 0.0
    %5044 = vmatpush1.xpose.msra.mxu0 0.0
    %5045 = vmatprep.subr.mxu0 0.0
    %5046 = vmatpush1.xpose.msra.mxu0 0.0
    %5047 = vmatprep.subr.mxu0 0.0
    %5048 = vmatpush1.xpose.msra.mxu0 0.0
    %5049 = vmatprep.subr.mxu0 0.0
    %5050 = vmatpush1.xpose.msra.mxu0 0.0
    %5051 = vmatprep.subr.mxu0 0.0
    %5052 = vmatpush1.xpose.msra.mxu0 0.0
    %5053 = vmatprep.subr.mxu0 0.0
    %5054 = vmatpush1.xpose.msra.mxu0 0.0
    %5055 = vmatprep.mubr.f32.mxu0 0.0
    %v5056 = vand.u32 %v4759, 4294901760
    %v5057 = vsub.f32 %v4759, %v5056
    %v5058 = vand.u32 %v5057, 4294901760
    %5059 = vmatmul.mubr.f32.gmra.mrb[0].mxu0 %v5058
    %v5060 = vpop.f32.mrb[0].mxu0
    %v5061 = vadd.f32 %v4987, %v5060
    %v5062 = vpop.f32.mrb[0].mxu0
    %5063 = vdwg.mxu0
    %5064 = vmatprep.subr.mxu0 0.0
    %v5065 = vand.u32 %v4762, 4294901760
    %v5066 = vsub.f32 %v4762, %v5065
    %v5067 = vand.u32 %v5066, 4294901760
    %5068 = vmatpush1.xpose.msra.mxu0 %v5067
    %5069 = vmatprep.subr.mxu0 0.0
    %5070 = vmatpush1.xpose.msra.mxu0 0.0
    %5071 = vmatprep.subr.mxu0 0.0
    %5072 = vmatpush1.xpose.msra.mxu0 0.0
    %5073 = vmatprep.subr.mxu0 0.0
    %5074 = vmatpush1.xpose.msra.mxu0 0.0
    %5075 = vmatprep.subr.mxu0 0.0
    %5076 = vmatpush1.xpose.msra.mxu0 0.0
    %5077 = vmatprep.subr.mxu0 0.0
    %5078 = vmatpush1.xpose.msra.mxu0 0.0
    %5079 = vmatprep.subr.mxu0 0.0
    %5080 = vmatpush1.xpose.msra.mxu0 0.0
    %5081 = vmatprep.subr.mxu0 0.0
    %5082 = vmatpush1.xpose.msra.mxu0 0.0
    %5083 = vmatprep.subr.mxu0 0.0
    %5084 = vmatpush1.xpose.msra.mxu0 0.0
    %5085 = vmatprep.subr.mxu0 0.0
    %5086 = vmatpush1.xpose.msra.mxu0 0.0
    %5087 = vmatprep.subr.mxu0 0.0
    %5088 = vmatpush1.xpose.msra.mxu0 0.0
    %5089 = vmatprep.subr.mxu0 0.0
    %5090 = vmatpush1.xpose.msra.mxu0 0.0
    %5091 = vmatprep.subr.mxu0 0.0
    %5092 = vmatpush1.xpose.msra.mxu0 0.0
    %5093 = vmatprep.subr.mxu0 0.0
    %5094 = vmatpush1.xpose.msra.mxu0 0.0
    %5095 = vmatprep.subr.mxu0 0.0
    %5096 = vmatpush1.xpose.msra.mxu0 0.0
    %5097 = vmatprep.subr.mxu0 0.0
    %5098 = vmatpush1.xpose.msra.mxu0 0.0
    %5099 = vmatprep.subr.mxu0 0.0
    %5100 = vmatpush1.xpose.msra.mxu0 0.0
    %5101 = vmatprep.subr.mxu0 0.0
    %5102 = vmatpush1.xpose.msra.mxu0 0.0
    %5103 = vmatprep.subr.mxu0 0.0
    %5104 = vmatpush1.xpose.msra.mxu0 0.0
    %5105 = vmatprep.subr.mxu0 0.0
    %5106 = vmatpush1.xpose.msra.mxu0 0.0
    %5107 = vmatprep.subr.mxu0 0.0
    %5108 = vmatpush1.xpose.msra.mxu0 0.0
    %5109 = vmatprep.subr.mxu0 0.0
    %5110 = vmatpush1.xpose.msra.mxu0 0.0
    %5111 = vmatprep.subr.mxu0 0.0
    %5112 = vmatpush1.xpose.msra.mxu0 0.0
    %5113 = vmatprep.subr.mxu0 0.0
    %5114 = vmatpush1.xpose.msra.mxu0 0.0
    %5115 = vmatprep.subr.mxu0 0.0
    %5116 = vmatpush1.xpose.msra.mxu0 0.0
    %5117 = vmatprep.subr.mxu0 0.0
    %5118 = vmatpush1.xpose.msra.mxu0 0.0
    %5119 = vmatprep.subr.mxu0 0.0
    %5120 = vmatpush1.xpose.msra.mxu0 0.0
    %5121 = vmatprep.subr.mxu0 0.0
    %5122 = vmatpush1.xpose.msra.mxu0 0.0
    %5123 = vmatprep.subr.mxu0 0.0
    %5124 = vmatpush1.xpose.msra.mxu0 0.0
    %5125 = vmatprep.subr.mxu0 0.0
    %5126 = vmatpush1.xpose.msra.mxu0 0.0
    %5127 = vmatprep.subr.mxu0 0.0
    %5128 = vmatpush1.xpose.msra.mxu0 0.0
    %5129 = vmatprep.subr.mxu0 0.0
    %5130 = vmatpush1.xpose.msra.mxu0 0.0
    %5131 = vmatprep.mubr.f32.mxu0 0.0
    %v5132 = vand.u32 %v4759, 4294901760
    %5133 = vmatmul.mubr.f32.gmra.mrb[0].mxu0 %v5132
    %v5134 = vpop.f32.mrb[0].mxu0
    %v5135 = vadd.f32 %v5061, %v5134
    %v5136 = vpop.f32.mrb[0].mxu0
    %5137 = vdwg.mxu0
    %5138 = vmatprep.subr.mxu0 0.0
    %v5139 = vand.u32 %v4762, 4294901760
    %5140 = vmatpush1.xpose.msra.mxu0 %v5139
    %5141 = vmatprep.subr.mxu0 0.0
    %5142 = vmatpush1.xpose.msra.mxu0 0.0
    %5143 = vmatprep.subr.mxu0 0.0
    %5144 = vmatpush1.xpose.msra.mxu0 0.0
    %5145 = vmatprep.subr.mxu0 0.0
    %5146 = vmatpush1.xpose.msra.mxu0 0.0
    %5147 = vmatprep.subr.mxu0 0.0
    %5148 = vmatpush1.xpose.msra.mxu0 0.0
    %5149 = vmatprep.subr.mxu0 0.0
    %5150 = vmatpush1.xpose.msra.mxu0 0.0
    %5151 = vmatprep.subr.mxu0 0.0
    %5152 = vmatpush1.xpose.msra.mxu0 0.0
    %5153 = vmatprep.subr.mxu0 0.0
    %5154 = vmatpush1.xpose.msra.mxu0 0.0
    %5155 = vmatprep.subr.mxu0 0.0
    %5156 = vmatpush1.xpose.msra.mxu0 0.0
    %5157 = vmatprep.subr.mxu0 0.0
    %5158 = vmatpush1.xpose.msra.mxu0 0.0
    %5159 = vmatprep.subr.mxu0 0.0
    %5160 = vmatpush1.xpose.msra.mxu0 0.0
    %5161 = vmatprep.subr.mxu0 0.0
    %5162 = vmatpush1.xpose.msra.mxu0 0.0
    %5163 = vmatprep.subr.mxu0 0.0
    %5164 = vmatpush1.xpose.msra.mxu0 0.0
    %5165 = vmatprep.subr.mxu0 0.0
    %5166 = vmatpush1.xpose.msra.mxu0 0.0
    %5167 = vmatprep.subr.mxu0 0.0
    %5168 = vmatpush1.xpose.msra.mxu0 0.0
    %5169 = vmatprep.subr.mxu0 0.0
    %5170 = vmatpush1.xpose.msra.mxu0 0.0
    %5171 = vmatprep.subr.mxu0 0.0
    %5172 = vmatpush1.xpose.msra.mxu0 0.0
    %5173 = vmatprep.subr.mxu0 0.0
    %5174 = vmatpush1.xpose.msra.mxu0 0.0
    %5175 = vmatprep.subr.mxu0 0.0
    %5176 = vmatpush1.xpose.msra.mxu0 0.0
    %5177 = vmatprep.subr.mxu0 0.0
    %5178 = vmatpush1.xpose.msra.mxu0 0.0
    %5179 = vmatprep.subr.mxu0 0.0
    %5180 = vmatpush1.xpose.msra.mxu0 0.0
    %5181 = vmatprep.subr.mxu0 0.0
    %5182 = vmatpush1.xpose.msra.mxu0 0.0
    %5183 = vmatprep.subr.mxu0 0.0
    %5184 = vmatpush1.xpose.msra.mxu0 0.0
    %5185 = vmatprep.subr.mxu0 0.0
    %5186 = vmatpush1.xpose.msra.mxu0 0.0
    %5187 = vmatprep.subr.mxu0 0.0
    %5188 = vmatpush1.xpose.msra.mxu0 0.0
    %5189 = vmatprep.subr.mxu0 0.0
    %5190 = vmatpush1.xpose.msra.mxu0 0.0
    %5191 = vmatprep.subr.mxu0 0.0
    %5192 = vmatpush1.xpose.msra.mxu0 0.0
    %5193 = vmatprep.subr.mxu0 0.0
    %5194 = vmatpush1.xpose.msra.mxu0 0.0
    %5195 = vmatprep.subr.mxu0 0.0
    %5196 = vmatpush1.xpose.msra.mxu0 0.0
    %5197 = vmatprep.subr.mxu0 0.0
    %5198 = vmatpush1.xpose.msra.mxu0 0.0
    %5199 = vmatprep.subr.mxu0 0.0
    %5200 = vmatpush1.xpose.msra.mxu0 0.0
    %5201 = vmatprep.subr.mxu0 0.0
    %5202 = vmatpush1.xpose.msra.mxu0 0.0
    %5203 = vmatprep.mubr.f32.mxu0 0.0
    %v5204 = vand.u32 %v4759, 4294901760
    %5205 = vmatmul.mubr.f32.gmra.mrb[0].mxu0 %v5204
    %v5206 = vpop.f32.mrb[0].mxu0
    %v5207 = vadd.f32 %v5135, %v5206
    %v5208 = vpop.f32.mrb[0].mxu0
    %5209 = vdwg.mxu0
    %v5211 = vsel %vm2045, %v1456, 0
    %v5214 = vsel %vm2045, %v1748, 0
    %5216 = vmatprep.subr.mxu0 0.0
    %v5217 = vand.u32 %v5214, 4294901760
    %5218 = vmatpush1.xpose.msra.mxu0 %v5217
    %5219 = vmatprep.subr.mxu0 0.0
    %5220 = vmatpush1.xpose.msra.mxu0 0.0
    %5221 = vmatprep.subr.mxu0 0.0
    %5222 = vmatpush1.xpose.msra.mxu0 0.0
    %5223 = vmatprep.subr.mxu0 0.0
    %5224 = vmatpush1.xpose.msra.mxu0 0.0
    %5225 = vmatprep.subr.mxu0 0.0
    %5226 = vmatpush1.xpose.msra.mxu0 0.0
    %5227 = vmatprep.subr.mxu0 0.0
    %5228 = vmatpush1.xpose.msra.mxu0 0.0
    %5229 = vmatprep.subr.mxu0 0.0
    %5230 = vmatpush1.xpose.msra.mxu0 0.0
    %5231 = vmatprep.subr.mxu0 0.0
    %5232 = vmatpush1.xpose.msra.mxu0 0.0
    %5233 = vmatprep.subr.mxu0 0.0
    %5234 = vmatpush1.xpose.msra.mxu0 0.0
    %5235 = vmatprep.subr.mxu0 0.0
    %5236 = vmatpush1.xpose.msra.mxu0 0.0
    %5237 = vmatprep.subr.mxu0 0.0
    %5238 = vmatpush1.xpose.msra.mxu0 0.0
    %5239 = vmatprep.subr.mxu0 0.0
    %5240 = vmatpush1.xpose.msra.mxu0 0.0
    %5241 = vmatprep.subr.mxu0 0.0
    %5242 = vmatpush1.xpose.msra.mxu0 0.0
    %5243 = vmatprep.subr.mxu0 0.0
    %5244 = vmatpush1.xpose.msra.mxu0 0.0
    %5245 = vmatprep.subr.mxu0 0.0
    %5246 = vmatpush1.xpose.msra.mxu0 0.0
    %5247 = vmatprep.subr.mxu0 0.0
    %5248 = vmatpush1.xpose.msra.mxu0 0.0
    %5249 = vmatprep.subr.mxu0 0.0
    %5250 = vmatpush1.xpose.msra.mxu0 0.0
    %5251 = vmatprep.subr.mxu0 0.0
    %5252 = vmatpush1.xpose.msra.mxu0 0.0
    %5253 = vmatprep.subr.mxu0 0.0
    %5254 = vmatpush1.xpose.msra.mxu0 0.0
    %5255 = vmatprep.subr.mxu0 0.0
    %5256 = vmatpush1.xpose.msra.mxu0 0.0
    %5257 = vmatprep.subr.mxu0 0.0
    %5258 = vmatpush1.xpose.msra.mxu0 0.0
    %5259 = vmatprep.subr.mxu0 0.0
    %5260 = vmatpush1.xpose.msra.mxu0 0.0
    %5261 = vmatprep.subr.mxu0 0.0
    %5262 = vmatpush1.xpose.msra.mxu0 0.0
    %5263 = vmatprep.subr.mxu0 0.0
    %5264 = vmatpush1.xpose.msra.mxu0 0.0
    %5265 = vmatprep.subr.mxu0 0.0
    %5266 = vmatpush1.xpose.msra.mxu0 0.0
    %5267 = vmatprep.subr.mxu0 0.0
    %5268 = vmatpush1.xpose.msra.mxu0 0.0
    %5269 = vmatprep.subr.mxu0 0.0
    %5270 = vmatpush1.xpose.msra.mxu0 0.0
    %5271 = vmatprep.subr.mxu0 0.0
    %5272 = vmatpush1.xpose.msra.mxu0 0.0
    %5273 = vmatprep.subr.mxu0 0.0
    %5274 = vmatpush1.xpose.msra.mxu0 0.0
    %5275 = vmatprep.subr.mxu0 0.0
    %5276 = vmatpush1.xpose.msra.mxu0 0.0
    %5277 = vmatprep.subr.mxu0 0.0
    %5278 = vmatpush1.xpose.msra.mxu0 0.0
    %5279 = vmatprep.subr.mxu0 0.0
    %5280 = vmatpush1.xpose.msra.mxu0 0.0
    %5281 = vmatprep.mubr.f32.mxu0 0.0
    %v5282 = vand.u32 %v5211, 4294901760
    %v5283 = vsub.f32 %v5211, %v5282
    %v5284 = vand.u32 %v5283, 4294901760
    %v5285 = vsub.f32 %v5283, %v5284
    %v5286 = vand.u32 %v5285, 4294901760
    %5287 = vmatmul.mubr.f32.gmra.mrb[0].mxu0 %v5286
    %v5288 = vpop.f32.mrb[0].mxu0
    %v5289 = vadd.f32 0.0, %v5288
    %v5290 = vpop.f32.mrb[0].mxu0
    %5291 = vdwg.mxu0
    %5292 = vmatprep.subr.mxu0 0.0
    %v5293 = vand.u32 %v5214, 4294901760
    %v5294 = vsub.f32 %v5214, %v5293
    %v5295 = vand.u32 %v5294, 4294901760
    %v5296 = vsub.f32 %v5294, %v5295
    %v5297 = vand.u32 %v5296, 4294901760
    %5298 = vmatpush1.xpose.msra.mxu0 %v5297
    %5299 = vmatprep.subr.mxu0 0.0
    %5300 = vmatpush1.xpose.msra.mxu0 0.0
    %5301 = vmatprep.subr.mxu0 0.0
    %5302 = vmatpush1.xpose.msra.mxu0 0.0
    %5303 = vmatprep.subr.mxu0 0.0
    %5304 = vmatpush1.xpose.msra.mxu0 0.0
    %5305 = vmatprep.subr.mxu0 0.0
    %5306 = vmatpush1.xpose.msra.mxu0 0.0
    %5307 = vmatprep.subr.mxu0 0.0
    %5308 = vmatpush1.xpose.msra.mxu0 0.0
    %5309 = vmatprep.subr.mxu0 0.0
    %5310 = vmatpush1.xpose.msra.mxu0 0.0
    %5311 = vmatprep.subr.mxu0 0.0
    %5312 = vmatpush1.xpose.msra.mxu0 0.0
    %5313 = vmatprep.subr.mxu0 0.0
    %5314 = vmatpush1.xpose.msra.mxu0 0.0
    %5315 = vmatprep.subr.mxu0 0.0
    %5316 = vmatpush1.xpose.msra.mxu0 0.0
    %5317 = vmatprep.subr.mxu0 0.0
    %5318 = vmatpush1.xpose.msra.mxu0 0.0
    %5319 = vmatprep.subr.mxu0 0.0
    %5320 = vmatpush1.xpose.msra.mxu0 0.0
    %5321 = vmatprep.subr.mxu0 0.0
    %5322 = vmatpush1.xpose.msra.mxu0 0.0
    %5323 = vmatprep.subr.mxu0 0.0
    %5324 = vmatpush1.xpose.msra.mxu0 0.0
    %5325 = vmatprep.subr.mxu0 0.0
    %5326 = vmatpush1.xpose.msra.mxu0 0.0
    %5327 = vmatprep.subr.mxu0 0.0
    %5328 = vmatpush1.xpose.msra.mxu0 0.0
    %5329 = vmatprep.subr.mxu0 0.0
    %5330 = vmatpush1.xpose.msra.mxu0 0.0
    %5331 = vmatprep.subr.mxu0 0.0
    %5332 = vmatpush1.xpose.msra.mxu0 0.0
    %5333 = vmatprep.subr.mxu0 0.0
    %5334 = vmatpush1.xpose.msra.mxu0 0.0
    %5335 = vmatprep.subr.mxu0 0.0
    %5336 = vmatpush1.xpose.msra.mxu0 0.0
    %5337 = vmatprep.subr.mxu0 0.0
    %5338 = vmatpush1.xpose.msra.mxu0 0.0
    %5339 = vmatprep.subr.mxu0 0.0
    %5340 = vmatpush1.xpose.msra.mxu0 0.0
    %5341 = vmatprep.subr.mxu0 0.0
    %5342 = vmatpush1.xpose.msra.mxu0 0.0
    %5343 = vmatprep.subr.mxu0 0.0
    %5344 = vmatpush1.xpose.msra.mxu0 0.0
    %5345 = vmatprep.subr.mxu0 0.0
    %5346 = vmatpush1.xpose.msra.mxu0 0.0
    %5347 = vmatprep.subr.mxu0 0.0
    %5348 = vmatpush1.xpose.msra.mxu0 0.0
    %5349 = vmatprep.subr.mxu0 0.0
    %5350 = vmatpush1.xpose.msra.mxu0 0.0
    %5351 = vmatprep.subr.mxu0 0.0
    %5352 = vmatpush1.xpose.msra.mxu0 0.0
    %5353 = vmatprep.subr.mxu0 0.0
    %5354 = vmatpush1.xpose.msra.mxu0 0.0
    %5355 = vmatprep.subr.mxu0 0.0
    %5356 = vmatpush1.xpose.msra.mxu0 0.0
    %5357 = vmatprep.subr.mxu0 0.0
    %5358 = vmatpush1.xpose.msra.mxu0 0.0
    %5359 = vmatprep.subr.mxu0 0.0
    %5360 = vmatpush1.xpose.msra.mxu0 0.0
    %5361 = vmatprep.mubr.f32.mxu0 0.0
    %v5362 = vand.u32 %v5211, 4294901760
    %5363 = vmatmul.mubr.f32.gmra.mrb[0].mxu0 %v5362
    %v5364 = vpop.f32.mrb[0].mxu0
    %v5365 = vadd.f32 %v5289, %v5364
    %v5366 = vpop.f32.mrb[0].mxu0
    %5367 = vdwg.mxu0
    %5368 = vmatprep.subr.mxu0 0.0
    %v5369 = vand.u32 %v5214, 4294901760
    %v5370 = vsub.f32 %v5214, %v5369
    %5371 = vmatpush1.xpose.msra.mxu0 %v5370
    %5372 = vmatprep.subr.mxu0 0.0
    %5373 = vmatpush1.xpose.msra.mxu0 0.0
    %5374 = vmatprep.subr.mxu0 0.0
    %5375 = vmatpush1.xpose.msra.mxu0 0.0
    %5376 = vmatprep.subr.mxu0 0.0
    %5377 = vmatpush1.xpose.msra.mxu0 0.0
    %5378 = vmatprep.subr.mxu0 0.0
    %5379 = vmatpush1.xpose.msra.mxu0 0.0
    %5380 = vmatprep.subr.mxu0 0.0
    %5381 = vmatpush1.xpose.msra.mxu0 0.0
    %5382 = vmatprep.subr.mxu0 0.0
    %5383 = vmatpush1.xpose.msra.mxu0 0.0
    %5384 = vmatprep.subr.mxu0 0.0
    %5385 = vmatpush1.xpose.msra.mxu0 0.0
    %5386 = vmatprep.subr.mxu0 0.0
    %5387 = vmatpush1.xpose.msra.mxu0 0.0
    %5388 = vmatprep.subr.mxu0 0.0
    %5389 = vmatpush1.xpose.msra.mxu0 0.0
    %5390 = vmatprep.subr.mxu0 0.0
    %5391 = vmatpush1.xpose.msra.mxu0 0.0
    %5392 = vmatprep.subr.mxu0 0.0
    %5393 = vmatpush1.xpose.msra.mxu0 0.0
    %5394 = vmatprep.subr.mxu0 0.0
    %5395 = vmatpush1.xpose.msra.mxu0 0.0
    %5396 = vmatprep.subr.mxu0 0.0
    %5397 = vmatpush1.xpose.msra.mxu0 0.0
    %5398 = vmatprep.subr.mxu0 0.0
    %5399 = vmatpush1.xpose.msra.mxu0 0.0
    %5400 = vmatprep.subr.mxu0 0.0
    %5401 = vmatpush1.xpose.msra.mxu0 0.0
    %5402 = vmatprep.subr.mxu0 0.0
    %5403 = vmatpush1.xpose.msra.mxu0 0.0
    %5404 = vmatprep.subr.mxu0 0.0
    %5405 = vmatpush1.xpose.msra.mxu0 0.0
    %5406 = vmatprep.subr.mxu0 0.0
    %5407 = vmatpush1.xpose.msra.mxu0 0.0
    %5408 = vmatprep.subr.mxu0 0.0
    %5409 = vmatpush1.xpose.msra.mxu0 0.0
    %5410 = vmatprep.subr.mxu0 0.0
    %5411 = vmatpush1.xpose.msra.mxu0 0.0
    %5412 = vmatprep.subr.mxu0 0.0
    %5413 = vmatpush1.xpose.msra.mxu0 0.0
    %5414 = vmatprep.subr.mxu0 0.0
    %5415 = vmatpush1.xpose.msra.mxu0 0.0
    %5416 = vmatprep.subr.mxu0 0.0
    %5417 = vmatpush1.xpose.msra.mxu0 0.0
    %5418 = vmatprep.subr.mxu0 0.0
    %5419 = vmatpush1.xpose.msra.mxu0 0.0
    %5420 = vmatprep.subr.mxu0 0.0
    %5421 = vmatpush1.xpose.msra.mxu0 0.0
    %5422 = vmatprep.subr.mxu0 0.0
    %5423 = vmatpush1.xpose.msra.mxu0 0.0
    %5424 = vmatprep.subr.mxu0 0.0
    %5425 = vmatpush1.xpose.msra.mxu0 0.0
    %5426 = vmatprep.subr.mxu0 0.0
    %5427 = vmatpush1.xpose.msra.mxu0 0.0
    %5428 = vmatprep.subr.mxu0 0.0
    %5429 = vmatpush1.xpose.msra.mxu0 0.0
    %5430 = vmatprep.subr.mxu0 0.0
    %5431 = vmatpush1.xpose.msra.mxu0 0.0
    %5432 = vmatprep.subr.mxu0 0.0
    %5433 = vmatpush1.xpose.msra.mxu0 0.0
    %5434 = vmatprep.mubr.f32.mxu0 0.0
    %v5435 = vand.u32 %v5211, 4294901760
    %v5436 = vsub.f32 %v5211, %v5435
    %5437 = vmatmul.mubr.f32.gmra.mrb[0].mxu0 %v5436
    %v5438 = vpop.f32.mrb[0].mxu0
    %v5439 = vadd.f32 %v5365, %v5438
    %v5440 = vpop.f32.mrb[0].mxu0
    %5441 = vdwg.mxu0
    %5442 = vmatprep.subr.mxu0 0.0
    %v5443 = vand.u32 %v5214, 4294901760
    %5444 = vmatpush1.xpose.msra.mxu0 %v5443
    %5445 = vmatprep.subr.mxu0 0.0
    %5446 = vmatpush1.xpose.msra.mxu0 0.0
    %5447 = vmatprep.subr.mxu0 0.0
    %5448 = vmatpush1.xpose.msra.mxu0 0.0
    %5449 = vmatprep.subr.mxu0 0.0
    %5450 = vmatpush1.xpose.msra.mxu0 0.0
    %5451 = vmatprep.subr.mxu0 0.0
    %5452 = vmatpush1.xpose.msra.mxu0 0.0
    %5453 = vmatprep.subr.mxu0 0.0
    %5454 = vmatpush1.xpose.msra.mxu0 0.0
    %5455 = vmatprep.subr.mxu0 0.0
    %5456 = vmatpush1.xpose.msra.mxu0 0.0
    %5457 = vmatprep.subr.mxu0 0.0
    %5458 = vmatpush1.xpose.msra.mxu0 0.0
    %5459 = vmatprep.subr.mxu0 0.0
    %5460 = vmatpush1.xpose.msra.mxu0 0.0
    %5461 = vmatprep.subr.mxu0 0.0
    %5462 = vmatpush1.xpose.msra.mxu0 0.0
    %5463 = vmatprep.subr.mxu0 0.0
    %5464 = vmatpush1.xpose.msra.mxu0 0.0
    %5465 = vmatprep.subr.mxu0 0.0
    %5466 = vmatpush1.xpose.msra.mxu0 0.0
    %5467 = vmatprep.subr.mxu0 0.0
    %5468 = vmatpush1.xpose.msra.mxu0 0.0
    %5469 = vmatprep.subr.mxu0 0.0
    %5470 = vmatpush1.xpose.msra.mxu0 0.0
    %5471 = vmatprep.subr.mxu0 0.0
    %5472 = vmatpush1.xpose.msra.mxu0 0.0
    %5473 = vmatprep.subr.mxu0 0.0
    %5474 = vmatpush1.xpose.msra.mxu0 0.0
    %5475 = vmatprep.subr.mxu0 0.0
    %5476 = vmatpush1.xpose.msra.mxu0 0.0
    %5477 = vmatprep.subr.mxu0 0.0
    %5478 = vmatpush1.xpose.msra.mxu0 0.0
    %5479 = vmatprep.subr.mxu0 0.0
    %5480 = vmatpush1.xpose.msra.mxu0 0.0
    %5481 = vmatprep.subr.mxu0 0.0
    %5482 = vmatpush1.xpose.msra.mxu0 0.0
    %5483 = vmatprep.subr.mxu0 0.0
    %5484 = vmatpush1.xpose.msra.mxu0 0.0
    %5485 = vmatprep.subr.mxu0 0.0
    %5486 = vmatpush1.xpose.msra.mxu0 0.0
    %5487 = vmatprep.subr.mxu0 0.0
    %5488 = vmatpush1.xpose.msra.mxu0 0.0
    %5489 = vmatprep.subr.mxu0 0.0
    %5490 = vmatpush1.xpose.msra.mxu0 0.0
    %5491 = vmatprep.subr.mxu0 0.0
    %5492 = vmatpush1.xpose.msra.mxu0 0.0
    %5493 = vmatprep.subr.mxu0 0.0
    %5494 = vmatpush1.xpose.msra.mxu0 0.0
    %5495 = vmatprep.subr.mxu0 0.0
    %5496 = vmatpush1.xpose.msra.mxu0 0.0
    %5497 = vmatprep.subr.mxu0 0.0
    %5498 = vmatpush1.xpose.msra.mxu0 0.0
    %5499 = vmatprep.subr.mxu0 0.0
    %5500 = vmatpush1.xpose.msra.mxu0 0.0
    %5501 = vmatprep.subr.mxu0 0.0
    %5502 = vmatpush1.xpose.msra.mxu0 0.0
    %5503 = vmatprep.subr.mxu0 0.0
    %5504 = vmatpush1.xpose.msra.mxu0 0.0
    %5505 = vmatprep.subr.mxu0 0.0
    %5506 = vmatpush1.xpose.msra.mxu0 0.0
    %5507 = vmatprep.mubr.f32.mxu0 0.0
    %v5508 = vand.u32 %v5211, 4294901760
    %v5509 = vsub.f32 %v5211, %v5508
    %v5510 = vand.u32 %v5509, 4294901760
    %5511 = vmatmul.mubr.f32.gmra.mrb[0].mxu0 %v5510
    %v5512 = vpop.f32.mrb[0].mxu0
    %v5513 = vadd.f32 %v5439, %v5512
    %v5514 = vpop.f32.mrb[0].mxu0
    %5515 = vdwg.mxu0
    %5516 = vmatprep.subr.mxu0 0.0
    %v5517 = vand.u32 %v5214, 4294901760
    %v5518 = vsub.f32 %v5214, %v5517
    %v5519 = vand.u32 %v5518, 4294901760
    %5520 = vmatpush1.xpose.msra.mxu0 %v5519
    %5521 = vmatprep.subr.mxu0 0.0
    %5522 = vmatpush1.xpose.msra.mxu0 0.0
    %5523 = vmatprep.subr.mxu0 0.0
    %5524 = vmatpush1.xpose.msra.mxu0 0.0
    %5525 = vmatprep.subr.mxu0 0.0
    %5526 = vmatpush1.xpose.msra.mxu0 0.0
    %5527 = vmatprep.subr.mxu0 0.0
    %5528 = vmatpush1.xpose.msra.mxu0 0.0
    %5529 = vmatprep.subr.mxu0 0.0
    %5530 = vmatpush1.xpose.msra.mxu0 0.0
    %5531 = vmatprep.subr.mxu0 0.0
    %5532 = vmatpush1.xpose.msra.mxu0 0.0
    %5533 = vmatprep.subr.mxu0 0.0
    %5534 = vmatpush1.xpose.msra.mxu0 0.0
    %5535 = vmatprep.subr.mxu0 0.0
    %5536 = vmatpush1.xpose.msra.mxu0 0.0
    %5537 = vmatprep.subr.mxu0 0.0
    %5538 = vmatpush1.xpose.msra.mxu0 0.0
    %5539 = vmatprep.subr.mxu0 0.0
    %5540 = vmatpush1.xpose.msra.mxu0 0.0
    %5541 = vmatprep.subr.mxu0 0.0
    %5542 = vmatpush1.xpose.msra.mxu0 0.0
    %5543 = vmatprep.subr.mxu0 0.0
    %5544 = vmatpush1.xpose.msra.mxu0 0.0
    %5545 = vmatprep.subr.mxu0 0.0
    %5546 = vmatpush1.xpose.msra.mxu0 0.0
    %5547 = vmatprep.subr.mxu0 0.0
    %5548 = vmatpush1.xpose.msra.mxu0 0.0
    %5549 = vmatprep.subr.mxu0 0.0
    %5550 = vmatpush1.xpose.msra.mxu0 0.0
    %5551 = vmatprep.subr.mxu0 0.0
    %5552 = vmatpush1.xpose.msra.mxu0 0.0
    %5553 = vmatprep.subr.mxu0 0.0
    %5554 = vmatpush1.xpose.msra.mxu0 0.0
    %5555 = vmatprep.subr.mxu0 0.0
    %5556 = vmatpush1.xpose.msra.mxu0 0.0
    %5557 = vmatprep.subr.mxu0 0.0
    %5558 = vmatpush1.xpose.msra.mxu0 0.0
    %5559 = vmatprep.subr.mxu0 0.0
    %5560 = vmatpush1.xpose.msra.mxu0 0.0
    %5561 = vmatprep.subr.mxu0 0.0
    %5562 = vmatpush1.xpose.msra.mxu0 0.0
    %5563 = vmatprep.subr.mxu0 0.0
    %5564 = vmatpush1.xpose.msra.mxu0 0.0
    %5565 = vmatprep.subr.mxu0 0.0
    %5566 = vmatpush1.xpose.msra.mxu0 0.0
    %5567 = vmatprep.subr.mxu0 0.0
    %5568 = vmatpush1.xpose.msra.mxu0 0.0
    %5569 = vmatprep.subr.mxu0 0.0
    %5570 = vmatpush1.xpose.msra.mxu0 0.0
    %5571 = vmatprep.subr.mxu0 0.0
    %5572 = vmatpush1.xpose.msra.mxu0 0.0
    %5573 = vmatprep.subr.mxu0 0.0
    %5574 = vmatpush1.xpose.msra.mxu0 0.0
    %5575 = vmatprep.subr.mxu0 0.0
    %5576 = vmatpush1.xpose.msra.mxu0 0.0
    %5577 = vmatprep.subr.mxu0 0.0
    %5578 = vmatpush1.xpose.msra.mxu0 0.0
    %5579 = vmatprep.subr.mxu0 0.0
    %5580 = vmatpush1.xpose.msra.mxu0 0.0
    %5581 = vmatprep.subr.mxu0 0.0
    %5582 = vmatpush1.xpose.msra.mxu0 0.0
    %5583 = vmatprep.mubr.f32.mxu0 0.0
    %v5584 = vand.u32 %v5211, 4294901760
    %5585 = vmatmul.mubr.f32.gmra.mrb[0].mxu0 %v5584
    %v5586 = vpop.f32.mrb[0].mxu0
    %v5587 = vadd.f32 %v5513, %v5586
    %v5588 = vpop.f32.mrb[0].mxu0
    %5589 = vdwg.mxu0
    %5590 = vmatprep.subr.mxu0 0.0
    %v5591 = vand.u32 %v5214, 4294901760
    %5592 = vmatpush1.xpose.msra.mxu0 %v5591
    %5593 = vmatprep.subr.mxu0 0.0
    %5594 = vmatpush1.xpose.msra.mxu0 0.0
    %5595 = vmatprep.subr.mxu0 0.0
    %5596 = vmatpush1.xpose.msra.mxu0 0.0
    %5597 = vmatprep.subr.mxu0 0.0
    %5598 = vmatpush1.xpose.msra.mxu0 0.0
    %5599 = vmatprep.subr.mxu0 0.0
    %5600 = vmatpush1.xpose.msra.mxu0 0.0
    %5601 = vmatprep.subr.mxu0 0.0
    %5602 = vmatpush1.xpose.msra.mxu0 0.0
    %5603 = vmatprep.subr.mxu0 0.0
    %5604 = vmatpush1.xpose.msra.mxu0 0.0
    %5605 = vmatprep.subr.mxu0 0.0
    %5606 = vmatpush1.xpose.msra.mxu0 0.0
    %5607 = vmatprep.subr.mxu0 0.0
    %5608 = vmatpush1.xpose.msra.mxu0 0.0
    %5609 = vmatprep.subr.mxu0 0.0
    %5610 = vmatpush1.xpose.msra.mxu0 0.0
    %5611 = vmatprep.subr.mxu0 0.0
    %5612 = vmatpush1.xpose.msra.mxu0 0.0
    %5613 = vmatprep.subr.mxu0 0.0
    %5614 = vmatpush1.xpose.msra.mxu0 0.0
    %5615 = vmatprep.subr.mxu0 0.0
    %5616 = vmatpush1.xpose.msra.mxu0 0.0
    %5617 = vmatprep.subr.mxu0 0.0
    %5618 = vmatpush1.xpose.msra.mxu0 0.0
    %5619 = vmatprep.subr.mxu0 0.0
    %5620 = vmatpush1.xpose.msra.mxu0 0.0
    %5621 = vmatprep.subr.mxu0 0.0
    %5622 = vmatpush1.xpose.msra.mxu0 0.0
    %5623 = vmatprep.subr.mxu0 0.0
    %5624 = vmatpush1.xpose.msra.mxu0 0.0
    %5625 = vmatprep.subr.mxu0 0.0
    %5626 = vmatpush1.xpose.msra.mxu0 0.0
    %5627 = vmatprep.subr.mxu0 0.0
    %5628 = vmatpush1.xpose.msra.mxu0 0.0
    %5629 = vmatprep.subr.mxu0 0.0
    %5630 = vmatpush1.xpose.msra.mxu0 0.0
    %5631 = vmatprep.subr.mxu0 0.0
    %5632 = vmatpush1.xpose.msra.mxu0 0.0
    %5633 = vmatprep.subr.mxu0 0.0
    %5634 = vmatpush1.xpose.msra.mxu0 0.0
    %5635 = vmatprep.subr.mxu0 0.0
    %5636 = vmatpush1.xpose.msra.mxu0 0.0
    %5637 = vmatprep.subr.mxu0 0.0
    %5638 = vmatpush1.xpose.msra.mxu0 0.0
    %5639 = vmatprep.subr.mxu0 0.0
    %5640 = vmatpush1.xpose.msra.mxu0 0.0
    %5641 = vmatprep.subr.mxu0 0.0
    %5642 = vmatpush1.xpose.msra.mxu0 0.0
    %5643 = vmatprep.subr.mxu0 0.0
    %5644 = vmatpush1.xpose.msra.mxu0 0.0
    %5645 = vmatprep.subr.mxu0 0.0
    %5646 = vmatpush1.xpose.msra.mxu0 0.0
    %5647 = vmatprep.subr.mxu0 0.0
    %5648 = vmatpush1.xpose.msra.mxu0 0.0
    %5649 = vmatprep.subr.mxu0 0.0
    %5650 = vmatpush1.xpose.msra.mxu0 0.0
    %5651 = vmatprep.subr.mxu0 0.0
    %5652 = vmatpush1.xpose.msra.mxu0 0.0
    %5653 = vmatprep.subr.mxu0 0.0
    %5654 = vmatpush1.xpose.msra.mxu0 0.0
    %5655 = vmatprep.mubr.f32.mxu0 0.0
    %v5656 = vand.u32 %v5211, 4294901760
    %5657 = vmatmul.mubr.f32.gmra.mrb[0].mxu0 %v5656
    %v5658 = vpop.f32.mrb[0].mxu0
    %v5659 = vadd.f32 %v5587, %v5658
    %v5660 = vpop.f32.mrb[0].mxu0
    %5661 = vdwg.mxu0
    %v5662 = vmul.f32 %v2495, 0.35355338
    %v5663 = vmul.f32 %v2947, 0.35355338
    %v5664 = vmul.f32 %v3399, 0.35355338
    %v5665 = vmul.f32 %v3851, 0.35355338
    %v5666 = vmul.f32 %v4303, 0.35355338
    %v5667 = vmul.f32 %v4755, 0.35355338
    %v5668 = vmul.f32 %v5207, 0.35355338
    %v5669 = vmul.f32 %v5659, 0.35355338
    %v5670 = vsel %vm2045, %v5662, -inf
    %5671 = vmax.xlane.f32.xlu0 %v5670
    %v5672 = vpop.xlane.xlu0 %5671
    %v5673 = vsel %vm2045, %v5663, -inf
    %5674 = vmax.xlane.f32.xlu0 %v5673
    %v5675 = vpop.xlane.xlu0 %5674
    %v5676 = vsel %vm2045, %v5664, -inf
    %5677 = vmax.xlane.f32.xlu0 %v5676
    %v5678 = vpop.xlane.xlu0 %5677
    %v5679 = vsel %vm2045, %v5665, -inf
    %5680 = vmax.xlane.f32.xlu0 %v5679
    %v5681 = vpop.xlane.xlu0 %5680
    %v5682 = vsel %vm2045, %v5666, -inf
    %5683 = vmax.xlane.f32.xlu0 %v5682
    %v5684 = vpop.xlane.xlu0 %5683
    %v5685 = vsel %vm2045, %v5667, -inf
    %5686 = vmax.xlane.f32.xlu0 %v5685
    %v5687 = vpop.xlane.xlu0 %5686
    %v5688 = vsel %vm2045, %v5668, -inf
    %5689 = vmax.xlane.f32.xlu0 %v5688
    %v5690 = vpop.xlane.xlu0 %5689
    %v5691 = vsel %vm2045, %v5669, -inf
    %5692 = vmax.xlane.f32.xlu0 %v5691
    %v5693 = vpop.xlane.xlu0 %5692
    %v5694 = vsub.f32 %v5662, %v5672
    %v5695 = vsub.f32 %v5663, %v5675
    %v5696 = vsub.f32 %v5664, %v5678
    %v5697 = vsub.f32 %v5665, %v5681
    %v5698 = vsub.f32 %v5666, %v5684
    %v5699 = vsub.f32 %v5667, %v5687
    %v5700 = vsub.f32 %v5668, %v5690
    %v5701 = vsub.f32 %v5669, %v5693
    %v5702 = vmul.f32 %v5694, 1.442695
    %v5703 = vpow.pop %v5702
    %v5704 = vmul.f32 %v5695, 1.442695
    %v5705 = vpow.pop %v5704
    %v5706 = vmul.f32 %v5696, 1.442695
    %v5707 = vpow.pop %v5706
    %v5708 = vmul.f32 %v5697, 1.442695
    %v5709 = vpow.pop %v5708
    %v5710 = vmul.f32 %v5698, 1.442695
    %v5711 = vpow.pop %v5710
    %v5712 = vmul.f32 %v5699, 1.442695
    %v5713 = vpow.pop %v5712
    %v5714 = vmul.f32 %v5700, 1.442695
    %v5715 = vpow.pop %v5714
    %v5716 = vmul.f32 %v5701, 1.442695
    %v5717 = vpow.pop %v5716
    %v5718 = vsel %vm2045, %v5703, 0.0
    %5719 = vadd.xlane.f32.xlu0 %v5718
    %v5720 = vpop.xlane.xlu0 %5719
    %v5721 = vsel %vm2045, %v5705, 0.0
    %5722 = vadd.xlane.f32.xlu0 %v5721
    %v5723 = vpop.xlane.xlu0 %5722
    %v5724 = vsel %vm2045, %v5707, 0.0
    %5725 = vadd.xlane.f32.xlu0 %v5724
    %v5726 = vpop.xlane.xlu0 %5725
    %v5727 = vsel %vm2045, %v5709, 0.0
    %5728 = vadd.xlane.f32.xlu0 %v5727
    %v5729 = vpop.xlane.xlu0 %5728
    %v5730 = vsel %vm2045, %v5711, 0.0
    %5731 = vadd.xlane.f32.xlu0 %v5730
    %v5732 = vpop.xlane.xlu0 %5731
    %v5733 = vsel %vm2045, %v5713, 0.0
    %5734 = vadd.xlane.f32.xlu0 %v5733
    %v5735 = vpop.xlane.xlu0 %5734
    %v5736 = vsel %vm2045, %v5715, 0.0
    %5737 = vadd.xlane.f32.xlu0 %v5736
    %v5738 = vpop.xlane.xlu0 %5737
    %v5739 = vsel %vm2045, %v5717, 0.0
    %5740 = vadd.xlane.f32.xlu0 %v5739
    %v5741 = vpop.xlane.xlu0 %5740
    %v5742 = vrcp.pop %v5720
    %v5743 = vrcp.pop %v5723
    %v5744 = vrcp.pop %v5726
    %v5745 = vrcp.pop %v5729
    %v5746 = vrcp.pop %v5732
    %v5747 = vrcp.pop %v5735
    %v5748 = vrcp.pop %v5738
    %v5749 = vrcp.pop %v5741
    %v5750 = vmul.f32 %v5703, %v5742
    %v5751 = vmul.f32 %v5705, %v5743
    %v5752 = vmul.f32 %v5707, %v5744
    %v5753 = vmul.f32 %v5709, %v5745
    %v5754 = vmul.f32 %v5711, %v5746
    %v5755 = vmul.f32 %v5713, %v5747
    %v5756 = vmul.f32 %v5715, %v5748
    %v5757 = vmul.f32 %v5717, %v5749
    %v5759 = vsel %vm2045, %v5750, 0
    %5761 = vmatprep.subr.mxu0 0.0
    %v5762 = vand.u32 %v1973, 4294901760
    %5763 = vmatpush1.msra.mxu0 %v5762
    %5764 = vmatprep.subr.mxu0 0.0
    %5765 = vmatpush1.msra.mxu0 0.0
    %5766 = vmatprep.subr.mxu0 0.0
    %5767 = vmatpush1.msra.mxu0 0.0
    %5768 = vmatprep.subr.mxu0 0.0
    %5769 = vmatpush1.msra.mxu0 0.0
    %5770 = vmatprep.subr.mxu0 0.0
    %5771 = vmatpush1.msra.mxu0 0.0
    %5772 = vmatprep.subr.mxu0 0.0
    %5773 = vmatpush1.msra.mxu0 0.0
    %5774 = vmatprep.subr.mxu0 0.0
    %5775 = vmatpush1.msra.mxu0 0.0
    %5776 = vmatprep.subr.mxu0 0.0
    %5777 = vmatpush1.msra.mxu0 0.0
    %5778 = vmatprep.subr.mxu0 0.0
    %5779 = vmatpush1.msra.mxu0 0.0
    %5780 = vmatprep.subr.mxu0 0.0
    %5781 = vmatpush1.msra.mxu0 0.0
    %5782 = vmatprep.subr.mxu0 0.0
    %5783 = vmatpush1.msra.mxu0 0.0
    %5784 = vmatprep.subr.mxu0 0.0
    %5785 = vmatpush1.msra.mxu0 0.0
    %5786 = vmatprep.subr.mxu0 0.0
    %5787 = vmatpush1.msra.mxu0 0.0
    %5788 = vmatprep.subr.mxu0 0.0
    %5789 = vmatpush1.msra.mxu0 0.0
    %5790 = vmatprep.subr.mxu0 0.0
    %5791 = vmatpush1.msra.mxu0 0.0
    %5792 = vmatprep.subr.mxu0 0.0
    %5793 = vmatpush1.msra.mxu0 0.0
    %5794 = vmatprep.subr.mxu0 0.0
    %5795 = vmatpush1.msra.mxu0 0.0
    %5796 = vmatprep.subr.mxu0 0.0
    %5797 = vmatpush1.msra.mxu0 0.0
    %5798 = vmatprep.subr.mxu0 0.0
    %5799 = vmatpush1.msra.mxu0 0.0
    %5800 = vmatprep.subr.mxu0 0.0
    %5801 = vmatpush1.msra.mxu0 0.0
    %5802 = vmatprep.subr.mxu0 0.0
    %5803 = vmatpush1.msra.mxu0 0.0
    %5804 = vmatprep.subr.mxu0 0.0
    %5805 = vmatpush1.msra.mxu0 0.0
    %5806 = vmatprep.subr.mxu0 0.0
    %5807 = vmatpush1.msra.mxu0 0.0
    %5808 = vmatprep.subr.mxu0 0.0
    %5809 = vmatpush1.msra.mxu0 0.0
    %5810 = vmatprep.subr.mxu0 0.0
    %5811 = vmatpush1.msra.mxu0 0.0
    %5812 = vmatprep.subr.mxu0 0.0
    %5813 = vmatpush1.msra.mxu0 0.0
    %5814 = vmatprep.subr.mxu0 0.0
    %5815 = vmatpush1.msra.mxu0 0.0
    %5816 = vmatprep.subr.mxu0 0.0
    %5817 = vmatpush1.msra.mxu0 0.0
    %5818 = vmatprep.subr.mxu0 0.0
    %5819 = vmatpush1.msra.mxu0 0.0
    %5820 = vmatprep.subr.mxu0 0.0
    %5821 = vmatpush1.msra.mxu0 0.0
    %5822 = vmatprep.subr.mxu0 0.0
    %5823 = vmatpush1.msra.mxu0 0.0
    %5824 = vmatprep.subr.mxu0 0.0
    %5825 = vmatpush1.msra.mxu0 0.0
    %5826 = vmatprep.mubr.f32.mxu0 0.0
    %v5827 = vand.u32 %v5759, 4294901760
    %v5828 = vsub.f32 %v5759, %v5827
    %v5829 = vand.u32 %v5828, 4294901760
    %v5830 = vsub.f32 %v5828, %v5829
    %v5831 = vand.u32 %v5830, 4294901760
    %5832 = vmatmul.mubr.f32.gmra.mrb[0].mxu0 %v5831
    %v5833 = vpop.f32.mrb[0].mxu0
    %v5834 = vadd.f32 0.0, %v5833
    %v5835 = vpop.f32.mrb[0].mxu0
    %5836 = vdwg.mxu0
    %5837 = vmatprep.subr.mxu0 0.0
    %v5838 = vand.u32 %v1973, 4294901760
    %v5839 = vsub.f32 %v1973, %v5838
    %v5840 = vand.u32 %v5839, 4294901760
    %v5841 = vsub.f32 %v5839, %v5840
    %v5842 = vand.u32 %v5841, 4294901760
    %5843 = vmatpush1.msra.mxu0 %v5842
    %5844 = vmatprep.subr.mxu0 0.0
    %5845 = vmatpush1.msra.mxu0 0.0
    %5846 = vmatprep.subr.mxu0 0.0
    %5847 = vmatpush1.msra.mxu0 0.0
    %5848 = vmatprep.subr.mxu0 0.0
    %5849 = vmatpush1.msra.mxu0 0.0
    %5850 = vmatprep.subr.mxu0 0.0
    %5851 = vmatpush1.msra.mxu0 0.0
    %5852 = vmatprep.subr.mxu0 0.0
    %5853 = vmatpush1.msra.mxu0 0.0
    %5854 = vmatprep.subr.mxu0 0.0
    %5855 = vmatpush1.msra.mxu0 0.0
    %5856 = vmatprep.subr.mxu0 0.0
    %5857 = vmatpush1.msra.mxu0 0.0
    %5858 = vmatprep.subr.mxu0 0.0
    %5859 = vmatpush1.msra.mxu0 0.0
    %5860 = vmatprep.subr.mxu0 0.0
    %5861 = vmatpush1.msra.mxu0 0.0
    %5862 = vmatprep.subr.mxu0 0.0
    %5863 = vmatpush1.msra.mxu0 0.0
    %5864 = vmatprep.subr.mxu0 0.0
    %5865 = vmatpush1.msra.mxu0 0.0
    %5866 = vmatprep.subr.mxu0 0.0
    %5867 = vmatpush1.msra.mxu0 0.0
    %5868 = vmatprep.subr.mxu0 0.0
    %5869 = vmatpush1.msra.mxu0 0.0
    %5870 = vmatprep.subr.mxu0 0.0
    %5871 = vmatpush1.msra.mxu0 0.0
    %5872 = vmatprep.subr.mxu0 0.0
    %5873 = vmatpush1.msra.mxu0 0.0
    %5874 = vmatprep.subr.mxu0 0.0
    %5875 = vmatpush1.msra.mxu0 0.0
    %5876 = vmatprep.subr.mxu0 0.0
    %5877 = vmatpush1.msra.mxu0 0.0
    %5878 = vmatprep.subr.mxu0 0.0
    %5879 = vmatpush1.msra.mxu0 0.0
    %5880 = vmatprep.subr.mxu0 0.0
    %5881 = vmatpush1.msra.mxu0 0.0
    %5882 = vmatprep.subr.mxu0 0.0
    %5883 = vmatpush1.msra.mxu0 0.0
    %5884 = vmatprep.subr.mxu0 0.0
    %5885 = vmatpush1.msra.mxu0 0.0
    %5886 = vmatprep.subr.mxu0 0.0
    %5887 = vmatpush1.msra.mxu0 0.0
    %5888 = vmatprep.subr.mxu0 0.0
    %5889 = vmatpush1.msra.mxu0 0.0
    %5890 = vmatprep.subr.mxu0 0.0
    %5891 = vmatpush1.msra.mxu0 0.0
    %5892 = vmatprep.subr.mxu0 0.0
    %5893 = vmatpush1.msra.mxu0 0.0
    %5894 = vmatprep.subr.mxu0 0.0
    %5895 = vmatpush1.msra.mxu0 0.0
    %5896 = vmatprep.subr.mxu0 0.0
    %5897 = vmatpush1.msra.mxu0 0.0
    %5898 = vmatprep.subr.mxu0 0.0
    %5899 = vmatpush1.msra.mxu0 0.0
    %5900 = vmatprep.subr.mxu0 0.0
    %5901 = vmatpush1.msra.mxu0 0.0
    %5902 = vmatprep.subr.mxu0 0.0
    %5903 = vmatpush1.msra.mxu0 0.0
    %5904 = vmatprep.subr.mxu0 0.0
    %5905 = vmatpush1.msra.mxu0 0.0
    %5906 = vmatprep.mubr.f32.mxu0 0.0
    %v5907 = vand.u32 %v5759, 4294901760
    %5908 = vmatmul.mubr.f32.gmra.mrb[0].mxu0 %v5907
    %v5909 = vpop.f32.mrb[0].mxu0
    %v5910 = vadd.f32 %v5834, %v5909
    %v5911 = vpop.f32.mrb[0].mxu0
    %5912 = vdwg.mxu0
    %5913 = vmatprep.subr.mxu0 0.0
    %v5914 = vand.u32 %v1973, 4294901760
    %v5915 = vsub.f32 %v1973, %v5914
    %5916 = vmatpush1.msra.mxu0 %v5915
    %5917 = vmatprep.subr.mxu0 0.0
    %5918 = vmatpush1.msra.mxu0 0.0
    %5919 = vmatprep.subr.mxu0 0.0
    %5920 = vmatpush1.msra.mxu0 0.0
    %5921 = vmatprep.subr.mxu0 0.0
    %5922 = vmatpush1.msra.mxu0 0.0
    %5923 = vmatprep.subr.mxu0 0.0
    %5924 = vmatpush1.msra.mxu0 0.0
    %5925 = vmatprep.subr.mxu0 0.0
    %5926 = vmatpush1.msra.mxu0 0.0
    %5927 = vmatprep.subr.mxu0 0.0
    %5928 = vmatpush1.msra.mxu0 0.0
    %5929 = vmatprep.subr.mxu0 0.0
    %5930 = vmatpush1.msra.mxu0 0.0
    %5931 = vmatprep.subr.mxu0 0.0
    %5932 = vmatpush1.msra.mxu0 0.0
    %5933 = vmatprep.subr.mxu0 0.0
    %5934 = vmatpush1.msra.mxu0 0.0
    %5935 = vmatprep.subr.mxu0 0.0
    %5936 = vmatpush1.msra.mxu0 0.0
    %5937 = vmatprep.subr.mxu0 0.0
    %5938 = vmatpush1.msra.mxu0 0.0
    %5939 = vmatprep.subr.mxu0 0.0
    %5940 = vmatpush1.msra.mxu0 0.0
    %5941 = vmatprep.subr.mxu0 0.0
    %5942 = vmatpush1.msra.mxu0 0.0
    %5943 = vmatprep.subr.mxu0 0.0
    %5944 = vmatpush1.msra.mxu0 0.0
    %5945 = vmatprep.subr.mxu0 0.0
    %5946 = vmatpush1.msra.mxu0 0.0
    %5947 = vmatprep.subr.mxu0 0.0
    %5948 = vmatpush1.msra.mxu0 0.0
    %5949 = vmatprep.subr.mxu0 0.0
    %5950 = vmatpush1.msra.mxu0 0.0
    %5951 = vmatprep.subr.mxu0 0.0
    %5952 = vmatpush1.msra.mxu0 0.0
    %5953 = vmatprep.subr.mxu0 0.0
    %5954 = vmatpush1.msra.mxu0 0.0
    %5955 = vmatprep.subr.mxu0 0.0
    %5956 = vmatpush1.msra.mxu0 0.0
    %5957 = vmatprep.subr.mxu0 0.0
    %5958 = vmatpush1.msra.mxu0 0.0
    %5959 = vmatprep.subr.mxu0 0.0
    %5960 = vmatpush1.msra.mxu0 0.0
    %5961 = vmatprep.subr.mxu0 0.0
    %5962 = vmatpush1.msra.mxu0 0.0
    %5963 = vmatprep.subr.mxu0 0.0
    %5964 = vmatpush1.msra.mxu0 0.0
    %5965 = vmatprep.subr.mxu0 0.0
    %5966 = vmatpush1.msra.mxu0 0.0
    %5967 = vmatprep.subr.mxu0 0.0
    %5968 = vmatpush1.msra.mxu0 0.0
    %5969 = vmatprep.subr.mxu0 0.0
    %5970 = vmatpush1.msra.mxu0 0.0
    %5971 = vmatprep.subr.mxu0 0.0
    %5972 = vmatpush1.msra.mxu0 0.0
    %5973 = vmatprep.subr.mxu0 0.0
    %5974 = vmatpush1.msra.mxu0 0.0
    %5975 = vmatprep.subr.mxu0 0.0
    %5976 = vmatpush1.msra.mxu0 0.0
    %5977 = vmatprep.subr.mxu0 0.0
    %5978 = vmatpush1.msra.mxu0 0.0
    %5979 = vmatprep.mubr.f32.mxu0 0.0
    %v5980 = vand.u32 %v5759, 4294901760
    %v5981 = vsub.f32 %v5759, %v5980
    %5982 = vmatmul.mubr.f32.gmra.mrb[0].mxu0 %v5981
    %v5983 = vpop.f32.mrb[0].mxu0
    %v5984 = vadd.f32 %v5910, %v5983
    %v5985 = vpop.f32.mrb[0].mxu0
    %5986 = vdwg.mxu0
    %5987 = vmatprep.subr.mxu0 0.0
    %v5988 = vand.u32 %v1973, 4294901760
    %5989 = vmatpush1.msra.mxu0 %v5988
    %5990 = vmatprep.subr.mxu0 0.0
    %5991 = vmatpush1.msra.mxu0 0.0
    %5992 = vmatprep.subr.mxu0 0.0
    %5993 = vmatpush1.msra.mxu0 0.0
    %5994 = vmatprep.subr.mxu0 0.0
    %5995 = vmatpush1.msra.mxu0 0.0
    %5996 = vmatprep.subr.mxu0 0.0
    %5997 = vmatpush1.msra.mxu0 0.0
    %5998 = vmatprep.subr.mxu0 0.0
    %5999 = vmatpush1.msra.mxu0 0.0
    %6000 = vmatprep.subr.mxu0 0.0
    %6001 = vmatpush1.msra.mxu0 0.0
    %6002 = vmatprep.subr.mxu0 0.0
    %6003 = vmatpush1.msra.mxu0 0.0
    %6004 = vmatprep.subr.mxu0 0.0
    %6005 = vmatpush1.msra.mxu0 0.0
    %6006 = vmatprep.subr.mxu0 0.0
    %6007 = vmatpush1.msra.mxu0 0.0
    %6008 = vmatprep.subr.mxu0 0.0
    %6009 = vmatpush1.msra.mxu0 0.0
    %6010 = vmatprep.subr.mxu0 0.0
    %6011 = vmatpush1.msra.mxu0 0.0
    %6012 = vmatprep.subr.mxu0 0.0
    %6013 = vmatpush1.msra.mxu0 0.0
    %6014 = vmatprep.subr.mxu0 0.0
    %6015 = vmatpush1.msra.mxu0 0.0
    %6016 = vmatprep.subr.mxu0 0.0
    %6017 = vmatpush1.msra.mxu0 0.0
    %6018 = vmatprep.subr.mxu0 0.0
    %6019 = vmatpush1.msra.mxu0 0.0
    %6020 = vmatprep.subr.mxu0 0.0
    %6021 = vmatpush1.msra.mxu0 0.0
    %6022 = vmatprep.subr.mxu0 0.0
    %6023 = vmatpush1.msra.mxu0 0.0
    %6024 = vmatprep.subr.mxu0 0.0
    %6025 = vmatpush1.msra.mxu0 0.0
    %6026 = vmatprep.subr.mxu0 0.0
    %6027 = vmatpush1.msra.mxu0 0.0
    %6028 = vmatprep.subr.mxu0 0.0
    %6029 = vmatpush1.msra.mxu0 0.0
    %6030 = vmatprep.subr.mxu0 0.0
    %6031 = vmatpush1.msra.mxu0 0.0
    %6032 = vmatprep.subr.mxu0 0.0
    %6033 = vmatpush1.msra.mxu0 0.0
    %6034 = vmatprep.subr.mxu0 0.0
    %6035 = vmatpush1.msra.mxu0 0.0
    %6036 = vmatprep.subr.mxu0 0.0
    %6037 = vmatpush1.msra.mxu0 0.0
    %6038 = vmatprep.subr.mxu0 0.0
    %6039 = vmatpush1.msra.mxu0 0.0
    %6040 = vmatprep.subr.mxu0 0.0
    %6041 = vmatpush1.msra.mxu0 0.0
    %6042 = vmatprep.subr.mxu0 0.0
    %6043 = vmatpush1.msra.mxu0 0.0
    %6044 = vmatprep.subr.mxu0 0.0
    %6045 = vmatpush1.msra.mxu0 0.0
    %6046 = vmatprep.subr.mxu0 0.0
    %6047 = vmatpush1.msra.mxu0 0.0
    %6048 = vmatprep.subr.mxu0 0.0
    %6049 = vmatpush1.msra.mxu0 0.0
    %6050 = vmatprep.subr.mxu0 0.0
    %6051 = vmatpush1.msra.mxu0 0.0
    %6052 = vmatprep.mubr.f32.mxu0 0.0
    %v6053 = vand.u32 %v5759, 4294901760
    %v6054 = vsub.f32 %v5759, %v6053
    %v6055 = vand.u32 %v6054, 4294901760
    %6056 = vmatmul.mubr.f32.gmra.mrb[0].mxu0 %v6055
    %v6057 = vpop.f32.mrb[0].mxu0
    %v6058 = vadd.f32 %v5984, %v6057
    %v6059 = vpop.f32.mrb[0].mxu0
    %6060 = vdwg.mxu0
    %6061 = vmatprep.subr.mxu0 0.0
    %v6062 = vand.u32 %v1973, 4294901760
    %v6063 = vsub.f32 %v1973, %v6062
    %v6064 = vand.u32 %v6063, 4294901760
    %6065 = vmatpush1.msra.mxu0 %v6064
    %6066 = vmatprep.subr.mxu0 0.0
    %6067 = vmatpush1.msra.mxu0 0.0
    %6068 = vmatprep.subr.mxu0 0.0
    %6069 = vmatpush1.msra.mxu0 0.0
    %6070 = vmatprep.subr.mxu0 0.0
    %6071 = vmatpush1.msra.mxu0 0.0
    %6072 = vmatprep.subr.mxu0 0.0
    %6073 = vmatpush1.msra.mxu0 0.0
    %6074 = vmatprep.subr.mxu0 0.0
    %6075 = vmatpush1.msra.mxu0 0.0
    %6076 = vmatprep.subr.mxu0 0.0
    %6077 = vmatpush1.msra.mxu0 0.0
    %6078 = vmatprep.subr.mxu0 0.0
    %6079 = vmatpush1.msra.mxu0 0.0
    %6080 = vmatprep.subr.mxu0 0.0
    %6081 = vmatpush1.msra.mxu0 0.0
    %6082 = vmatprep.subr.mxu0 0.0
    %6083 = vmatpush1.msra.mxu0 0.0
    %6084 = vmatprep.subr.mxu0 0.0
    %6085 = vmatpush1.msra.mxu0 0.0
    %6086 = vmatprep.subr.mxu0 0.0
    %6087 = vmatpush1.msra.mxu0 0.0
    %6088 = vmatprep.subr.mxu0 0.0
    %6089 = vmatpush1.msra.mxu0 0.0
    %6090 = vmatprep.subr.mxu0 0.0
    %6091 = vmatpush1.msra.mxu0 0.0
    %6092 = vmatprep.subr.mxu0 0.0
    %6093 = vmatpush1.msra.mxu0 0.0
    %6094 = vmatprep.subr.mxu0 0.0
    %6095 = vmatpush1.msra.mxu0 0.0
    %6096 = vmatprep.subr.mxu0 0.0
    %6097 = vmatpush1.msra.mxu0 0.0
    %6098 = vmatprep.subr.mxu0 0.0
    %6099 = vmatpush1.msra.mxu0 0.0
    %6100 = vmatprep.subr.mxu0 0.0
    %6101 = vmatpush1.msra.mxu0 0.0
    %6102 = vmatprep.subr.mxu0 0.0
    %6103 = vmatpush1.msra.mxu0 0.0
    %6104 = vmatprep.subr.mxu0 0.0
    %6105 = vmatpush1.msra.mxu0 0.0
    %6106 = vmatprep.subr.mxu0 0.0
    %6107 = vmatpush1.msra.mxu0 0.0
    %6108 = vmatprep.subr.mxu0 0.0
    %6109 = vmatpush1.msra.mxu0 0.0
    %6110 = vmatprep.subr.mxu0 0.0
    %6111 = vmatpush1.msra.mxu0 0.0
    %6112 = vmatprep.subr.mxu0 0.0
    %6113 = vmatpush1.msra.mxu0 0.0
    %6114 = vmatprep.subr.mxu0 0.0
    %6115 = vmatpush1.msra.mxu0 0.0
    %6116 = vmatprep.subr.mxu0 0.0
    %6117 = vmatpush1.msra.mxu0 0.0
    %6118 = vmatprep.subr.mxu0 0.0
    %6119 = vmatpush1.msra.mxu0 0.0
    %6120 = vmatprep.subr.mxu0 0.0
    %6121 = vmatpush1.msra.mxu0 0.0
    %6122 = vmatprep.subr.mxu0 0.0
    %6123 = vmatpush1.msra.mxu0 0.0
    %6124 = vmatprep.subr.mxu0 0.0
    %6125 = vmatpush1.msra.mxu0 0.0
    %6126 = vmatprep.subr.mxu0 0.0
    %6127 = vmatpush1.msra.mxu0 0.0
    %6128 = vmatprep.mubr.f32.mxu0 0.0
    %v6129 = vand.u32 %v5759, 4294901760
    %6130 = vmatmul.mubr.f32.gmra.mrb[0].mxu0 %v6129
    %v6131 = vpop.f32.mrb[0].mxu0
    %v6132 = vadd.f32 %v6058, %v6131
    %v6133 = vpop.f32.mrb[0].mxu0
    %6134 = vdwg.mxu0
    %6135 = vmatprep.subr.mxu0 0.0
    %v6136 = vand.u32 %v1973, 4294901760
    %6137 = vmatpush1.msra.mxu0 %v6136
    %6138 = vmatprep.subr.mxu0 0.0
    %6139 = vmatpush1.msra.mxu0 0.0
    %6140 = vmatprep.subr.mxu0 0.0
    %6141 = vmatpush1.msra.mxu0 0.0
    %6142 = vmatprep.subr.mxu0 0.0
    %6143 = vmatpush1.msra.mxu0 0.0
    %6144 = vmatprep.subr.mxu0 0.0
    %6145 = vmatpush1.msra.mxu0 0.0
    %6146 = vmatprep.subr.mxu0 0.0
    %6147 = vmatpush1.msra.mxu0 0.0
    %6148 = vmatprep.subr.mxu0 0.0
    %6149 = vmatpush1.msra.mxu0 0.0
    %6150 = vmatprep.subr.mxu0 0.0
    %6151 = vmatpush1.msra.mxu0 0.0
    %6152 = vmatprep.subr.mxu0 0.0
    %6153 = vmatpush1.msra.mxu0 0.0
    %6154 = vmatprep.subr.mxu0 0.0
    %6155 = vmatpush1.msra.mxu0 0.0
    %6156 = vmatprep.subr.mxu0 0.0
    %6157 = vmatpush1.msra.mxu0 0.0
    %6158 = vmatprep.subr.mxu0 0.0
    %6159 = vmatpush1.msra.mxu0 0.0
    %6160 = vmatprep.subr.mxu0 0.0
    %6161 = vmatpush1.msra.mxu0 0.0
    %6162 = vmatprep.subr.mxu0 0.0
    %6163 = vmatpush1.msra.mxu0 0.0
    %6164 = vmatprep.subr.mxu0 0.0
    %6165 = vmatpush1.msra.mxu0 0.0
    %6166 = vmatprep.subr.mxu0 0.0
    %6167 = vmatpush1.msra.mxu0 0.0
    %6168 = vmatprep.subr.mxu0 0.0
    %6169 = vmatpush1.msra.mxu0 0.0
    %6170 = vmatprep.subr.mxu0 0.0
    %6171 = vmatpush1.msra.mxu0 0.0
    %6172 = vmatprep.subr.mxu0 0.0
    %6173 = vmatpush1.msra.mxu0 0.0
    %6174 = vmatprep.subr.mxu0 0.0
    %6175 = vmatpush1.msra.mxu0 0.0
    %6176 = vmatprep.subr.mxu0 0.0
    %6177 = vmatpush1.msra.mxu0 0.0
    %6178 = vmatprep.subr.mxu0 0.0
    %6179 = vmatpush1.msra.mxu0 0.0
    %6180 = vmatprep.subr.mxu0 0.0
    %6181 = vmatpush1.msra.mxu0 0.0
    %6182 = vmatprep.subr.mxu0 0.0
    %6183 = vmatpush1.msra.mxu0 0.0
    %6184 = vmatprep.subr.mxu0 0.0
    %6185 = vmatpush1.msra.mxu0 0.0
    %6186 = vmatprep.subr.mxu0 0.0
    %6187 = vmatpush1.msra.mxu0 0.0
    %6188 = vmatprep.subr.mxu0 0.0
    %6189 = vmatpush1.msra.mxu0 0.0
    %6190 = vmatprep.subr.mxu0 0.0
    %6191 = vmatpush1.msra.mxu0 0.0
    %6192 = vmatprep.subr.mxu0 0.0
    %6193 = vmatpush1.msra.mxu0 0.0
    %6194 = vmatprep.subr.mxu0 0.0
    %6195 = vmatpush1.msra.mxu0 0.0
    %6196 = vmatprep.subr.mxu0 0.0
    %6197 = vmatpush1.msra.mxu0 0.0
    %6198 = vmatprep.subr.mxu0 0.0
    %6199 = vmatpush1.msra.mxu0 0.0
    %6200 = vmatprep.mubr.f32.mxu0 0.0
    %v6201 = vand.u32 %v5759, 4294901760
    %6202 = vmatmul.mubr.f32.gmra.mrb[0].mxu0 %v6201
    %v6203 = vpop.f32.mrb[0].mxu0
    %v6204 = vadd.f32 %v6132, %v6203
    %v6205 = vpop.f32.mrb[0].mxu0
    %6206 = vdwg.mxu0
    %v6208 = vsel %vm2045, %v5751, 0
    %6210 = vmatprep.subr.mxu0 0.0
    %v6211 = vand.u32 %v1974, 4294901760
    %6212 = vmatpush1.msra.mxu0 %v6211
    %6213 = vmatprep.subr.mxu0 0.0
    %6214 = vmatpush1.msra.mxu0 0.0
    %6215 = vmatprep.subr.mxu0 0.0
    %6216 = vmatpush1.msra.mxu0 0.0
    %6217 = vmatprep.subr.mxu0 0.0
    %6218 = vmatpush1.msra.mxu0 0.0
    %6219 = vmatprep.subr.mxu0 0.0
    %6220 = vmatpush1.msra.mxu0 0.0
    %6221 = vmatprep.subr.mxu0 0.0
    %6222 = vmatpush1.msra.mxu0 0.0
    %6223 = vmatprep.subr.mxu0 0.0
    %6224 = vmatpush1.msra.mxu0 0.0
    %6225 = vmatprep.subr.mxu0 0.0
    %6226 = vmatpush1.msra.mxu0 0.0
    %6227 = vmatprep.subr.mxu0 0.0
    %6228 = vmatpush1.msra.mxu0 0.0
    %6229 = vmatprep.subr.mxu0 0.0
    %6230 = vmatpush1.msra.mxu0 0.0
    %6231 = vmatprep.subr.mxu0 0.0
    %6232 = vmatpush1.msra.mxu0 0.0
    %6233 = vmatprep.subr.mxu0 0.0
    %6234 = vmatpush1.msra.mxu0 0.0
    %6235 = vmatprep.subr.mxu0 0.0
    %6236 = vmatpush1.msra.mxu0 0.0
    %6237 = vmatprep.subr.mxu0 0.0
    %6238 = vmatpush1.msra.mxu0 0.0
    %6239 = vmatprep.subr.mxu0 0.0
    %6240 = vmatpush1.msra.mxu0 0.0
    %6241 = vmatprep.subr.mxu0 0.0
    %6242 = vmatpush1.msra.mxu0 0.0
    %6243 = vmatprep.subr.mxu0 0.0
    %6244 = vmatpush1.msra.mxu0 0.0
    %6245 = vmatprep.subr.mxu0 0.0
    %6246 = vmatpush1.msra.mxu0 0.0
    %6247 = vmatprep.subr.mxu0 0.0
    %6248 = vmatpush1.msra.mxu0 0.0
    %6249 = vmatprep.subr.mxu0 0.0
    %6250 = vmatpush1.msra.mxu0 0.0
    %6251 = vmatprep.subr.mxu0 0.0
    %6252 = vmatpush1.msra.mxu0 0.0
    %6253 = vmatprep.subr.mxu0 0.0
    %6254 = vmatpush1.msra.mxu0 0.0
    %6255 = vmatprep.subr.mxu0 0.0
    %6256 = vmatpush1.msra.mxu0 0.0
    %6257 = vmatprep.subr.mxu0 0.0
    %6258 = vmatpush1.msra.mxu0 0.0
    %6259 = vmatprep.subr.mxu0 0.0
    %6260 = vmatpush1.msra.mxu0 0.0
    %6261 = vmatprep.subr.mxu0 0.0
    %6262 = vmatpush1.msra.mxu0 0.0
    %6263 = vmatprep.subr.mxu0 0.0
    %6264 = vmatpush1.msra.mxu0 0.0
    %6265 = vmatprep.subr.mxu0 0.0
    %6266 = vmatpush1.msra.mxu0 0.0
    %6267 = vmatprep.subr.mxu0 0.0
    %6268 = vmatpush1.msra.mxu0 0.0
    %6269 = vmatprep.subr.mxu0 0.0
    %6270 = vmatpush1.msra.mxu0 0.0
    %6271 = vmatprep.subr.mxu0 0.0
    %6272 = vmatpush1.msra.mxu0 0.0
    %6273 = vmatprep.subr.mxu0 0.0
    %6274 = vmatpush1.msra.mxu0 0.0
    %6275 = vmatprep.mubr.f32.mxu0 0.0
    %v6276 = vand.u32 %v6208, 4294901760
    %v6277 = vsub.f32 %v6208, %v6276
    %v6278 = vand.u32 %v6277, 4294901760
    %v6279 = vsub.f32 %v6277, %v6278
    %v6280 = vand.u32 %v6279, 4294901760
    %6281 = vmatmul.mubr.f32.gmra.mrb[0].mxu0 %v6280
    %v6282 = vpop.f32.mrb[0].mxu0
    %v6283 = vadd.f32 0.0, %v6282
    %v6284 = vpop.f32.mrb[0].mxu0
    %6285 = vdwg.mxu0
    %6286 = vmatprep.subr.mxu0 0.0
    %v6287 = vand.u32 %v1974, 4294901760
    %v6288 = vsub.f32 %v1974, %v6287
    %v6289 = vand.u32 %v6288, 4294901760
    %v6290 = vsub.f32 %v6288, %v6289
    %v6291 = vand.u32 %v6290, 4294901760
    %6292 = vmatpush1.msra.mxu0 %v6291
    %6293 = vmatprep.subr.mxu0 0.0
    %6294 = vmatpush1.msra.mxu0 0.0
    %6295 = vmatprep.subr.mxu0 0.0
    %6296 = vmatpush1.msra.mxu0 0.0
    %6297 = vmatprep.subr.mxu0 0.0
    %6298 = vmatpush1.msra.mxu0 0.0
    %6299 = vmatprep.subr.mxu0 0.0
    %6300 = vmatpush1.msra.mxu0 0.0
    %6301 = vmatprep.subr.mxu0 0.0
    %6302 = vmatpush1.msra.mxu0 0.0
    %6303 = vmatprep.subr.mxu0 0.0
    %6304 = vmatpush1.msra.mxu0 0.0
    %6305 = vmatprep.subr.mxu0 0.0
    %6306 = vmatpush1.msra.mxu0 0.0
    %6307 = vmatprep.subr.mxu0 0.0
    %6308 = vmatpush1.msra.mxu0 0.0
    %6309 = vmatprep.subr.mxu0 0.0
    %6310 = vmatpush1.msra.mxu0 0.0
    %6311 = vmatprep.subr.mxu0 0.0
    %6312 = vmatpush1.msra.mxu0 0.0
    %6313 = vmatprep.subr.mxu0 0.0
    %6314 = vmatpush1.msra.mxu0 0.0
    %6315 = vmatprep.subr.mxu0 0.0
    %6316 = vmatpush1.msra.mxu0 0.0
    %6317 = vmatprep.subr.mxu0 0.0
    %6318 = vmatpush1.msra.mxu0 0.0
    %6319 = vmatprep.subr.mxu0 0.0
    %6320 = vmatpush1.msra.mxu0 0.0
    %6321 = vmatprep.subr.mxu0 0.0
    %6322 = vmatpush1.msra.mxu0 0.0
    %6323 = vmatprep.subr.mxu0 0.0
    %6324 = vmatpush1.msra.mxu0 0.0
    %6325 = vmatprep.subr.mxu0 0.0
    %6326 = vmatpush1.msra.mxu0 0.0
    %6327 = vmatprep.subr.mxu0 0.0
    %6328 = vmatpush1.msra.mxu0 0.0
    %6329 = vmatprep.subr.mxu0 0.0
    %6330 = vmatpush1.msra.mxu0 0.0
    %6331 = vmatprep.subr.mxu0 0.0
    %6332 = vmatpush1.msra.mxu0 0.0
    %6333 = vmatprep.subr.mxu0 0.0
    %6334 = vmatpush1.msra.mxu0 0.0
    %6335 = vmatprep.subr.mxu0 0.0
    %6336 = vmatpush1.msra.mxu0 0.0
    %6337 = vmatprep.subr.mxu0 0.0
    %6338 = vmatpush1.msra.mxu0 0.0
    %6339 = vmatprep.subr.mxu0 0.0
    %6340 = vmatpush1.msra.mxu0 0.0
    %6341 = vmatprep.subr.mxu0 0.0
    %6342 = vmatpush1.msra.mxu0 0.0
    %6343 = vmatprep.subr.mxu0 0.0
    %6344 = vmatpush1.msra.mxu0 0.0
    %6345 = vmatprep.subr.mxu0 0.0
    %6346 = vmatpush1.msra.mxu0 0.0
    %6347 = vmatprep.subr.mxu0 0.0
    %6348 = vmatpush1.msra.mxu0 0.0
    %6349 = vmatprep.subr.mxu0 0.0
    %6350 = vmatpush1.msra.mxu0 0.0
    %6351 = vmatprep.subr.mxu0 0.0
    %6352 = vmatpush1.msra.mxu0 0.0
    %6353 = vmatprep.subr.mxu0 0.0
    %6354 = vmatpush1.msra.mxu0 0.0
    %6355 = vmatprep.mubr.f32.mxu0 0.0
    %v6356 = vand.u32 %v6208, 4294901760
    %6357 = vmatmul.mubr.f32.gmra.mrb[0].mxu0 %v6356
    %v6358 = vpop.f32.mrb[0].mxu0
    %v6359 = vadd.f32 %v6283, %v6358
    %v6360 = vpop.f32.mrb[0].mxu0
    %6361 = vdwg.mxu0
    %6362 = vmatprep.subr.mxu0 0.0
    %v6363 = vand.u32 %v1974, 4294901760
    %v6364 = vsub.f32 %v1974, %v6363
    %6365 = vmatpush1.msra.mxu0 %v6364
    %6366 = vmatprep.subr.mxu0 0.0
    %6367 = vmatpush1.msra.mxu0 0.0
    %6368 = vmatprep.subr.mxu0 0.0
    %6369 = vmatpush1.msra.mxu0 0.0
    %6370 = vmatprep.subr.mxu0 0.0
    %6371 = vmatpush1.msra.mxu0 0.0
    %6372 = vmatprep.subr.mxu0 0.0
    %6373 = vmatpush1.msra.mxu0 0.0
    %6374 = vmatprep.subr.mxu0 0.0
    %6375 = vmatpush1.msra.mxu0 0.0
    %6376 = vmatprep.subr.mxu0 0.0
    %6377 = vmatpush1.msra.mxu0 0.0
    %6378 = vmatprep.subr.mxu0 0.0
    %6379 = vmatpush1.msra.mxu0 0.0
    %6380 = vmatprep.subr.mxu0 0.0
    %6381 = vmatpush1.msra.mxu0 0.0
    %6382 = vmatprep.subr.mxu0 0.0
    %6383 = vmatpush1.msra.mxu0 0.0
    %6384 = vmatprep.subr.mxu0 0.0
    %6385 = vmatpush1.msra.mxu0 0.0
    %6386 = vmatprep.subr.mxu0 0.0
    %6387 = vmatpush1.msra.mxu0 0.0
    %6388 = vmatprep.subr.mxu0 0.0
    %6389 = vmatpush1.msra.mxu0 0.0
    %6390 = vmatprep.subr.mxu0 0.0
    %6391 = vmatpush1.msra.mxu0 0.0
    %6392 = vmatprep.subr.mxu0 0.0
    %6393 = vmatpush1.msra.mxu0 0.0
    %6394 = vmatprep.subr.mxu0 0.0
    %6395 = vmatpush1.msra.mxu0 0.0
    %6396 = vmatprep.subr.mxu0 0.0
    %6397 = vmatpush1.msra.mxu0 0.0
    %6398 = vmatprep.subr.mxu0 0.0
    %6399 = vmatpush1.msra.mxu0 0.0
    %6400 = vmatprep.subr.mxu0 0.0
    %6401 = vmatpush1.msra.mxu0 0.0
    %6402 = vmatprep.subr.mxu0 0.0
    %6403 = vmatpush1.msra.mxu0 0.0
    %6404 = vmatprep.subr.mxu0 0.0
    %6405 = vmatpush1.msra.mxu0 0.0
    %6406 = vmatprep.subr.mxu0 0.0
    %6407 = vmatpush1.msra.mxu0 0.0
    %6408 = vmatprep.subr.mxu0 0.0
    %6409 = vmatpush1.msra.mxu0 0.0
    %6410 = vmatprep.subr.mxu0 0.0
    %6411 = vmatpush1.msra.mxu0 0.0
    %6412 = vmatprep.subr.mxu0 0.0
    %6413 = vmatpush1.msra.mxu0 0.0
    %6414 = vmatprep.subr.mxu0 0.0
    %6415 = vmatpush1.msra.mxu0 0.0
    %6416 = vmatprep.subr.mxu0 0.0
    %6417 = vmatpush1.msra.mxu0 0.0
    %6418 = vmatprep.subr.mxu0 0.0
    %6419 = vmatpush1.msra.mxu0 0.0
    %6420 = vmatprep.subr.mxu0 0.0
    %6421 = vmatpush1.msra.mxu0 0.0
    %6422 = vmatprep.subr.mxu0 0.0
    %6423 = vmatpush1.msra.mxu0 0.0
    %6424 = vmatprep.subr.mxu0 0.0
    %6425 = vmatpush1.msra.mxu0 0.0
    %6426 = vmatprep.subr.mxu0 0.0
    %6427 = vmatpush1.msra.mxu0 0.0
    %6428 = vmatprep.mubr.f32.mxu0 0.0
    %v6429 = vand.u32 %v6208, 4294901760
    %v6430 = vsub.f32 %v6208, %v6429
    %6431 = vmatmul.mubr.f32.gmra.mrb[0].mxu0 %v6430
    %v6432 = vpop.f32.mrb[0].mxu0
    %v6433 = vadd.f32 %v6359, %v6432
    %v6434 = vpop.f32.mrb[0].mxu0
    %6435 = vdwg.mxu0
    %6436 = vmatprep.subr.mxu0 0.0
    %v6437 = vand.u32 %v1974, 4294901760
    %6438 = vmatpush1.msra.mxu0 %v6437
    %6439 = vmatprep.subr.mxu0 0.0
    %6440 = vmatpush1.msra.mxu0 0.0
    %6441 = vmatprep.subr.mxu0 0.0
    %6442 = vmatpush1.msra.mxu0 0.0
    %6443 = vmatprep.subr.mxu0 0.0
    %6444 = vmatpush1.msra.mxu0 0.0
    %6445 = vmatprep.subr.mxu0 0.0
    %6446 = vmatpush1.msra.mxu0 0.0
    %6447 = vmatprep.subr.mxu0 0.0
    %6448 = vmatpush1.msra.mxu0 0.0
    %6449 = vmatprep.subr.mxu0 0.0
    %6450 = vmatpush1.msra.mxu0 0.0
    %6451 = vmatprep.subr.mxu0 0.0
    %6452 = vmatpush1.msra.mxu0 0.0
    %6453 = vmatprep.subr.mxu0 0.0
    %6454 = vmatpush1.msra.mxu0 0.0
    %6455 = vmatprep.subr.mxu0 0.0
    %6456 = vmatpush1.msra.mxu0 0.0
    %6457 = vmatprep.subr.mxu0 0.0
    %6458 = vmatpush1.msra.mxu0 0.0
    %6459 = vmatprep.subr.mxu0 0.0
    %6460 = vmatpush1.msra.mxu0 0.0
    %6461 = vmatprep.subr.mxu0 0.0
    %6462 = vmatpush1.msra.mxu0 0.0
    %6463 = vmatprep.subr.mxu0 0.0
    %6464 = vmatpush1.msra.mxu0 0.0
    %6465 = vmatprep.subr.mxu0 0.0
    %6466 = vmatpush1.msra.mxu0 0.0
    %6467 = vmatprep.subr.mxu0 0.0
    %6468 = vmatpush1.msra.mxu0 0.0
    %6469 = vmatprep.subr.mxu0 0.0
    %6470 = vmatpush1.msra.mxu0 0.0
    %6471 = vmatprep.subr.mxu0 0.0
    %6472 = vmatpush1.msra.mxu0 0.0
    %6473 = vmatprep.subr.mxu0 0.0
    %6474 = vmatpush1.msra.mxu0 0.0
    %6475 = vmatprep.subr.mxu0 0.0
    %6476 = vmatpush1.msra.mxu0 0.0
    %6477 = vmatprep.subr.mxu0 0.0
    %6478 = vmatpush1.msra.mxu0 0.0
    %6479 = vmatprep.subr.mxu0 0.0
    %6480 = vmatpush1.msra.mxu0 0.0
    %6481 = vmatprep.subr.mxu0 0.0
    %6482 = vmatpush1.msra.mxu0 0.0
    %6483 = vmatprep.subr.mxu0 0.0
    %6484 = vmatpush1.msra.mxu0 0.0
    %6485 = vmatprep.subr.mxu0 0.0
    %6486 = vmatpush1.msra.mxu0 0.0
    %6487 = vmatprep.subr.mxu0 0.0
    %6488 = vmatpush1.msra.mxu0 0.0
    %6489 = vmatprep.subr.mxu0 0.0
    %6490 = vmatpush1.msra.mxu0 0.0
    %6491 = vmatprep.subr.mxu0 0.0
    %6492 = vmatpush1.msra.mxu0 0.0
    %6493 = vmatprep.subr.mxu0 0.0
    %6494 = vmatpush1.msra.mxu0 0.0
    %6495 = vmatprep.subr.mxu0 0.0
    %6496 = vmatpush1.msra.mxu0 0.0
    %6497 = vmatprep.subr.mxu0 0.0
    %6498 = vmatpush1.msra.mxu0 0.0
    %6499 = vmatprep.subr.mxu0 0.0
    %6500 = vmatpush1.msra.mxu0 0.0
    %6501 = vmatprep.mubr.f32.mxu0 0.0
    %v6502 = vand.u32 %v6208, 4294901760
    %v6503 = vsub.f32 %v6208, %v6502
    %v6504 = vand.u32 %v6503, 4294901760
    %6505 = vmatmul.mubr.f32.gmra.mrb[0].mxu0 %v6504
    %v6506 = vpop.f32.mrb[0].mxu0
    %v6507 = vadd.f32 %v6433, %v6506
    %v6508 = vpop.f32.mrb[0].mxu0
    %6509 = vdwg.mxu0
    %6510 = vmatprep.subr.mxu0 0.0
    %v6511 = vand.u32 %v1974, 4294901760
    %v6512 = vsub.f32 %v1974, %v6511
    %v6513 = vand.u32 %v6512, 4294901760
    %6514 = vmatpush1.msra.mxu0 %v6513
    %6515 = vmatprep.subr.mxu0 0.0
    %6516 = vmatpush1.msra.mxu0 0.0
    %6517 = vmatprep.subr.mxu0 0.0
    %6518 = vmatpush1.msra.mxu0 0.0
    %6519 = vmatprep.subr.mxu0 0.0
    %6520 = vmatpush1.msra.mxu0 0.0
    %6521 = vmatprep.subr.mxu0 0.0
    %6522 = vmatpush1.msra.mxu0 0.0
    %6523 = vmatprep.subr.mxu0 0.0
    %6524 = vmatpush1.msra.mxu0 0.0
    %6525 = vmatprep.subr.mxu0 0.0
    %6526 = vmatpush1.msra.mxu0 0.0
    %6527 = vmatprep.subr.mxu0 0.0
    %6528 = vmatpush1.msra.mxu0 0.0
    %6529 = vmatprep.subr.mxu0 0.0
    %6530 = vmatpush1.msra.mxu0 0.0
    %6531 = vmatprep.subr.mxu0 0.0
    %6532 = vmatpush1.msra.mxu0 0.0
    %6533 = vmatprep.subr.mxu0 0.0
    %6534 = vmatpush1.msra.mxu0 0.0
    %6535 = vmatprep.subr.mxu0 0.0
    %6536 = vmatpush1.msra.mxu0 0.0
    %6537 = vmatprep.subr.mxu0 0.0
    %6538 = vmatpush1.msra.mxu0 0.0
    %6539 = vmatprep.subr.mxu0 0.0
    %6540 = vmatpush1.msra.mxu0 0.0
    %6541 = vmatprep.subr.mxu0 0.0
    %6542 = vmatpush1.msra.mxu0 0.0
    %6543 = vmatprep.subr.mxu0 0.0
    %6544 = vmatpush1.msra.mxu0 0.0
    %6545 = vmatprep.subr.mxu0 0.0
    %6546 = vmatpush1.msra.mxu0 0.0
    %6547 = vmatprep.subr.mxu0 0.0
    %6548 = vmatpush1.msra.mxu0 0.0
    %6549 = vmatprep.subr.mxu0 0.0
    %6550 = vmatpush1.msra.mxu0 0.0
    %6551 = vmatprep.subr.mxu0 0.0
    %6552 = vmatpush1.msra.mxu0 0.0
    %6553 = vmatprep.subr.mxu0 0.0
    %6554 = vmatpush1.msra.mxu0 0.0
    %6555 = vmatprep.subr.mxu0 0.0
    %6556 = vmatpush1.msra.mxu0 0.0
    %6557 = vmatprep.subr.mxu0 0.0
    %6558 = vmatpush1.msra.mxu0 0.0
    %6559 = vmatprep.subr.mxu0 0.0
    %6560 = vmatpush1.msra.mxu0 0.0
    %6561 = vmatprep.subr.mxu0 0.0
    %6562 = vmatpush1.msra.mxu0 0.0
    %6563 = vmatprep.subr.mxu0 0.0
    %6564 = vmatpush1.msra.mxu0 0.0
    %6565 = vmatprep.subr.mxu0 0.0
    %6566 = vmatpush1.msra.mxu0 0.0
    %6567 = vmatprep.subr.mxu0 0.0
    %6568 = vmatpush1.msra.mxu0 0.0
    %6569 = vmatprep.subr.mxu0 0.0
    %6570 = vmatpush1.msra.mxu0 0.0
    %6571 = vmatprep.subr.mxu0 0.0
    %6572 = vmatpush1.msra.mxu0 0.0
    %6573 = vmatprep.subr.mxu0 0.0
    %6574 = vmatpush1.msra.mxu0 0.0
    %6575 = vmatprep.subr.mxu0 0.0
    %6576 = vmatpush1.msra.mxu0 0.0
    %6577 = vmatprep.mubr.f32.mxu0 0.0
    %v6578 = vand.u32 %v6208, 4294901760
    %6579 = vmatmul.mubr.f32.gmra.mrb[0].mxu0 %v6578
    %v6580 = vpop.f32.mrb[0].mxu0
    %v6581 = vadd.f32 %v6507, %v6580
    %v6582 = vpop.f32.mrb[0].mxu0
    %6583 = vdwg.mxu0
    %6584 = vmatprep.subr.mxu0 0.0
    %v6585 = vand.u32 %v1974, 4294901760
    %6586 = vmatpush1.msra.mxu0 %v6585
    %6587 = vmatprep.subr.mxu0 0.0
    %6588 = vmatpush1.msra.mxu0 0.0
    %6589 = vmatprep.subr.mxu0 0.0
    %6590 = vmatpush1.msra.mxu0 0.0
    %6591 = vmatprep.subr.mxu0 0.0
    %6592 = vmatpush1.msra.mxu0 0.0
    %6593 = vmatprep.subr.mxu0 0.0
    %6594 = vmatpush1.msra.mxu0 0.0
    %6595 = vmatprep.subr.mxu0 0.0
    %6596 = vmatpush1.msra.mxu0 0.0
    %6597 = vmatprep.subr.mxu0 0.0
    %6598 = vmatpush1.msra.mxu0 0.0
    %6599 = vmatprep.subr.mxu0 0.0
    %6600 = vmatpush1.msra.mxu0 0.0
    %6601 = vmatprep.subr.mxu0 0.0
    %6602 = vmatpush1.msra.mxu0 0.0
    %6603 = vmatprep.subr.mxu0 0.0
    %6604 = vmatpush1.msra.mxu0 0.0
    %6605 = vmatprep.subr.mxu0 0.0
    %6606 = vmatpush1.msra.mxu0 0.0
    %6607 = vmatprep.subr.mxu0 0.0
    %6608 = vmatpush1.msra.mxu0 0.0
    %6609 = vmatprep.subr.mxu0 0.0
    %6610 = vmatpush1.msra.mxu0 0.0
    %6611 = vmatprep.subr.mxu0 0.0
    %6612 = vmatpush1.msra.mxu0 0.0
    %6613 = vmatprep.subr.mxu0 0.0
    %6614 = vmatpush1.msra.mxu0 0.0
    %6615 = vmatprep.subr.mxu0 0.0
    %6616 = vmatpush1.msra.mxu0 0.0
    %6617 = vmatprep.subr.mxu0 0.0
    %6618 = vmatpush1.msra.mxu0 0.0
    %6619 = vmatprep.subr.mxu0 0.0
    %6620 = vmatpush1.msra.mxu0 0.0
    %6621 = vmatprep.subr.mxu0 0.0
    %6622 = vmatpush1.msra.mxu0 0.0
    %6623 = vmatprep.subr.mxu0 0.0
    %6624 = vmatpush1.msra.mxu0 0.0
    %6625 = vmatprep.subr.mxu0 0.0
    %6626 = vmatpush1.msra.mxu0 0.0
    %6627 = vmatprep.subr.mxu0 0.0
    %6628 = vmatpush1.msra.mxu0 0.0
    %6629 = vmatprep.subr.mxu0 0.0
    %6630 = vmatpush1.msra.mxu0 0.0
    %6631 = vmatprep.subr.mxu0 0.0
    %6632 = vmatpush1.msra.mxu0 0.0
    %6633 = vmatprep.subr.mxu0 0.0
    %6634 = vmatpush1.msra.mxu0 0.0
    %6635 = vmatprep.subr.mxu0 0.0
    %6636 = vmatpush1.msra.mxu0 0.0
    %6637 = vmatprep.subr.mxu0 0.0
    %6638 = vmatpush1.msra.mxu0 0.0
    %6639 = vmatprep.subr.mxu0 0.0
    %6640 = vmatpush1.msra.mxu0 0.0
    %6641 = vmatprep.subr.mxu0 0.0
    %6642 = vmatpush1.msra.mxu0 0.0
    %6643 = vmatprep.subr.mxu0 0.0
    %6644 = vmatpush1.msra.mxu0 0.0
    %6645 = vmatprep.subr.mxu0 0.0
    %6646 = vmatpush1.msra.mxu0 0.0
    %6647 = vmatprep.subr.mxu0 0.0
    %6648 = vmatpush1.msra.mxu0 0.0
    %6649 = vmatprep.mubr.f32.mxu0 0.0
    %v6650 = vand.u32 %v6208, 4294901760
    %6651 = vmatmul.mubr.f32.gmra.mrb[0].mxu0 %v6650
    %v6652 = vpop.f32.mrb[0].mxu0
    %v6653 = vadd.f32 %v6581, %v6652
    %v6654 = vpop.f32.mrb[0].mxu0
    %6655 = vdwg.mxu0
    %v6657 = vsel %vm2045, %v5752, 0
    %6659 = vmatprep.subr.mxu0 0.0
    %v6660 = vand.u32 %v1975, 4294901760
    %6661 = vmatpush1.msra.mxu0 %v6660
    %6662 = vmatprep.subr.mxu0 0.0
    %6663 = vmatpush1.msra.mxu0 0.0
    %6664 = vmatprep.subr.mxu0 0.0
    %6665 = vmatpush1.msra.mxu0 0.0
    %6666 = vmatprep.subr.mxu0 0.0
    %6667 = vmatpush1.msra.mxu0 0.0
    %6668 = vmatprep.subr.mxu0 0.0
    %6669 = vmatpush1.msra.mxu0 0.0
    %6670 = vmatprep.subr.mxu0 0.0
    %6671 = vmatpush1.msra.mxu0 0.0
    %6672 = vmatprep.subr.mxu0 0.0
    %6673 = vmatpush1.msra.mxu0 0.0
    %6674 = vmatprep.subr.mxu0 0.0
    %6675 = vmatpush1.msra.mxu0 0.0
    %6676 = vmatprep.subr.mxu0 0.0
    %6677 = vmatpush1.msra.mxu0 0.0
    %6678 = vmatprep.subr.mxu0 0.0
    %6679 = vmatpush1.msra.mxu0 0.0
    %6680 = vmatprep.subr.mxu0 0.0
    %6681 = vmatpush1.msra.mxu0 0.0
    %6682 = vmatprep.subr.mxu0 0.0
    %6683 = vmatpush1.msra.mxu0 0.0
    %6684 = vmatprep.subr.mxu0 0.0
    %6685 = vmatpush1.msra.mxu0 0.0
    %6686 = vmatprep.subr.mxu0 0.0
    %6687 = vmatpush1.msra.mxu0 0.0
    %6688 = vmatprep.subr.mxu0 0.0
    %6689 = vmatpush1.msra.mxu0 0.0
    %6690 = vmatprep.subr.mxu0 0.0
    %6691 = vmatpush1.msra.mxu0 0.0
    %6692 = vmatprep.subr.mxu0 0.0
    %6693 = vmatpush1.msra.mxu0 0.0
    %6694 = vmatprep.subr.mxu0 0.0
    %6695 = vmatpush1.msra.mxu0 0.0
    %6696 = vmatprep.subr.mxu0 0.0
    %6697 = vmatpush1.msra.mxu0 0.0
    %6698 = vmatprep.subr.mxu0 0.0
    %6699 = vmatpush1.msra.mxu0 0.0
    %6700 = vmatprep.subr.mxu0 0.0
    %6701 = vmatpush1.msra.mxu0 0.0
    %6702 = vmatprep.subr.mxu0 0.0
    %6703 = vmatpush1.msra.mxu0 0.0
    %6704 = vmatprep.subr.mxu0 0.0
    %6705 = vmatpush1.msra.mxu0 0.0
    %6706 = vmatprep.subr.mxu0 0.0
    %6707 = vmatpush1.msra.mxu0 0.0
    %6708 = vmatprep.subr.mxu0 0.0
    %6709 = vmatpush1.msra.mxu0 0.0
    %6710 = vmatprep.subr.mxu0 0.0
    %6711 = vmatpush1.msra.mxu0 0.0
    %6712 = vmatprep.subr.mxu0 0.0
    %6713 = vmatpush1.msra.mxu0 0.0
    %6714 = vmatprep.subr.mxu0 0.0
    %6715 = vmatpush1.msra.mxu0 0.0
    %6716 = vmatprep.subr.mxu0 0.0
    %6717 = vmatpush1.msra.mxu0 0.0
    %6718 = vmatprep.subr.mxu0 0.0
    %6719 = vmatpush1.msra.mxu0 0.0
    %6720 = vmatprep.subr.mxu0 0.0
    %6721 = vmatpush1.msra.mxu0 0.0
    %6722 = vmatprep.subr.mxu0 0.0
    %6723 = vmatpush1.msra.mxu0 0.0
    %6724 = vmatprep.mubr.f32.mxu0 0.0
    %v6725 = vand.u32 %v6657, 4294901760
    %v6726 = vsub.f32 %v6657, %v6725
    %v6727 = vand.u32 %v6726, 4294901760
    %v6728 = vsub.f32 %v6726, %v6727
    %v6729 = vand.u32 %v6728, 4294901760
    %6730 = vmatmul.mubr.f32.gmra.mrb[0].mxu0 %v6729
    %v6731 = vpop.f32.mrb[0].mxu0
    %v6732 = vadd.f32 0.0, %v6731
    %v6733 = vpop.f32.mrb[0].mxu0
    %6734 = vdwg.mxu0
    %6735 = vmatprep.subr.mxu0 0.0
    %v6736 = vand.u32 %v1975, 4294901760
    %v6737 = vsub.f32 %v1975, %v6736
    %v6738 = vand.u32 %v6737, 4294901760
    %v6739 = vsub.f32 %v6737, %v6738
    %v6740 = vand.u32 %v6739, 4294901760
    %6741 = vmatpush1.msra.mxu0 %v6740
    %6742 = vmatprep.subr.mxu0 0.0
    %6743 = vmatpush1.msra.mxu0 0.0
    %6744 = vmatprep.subr.mxu0 0.0
    %6745 = vmatpush1.msra.mxu0 0.0
    %6746 = vmatprep.subr.mxu0 0.0
    %6747 = vmatpush1.msra.mxu0 0.0
    %6748 = vmatprep.subr.mxu0 0.0
    %6749 = vmatpush1.msra.mxu0 0.0
    %6750 = vmatprep.subr.mxu0 0.0
    %6751 = vmatpush1.msra.mxu0 0.0
    %6752 = vmatprep.subr.mxu0 0.0
    %6753 = vmatpush1.msra.mxu0 0.0
    %6754 = vmatprep.subr.mxu0 0.0
    %6755 = vmatpush1.msra.mxu0 0.0
    %6756 = vmatprep.subr.mxu0 0.0
    %6757 = vmatpush1.msra.mxu0 0.0
    %6758 = vmatprep.subr.mxu0 0.0
    %6759 = vmatpush1.msra.mxu0 0.0
    %6760 = vmatprep.subr.mxu0 0.0
    %6761 = vmatpush1.msra.mxu0 0.0
    %6762 = vmatprep.subr.mxu0 0.0
    %6763 = vmatpush1.msra.mxu0 0.0
    %6764 = vmatprep.subr.mxu0 0.0
    %6765 = vmatpush1.msra.mxu0 0.0
    %6766 = vmatprep.subr.mxu0 0.0
    %6767 = vmatpush1.msra.mxu0 0.0
    %6768 = vmatprep.subr.mxu0 0.0
    %6769 = vmatpush1.msra.mxu0 0.0
    %6770 = vmatprep.subr.mxu0 0.0
    %6771 = vmatpush1.msra.mxu0 0.0
    %6772 = vmatprep.subr.mxu0 0.0
    %6773 = vmatpush1.msra.mxu0 0.0
    %6774 = vmatprep.subr.mxu0 0.0
    %6775 = vmatpush1.msra.mxu0 0.0
    %6776 = vmatprep.subr.mxu0 0.0
    %6777 = vmatpush1.msra.mxu0 0.0
    %6778 = vmatprep.subr.mxu0 0.0
    %6779 = vmatpush1.msra.mxu0 0.0
    %6780 = vmatprep.subr.mxu0 0.0
    %6781 = vmatpush1.msra.mxu0 0.0
    %6782 = vmatprep.subr.mxu0 0.0
    %6783 = vmatpush1.msra.mxu0 0.0
    %6784 = vmatprep.subr.mxu0 0.0
    %6785 = vmatpush1.msra.mxu0 0.0
    %6786 = vmatprep.subr.mxu0 0.0
    %6787 = vmatpush1.msra.mxu0 0.0
    %6788 = vmatprep.subr.mxu0 0.0
    %6789 = vmatpush1.msra.mxu0 0.0
    %6790 = vmatprep.subr.mxu0 0.0
    %6791 = vmatpush1.msra.mxu0 0.0
    %6792 = vmatprep.subr.mxu0 0.0
    %6793 = vmatpush1.msra.mxu0 0.0
    %6794 = vmatprep.subr.mxu0 0.0
    %6795 = vmatpush1.msra.mxu0 0.0
    %6796 = vmatprep.subr.mxu0 0.0
    %6797 = vmatpush1.msra.mxu0 0.0
    %6798 = vmatprep.subr.mxu0 0.0
    %6799 = vmatpush1.msra.mxu0 0.0
    %6800 = vmatprep.subr.mxu0 0.0
    %6801 = vmatpush1.msra.mxu0 0.0
    %6802 = vmatprep.subr.mxu0 0.0
    %6803 = vmatpush1.msra.mxu0 0.0
    %6804 = vmatprep.mubr.f32.mxu0 0.0
    %v6805 = vand.u32 %v6657, 4294901760
    %6806 = vmatmul.mubr.f32.gmra.mrb[0].mxu0 %v6805
    %v6807 = vpop.f32.mrb[0].mxu0
    %v6808 = vadd.f32 %v6732, %v6807
    %v6809 = vpop.f32.mrb[0].mxu0
    %6810 = vdwg.mxu0
    %6811 = vmatprep.subr.mxu0 0.0
    %v6812 = vand.u32 %v1975, 4294901760
    %v6813 = vsub.f32 %v1975, %v6812
    %6814 = vmatpush1.msra.mxu0 %v6813
    %6815 = vmatprep.subr.mxu0 0.0
    %6816 = vmatpush1.msra.mxu0 0.0
    %6817 = vmatprep.subr.mxu0 0.0
    %6818 = vmatpush1.msra.mxu0 0.0
    %6819 = vmatprep.subr.mxu0 0.0
    %6820 = vmatpush1.msra.mxu0 0.0
    %6821 = vmatprep.subr.mxu0 0.0
    %6822 = vmatpush1.msra.mxu0 0.0
    %6823 = vmatprep.subr.mxu0 0.0
    %6824 = vmatpush1.msra.mxu0 0.0
    %6825 = vmatprep.subr.mxu0 0.0
    %6826 = vmatpush1.msra.mxu0 0.0
    %6827 = vmatprep.subr.mxu0 0.0
    %6828 = vmatpush1.msra.mxu0 0.0
    %6829 = vmatprep.subr.mxu0 0.0
    %6830 = vmatpush1.msra.mxu0 0.0
    %6831 = vmatprep.subr.mxu0 0.0
    %6832 = vmatpush1.msra.mxu0 0.0
    %6833 = vmatprep.subr.mxu0 0.0
    %6834 = vmatpush1.msra.mxu0 0.0
    %6835 = vmatprep.subr.mxu0 0.0
    %6836 = vmatpush1.msra.mxu0 0.0
    %6837 = vmatprep.subr.mxu0 0.0
    %6838 = vmatpush1.msra.mxu0 0.0
    %6839 = vmatprep.subr.mxu0 0.0
    %6840 = vmatpush1.msra.mxu0 0.0
    %6841 = vmatprep.subr.mxu0 0.0
    %6842 = vmatpush1.msra.mxu0 0.0
    %6843 = vmatprep.subr.mxu0 0.0
    %6844 = vmatpush1.msra.mxu0 0.0
    %6845 = vmatprep.subr.mxu0 0.0
    %6846 = vmatpush1.msra.mxu0 0.0
    %6847 = vmatprep.subr.mxu0 0.0
    %6848 = vmatpush1.msra.mxu0 0.0
    %6849 = vmatprep.subr.mxu0 0.0
    %6850 = vmatpush1.msra.mxu0 0.0
    %6851 = vmatprep.subr.mxu0 0.0
    %6852 = vmatpush1.msra.mxu0 0.0
    %6853 = vmatprep.subr.mxu0 0.0
    %6854 = vmatpush1.msra.mxu0 0.0
    %6855 = vmatprep.subr.mxu0 0.0
    %6856 = vmatpush1.msra.mxu0 0.0
    %6857 = vmatprep.subr.mxu0 0.0
    %6858 = vmatpush1.msra.mxu0 0.0
    %6859 = vmatprep.subr.mxu0 0.0
    %6860 = vmatpush1.msra.mxu0 0.0
    %6861 = vmatprep.subr.mxu0 0.0
    %6862 = vmatpush1.msra.mxu0 0.0
    %6863 = vmatprep.subr.mxu0 0.0
    %6864 = vmatpush1.msra.mxu0 0.0
    %6865 = vmatprep.subr.mxu0 0.0
    %6866 = vmatpush1.msra.mxu0 0.0
    %6867 = vmatprep.subr.mxu0 0.0
    %6868 = vmatpush1.msra.mxu0 0.0
    %6869 = vmatprep.subr.mxu0 0.0
    %6870 = vmatpush1.msra.mxu0 0.0
    %6871 = vmatprep.subr.mxu0 0.0
    %6872 = vmatpush1.msra.mxu0 0.0
    %6873 = vmatprep.subr.mxu0 0.0
    %6874 = vmatpush1.msra.mxu0 0.0
    %6875 = vmatprep.subr.mxu0 0.0
    %6876 = vmatpush1.msra.mxu0 0.0
    %6877 = vmatprep.mubr.f32.mxu0 0.0
    %v6878 = vand.u32 %v6657, 4294901760
    %v6879 = vsub.f32 %v6657, %v6878
    %6880 = vmatmul.mubr.f32.gmra.mrb[0].mxu0 %v6879
    %v6881 = vpop.f32.mrb[0].mxu0
    %v6882 = vadd.f32 %v6808, %v6881
    %v6883 = vpop.f32.mrb[0].mxu0
    %6884 = vdwg.mxu0
    %6885 = vmatprep.subr.mxu0 0.0
    %v6886 = vand.u32 %v1975, 4294901760
    %6887 = vmatpush1.msra.mxu0 %v6886
    %6888 = vmatprep.subr.mxu0 0.0
    %6889 = vmatpush1.msra.mxu0 0.0
    %6890 = vmatprep.subr.mxu0 0.0
    %6891 = vmatpush1.msra.mxu0 0.0
    %6892 = vmatprep.subr.mxu0 0.0
    %6893 = vmatpush1.msra.mxu0 0.0
    %6894 = vmatprep.subr.mxu0 0.0
    %6895 = vmatpush1.msra.mxu0 0.0
    %6896 = vmatprep.subr.mxu0 0.0
    %6897 = vmatpush1.msra.mxu0 0.0
    %6898 = vmatprep.subr.mxu0 0.0
    %6899 = vmatpush1.msra.mxu0 0.0
    %6900 = vmatprep.subr.mxu0 0.0
    %6901 = vmatpush1.msra.mxu0 0.0
    %6902 = vmatprep.subr.mxu0 0.0
    %6903 = vmatpush1.msra.mxu0 0.0
    %6904 = vmatprep.subr.mxu0 0.0
    %6905 = vmatpush1.msra.mxu0 0.0
    %6906 = vmatprep.subr.mxu0 0.0
    %6907 = vmatpush1.msra.mxu0 0.0
    %6908 = vmatprep.subr.mxu0 0.0
    %6909 = vmatpush1.msra.mxu0 0.0
    %6910 = vmatprep.subr.mxu0 0.0
    %6911 = vmatpush1.msra.mxu0 0.0
    %6912 = vmatprep.subr.mxu0 0.0
    %6913 = vmatpush1.msra.mxu0 0.0
    %6914 = vmatprep.subr.mxu0 0.0
    %6915 = vmatpush1.msra.mxu0 0.0
    %6916 = vmatprep.subr.mxu0 0.0
    %6917 = vmatpush1.msra.mxu0 0.0
    %6918 = vmatprep.subr.mxu0 0.0
    %6919 = vmatpush1.msra.mxu0 0.0
    %6920 = vmatprep.subr.mxu0 0.0
    %6921 = vmatpush1.msra.mxu0 0.0
    %6922 = vmatprep.subr.mxu0 0.0
    %6923 = vmatpush1.msra.mxu0 0.0
    %6924 = vmatprep.subr.mxu0 0.0
    %6925 = vmatpush1.msra.mxu0 0.0
    %6926 = vmatprep.subr.mxu0 0.0
    %6927 = vmatpush1.msra.mxu0 0.0
    %6928 = vmatprep.subr.mxu0 0.0
    %6929 = vmatpush1.msra.mxu0 0.0
    %6930 = vmatprep.subr.mxu0 0.0
    %6931 = vmatpush1.msra.mxu0 0.0
    %6932 = vmatprep.subr.mxu0 0.0
    %6933 = vmatpush1.msra.mxu0 0.0
    %6934 = vmatprep.subr.mxu0 0.0
    %6935 = vmatpush1.msra.mxu0 0.0
    %6936 = vmatprep.subr.mxu0 0.0
    %6937 = vmatpush1.msra.mxu0 0.0
    %6938 = vmatprep.subr.mxu0 0.0
    %6939 = vmatpush1.msra.mxu0 0.0
    %6940 = vmatprep.subr.mxu0 0.0
    %6941 = vmatpush1.msra.mxu0 0.0
    %6942 = vmatprep.subr.mxu0 0.0
    %6943 = vmatpush1.msra.mxu0 0.0
    %6944 = vmatprep.subr.mxu0 0.0
    %6945 = vmatpush1.msra.mxu0 0.0
    %6946 = vmatprep.subr.mxu0 0.0
    %6947 = vmatpush1.msra.mxu0 0.0
    %6948 = vmatprep.subr.mxu0 0.0
    %6949 = vmatpush1.msra.mxu0 0.0
    %6950 = vmatprep.mubr.f32.mxu0 0.0
    %v6951 = vand.u32 %v6657, 4294901760
    %v6952 = vsub.f32 %v6657, %v6951
    %v6953 = vand.u32 %v6952, 4294901760
    %6954 = vmatmul.mubr.f32.gmra.mrb[0].mxu0 %v6953
    %v6955 = vpop.f32.mrb[0].mxu0
    %v6956 = vadd.f32 %v6882, %v6955
    %v6957 = vpop.f32.mrb[0].mxu0
    %6958 = vdwg.mxu0
    %6959 = vmatprep.subr.mxu0 0.0
    %v6960 = vand.u32 %v1975, 4294901760
    %v6961 = vsub.f32 %v1975, %v6960
    %v6962 = vand.u32 %v6961, 4294901760
    %6963 = vmatpush1.msra.mxu0 %v6962
    %6964 = vmatprep.subr.mxu0 0.0
    %6965 = vmatpush1.msra.mxu0 0.0
    %6966 = vmatprep.subr.mxu0 0.0
    %6967 = vmatpush1.msra.mxu0 0.0
    %6968 = vmatprep.subr.mxu0 0.0
    %6969 = vmatpush1.msra.mxu0 0.0
    %6970 = vmatprep.subr.mxu0 0.0
    %6971 = vmatpush1.msra.mxu0 0.0
    %6972 = vmatprep.subr.mxu0 0.0
    %6973 = vmatpush1.msra.mxu0 0.0
    %6974 = vmatprep.subr.mxu0 0.0
    %6975 = vmatpush1.msra.mxu0 0.0
    %6976 = vmatprep.subr.mxu0 0.0
    %6977 = vmatpush1.msra.mxu0 0.0
    %6978 = vmatprep.subr.mxu0 0.0
    %6979 = vmatpush1.msra.mxu0 0.0
    %6980 = vmatprep.subr.mxu0 0.0
    %6981 = vmatpush1.msra.mxu0 0.0
    %6982 = vmatprep.subr.mxu0 0.0
    %6983 = vmatpush1.msra.mxu0 0.0
    %6984 = vmatprep.subr.mxu0 0.0
    %6985 = vmatpush1.msra.mxu0 0.0
    %6986 = vmatprep.subr.mxu0 0.0
    %6987 = vmatpush1.msra.mxu0 0.0
    %6988 = vmatprep.subr.mxu0 0.0
    %6989 = vmatpush1.msra.mxu0 0.0
    %6990 = vmatprep.subr.mxu0 0.0
    %6991 = vmatpush1.msra.mxu0 0.0
    %6992 = vmatprep.subr.mxu0 0.0
    %6993 = vmatpush1.msra.mxu0 0.0
    %6994 = vmatprep.subr.mxu0 0.0
    %6995 = vmatpush1.msra.mxu0 0.0
    %6996 = vmatprep.subr.mxu0 0.0
    %6997 = vmatpush1.msra.mxu0 0.0
    %6998 = vmatprep.subr.mxu0 0.0
    %6999 = vmatpush1.msra.mxu0 0.0
    %7000 = vmatprep.subr.mxu0 0.0
    %7001 = vmatpush1.msra.mxu0 0.0
    %7002 = vmatprep.subr.mxu0 0.0
    %7003 = vmatpush1.msra.mxu0 0.0
    %7004 = vmatprep.subr.mxu0 0.0
    %7005 = vmatpush1.msra.mxu0 0.0
    %7006 = vmatprep.subr.mxu0 0.0
    %7007 = vmatpush1.msra.mxu0 0.0
    %7008 = vmatprep.subr.mxu0 0.0
    %7009 = vmatpush1.msra.mxu0 0.0
    %7010 = vmatprep.subr.mxu0 0.0
    %7011 = vmatpush1.msra.mxu0 0.0
    %7012 = vmatprep.subr.mxu0 0.0
    %7013 = vmatpush1.msra.mxu0 0.0
    %7014 = vmatprep.subr.mxu0 0.0
    %7015 = vmatpush1.msra.mxu0 0.0
    %7016 = vmatprep.subr.mxu0 0.0
    %7017 = vmatpush1.msra.mxu0 0.0
    %7018 = vmatprep.subr.mxu0 0.0
    %7019 = vmatpush1.msra.mxu0 0.0
    %7020 = vmatprep.subr.mxu0 0.0
    %7021 = vmatpush1.msra.mxu0 0.0
    %7022 = vmatprep.subr.mxu0 0.0
    %7023 = vmatpush1.msra.mxu0 0.0
    %7024 = vmatprep.subr.mxu0 0.0
    %7025 = vmatpush1.msra.mxu0 0.0
    %7026 = vmatprep.mubr.f32.mxu0 0.0
    %v7027 = vand.u32 %v6657, 4294901760
    %7028 = vmatmul.mubr.f32.gmra.mrb[0].mxu0 %v7027
    %v7029 = vpop.f32.mrb[0].mxu0
    %v7030 = vadd.f32 %v6956, %v7029
    %v7031 = vpop.f32.mrb[0].mxu0
    %7032 = vdwg.mxu0
    %7033 = vmatprep.subr.mxu0 0.0
    %v7034 = vand.u32 %v1975, 4294901760
    %7035 = vmatpush1.msra.mxu0 %v7034
    %7036 = vmatprep.subr.mxu0 0.0
    %7037 = vmatpush1.msra.mxu0 0.0
    %7038 = vmatprep.subr.mxu0 0.0
    %7039 = vmatpush1.msra.mxu0 0.0
    %7040 = vmatprep.subr.mxu0 0.0
    %7041 = vmatpush1.msra.mxu0 0.0
    %7042 = vmatprep.subr.mxu0 0.0
    %7043 = vmatpush1.msra.mxu0 0.0
    %7044 = vmatprep.subr.mxu0 0.0
    %7045 = vmatpush1.msra.mxu0 0.0
    %7046 = vmatprep.subr.mxu0 0.0
    %7047 = vmatpush1.msra.mxu0 0.0
    %7048 = vmatprep.subr.mxu0 0.0
    %7049 = vmatpush1.msra.mxu0 0.0
    %7050 = vmatprep.subr.mxu0 0.0
    %7051 = vmatpush1.msra.mxu0 0.0
    %7052 = vmatprep.subr.mxu0 0.0
    %7053 = vmatpush1.msra.mxu0 0.0
    %7054 = vmatprep.subr.mxu0 0.0
    %7055 = vmatpush1.msra.mxu0 0.0
    %7056 = vmatprep.subr.mxu0 0.0
    %7057 = vmatpush1.msra.mxu0 0.0
    %7058 = vmatprep.subr.mxu0 0.0
    %7059 = vmatpush1.msra.mxu0 0.0
    %7060 = vmatprep.subr.mxu0 0.0
    %7061 = vmatpush1.msra.mxu0 0.0
    %7062 = vmatprep.subr.mxu0 0.0
    %7063 = vmatpush1.msra.mxu0 0.0
    %7064 = vmatprep.subr.mxu0 0.0
    %7065 = vmatpush1.msra.mxu0 0.0
    %7066 = vmatprep.subr.mxu0 0.0
    %7067 = vmatpush1.msra.mxu0 0.0
    %7068 = vmatprep.subr.mxu0 0.0
    %7069 = vmatpush1.msra.mxu0 0.0
    %7070 = vmatprep.subr.mxu0 0.0
    %7071 = vmatpush1.msra.mxu0 0.0
    %7072 = vmatprep.subr.mxu0 0.0
    %7073 = vmatpush1.msra.mxu0 0.0
    %7074 = vmatprep.subr.mxu0 0.0
    %7075 = vmatpush1.msra.mxu0 0.0
    %7076 = vmatprep.subr.mxu0 0.0
    %7077 = vmatpush1.msra.mxu0 0.0
    %7078 = vmatprep.subr.mxu0 0.0
    %7079 = vmatpush1.msra.mxu0 0.0
    %7080 = vmatprep.subr.mxu0 0.0
    %7081 = vmatpush1.msra.mxu0 0.0
    %7082 = vmatprep.subr.mxu0 0.0
    %7083 = vmatpush1.msra.mxu0 0.0
    %7084 = vmatprep.subr.mxu0 0.0
    %7085 = vmatpush1.msra.mxu0 0.0
    %7086 = vmatprep.subr.mxu0 0.0
    %7087 = vmatpush1.msra.mxu0 0.0
    %7088 = vmatprep.subr.mxu0 0.0
    %7089 = vmatpush1.msra.mxu0 0.0
    %7090 = vmatprep.subr.mxu0 0.0
    %7091 = vmatpush1.msra.mxu0 0.0
    %7092 = vmatprep.subr.mxu0 0.0
    %7093 = vmatpush1.msra.mxu0 0.0
    %7094 = vmatprep.subr.mxu0 0.0
    %7095 = vmatpush1.msra.mxu0 0.0
    %7096 = vmatprep.subr.mxu0 0.0
    %7097 = vmatpush1.msra.mxu0 0.0
    %7098 = vmatprep.mubr.f32.mxu0 0.0
    %v7099 = vand.u32 %v6657, 4294901760
    %7100 = vmatmul.mubr.f32.gmra.mrb[0].mxu0 %v7099
    %v7101 = vpop.f32.mrb[0].mxu0
    %v7102 = vadd.f32 %v7030, %v7101
    %v7103 = vpop.f32.mrb[0].mxu0
    %7104 = vdwg.mxu0
    %v7106 = vsel %vm2045, %v5753, 0
    %7108 = vmatprep.subr.mxu0 0.0
    %v7109 = vand.u32 %v1976, 4294901760
    %7110 = vmatpush1.msra.mxu0 %v7109
    %7111 = vmatprep.subr.mxu0 0.0
    %7112 = vmatpush1.msra.mxu0 0.0
    %7113 = vmatprep.subr.mxu0 0.0
    %7114 = vmatpush1.msra.mxu0 0.0
    %7115 = vmatprep.subr.mxu0 0.0
    %7116 = vmatpush1.msra.mxu0 0.0
    %7117 = vmatprep.subr.mxu0 0.0
    %7118 = vmatpush1.msra.mxu0 0.0
    %7119 = vmatprep.subr.mxu0 0.0
    %7120 = vmatpush1.msra.mxu0 0.0
    %7121 = vmatprep.subr.mxu0 0.0
    %7122 = vmatpush1.msra.mxu0 0.0
    %7123 = vmatprep.subr.mxu0 0.0
    %7124 = vmatpush1.msra.mxu0 0.0
    %7125 = vmatprep.subr.mxu0 0.0
    %7126 = vmatpush1.msra.mxu0 0.0
    %7127 = vmatprep.subr.mxu0 0.0
    %7128 = vmatpush1.msra.mxu0 0.0
    %7129 = vmatprep.subr.mxu0 0.0
    %7130 = vmatpush1.msra.mxu0 0.0
    %7131 = vmatprep.subr.mxu0 0.0
    %7132 = vmatpush1.msra.mxu0 0.0
    %7133 = vmatprep.subr.mxu0 0.0
    %7134 = vmatpush1.msra.mxu0 0.0
    %7135 = vmatprep.subr.mxu0 0.0
    %7136 = vmatpush1.msra.mxu0 0.0
    %7137 = vmatprep.subr.mxu0 0.0
    %7138 = vmatpush1.msra.mxu0 0.0
    %7139 = vmatprep.subr.mxu0 0.0
    %7140 = vmatpush1.msra.mxu0 0.0
    %7141 = vmatprep.subr.mxu0 0.0
    %7142 = vmatpush1.msra.mxu0 0.0
    %7143 = vmatprep.subr.mxu0 0.0
    %7144 = vmatpush1.msra.mxu0 0.0
    %7145 = vmatprep.subr.mxu0 0.0
    %7146 = vmatpush1.msra.mxu0 0.0
    %7147 = vmatprep.subr.mxu0 0.0
    %7148 = vmatpush1.msra.mxu0 0.0
    %7149 = vmatprep.subr.mxu0 0.0
    %7150 = vmatpush1.msra.mxu0 0.0
    %7151 = vmatprep.subr.mxu0 0.0
    %7152 = vmatpush1.msra.mxu0 0.0
    %7153 = vmatprep.subr.mxu0 0.0
    %7154 = vmatpush1.msra.mxu0 0.0
    %7155 = vmatprep.subr.mxu0 0.0
    %7156 = vmatpush1.msra.mxu0 0.0
    %7157 = vmatprep.subr.mxu0 0.0
    %7158 = vmatpush1.msra.mxu0 0.0
    %7159 = vmatprep.subr.mxu0 0.0
    %7160 = vmatpush1.msra.mxu0 0.0
    %7161 = vmatprep.subr.mxu0 0.0
    %7162 = vmatpush1.msra.mxu0 0.0
    %7163 = vmatprep.subr.mxu0 0.0
    %7164 = vmatpush1.msra.mxu0 0.0
    %7165 = vmatprep.subr.mxu0 0.0
    %7166 = vmatpush1.msra.mxu0 0.0
    %7167 = vmatprep.subr.mxu0 0.0
    %7168 = vmatpush1.msra.mxu0 0.0
    %7169 = vmatprep.subr.mxu0 0.0
    %7170 = vmatpush1.msra.mxu0 0.0
    %7171 = vmatprep.subr.mxu0 0.0
    %7172 = vmatpush1.msra.mxu0 0.0
    %7173 = vmatprep.mubr.f32.mxu0 0.0
    %v7174 = vand.u32 %v7106, 4294901760
    %v7175 = vsub.f32 %v7106, %v7174
    %v7176 = vand.u32 %v7175, 4294901760
    %v7177 = vsub.f32 %v7175, %v7176
    %v7178 = vand.u32 %v7177, 4294901760
    %7179 = vmatmul.mubr.f32.gmra.mrb[0].mxu0 %v7178
    %v7180 = vpop.f32.mrb[0].mxu0
    %v7181 = vadd.f32 0.0, %v7180
    %v7182 = vpop.f32.mrb[0].mxu0
    %7183 = vdwg.mxu0
    %7184 = vmatprep.subr.mxu0 0.0
    %v7185 = vand.u32 %v1976, 4294901760
    %v7186 = vsub.f32 %v1976, %v7185
    %v7187 = vand.u32 %v7186, 4294901760
    %v7188 = vsub.f32 %v7186, %v7187
    %v7189 = vand.u32 %v7188, 4294901760
    %7190 = vmatpush1.msra.mxu0 %v7189
    %7191 = vmatprep.subr.mxu0 0.0
    %7192 = vmatpush1.msra.mxu0 0.0
    %7193 = vmatprep.subr.mxu0 0.0
    %7194 = vmatpush1.msra.mxu0 0.0
    %7195 = vmatprep.subr.mxu0 0.0
    %7196 = vmatpush1.msra.mxu0 0.0
    %7197 = vmatprep.subr.mxu0 0.0
    %7198 = vmatpush1.msra.mxu0 0.0
    %7199 = vmatprep.subr.mxu0 0.0
    %7200 = vmatpush1.msra.mxu0 0.0
    %7201 = vmatprep.subr.mxu0 0.0
    %7202 = vmatpush1.msra.mxu0 0.0
    %7203 = vmatprep.subr.mxu0 0.0
    %7204 = vmatpush1.msra.mxu0 0.0
    %7205 = vmatprep.subr.mxu0 0.0
    %7206 = vmatpush1.msra.mxu0 0.0
    %7207 = vmatprep.subr.mxu0 0.0
    %7208 = vmatpush1.msra.mxu0 0.0
    %7209 = vmatprep.subr.mxu0 0.0
    %7210 = vmatpush1.msra.mxu0 0.0
    %7211 = vmatprep.subr.mxu0 0.0
    %7212 = vmatpush1.msra.mxu0 0.0
    %7213 = vmatprep.subr.mxu0 0.0
    %7214 = vmatpush1.msra.mxu0 0.0
    %7215 = vmatprep.subr.mxu0 0.0
    %7216 = vmatpush1.msra.mxu0 0.0
    %7217 = vmatprep.subr.mxu0 0.0
    %7218 = vmatpush1.msra.mxu0 0.0
    %7219 = vmatprep.subr.mxu0 0.0
    %7220 = vmatpush1.msra.mxu0 0.0
    %7221 = vmatprep.subr.mxu0 0.0
    %7222 = vmatpush1.msra.mxu0 0.0
    %7223 = vmatprep.subr.mxu0 0.0
    %7224 = vmatpush1.msra.mxu0 0.0
    %7225 = vmatprep.subr.mxu0 0.0
    %7226 = vmatpush1.msra.mxu0 0.0
    %7227 = vmatprep.subr.mxu0 0.0
    %7228 = vmatpush1.msra.mxu0 0.0
    %7229 = vmatprep.subr.mxu0 0.0
    %7230 = vmatpush1.msra.mxu0 0.0
    %7231 = vmatprep.subr.mxu0 0.0
    %7232 = vmatpush1.msra.mxu0 0.0
    %7233 = vmatprep.subr.mxu0 0.0
    %7234 = vmatpush1.msra.mxu0 0.0
    %7235 = vmatprep.subr.mxu0 0.0
    %7236 = vmatpush1.msra.mxu0 0.0
    %7237 = vmatprep.subr.mxu0 0.0
    %7238 = vmatpush1.msra.mxu0 0.0
    %7239 = vmatprep.subr.mxu0 0.0
    %7240 = vmatpush1.msra.mxu0 0.0
    %7241 = vmatprep.subr.mxu0 0.0
    %7242 = vmatpush1.msra.mxu0 0.0
    %7243 = vmatprep.subr.mxu0 0.0
    %7244 = vmatpush1.msra.mxu0 0.0
    %7245 = vmatprep.subr.mxu0 0.0
    %7246 = vmatpush1.msra.mxu0 0.0
    %7247 = vmatprep.subr.mxu0 0.0
    %7248 = vmatpush1.msra.mxu0 0.0
    %7249 = vmatprep.subr.mxu0 0.0
    %7250 = vmatpush1.msra.mxu0 0.0
    %7251 = vmatprep.subr.mxu0 0.0
    %7252 = vmatpush1.msra.mxu0 0.0
    %7253 = vmatprep.mubr.f32.mxu0 0.0
    %v7254 = vand.u32 %v7106, 4294901760
    %7255 = vmatmul.mubr.f32.gmra.mrb[0].mxu0 %v7254
    %v7256 = vpop.f32.mrb[0].mxu0
    %v7257 = vadd.f32 %v7181, %v7256
    %v7258 = vpop.f32.mrb[0].mxu0
    %7259 = vdwg.mxu0
    %7260 = vmatprep.subr.mxu0 0.0
    %v7261 = vand.u32 %v1976, 4294901760
    %v7262 = vsub.f32 %v1976, %v7261
    %7263 = vmatpush1.msra.mxu0 %v7262
    %7264 = vmatprep.subr.mxu0 0.0
    %7265 = vmatpush1.msra.mxu0 0.0
    %7266 = vmatprep.subr.mxu0 0.0
    %7267 = vmatpush1.msra.mxu0 0.0
    %7268 = vmatprep.subr.mxu0 0.0
    %7269 = vmatpush1.msra.mxu0 0.0
    %7270 = vmatprep.subr.mxu0 0.0
    %7271 = vmatpush1.msra.mxu0 0.0
    %7272 = vmatprep.subr.mxu0 0.0
    %7273 = vmatpush1.msra.mxu0 0.0
    %7274 = vmatprep.subr.mxu0 0.0
    %7275 = vmatpush1.msra.mxu0 0.0
    %7276 = vmatprep.subr.mxu0 0.0
    %7277 = vmatpush1.msra.mxu0 0.0
    %7278 = vmatprep.subr.mxu0 0.0
    %7279 = vmatpush1.msra.mxu0 0.0
    %7280 = vmatprep.subr.mxu0 0.0
    %7281 = vmatpush1.msra.mxu0 0.0
    %7282 = vmatprep.subr.mxu0 0.0
    %7283 = vmatpush1.msra.mxu0 0.0
    %7284 = vmatprep.subr.mxu0 0.0
    %7285 = vmatpush1.msra.mxu0 0.0
    %7286 = vmatprep.subr.mxu0 0.0
    %7287 = vmatpush1.msra.mxu0 0.0
    %7288 = vmatprep.subr.mxu0 0.0
    %7289 = vmatpush1.msra.mxu0 0.0
    %7290 = vmatprep.subr.mxu0 0.0
    %7291 = vmatpush1.msra.mxu0 0.0
    %7292 = vmatprep.subr.mxu0 0.0
    %7293 = vmatpush1.msra.mxu0 0.0
    %7294 = vmatprep.subr.mxu0 0.0
    %7295 = vmatpush1.msra.mxu0 0.0
    %7296 = vmatprep.subr.mxu0 0.0
    %7297 = vmatpush1.msra.mxu0 0.0
    %7298 = vmatprep.subr.mxu0 0.0
    %7299 = vmatpush1.msra.mxu0 0.0
    %7300 = vmatprep.subr.mxu0 0.0
    %7301 = vmatpush1.msra.mxu0 0.0
    %7302 = vmatprep.subr.mxu0 0.0
    %7303 = vmatpush1.msra.mxu0 0.0
    %7304 = vmatprep.subr.mxu0 0.0
    %7305 = vmatpush1.msra.mxu0 0.0
    %7306 = vmatprep.subr.mxu0 0.0
    %7307 = vmatpush1.msra.mxu0 0.0
    %7308 = vmatprep.subr.mxu0 0.0
    %7309 = vmatpush1.msra.mxu0 0.0
    %7310 = vmatprep.subr.mxu0 0.0
    %7311 = vmatpush1.msra.mxu0 0.0
    %7312 = vmatprep.subr.mxu0 0.0
    %7313 = vmatpush1.msra.mxu0 0.0
    %7314 = vmatprep.subr.mxu0 0.0
    %7315 = vmatpush1.msra.mxu0 0.0
    %7316 = vmatprep.subr.mxu0 0.0
    %7317 = vmatpush1.msra.mxu0 0.0
    %7318 = vmatprep.subr.mxu0 0.0
    %7319 = vmatpush1.msra.mxu0 0.0
    %7320 = vmatprep.subr.mxu0 0.0
    %7321 = vmatpush1.msra.mxu0 0.0
    %7322 = vmatprep.subr.mxu0 0.0
    %7323 = vmatpush1.msra.mxu0 0.0
    %7324 = vmatprep.subr.mxu0 0.0
    %7325 = vmatpush1.msra.mxu0 0.0
    %7326 = vmatprep.mubr.f32.mxu0 0.0
    %v7327 = vand.u32 %v7106, 4294901760
    %v7328 = vsub.f32 %v7106, %v7327
    %7329 = vmatmul.mubr.f32.gmra.mrb[0].mxu0 %v7328
    %v7330 = vpop.f32.mrb[0].mxu0
    %v7331 = vadd.f32 %v7257, %v7330
    %v7332 = vpop.f32.mrb[0].mxu0
    %7333 = vdwg.mxu0
    %7334 = vmatprep.subr.mxu0 0.0
    %v7335 = vand.u32 %v1976, 4294901760
    %7336 = vmatpush1.msra.mxu0 %v7335
    %7337 = vmatprep.subr.mxu0 0.0
    %7338 = vmatpush1.msra.mxu0 0.0
    %7339 = vmatprep.subr.mxu0 0.0
    %7340 = vmatpush1.msra.mxu0 0.0
    %7341 = vmatprep.subr.mxu0 0.0
    %7342 = vmatpush1.msra.mxu0 0.0
    %7343 = vmatprep.subr.mxu0 0.0
    %7344 = vmatpush1.msra.mxu0 0.0
    %7345 = vmatprep.subr.mxu0 0.0
    %7346 = vmatpush1.msra.mxu0 0.0
    %7347 = vmatprep.subr.mxu0 0.0
    %7348 = vmatpush1.msra.mxu0 0.0
    %7349 = vmatprep.subr.mxu0 0.0
    %7350 = vmatpush1.msra.mxu0 0.0
    %7351 = vmatprep.subr.mxu0 0.0
    %7352 = vmatpush1.msra.mxu0 0.0
    %7353 = vmatprep.subr.mxu0 0.0
    %7354 = vmatpush1.msra.mxu0 0.0
    %7355 = vmatprep.subr.mxu0 0.0
    %7356 = vmatpush1.msra.mxu0 0.0
    %7357 = vmatprep.subr.mxu0 0.0
    %7358 = vmatpush1.msra.mxu0 0.0
    %7359 = vmatprep.subr.mxu0 0.0
    %7360 = vmatpush1.msra.mxu0 0.0
    %7361 = vmatprep.subr.mxu0 0.0
    %7362 = vmatpush1.msra.mxu0 0.0
    %7363 = vmatprep.subr.mxu0 0.0
    %7364 = vmatpush1.msra.mxu0 0.0
    %7365 = vmatprep.subr.mxu0 0.0
    %7366 = vmatpush1.msra.mxu0 0.0
    %7367 = vmatprep.subr.mxu0 0.0
    %7368 = vmatpush1.msra.mxu0 0.0
    %7369 = vmatprep.subr.mxu0 0.0
    %7370 = vmatpush1.msra.mxu0 0.0
    %7371 = vmatprep.subr.mxu0 0.0
    %7372 = vmatpush1.msra.mxu0 0.0
    %7373 = vmatprep.subr.mxu0 0.0
    %7374 = vmatpush1.msra.mxu0 0.0
    %7375 = vmatprep.subr.mxu0 0.0
    %7376 = vmatpush1.msra.mxu0 0.0
    %7377 = vmatprep.subr.mxu0 0.0
    %7378 = vmatpush1.msra.mxu0 0.0
    %7379 = vmatprep.subr.mxu0 0.0
    %7380 = vmatpush1.msra.mxu0 0.0
    %7381 = vmatprep.subr.mxu0 0.0
    %7382 = vmatpush1.msra.mxu0 0.0
    %7383 = vmatprep.subr.mxu0 0.0
    %7384 = vmatpush1.msra.mxu0 0.0
    %7385 = vmatprep.subr.mxu0 0.0
    %7386 = vmatpush1.msra.mxu0 0.0
    %7387 = vmatprep.subr.mxu0 0.0
    %7388 = vmatpush1.msra.mxu0 0.0
    %7389 = vmatprep.subr.mxu0 0.0
    %7390 = vmatpush1.msra.mxu0 0.0
    %7391 = vmatprep.subr.mxu0 0.0
    %7392 = vmatpush1.msra.mxu0 0.0
    %7393 = vmatprep.subr.mxu0 0.0
    %7394 = vmatpush1.msra.mxu0 0.0
    %7395 = vmatprep.subr.mxu0 0.0
    %7396 = vmatpush1.msra.mxu0 0.0
    %7397 = vmatprep.subr.mxu0 0.0
    %7398 = vmatpush1.msra.mxu0 0.0
    %7399 = vmatprep.mubr.f32.mxu0 0.0
    %v7400 = vand.u32 %v7106, 4294901760
    %v7401 = vsub.f32 %v7106, %v7400
    %v7402 = vand.u32 %v7401, 4294901760
    %7403 = vmatmul.mubr.f32.gmra.mrb[0].mxu0 %v7402
    %v7404 = vpop.f32.mrb[0].mxu0
    %v7405 = vadd.f32 %v7331, %v7404
    %v7406 = vpop.f32.mrb[0].mxu0
    %7407 = vdwg.mxu0
    %7408 = vmatprep.subr.mxu0 0.0
    %v7409 = vand.u32 %v1976, 4294901760
    %v7410 = vsub.f32 %v1976, %v7409
    %v7411 = vand.u32 %v7410, 4294901760
    %7412 = vmatpush1.msra.mxu0 %v7411
    %7413 = vmatprep.subr.mxu0 0.0
    %7414 = vmatpush1.msra.mxu0 0.0
    %7415 = vmatprep.subr.mxu0 0.0
    %7416 = vmatpush1.msra.mxu0 0.0
    %7417 = vmatprep.subr.mxu0 0.0
    %7418 = vmatpush1.msra.mxu0 0.0
    %7419 = vmatprep.subr.mxu0 0.0
    %7420 = vmatpush1.msra.mxu0 0.0
    %7421 = vmatprep.subr.mxu0 0.0
    %7422 = vmatpush1.msra.mxu0 0.0
    %7423 = vmatprep.subr.mxu0 0.0
    %7424 = vmatpush1.msra.mxu0 0.0
    %7425 = vmatprep.subr.mxu0 0.0
    %7426 = vmatpush1.msra.mxu0 0.0
    %7427 = vmatprep.subr.mxu0 0.0
    %7428 = vmatpush1.msra.mxu0 0.0
    %7429 = vmatprep.subr.mxu0 0.0
    %7430 = vmatpush1.msra.mxu0 0.0
    %7431 = vmatprep.subr.mxu0 0.0
    %7432 = vmatpush1.msra.mxu0 0.0
    %7433 = vmatprep.subr.mxu0 0.0
    %7434 = vmatpush1.msra.mxu0 0.0
    %7435 = vmatprep.subr.mxu0 0.0
    %7436 = vmatpush1.msra.mxu0 0.0
    %7437 = vmatprep.subr.mxu0 0.0
    %7438 = vmatpush1.msra.mxu0 0.0
    %7439 = vmatprep.subr.mxu0 0.0
    %7440 = vmatpush1.msra.mxu0 0.0
    %7441 = vmatprep.subr.mxu0 0.0
    %7442 = vmatpush1.msra.mxu0 0.0
    %7443 = vmatprep.subr.mxu0 0.0
    %7444 = vmatpush1.msra.mxu0 0.0
    %7445 = vmatprep.subr.mxu0 0.0
    %7446 = vmatpush1.msra.mxu0 0.0
    %7447 = vmatprep.subr.mxu0 0.0
    %7448 = vmatpush1.msra.mxu0 0.0
    %7449 = vmatprep.subr.mxu0 0.0
    %7450 = vmatpush1.msra.mxu0 0.0
    %7451 = vmatprep.subr.mxu0 0.0
    %7452 = vmatpush1.msra.mxu0 0.0
    %7453 = vmatprep.subr.mxu0 0.0
    %7454 = vmatpush1.msra.mxu0 0.0
    %7455 = vmatprep.subr.mxu0 0.0
    %7456 = vmatpush1.msra.mxu0 0.0
    %7457 = vmatprep.subr.mxu0 0.0
    %7458 = vmatpush1.msra.mxu0 0.0
    %7459 = vmatprep.subr.mxu0 0.0
    %7460 = vmatpush1.msra.mxu0 0.0
    %7461 = vmatprep.subr.mxu0 0.0
    %7462 = vmatpush1.msra.mxu0 0.0
    %7463 = vmatprep.subr.mxu0 0.0
    %7464 = vmatpush1.msra.mxu0 0.0
    %7465 = vmatprep.subr.mxu0 0.0
    %7466 = vmatpush1.msra.mxu0 0.0
    %7467 = vmatprep.subr.mxu0 0.0
    %7468 = vmatpush1.msra.mxu0 0.0
    %7469 = vmatprep.subr.mxu0 0.0
    %7470 = vmatpush1.msra.mxu0 0.0
    %7471 = vmatprep.subr.mxu0 0.0
    %7472 = vmatpush1.msra.mxu0 0.0
    %7473 = vmatprep.subr.mxu0 0.0
    %7474 = vmatpush1.msra.mxu0 0.0
    %7475 = vmatprep.mubr.f32.mxu0 0.0
    %v7476 = vand.u32 %v7106, 4294901760
    %7477 = vmatmul.mubr.f32.gmra.mrb[0].mxu0 %v7476
    %v7478 = vpop.f32.mrb[0].mxu0
    %v7479 = vadd.f32 %v7405, %v7478
    %v7480 = vpop.f32.mrb[0].mxu0
    %7481 = vdwg.mxu0
    %7482 = vmatprep.subr.mxu0 0.0
    %v7483 = vand.u32 %v1976, 4294901760
    %7484 = vmatpush1.msra.mxu0 %v7483
    %7485 = vmatprep.subr.mxu0 0.0
    %7486 = vmatpush1.msra.mxu0 0.0
    %7487 = vmatprep.subr.mxu0 0.0
    %7488 = vmatpush1.msra.mxu0 0.0
    %7489 = vmatprep.subr.mxu0 0.0
    %7490 = vmatpush1.msra.mxu0 0.0
    %7491 = vmatprep.subr.mxu0 0.0
    %7492 = vmatpush1.msra.mxu0 0.0
    %7493 = vmatprep.subr.mxu0 0.0
    %7494 = vmatpush1.msra.mxu0 0.0
    %7495 = vmatprep.subr.mxu0 0.0
    %7496 = vmatpush1.msra.mxu0 0.0
    %7497 = vmatprep.subr.mxu0 0.0
    %7498 = vmatpush1.msra.mxu0 0.0
    %7499 = vmatprep.subr.mxu0 0.0
    %7500 = vmatpush1.msra.mxu0 0.0
    %7501 = vmatprep.subr.mxu0 0.0
    %7502 = vmatpush1.msra.mxu0 0.0
    %7503 = vmatprep.subr.mxu0 0.0
    %7504 = vmatpush1.msra.mxu0 0.0
    %7505 = vmatprep.subr.mxu0 0.0
    %7506 = vmatpush1.msra.mxu0 0.0
    %7507 = vmatprep.subr.mxu0 0.0
    %7508 = vmatpush1.msra.mxu0 0.0
    %7509 = vmatprep.subr.mxu0 0.0
    %7510 = vmatpush1.msra.mxu0 0.0
    %7511 = vmatprep.subr.mxu0 0.0
    %7512 = vmatpush1.msra.mxu0 0.0
    %7513 = vmatprep.subr.mxu0 0.0
    %7514 = vmatpush1.msra.mxu0 0.0
    %7515 = vmatprep.subr.mxu0 0.0
    %7516 = vmatpush1.msra.mxu0 0.0
    %7517 = vmatprep.subr.mxu0 0.0
    %7518 = vmatpush1.msra.mxu0 0.0
    %7519 = vmatprep.subr.mxu0 0.0
    %7520 = vmatpush1.msra.mxu0 0.0
    %7521 = vmatprep.subr.mxu0 0.0
    %7522 = vmatpush1.msra.mxu0 0.0
    %7523 = vmatprep.subr.mxu0 0.0
    %7524 = vmatpush1.msra.mxu0 0.0
    %7525 = vmatprep.subr.mxu0 0.0
    %7526 = vmatpush1.msra.mxu0 0.0
    %7527 = vmatprep.subr.mxu0 0.0
    %7528 = vmatpush1.msra.mxu0 0.0
    %7529 = vmatprep.subr.mxu0 0.0
    %7530 = vmatpush1.msra.mxu0 0.0
    %7531 = vmatprep.subr.mxu0 0.0
    %7532 = vmatpush1.msra.mxu0 0.0
    %7533 = vmatprep.subr.mxu0 0.0
    %7534 = vmatpush1.msra.mxu0 0.0
    %7535 = vmatprep.subr.mxu0 0.0
    %7536 = vmatpush1.msra.mxu0 0.0
    %7537 = vmatprep.subr.mxu0 0.0
    %7538 = vmatpush1.msra.mxu0 0.0
    %7539 = vmatprep.subr.mxu0 0.0
    %7540 = vmatpush1.msra.mxu0 0.0
    %7541 = vmatprep.subr.mxu0 0.0
    %7542 = vmatpush1.msra.mxu0 0.0
    %7543 = vmatprep.subr.mxu0 0.0
    %7544 = vmatpush1.msra.mxu0 0.0
    %7545 = vmatprep.subr.mxu0 0.0
    %7546 = vmatpush1.msra.mxu0 0.0
    %7547 = vmatprep.mubr.f32.mxu0 0.0
    %v7548 = vand.u32 %v7106, 4294901760
    %7549 = vmatmul.mubr.f32.gmra.mrb[0].mxu0 %v7548
    %v7550 = vpop.f32.mrb[0].mxu0
    %v7551 = vadd.f32 %v7479, %v7550
    %v7552 = vpop.f32.mrb[0].mxu0
    %7553 = vdwg.mxu0
    %v7555 = vsel %vm2045, %v5754, 0
    %7557 = vmatprep.subr.mxu0 0.0
    %v7558 = vand.u32 %v2041, 4294901760
    %7559 = vmatpush1.msra.mxu0 %v7558
    %7560 = vmatprep.subr.mxu0 0.0
    %7561 = vmatpush1.msra.mxu0 0.0
    %7562 = vmatprep.subr.mxu0 0.0
    %7563 = vmatpush1.msra.mxu0 0.0
    %7564 = vmatprep.subr.mxu0 0.0
    %7565 = vmatpush1.msra.mxu0 0.0
    %7566 = vmatprep.subr.mxu0 0.0
    %7567 = vmatpush1.msra.mxu0 0.0
    %7568 = vmatprep.subr.mxu0 0.0
    %7569 = vmatpush1.msra.mxu0 0.0
    %7570 = vmatprep.subr.mxu0 0.0
    %7571 = vmatpush1.msra.mxu0 0.0
    %7572 = vmatprep.subr.mxu0 0.0
    %7573 = vmatpush1.msra.mxu0 0.0
    %7574 = vmatprep.subr.mxu0 0.0
    %7575 = vmatpush1.msra.mxu0 0.0
    %7576 = vmatprep.subr.mxu0 0.0
    %7577 = vmatpush1.msra.mxu0 0.0
    %7578 = vmatprep.subr.mxu0 0.0
    %7579 = vmatpush1.msra.mxu0 0.0
    %7580 = vmatprep.subr.mxu0 0.0
    %7581 = vmatpush1.msra.mxu0 0.0
    %7582 = vmatprep.subr.mxu0 0.0
    %7583 = vmatpush1.msra.mxu0 0.0
    %7584 = vmatprep.subr.mxu0 0.0
    %7585 = vmatpush1.msra.mxu0 0.0
    %7586 = vmatprep.subr.mxu0 0.0
    %7587 = vmatpush1.msra.mxu0 0.0
    %7588 = vmatprep.subr.mxu0 0.0
    %7589 = vmatpush1.msra.mxu0 0.0
    %7590 = vmatprep.subr.mxu0 0.0
    %7591 = vmatpush1.msra.mxu0 0.0
    %7592 = vmatprep.subr.mxu0 0.0
    %7593 = vmatpush1.msra.mxu0 0.0
    %7594 = vmatprep.subr.mxu0 0.0
    %7595 = vmatpush1.msra.mxu0 0.0
    %7596 = vmatprep.subr.mxu0 0.0
    %7597 = vmatpush1.msra.mxu0 0.0
    %7598 = vmatprep.subr.mxu0 0.0
    %7599 = vmatpush1.msra.mxu0 0.0
    %7600 = vmatprep.subr.mxu0 0.0
    %7601 = vmatpush1.msra.mxu0 0.0
    %7602 = vmatprep.subr.mxu0 0.0
    %7603 = vmatpush1.msra.mxu0 0.0
    %7604 = vmatprep.subr.mxu0 0.0
    %7605 = vmatpush1.msra.mxu0 0.0
    %7606 = vmatprep.subr.mxu0 0.0
    %7607 = vmatpush1.msra.mxu0 0.0
    %7608 = vmatprep.subr.mxu0 0.0
    %7609 = vmatpush1.msra.mxu0 0.0
    %7610 = vmatprep.subr.mxu0 0.0
    %7611 = vmatpush1.msra.mxu0 0.0
    %7612 = vmatprep.subr.mxu0 0.0
    %7613 = vmatpush1.msra.mxu0 0.0
    %7614 = vmatprep.subr.mxu0 0.0
    %7615 = vmatpush1.msra.mxu0 0.0
    %7616 = vmatprep.subr.mxu0 0.0
    %7617 = vmatpush1.msra.mxu0 0.0
    %7618 = vmatprep.subr.mxu0 0.0
    %7619 = vmatpush1.msra.mxu0 0.0
    %7620 = vmatprep.subr.mxu0 0.0
    %7621 = vmatpush1.msra.mxu0 0.0
    %7622 = vmatprep.mubr.f32.mxu0 0.0
    %v7623 = vand.u32 %v7555, 4294901760
    %v7624 = vsub.f32 %v7555, %v7623
    %v7625 = vand.u32 %v7624, 4294901760
    %v7626 = vsub.f32 %v7624, %v7625
    %v7627 = vand.u32 %v7626, 4294901760
    %7628 = vmatmul.mubr.f32.gmra.mrb[0].mxu0 %v7627
    %v7629 = vpop.f32.mrb[0].mxu0
    %v7630 = vadd.f32 0.0, %v7629
    %v7631 = vpop.f32.mrb[0].mxu0
    %7632 = vdwg.mxu0
    %7633 = vmatprep.subr.mxu0 0.0
    %v7634 = vand.u32 %v2041, 4294901760
    %v7635 = vsub.f32 %v2041, %v7634
    %v7636 = vand.u32 %v7635, 4294901760
    %v7637 = vsub.f32 %v7635, %v7636
    %v7638 = vand.u32 %v7637, 4294901760
    %7639 = vmatpush1.msra.mxu0 %v7638
    %7640 = vmatprep.subr.mxu0 0.0
    %7641 = vmatpush1.msra.mxu0 0.0
    %7642 = vmatprep.subr.mxu0 0.0
    %7643 = vmatpush1.msra.mxu0 0.0
    %7644 = vmatprep.subr.mxu0 0.0
    %7645 = vmatpush1.msra.mxu0 0.0
    %7646 = vmatprep.subr.mxu0 0.0
    %7647 = vmatpush1.msra.mxu0 0.0
    %7648 = vmatprep.subr.mxu0 0.0
    %7649 = vmatpush1.msra.mxu0 0.0
    %7650 = vmatprep.subr.mxu0 0.0
    %7651 = vmatpush1.msra.mxu0 0.0
    %7652 = vmatprep.subr.mxu0 0.0
    %7653 = vmatpush1.msra.mxu0 0.0
    %7654 = vmatprep.subr.mxu0 0.0
    %7655 = vmatpush1.msra.mxu0 0.0
    %7656 = vmatprep.subr.mxu0 0.0
    %7657 = vmatpush1.msra.mxu0 0.0
    %7658 = vmatprep.subr.mxu0 0.0
    %7659 = vmatpush1.msra.mxu0 0.0
    %7660 = vmatprep.subr.mxu0 0.0
    %7661 = vmatpush1.msra.mxu0 0.0
    %7662 = vmatprep.subr.mxu0 0.0
    %7663 = vmatpush1.msra.mxu0 0.0
    %7664 = vmatprep.subr.mxu0 0.0
    %7665 = vmatpush1.msra.mxu0 0.0
    %7666 = vmatprep.subr.mxu0 0.0
    %7667 = vmatpush1.msra.mxu0 0.0
    %7668 = vmatprep.subr.mxu0 0.0
    %7669 = vmatpush1.msra.mxu0 0.0
    %7670 = vmatprep.subr.mxu0 0.0
    %7671 = vmatpush1.msra.mxu0 0.0
    %7672 = vmatprep.subr.mxu0 0.0
    %7673 = vmatpush1.msra.mxu0 0.0
    %7674 = vmatprep.subr.mxu0 0.0
    %7675 = vmatpush1.msra.mxu0 0.0
    %7676 = vmatprep.subr.mxu0 0.0
    %7677 = vmatpush1.msra.mxu0 0.0
    %7678 = vmatprep.subr.mxu0 0.0
    %7679 = vmatpush1.msra.mxu0 0.0
    %7680 = vmatprep.subr.mxu0 0.0
    %7681 = vmatpush1.msra.mxu0 0.0
    %7682 = vmatprep.subr.mxu0 0.0
    %7683 = vmatpush1.msra.mxu0 0.0
    %7684 = vmatprep.subr.mxu0 0.0
    %7685 = vmatpush1.msra.mxu0 0.0
    %7686 = vmatprep.subr.mxu0 0.0
    %7687 = vmatpush1.msra.mxu0 0.0
    %7688 = vmatprep.subr.mxu0 0.0
    %7689 = vmatpush1.msra.mxu0 0.0
    %7690 = vmatprep.subr.mxu0 0.0
    %7691 = vmatpush1.msra.mxu0 0.0
    %7692 = vmatprep.subr.mxu0 0.0
    %7693 = vmatpush1.msra.mxu0 0.0
    %7694 = vmatprep.subr.mxu0 0.0
    %7695 = vmatpush1.msra.mxu0 0.0
    %7696 = vmatprep.subr.mxu0 0.0
    %7697 = vmatpush1.msra.mxu0 0.0
    %7698 = vmatprep.subr.mxu0 0.0
    %7699 = vmatpush1.msra.mxu0 0.0
    %7700 = vmatprep.subr.mxu0 0.0
    %7701 = vmatpush1.msra.mxu0 0.0
    %7702 = vmatprep.mubr.f32.mxu0 0.0
    %v7703 = vand.u32 %v7555, 4294901760
    %7704 = vmatmul.mubr.f32.gmra.mrb[0].mxu0 %v7703
    %v7705 = vpop.f32.mrb[0].mxu0
    %v7706 = vadd.f32 %v7630, %v7705
    %v7707 = vpop.f32.mrb[0].mxu0
    %7708 = vdwg.mxu0
    %7709 = vmatprep.subr.mxu0 0.0
    %v7710 = vand.u32 %v2041, 4294901760
    %v7711 = vsub.f32 %v2041, %v7710
    %7712 = vmatpush1.msra.mxu0 %v7711
    %7713 = vmatprep.subr.mxu0 0.0
    %7714 = vmatpush1.msra.mxu0 0.0
    %7715 = vmatprep.subr.mxu0 0.0
    %7716 = vmatpush1.msra.mxu0 0.0
    %7717 = vmatprep.subr.mxu0 0.0
    %7718 = vmatpush1.msra.mxu0 0.0
    %7719 = vmatprep.subr.mxu0 0.0
    %7720 = vmatpush1.msra.mxu0 0.0
    %7721 = vmatprep.subr.mxu0 0.0
    %7722 = vmatpush1.msra.mxu0 0.0
    %7723 = vmatprep.subr.mxu0 0.0
    %7724 = vmatpush1.msra.mxu0 0.0
    %7725 = vmatprep.subr.mxu0 0.0
    %7726 = vmatpush1.msra.mxu0 0.0
    %7727 = vmatprep.subr.mxu0 0.0
    %7728 = vmatpush1.msra.mxu0 0.0
    %7729 = vmatprep.subr.mxu0 0.0
    %7730 = vmatpush1.msra.mxu0 0.0
    %7731 = vmatprep.subr.mxu0 0.0
    %7732 = vmatpush1.msra.mxu0 0.0
    %7733 = vmatprep.subr.mxu0 0.0
    %7734 = vmatpush1.msra.mxu0 0.0
    %7735 = vmatprep.subr.mxu0 0.0
    %7736 = vmatpush1.msra.mxu0 0.0
    %7737 = vmatprep.subr.mxu0 0.0
    %7738 = vmatpush1.msra.mxu0 0.0
    %7739 = vmatprep.subr.mxu0 0.0
    %7740 = vmatpush1.msra.mxu0 0.0
    %7741 = vmatprep.subr.mxu0 0.0
    %7742 = vmatpush1.msra.mxu0 0.0
    %7743 = vmatprep.subr.mxu0 0.0
    %7744 = vmatpush1.msra.mxu0 0.0
    %7745 = vmatprep.subr.mxu0 0.0
    %7746 = vmatpush1.msra.mxu0 0.0
    %7747 = vmatprep.subr.mxu0 0.0
    %7748 = vmatpush1.msra.mxu0 0.0
    %7749 = vmatprep.subr.mxu0 0.0
    %7750 = vmatpush1.msra.mxu0 0.0
    %7751 = vmatprep.subr.mxu0 0.0
    %7752 = vmatpush1.msra.mxu0 0.0
    %7753 = vmatprep.subr.mxu0 0.0
    %7754 = vmatpush1.msra.mxu0 0.0
    %7755 = vmatprep.subr.mxu0 0.0
    %7756 = vmatpush1.msra.mxu0 0.0
    %7757 = vmatprep.subr.mxu0 0.0
    %7758 = vmatpush1.msra.mxu0 0.0
    %7759 = vmatprep.subr.mxu0 0.0
    %7760 = vmatpush1.msra.mxu0 0.0
    %7761 = vmatprep.subr.mxu0 0.0
    %7762 = vmatpush1.msra.mxu0 0.0
    %7763 = vmatprep.subr.mxu0 0.0
    %7764 = vmatpush1.msra.mxu0 0.0
    %7765 = vmatprep.subr.mxu0 0.0
    %7766 = vmatpush1.msra.mxu0 0.0
    %7767 = vmatprep.subr.mxu0 0.0
    %7768 = vmatpush1.msra.mxu0 0.0
    %7769 = vmatprep.subr.mxu0 0.0
    %7770 = vmatpush1.msra.mxu0 0.0
    %7771 = vmatprep.subr.mxu0 0.0
    %7772 = vmatpush1.msra.mxu0 0.0
    %7773 = vmatprep.subr.mxu0 0.0
    %7774 = vmatpush1.msra.mxu0 0.0
    %7775 = vmatprep.mubr.f32.mxu0 0.0
    %v7776 = vand.u32 %v7555, 4294901760
    %v7777 = vsub.f32 %v7555, %v7776
    %7778 = vmatmul.mubr.f32.gmra.mrb[0].mxu0 %v7777
    %v7779 = vpop.f32.mrb[0].mxu0
    %v7780 = vadd.f32 %v7706, %v7779
    %v7781 = vpop.f32.mrb[0].mxu0
    %7782 = vdwg.mxu0
    %7783 = vmatprep.subr.mxu0 0.0
    %v7784 = vand.u32 %v2041, 4294901760
    %7785 = vmatpush1.msra.mxu0 %v7784
    %7786 = vmatprep.subr.mxu0 0.0
    %7787 = vmatpush1.msra.mxu0 0.0
    %7788 = vmatprep.subr.mxu0 0.0
    %7789 = vmatpush1.msra.mxu0 0.0
    %7790 = vmatprep.subr.mxu0 0.0
    %7791 = vmatpush1.msra.mxu0 0.0
    %7792 = vmatprep.subr.mxu0 0.0
    %7793 = vmatpush1.msra.mxu0 0.0
    %7794 = vmatprep.subr.mxu0 0.0
    %7795 = vmatpush1.msra.mxu0 0.0
    %7796 = vmatprep.subr.mxu0 0.0
    %7797 = vmatpush1.msra.mxu0 0.0
    %7798 = vmatprep.subr.mxu0 0.0
    %7799 = vmatpush1.msra.mxu0 0.0
    %7800 = vmatprep.subr.mxu0 0.0
    %7801 = vmatpush1.msra.mxu0 0.0
    %7802 = vmatprep.subr.mxu0 0.0
    %7803 = vmatpush1.msra.mxu0 0.0
    %7804 = vmatprep.subr.mxu0 0.0
    %7805 = vmatpush1.msra.mxu0 0.0
    %7806 = vmatprep.subr.mxu0 0.0
    %7807 = vmatpush1.msra.mxu0 0.0
    %7808 = vmatprep.subr.mxu0 0.0
    %7809 = vmatpush1.msra.mxu0 0.0
    %7810 = vmatprep.subr.mxu0 0.0
    %7811 = vmatpush1.msra.mxu0 0.0
    %7812 = vmatprep.subr.mxu0 0.0
    %7813 = vmatpush1.msra.mxu0 0.0
    %7814 = vmatprep.subr.mxu0 0.0
    %7815 = vmatpush1.msra.mxu0 0.0
    %7816 = vmatprep.subr.mxu0 0.0
    %7817 = vmatpush1.msra.mxu0 0.0
    %7818 = vmatprep.subr.mxu0 0.0
    %7819 = vmatpush1.msra.mxu0 0.0
    %7820 = vmatprep.subr.mxu0 0.0
    %7821 = vmatpush1.msra.mxu0 0.0
    %7822 = vmatprep.subr.mxu0 0.0
    %7823 = vmatpush1.msra.mxu0 0.0
    %7824 = vmatprep.subr.mxu0 0.0
    %7825 = vmatpush1.msra.mxu0 0.0
    %7826 = vmatprep.subr.mxu0 0.0
    %7827 = vmatpush1.msra.mxu0 0.0
    %7828 = vmatprep.subr.mxu0 0.0
    %7829 = vmatpush1.msra.mxu0 0.0
    %7830 = vmatprep.subr.mxu0 0.0
    %7831 = vmatpush1.msra.mxu0 0.0
    %7832 = vmatprep.subr.mxu0 0.0
    %7833 = vmatpush1.msra.mxu0 0.0
    %7834 = vmatprep.subr.mxu0 0.0
    %7835 = vmatpush1.msra.mxu0 0.0
    %7836 = vmatprep.subr.mxu0 0.0
    %7837 = vmatpush1.msra.mxu0 0.0
    %7838 = vmatprep.subr.mxu0 0.0
    %7839 = vmatpush1.msra.mxu0 0.0
    %7840 = vmatprep.subr.mxu0 0.0
    %7841 = vmatpush1.msra.mxu0 0.0
    %7842 = vmatprep.subr.mxu0 0.0
    %7843 = vmatpush1.msra.mxu0 0.0
    %7844 = vmatprep.subr.mxu0 0.0
    %7845 = vmatpush1.msra.mxu0 0.0
    %7846 = vmatprep.subr.mxu0 0.0
    %7847 = vmatpush1.msra.mxu0 0.0
    %7848 = vmatprep.mubr.f32.mxu0 0.0
    %v7849 = vand.u32 %v7555, 4294901760
    %v7850 = vsub.f32 %v7555, %v7849
    %v7851 = vand.u32 %v7850, 4294901760
    %7852 = vmatmul.mubr.f32.gmra.mrb[0].mxu0 %v7851
    %v7853 = vpop.f32.mrb[0].mxu0
    %v7854 = vadd.f32 %v7780, %v7853
    %v7855 = vpop.f32.mrb[0].mxu0
    %7856 = vdwg.mxu0
    %7857 = vmatprep.subr.mxu0 0.0
    %v7858 = vand.u32 %v2041, 4294901760
    %v7859 = vsub.f32 %v2041, %v7858
    %v7860 = vand.u32 %v7859, 4294901760
    %7861 = vmatpush1.msra.mxu0 %v7860
    %7862 = vmatprep.subr.mxu0 0.0
    %7863 = vmatpush1.msra.mxu0 0.0
    %7864 = vmatprep.subr.mxu0 0.0
    %7865 = vmatpush1.msra.mxu0 0.0
    %7866 = vmatprep.subr.mxu0 0.0
    %7867 = vmatpush1.msra.mxu0 0.0
    %7868 = vmatprep.subr.mxu0 0.0
    %7869 = vmatpush1.msra.mxu0 0.0
    %7870 = vmatprep.subr.mxu0 0.0
    %7871 = vmatpush1.msra.mxu0 0.0
    %7872 = vmatprep.subr.mxu0 0.0
    %7873 = vmatpush1.msra.mxu0 0.0
    %7874 = vmatprep.subr.mxu0 0.0
    %7875 = vmatpush1.msra.mxu0 0.0
    %7876 = vmatprep.subr.mxu0 0.0
    %7877 = vmatpush1.msra.mxu0 0.0
    %7878 = vmatprep.subr.mxu0 0.0
    %7879 = vmatpush1.msra.mxu0 0.0
    %7880 = vmatprep.subr.mxu0 0.0
    %7881 = vmatpush1.msra.mxu0 0.0
    %7882 = vmatprep.subr.mxu0 0.0
    %7883 = vmatpush1.msra.mxu0 0.0
    %7884 = vmatprep.subr.mxu0 0.0
    %7885 = vmatpush1.msra.mxu0 0.0
    %7886 = vmatprep.subr.mxu0 0.0
    %7887 = vmatpush1.msra.mxu0 0.0
    %7888 = vmatprep.subr.mxu0 0.0
    %7889 = vmatpush1.msra.mxu0 0.0
    %7890 = vmatprep.subr.mxu0 0.0
    %7891 = vmatpush1.msra.mxu0 0.0
    %7892 = vmatprep.subr.mxu0 0.0
    %7893 = vmatpush1.msra.mxu0 0.0
    %7894 = vmatprep.subr.mxu0 0.0
    %7895 = vmatpush1.msra.mxu0 0.0
    %7896 = vmatprep.subr.mxu0 0.0
    %7897 = vmatpush1.msra.mxu0 0.0
    %7898 = vmatprep.subr.mxu0 0.0
    %7899 = vmatpush1.msra.mxu0 0.0
    %7900 = vmatprep.subr.mxu0 0.0
    %7901 = vmatpush1.msra.mxu0 0.0
    %7902 = vmatprep.subr.mxu0 0.0
    %7903 = vmatpush1.msra.mxu0 0.0
    %7904 = vmatprep.subr.mxu0 0.0
    %7905 = vmatpush1.msra.mxu0 0.0
    %7906 = vmatprep.subr.mxu0 0.0
    %7907 = vmatpush1.msra.mxu0 0.0
    %7908 = vmatprep.subr.mxu0 0.0
    %7909 = vmatpush1.msra.mxu0 0.0
    %7910 = vmatprep.subr.mxu0 0.0
    %7911 = vmatpush1.msra.mxu0 0.0
    %7912 = vmatprep.subr.mxu0 0.0
    %7913 = vmatpush1.msra.mxu0 0.0
    %7914 = vmatprep.subr.mxu0 0.0
    %7915 = vmatpush1.msra.mxu0 0.0
    %7916 = vmatprep.subr.mxu0 0.0
    %7917 = vmatpush1.msra.mxu0 0.0
    %7918 = vmatprep.subr.mxu0 0.0
    %7919 = vmatpush1.msra.mxu0 0.0
    %7920 = vmatprep.subr.mxu0 0.0
    %7921 = vmatpush1.msra.mxu0 0.0
    %7922 = vmatprep.subr.mxu0 0.0
    %7923 = vmatpush1.msra.mxu0 0.0
    %7924 = vmatprep.mubr.f32.mxu0 0.0
    %v7925 = vand.u32 %v7555, 4294901760
    %7926 = vmatmul.mubr.f32.gmra.mrb[0].mxu0 %v7925
    %v7927 = vpop.f32.mrb[0].mxu0
    %v7928 = vadd.f32 %v7854, %v7927
    %v7929 = vpop.f32.mrb[0].mxu0
    %7930 = vdwg.mxu0
    %7931 = vmatprep.subr.mxu0 0.0
    %v7932 = vand.u32 %v2041, 4294901760
    %7933 = vmatpush1.msra.mxu0 %v7932
    %7934 = vmatprep.subr.mxu0 0.0
    %7935 = vmatpush1.msra.mxu0 0.0
    %7936 = vmatprep.subr.mxu0 0.0
    %7937 = vmatpush1.msra.mxu0 0.0
    %7938 = vmatprep.subr.mxu0 0.0
    %7939 = vmatpush1.msra.mxu0 0.0
    %7940 = vmatprep.subr.mxu0 0.0
    %7941 = vmatpush1.msra.mxu0 0.0
    %7942 = vmatprep.subr.mxu0 0.0
    %7943 = vmatpush1.msra.mxu0 0.0
    %7944 = vmatprep.subr.mxu0 0.0
    %7945 = vmatpush1.msra.mxu0 0.0
    %7946 = vmatprep.subr.mxu0 0.0
    %7947 = vmatpush1.msra.mxu0 0.0
    %7948 = vmatprep.subr.mxu0 0.0
    %7949 = vmatpush1.msra.mxu0 0.0
    %7950 = vmatprep.subr.mxu0 0.0
    %7951 = vmatpush1.msra.mxu0 0.0
    %7952 = vmatprep.subr.mxu0 0.0
    %7953 = vmatpush1.msra.mxu0 0.0
    %7954 = vmatprep.subr.mxu0 0.0
    %7955 = vmatpush1.msra.mxu0 0.0
    %7956 = vmatprep.subr.mxu0 0.0
    %7957 = vmatpush1.msra.mxu0 0.0
    %7958 = vmatprep.subr.mxu0 0.0
    %7959 = vmatpush1.msra.mxu0 0.0
    %7960 = vmatprep.subr.mxu0 0.0
    %7961 = vmatpush1.msra.mxu0 0.0
    %7962 = vmatprep.subr.mxu0 0.0
    %7963 = vmatpush1.msra.mxu0 0.0
    %7964 = vmatprep.subr.mxu0 0.0
    %7965 = vmatpush1.msra.mxu0 0.0
    %7966 = vmatprep.subr.mxu0 0.0
    %7967 = vmatpush1.msra.mxu0 0.0
    %7968 = vmatprep.subr.mxu0 0.0
    %7969 = vmatpush1.msra.mxu0 0.0
    %7970 = vmatprep.subr.mxu0 0.0
    %7971 = vmatpush1.msra.mxu0 0.0
    %7972 = vmatprep.subr.mxu0 0.0
    %7973 = vmatpush1.msra.mxu0 0.0
    %7974 = vmatprep.subr.mxu0 0.0
    %7975 = vmatpush1.msra.mxu0 0.0
    %7976 = vmatprep.subr.mxu0 0.0
    %7977 = vmatpush1.msra.mxu0 0.0
    %7978 = vmatprep.subr.mxu0 0.0
    %7979 = vmatpush1.msra.mxu0 0.0
    %7980 = vmatprep.subr.mxu0 0.0
    %7981 = vmatpush1.msra.mxu0 0.0
    %7982 = vmatprep.subr.mxu0 0.0
    %7983 = vmatpush1.msra.mxu0 0.0
    %7984 = vmatprep.subr.mxu0 0.0
    %7985 = vmatpush1.msra.mxu0 0.0
    %7986 = vmatprep.subr.mxu0 0.0
    %7987 = vmatpush1.msra.mxu0 0.0
    %7988 = vmatprep.subr.mxu0 0.0
    %7989 = vmatpush1.msra.mxu0 0.0
    %7990 = vmatprep.subr.mxu0 0.0
    %7991 = vmatpush1.msra.mxu0 0.0
    %7992 = vmatprep.subr.mxu0 0.0
    %7993 = vmatpush1.msra.mxu0 0.0
    %7994 = vmatprep.subr.mxu0 0.0
    %7995 = vmatpush1.msra.mxu0 0.0
    %7996 = vmatprep.mubr.f32.mxu0 0.0
    %v7997 = vand.u32 %v7555, 4294901760
    %7998 = vmatmul.mubr.f32.gmra.mrb[0].mxu0 %v7997
    %v7999 = vpop.f32.mrb[0].mxu0
    %v8000 = vadd.f32 %v7928, %v7999
    %v8001 = vpop.f32.mrb[0].mxu0
    %8002 = vdwg.mxu0
    %v8004 = vsel %vm2045, %v5755, 0
    %8006 = vmatprep.subr.mxu0 0.0
    %v8007 = vand.u32 %v2042, 4294901760
    %8008 = vmatpush1.msra.mxu0 %v8007
    %8009 = vmatprep.subr.mxu0 0.0
    %8010 = vmatpush1.msra.mxu0 0.0
    %8011 = vmatprep.subr.mxu0 0.0
    %8012 = vmatpush1.msra.mxu0 0.0
    %8013 = vmatprep.subr.mxu0 0.0
    %8014 = vmatpush1.msra.mxu0 0.0
    %8015 = vmatprep.subr.mxu0 0.0
    %8016 = vmatpush1.msra.mxu0 0.0
    %8017 = vmatprep.subr.mxu0 0.0
    %8018 = vmatpush1.msra.mxu0 0.0
    %8019 = vmatprep.subr.mxu0 0.0
    %8020 = vmatpush1.msra.mxu0 0.0
    %8021 = vmatprep.subr.mxu0 0.0
    %8022 = vmatpush1.msra.mxu0 0.0
    %8023 = vmatprep.subr.mxu0 0.0
    %8024 = vmatpush1.msra.mxu0 0.0
    %8025 = vmatprep.subr.mxu0 0.0
    %8026 = vmatpush1.msra.mxu0 0.0
    %8027 = vmatprep.subr.mxu0 0.0
    %8028 = vmatpush1.msra.mxu0 0.0
    %8029 = vmatprep.subr.mxu0 0.0
    %8030 = vmatpush1.msra.mxu0 0.0
    %8031 = vmatprep.subr.mxu0 0.0
    %8032 = vmatpush1.msra.mxu0 0.0
    %8033 = vmatprep.subr.mxu0 0.0
    %8034 = vmatpush1.msra.mxu0 0.0
    %8035 = vmatprep.subr.mxu0 0.0
    %8036 = vmatpush1.msra.mxu0 0.0
    %8037 = vmatprep.subr.mxu0 0.0
    %8038 = vmatpush1.msra.mxu0 0.0
    %8039 = vmatprep.subr.mxu0 0.0
    %8040 = vmatpush1.msra.mxu0 0.0
    %8041 = vmatprep.subr.mxu0 0.0
    %8042 = vmatpush1.msra.mxu0 0.0
    %8043 = vmatprep.subr.mxu0 0.0
    %8044 = vmatpush1.msra.mxu0 0.0
    %8045 = vmatprep.subr.mxu0 0.0
    %8046 = vmatpush1.msra.mxu0 0.0
    %8047 = vmatprep.subr.mxu0 0.0
    %8048 = vmatpush1.msra.mxu0 0.0
    %8049 = vmatprep.subr.mxu0 0.0
    %8050 = vmatpush1.msra.mxu0 0.0
    %8051 = vmatprep.subr.mxu0 0.0
    %8052 = vmatpush1.msra.mxu0 0.0
    %8053 = vmatprep.subr.mxu0 0.0
    %8054 = vmatpush1.msra.mxu0 0.0
    %8055 = vmatprep.subr.mxu0 0.0
    %8056 = vmatpush1.msra.mxu0 0.0
    %8057 = vmatprep.subr.mxu0 0.0
    %8058 = vmatpush1.msra.mxu0 0.0
    %8059 = vmatprep.subr.mxu0 0.0
    %8060 = vmatpush1.msra.mxu0 0.0
    %8061 = vmatprep.subr.mxu0 0.0
    %8062 = vmatpush1.msra.mxu0 0.0
    %8063 = vmatprep.subr.mxu0 0.0
    %8064 = vmatpush1.msra.mxu0 0.0
    %8065 = vmatprep.subr.mxu0 0.0
    %8066 = vmatpush1.msra.mxu0 0.0
    %8067 = vmatprep.subr.mxu0 0.0
    %8068 = vmatpush1.msra.mxu0 0.0
    %8069 = vmatprep.subr.mxu0 0.0
    %8070 = vmatpush1.msra.mxu0 0.0
    %8071 = vmatprep.mubr.f32.mxu0 0.0
    %v8072 = vand.u32 %v8004, 4294901760
    %v8073 = vsub.f32 %v8004, %v8072
    %v8074 = vand.u32 %v8073, 4294901760
    %v8075 = vsub.f32 %v8073, %v8074
    %v8076 = vand.u32 %v8075, 4294901760
    %8077 = vmatmul.mubr.f32.gmra.mrb[0].mxu0 %v8076
    %v8078 = vpop.f32.mrb[0].mxu0
    %v8079 = vadd.f32 0.0, %v8078
    %v8080 = vpop.f32.mrb[0].mxu0
    %8081 = vdwg.mxu0
    %8082 = vmatprep.subr.mxu0 0.0
    %v8083 = vand.u32 %v2042, 4294901760
    %v8084 = vsub.f32 %v2042, %v8083
    %v8085 = vand.u32 %v8084, 4294901760
    %v8086 = vsub.f32 %v8084, %v8085
    %v8087 = vand.u32 %v8086, 4294901760
    %8088 = vmatpush1.msra.mxu0 %v8087
    %8089 = vmatprep.subr.mxu0 0.0
    %8090 = vmatpush1.msra.mxu0 0.0
    %8091 = vmatprep.subr.mxu0 0.0
    %8092 = vmatpush1.msra.mxu0 0.0
    %8093 = vmatprep.subr.mxu0 0.0
    %8094 = vmatpush1.msra.mxu0 0.0
    %8095 = vmatprep.subr.mxu0 0.0
    %8096 = vmatpush1.msra.mxu0 0.0
    %8097 = vmatprep.subr.mxu0 0.0
    %8098 = vmatpush1.msra.mxu0 0.0
    %8099 = vmatprep.subr.mxu0 0.0
    %8100 = vmatpush1.msra.mxu0 0.0
    %8101 = vmatprep.subr.mxu0 0.0
    %8102 = vmatpush1.msra.mxu0 0.0
    %8103 = vmatprep.subr.mxu0 0.0
    %8104 = vmatpush1.msra.mxu0 0.0
    %8105 = vmatprep.subr.mxu0 0.0
    %8106 = vmatpush1.msra.mxu0 0.0
    %8107 = vmatprep.subr.mxu0 0.0
    %8108 = vmatpush1.msra.mxu0 0.0
    %8109 = vmatprep.subr.mxu0 0.0
    %8110 = vmatpush1.msra.mxu0 0.0
    %8111 = vmatprep.subr.mxu0 0.0
    %8112 = vmatpush1.msra.mxu0 0.0
    %8113 = vmatprep.subr.mxu0 0.0
    %8114 = vmatpush1.msra.mxu0 0.0
    %8115 = vmatprep.subr.mxu0 0.0
    %8116 = vmatpush1.msra.mxu0 0.0
    %8117 = vmatprep.subr.mxu0 0.0
    %8118 = vmatpush1.msra.mxu0 0.0
    %8119 = vmatprep.subr.mxu0 0.0
    %8120 = vmatpush1.msra.mxu0 0.0
    %8121 = vmatprep.subr.mxu0 0.0
    %8122 = vmatpush1.msra.mxu0 0.0
    %8123 = vmatprep.subr.mxu0 0.0
    %8124 = vmatpush1.msra.mxu0 0.0
    %8125 = vmatprep.subr.mxu0 0.0
    %8126 = vmatpush1.msra.mxu0 0.0
    %8127 = vmatprep.subr.mxu0 0.0
    %8128 = vmatpush1.msra.mxu0 0.0
    %8129 = vmatprep.subr.mxu0 0.0
    %8130 = vmatpush1.msra.mxu0 0.0
    %8131 = vmatprep.subr.mxu0 0.0
    %8132 = vmatpush1.msra.mxu0 0.0
    %8133 = vmatprep.subr.mxu0 0.0
    %8134 = vmatpush1.msra.mxu0 0.0
    %8135 = vmatprep.subr.mxu0 0.0
    %8136 = vmatpush1.msra.mxu0 0.0
    %8137 = vmatprep.subr.mxu0 0.0
    %8138 = vmatpush1.msra.mxu0 0.0
    %8139 = vmatprep.subr.mxu0 0.0
    %8140 = vmatpush1.msra.mxu0 0.0
    %8141 = vmatprep.subr.mxu0 0.0
    %8142 = vmatpush1.msra.mxu0 0.0
    %8143 = vmatprep.subr.mxu0 0.0
    %8144 = vmatpush1.msra.mxu0 0.0
    %8145 = vmatprep.subr.mxu0 0.0
    %8146 = vmatpush1.msra.mxu0 0.0
    %8147 = vmatprep.subr.mxu0 0.0
    %8148 = vmatpush1.msra.mxu0 0.0
    %8149 = vmatprep.subr.mxu0 0.0
    %8150 = vmatpush1.msra.mxu0 0.0
    %8151 = vmatprep.mubr.f32.mxu0 0.0
    %v8152 = vand.u32 %v8004, 4294901760
    %8153 = vmatmul.mubr.f32.gmra.mrb[0].mxu0 %v8152
    %v8154 = vpop.f32.mrb[0].mxu0
    %v8155 = vadd.f32 %v8079, %v8154
    %v8156 = vpop.f32.mrb[0].mxu0
    %8157 = vdwg.mxu0
    %8158 = vmatprep.subr.mxu0 0.0
    %v8159 = vand.u32 %v2042, 4294901760
    %v8160 = vsub.f32 %v2042, %v8159
    %8161 = vmatpush1.msra.mxu0 %v8160
    %8162 = vmatprep.subr.mxu0 0.0
    %8163 = vmatpush1.msra.mxu0 0.0
    %8164 = vmatprep.subr.mxu0 0.0
    %8165 = vmatpush1.msra.mxu0 0.0
    %8166 = vmatprep.subr.mxu0 0.0
    %8167 = vmatpush1.msra.mxu0 0.0
    %8168 = vmatprep.subr.mxu0 0.0
    %8169 = vmatpush1.msra.mxu0 0.0
    %8170 = vmatprep.subr.mxu0 0.0
    %8171 = vmatpush1.msra.mxu0 0.0
    %8172 = vmatprep.subr.mxu0 0.0
    %8173 = vmatpush1.msra.mxu0 0.0
    %8174 = vmatprep.subr.mxu0 0.0
    %8175 = vmatpush1.msra.mxu0 0.0
    %8176 = vmatprep.subr.mxu0 0.0
    %8177 = vmatpush1.msra.mxu0 0.0
    %8178 = vmatprep.subr.mxu0 0.0
    %8179 = vmatpush1.msra.mxu0 0.0
    %8180 = vmatprep.subr.mxu0 0.0
    %8181 = vmatpush1.msra.mxu0 0.0
    %8182 = vmatprep.subr.mxu0 0.0
    %8183 = vmatpush1.msra.mxu0 0.0
    %8184 = vmatprep.subr.mxu0 0.0
    %8185 = vmatpush1.msra.mxu0 0.0
    %8186 = vmatprep.subr.mxu0 0.0
    %8187 = vmatpush1.msra.mxu0 0.0
    %8188 = vmatprep.subr.mxu0 0.0
    %8189 = vmatpush1.msra.mxu0 0.0
    %8190 = vmatprep.subr.mxu0 0.0
    %8191 = vmatpush1.msra.mxu0 0.0
    %8192 = vmatprep.subr.mxu0 0.0
    %8193 = vmatpush1.msra.mxu0 0.0
    %8194 = vmatprep.subr.mxu0 0.0
    %8195 = vmatpush1.msra.mxu0 0.0
    %8196 = vmatprep.subr.mxu0 0.0
    %8197 = vmatpush1.msra.mxu0 0.0
    %8198 = vmatprep.subr.mxu0 0.0
    %8199 = vmatpush1.msra.mxu0 0.0
    %8200 = vmatprep.subr.mxu0 0.0
    %8201 = vmatpush1.msra.mxu0 0.0
    %8202 = vmatprep.subr.mxu0 0.0
    %8203 = vmatpush1.msra.mxu0 0.0
    %8204 = vmatprep.subr.mxu0 0.0
    %8205 = vmatpush1.msra.mxu0 0.0
    %8206 = vmatprep.subr.mxu0 0.0
    %8207 = vmatpush1.msra.mxu0 0.0
    %8208 = vmatprep.subr.mxu0 0.0
    %8209 = vmatpush1.msra.mxu0 0.0
    %8210 = vmatprep.subr.mxu0 0.0
    %8211 = vmatpush1.msra.mxu0 0.0
    %8212 = vmatprep.subr.mxu0 0.0
    %8213 = vmatpush1.msra.mxu0 0.0
    %8214 = vmatprep.subr.mxu0 0.0
    %8215 = vmatpush1.msra.mxu0 0.0
    %8216 = vmatprep.subr.mxu0 0.0
    %8217 = vmatpush1.msra.mxu0 0.0
    %8218 = vmatprep.subr.mxu0 0.0
    %8219 = vmatpush1.msra.mxu0 0.0
    %8220 = vmatprep.subr.mxu0 0.0
    %8221 = vmatpush1.msra.mxu0 0.0
    %8222 = vmatprep.subr.mxu0 0.0
    %8223 = vmatpush1.msra.mxu0 0.0
    %8224 = vmatprep.mubr.f32.mxu0 0.0
    %v8225 = vand.u32 %v8004, 4294901760
    %v8226 = vsub.f32 %v8004, %v8225
    %8227 = vmatmul.mubr.f32.gmra.mrb[0].mxu0 %v8226
    %v8228 = vpop.f32.mrb[0].mxu0
    %v8229 = vadd.f32 %v8155, %v8228
    %v8230 = vpop.f32.mrb[0].mxu0
    %8231 = vdwg.mxu0
    %8232 = vmatprep.subr.mxu0 0.0
    %v8233 = vand.u32 %v2042, 4294901760
    %8234 = vmatpush1.msra.mxu0 %v8233
    %8235 = vmatprep.subr.mxu0 0.0
    %8236 = vmatpush1.msra.mxu0 0.0
    %8237 = vmatprep.subr.mxu0 0.0
    %8238 = vmatpush1.msra.mxu0 0.0
    %8239 = vmatprep.subr.mxu0 0.0
    %8240 = vmatpush1.msra.mxu0 0.0
    %8241 = vmatprep.subr.mxu0 0.0
    %8242 = vmatpush1.msra.mxu0 0.0
    %8243 = vmatprep.subr.mxu0 0.0
    %8244 = vmatpush1.msra.mxu0 0.0
    %8245 = vmatprep.subr.mxu0 0.0
    %8246 = vmatpush1.msra.mxu0 0.0
    %8247 = vmatprep.subr.mxu0 0.0
    %8248 = vmatpush1.msra.mxu0 0.0
    %8249 = vmatprep.subr.mxu0 0.0
    %8250 = vmatpush1.msra.mxu0 0.0
    %8251 = vmatprep.subr.mxu0 0.0
    %8252 = vmatpush1.msra.mxu0 0.0
    %8253 = vmatprep.subr.mxu0 0.0
    %8254 = vmatpush1.msra.mxu0 0.0
    %8255 = vmatprep.subr.mxu0 0.0
    %8256 = vmatpush1.msra.mxu0 0.0
    %8257 = vmatprep.subr.mxu0 0.0
    %8258 = vmatpush1.msra.mxu0 0.0
    %8259 = vmatprep.subr.mxu0 0.0
    %8260 = vmatpush1.msra.mxu0 0.0
    %8261 = vmatprep.subr.mxu0 0.0
    %8262 = vmatpush1.msra.mxu0 0.0
    %8263 = vmatprep.subr.mxu0 0.0
    %8264 = vmatpush1.msra.mxu0 0.0
    %8265 = vmatprep.subr.mxu0 0.0
    %8266 = vmatpush1.msra.mxu0 0.0
    %8267 = vmatprep.subr.mxu0 0.0
    %8268 = vmatpush1.msra.mxu0 0.0
    %8269 = vmatprep.subr.mxu0 0.0
    %8270 = vmatpush1.msra.mxu0 0.0
    %8271 = vmatprep.subr.mxu0 0.0
    %8272 = vmatpush1.msra.mxu0 0.0
    %8273 = vmatprep.subr.mxu0 0.0
    %8274 = vmatpush1.msra.mxu0 0.0
    %8275 = vmatprep.subr.mxu0 0.0
    %8276 = vmatpush1.msra.mxu0 0.0
    %8277 = vmatprep.subr.mxu0 0.0
    %8278 = vmatpush1.msra.mxu0 0.0
    %8279 = vmatprep.subr.mxu0 0.0
    %8280 = vmatpush1.msra.mxu0 0.0
    %8281 = vmatprep.subr.mxu0 0.0
    %8282 = vmatpush1.msra.mxu0 0.0
    %8283 = vmatprep.subr.mxu0 0.0
    %8284 = vmatpush1.msra.mxu0 0.0
    %8285 = vmatprep.subr.mxu0 0.0
    %8286 = vmatpush1.msra.mxu0 0.0
    %8287 = vmatprep.subr.mxu0 0.0
    %8288 = vmatpush1.msra.mxu0 0.0
    %8289 = vmatprep.subr.mxu0 0.0
    %8290 = vmatpush1.msra.mxu0 0.0
    %8291 = vmatprep.subr.mxu0 0.0
    %8292 = vmatpush1.msra.mxu0 0.0
    %8293 = vmatprep.subr.mxu0 0.0
    %8294 = vmatpush1.msra.mxu0 0.0
    %8295 = vmatprep.subr.mxu0 0.0
    %8296 = vmatpush1.msra.mxu0 0.0
    %8297 = vmatprep.mubr.f32.mxu0 0.0
    %v8298 = vand.u32 %v8004, 4294901760
    %v8299 = vsub.f32 %v8004, %v8298
    %v8300 = vand.u32 %v8299, 4294901760
    %8301 = vmatmul.mubr.f32.gmra.mrb[0].mxu0 %v8300
    %v8302 = vpop.f32.mrb[0].mxu0
    %v8303 = vadd.f32 %v8229, %v8302
    %v8304 = vpop.f32.mrb[0].mxu0
    %8305 = vdwg.mxu0
    %8306 = vmatprep.subr.mxu0 0.0
    %v8307 = vand.u32 %v2042, 4294901760
    %v8308 = vsub.f32 %v2042, %v8307
    %v8309 = vand.u32 %v8308, 4294901760
    %8310 = vmatpush1.msra.mxu0 %v8309
    %8311 = vmatprep.subr.mxu0 0.0
    %8312 = vmatpush1.msra.mxu0 0.0
    %8313 = vmatprep.subr.mxu0 0.0
    %8314 = vmatpush1.msra.mxu0 0.0
    %8315 = vmatprep.subr.mxu0 0.0
    %8316 = vmatpush1.msra.mxu0 0.0
    %8317 = vmatprep.subr.mxu0 0.0
    %8318 = vmatpush1.msra.mxu0 0.0
    %8319 = vmatprep.subr.mxu0 0.0
    %8320 = vmatpush1.msra.mxu0 0.0
    %8321 = vmatprep.subr.mxu0 0.0
    %8322 = vmatpush1.msra.mxu0 0.0
    %8323 = vmatprep.subr.mxu0 0.0
    %8324 = vmatpush1.msra.mxu0 0.0
    %8325 = vmatprep.subr.mxu0 0.0
    %8326 = vmatpush1.msra.mxu0 0.0
    %8327 = vmatprep.subr.mxu0 0.0
    %8328 = vmatpush1.msra.mxu0 0.0
    %8329 = vmatprep.subr.mxu0 0.0
    %8330 = vmatpush1.msra.mxu0 0.0
    %8331 = vmatprep.subr.mxu0 0.0
    %8332 = vmatpush1.msra.mxu0 0.0
    %8333 = vmatprep.subr.mxu0 0.0
    %8334 = vmatpush1.msra.mxu0 0.0
    %8335 = vmatprep.subr.mxu0 0.0
    %8336 = vmatpush1.msra.mxu0 0.0
    %8337 = vmatprep.subr.mxu0 0.0
    %8338 = vmatpush1.msra.mxu0 0.0
    %8339 = vmatprep.subr.mxu0 0.0
    %8340 = vmatpush1.msra.mxu0 0.0
    %8341 = vmatprep.subr.mxu0 0.0
    %8342 = vmatpush1.msra.mxu0 0.0
    %8343 = vmatprep.subr.mxu0 0.0
    %8344 = vmatpush1.msra.mxu0 0.0
    %8345 = vmatprep.subr.mxu0 0.0
    %8346 = vmatpush1.msra.mxu0 0.0
    %8347 = vmatprep.subr.mxu0 0.0
    %8348 = vmatpush1.msra.mxu0 0.0
    %8349 = vmatprep.subr.mxu0 0.0
    %8350 = vmatpush1.msra.mxu0 0.0
    %8351 = vmatprep.subr.mxu0 0.0
    %8352 = vmatpush1.msra.mxu0 0.0
    %8353 = vmatprep.subr.mxu0 0.0
    %8354 = vmatpush1.msra.mxu0 0.0
    %8355 = vmatprep.subr.mxu0 0.0
    %8356 = vmatpush1.msra.mxu0 0.0
    %8357 = vmatprep.subr.mxu0 0.0
    %8358 = vmatpush1.msra.mxu0 0.0
    %8359 = vmatprep.subr.mxu0 0.0
    %8360 = vmatpush1.msra.mxu0 0.0
    %8361 = vmatprep.subr.mxu0 0.0
    %8362 = vmatpush1.msra.mxu0 0.0
    %8363 = vmatprep.subr.mxu0 0.0
    %8364 = vmatpush1.msra.mxu0 0.0
    %8365 = vmatprep.subr.mxu0 0.0
    %8366 = vmatpush1.msra.mxu0 0.0
    %8367 = vmatprep.subr.mxu0 0.0
    %8368 = vmatpush1.msra.mxu0 0.0
    %8369 = vmatprep.subr.mxu0 0.0
    %8370 = vmatpush1.msra.mxu0 0.0
    %8371 = vmatprep.subr.mxu0 0.0
    %8372 = vmatpush1.msra.mxu0 0.0
    %8373 = vmatprep.mubr.f32.mxu0 0.0
    %v8374 = vand.u32 %v8004, 4294901760
    %8375 = vmatmul.mubr.f32.gmra.mrb[0].mxu0 %v8374
    %v8376 = vpop.f32.mrb[0].mxu0
    %v8377 = vadd.f32 %v8303, %v8376
    %v8378 = vpop.f32.mrb[0].mxu0
    %8379 = vdwg.mxu0
    %8380 = vmatprep.subr.mxu0 0.0
    %v8381 = vand.u32 %v2042, 4294901760
    %8382 = vmatpush1.msra.mxu0 %v8381
    %8383 = vmatprep.subr.mxu0 0.0
    %8384 = vmatpush1.msra.mxu0 0.0
    %8385 = vmatprep.subr.mxu0 0.0
    %8386 = vmatpush1.msra.mxu0 0.0
    %8387 = vmatprep.subr.mxu0 0.0
    %8388 = vmatpush1.msra.mxu0 0.0
    %8389 = vmatprep.subr.mxu0 0.0
    %8390 = vmatpush1.msra.mxu0 0.0
    %8391 = vmatprep.subr.mxu0 0.0
    %8392 = vmatpush1.msra.mxu0 0.0
    %8393 = vmatprep.subr.mxu0 0.0
    %8394 = vmatpush1.msra.mxu0 0.0
    %8395 = vmatprep.subr.mxu0 0.0
    %8396 = vmatpush1.msra.mxu0 0.0
    %8397 = vmatprep.subr.mxu0 0.0
    %8398 = vmatpush1.msra.mxu0 0.0
    %8399 = vmatprep.subr.mxu0 0.0
    %8400 = vmatpush1.msra.mxu0 0.0
    %8401 = vmatprep.subr.mxu0 0.0
    %8402 = vmatpush1.msra.mxu0 0.0
    %8403 = vmatprep.subr.mxu0 0.0
    %8404 = vmatpush1.msra.mxu0 0.0
    %8405 = vmatprep.subr.mxu0 0.0
    %8406 = vmatpush1.msra.mxu0 0.0
    %8407 = vmatprep.subr.mxu0 0.0
    %8408 = vmatpush1.msra.mxu0 0.0
    %8409 = vmatprep.subr.mxu0 0.0
    %8410 = vmatpush1.msra.mxu0 0.0
    %8411 = vmatprep.subr.mxu0 0.0
    %8412 = vmatpush1.msra.mxu0 0.0
    %8413 = vmatprep.subr.mxu0 0.0
    %8414 = vmatpush1.msra.mxu0 0.0
    %8415 = vmatprep.subr.mxu0 0.0
    %8416 = vmatpush1.msra.mxu0 0.0
    %8417 = vmatprep.subr.mxu0 0.0
    %8418 = vmatpush1.msra.mxu0 0.0
    %8419 = vmatprep.subr.mxu0 0.0
    %8420 = vmatpush1.msra.mxu0 0.0
    %8421 = vmatprep.subr.mxu0 0.0
    %8422 = vmatpush1.msra.mxu0 0.0
    %8423 = vmatprep.subr.mxu0 0.0
    %8424 = vmatpush1.msra.mxu0 0.0
    %8425 = vmatprep.subr.mxu0 0.0
    %8426 = vmatpush1.msra.mxu0 0.0
    %8427 = vmatprep.subr.mxu0 0.0
    %8428 = vmatpush1.msra.mxu0 0.0
    %8429 = vmatprep.subr.mxu0 0.0
    %8430 = vmatpush1.msra.mxu0 0.0
    %8431 = vmatprep.subr.mxu0 0.0
    %8432 = vmatpush1.msra.mxu0 0.0
    %8433 = vmatprep.subr.mxu0 0.0
    %8434 = vmatpush1.msra.mxu0 0.0
    %8435 = vmatprep.subr.mxu0 0.0
    %8436 = vmatpush1.msra.mxu0 0.0
    %8437 = vmatprep.subr.mxu0 0.0
    %8438 = vmatpush1.msra.mxu0 0.0
    %8439 = vmatprep.subr.mxu0 0.0
    %8440 = vmatpush1.msra.mxu0 0.0
    %8441 = vmatprep.subr.mxu0 0.0
    %8442 = vmatpush1.msra.mxu0 0.0
    %8443 = vmatprep.subr.mxu0 0.0
    %8444 = vmatpush1.msra.mxu0 0.0
    %8445 = vmatprep.mubr.f32.mxu0 0.0
    %v8446 = vand.u32 %v8004, 4294901760
    %8447 = vmatmul.mubr.f32.gmra.mrb[0].mxu0 %v8446
    %v8448 = vpop.f32.mrb[0].mxu0
    %v8449 = vadd.f32 %v8377, %v8448
    %v8450 = vpop.f32.mrb[0].mxu0
    %8451 = vdwg.mxu0
    %v8453 = vsel %vm2045, %v5756, 0
    %8455 = vmatprep.subr.mxu0 0.0
    %v8456 = vand.u32 %v2043, 4294901760
    %8457 = vmatpush1.msra.mxu0 %v8456
    %8458 = vmatprep.subr.mxu0 0.0
    %8459 = vmatpush1.msra.mxu0 0.0
    %8460 = vmatprep.subr.mxu0 0.0
    %8461 = vmatpush1.msra.mxu0 0.0
    %8462 = vmatprep.subr.mxu0 0.0
    %8463 = vmatpush1.msra.mxu0 0.0
    %8464 = vmatprep.subr.mxu0 0.0
    %8465 = vmatpush1.msra.mxu0 0.0
    %8466 = vmatprep.subr.mxu0 0.0
    %8467 = vmatpush1.msra.mxu0 0.0
    %8468 = vmatprep.subr.mxu0 0.0
    %8469 = vmatpush1.msra.mxu0 0.0
    %8470 = vmatprep.subr.mxu0 0.0
    %8471 = vmatpush1.msra.mxu0 0.0
    %8472 = vmatprep.subr.mxu0 0.0
    %8473 = vmatpush1.msra.mxu0 0.0
    %8474 = vmatprep.subr.mxu0 0.0
    %8475 = vmatpush1.msra.mxu0 0.0
    %8476 = vmatprep.subr.mxu0 0.0
    %8477 = vmatpush1.msra.mxu0 0.0
    %8478 = vmatprep.subr.mxu0 0.0
    %8479 = vmatpush1.msra.mxu0 0.0
    %8480 = vmatprep.subr.mxu0 0.0
    %8481 = vmatpush1.msra.mxu0 0.0
    %8482 = vmatprep.subr.mxu0 0.0
    %8483 = vmatpush1.msra.mxu0 0.0
    %8484 = vmatprep.subr.mxu0 0.0
    %8485 = vmatpush1.msra.mxu0 0.0
    %8486 = vmatprep.subr.mxu0 0.0
    %8487 = vmatpush1.msra.mxu0 0.0
    %8488 = vmatprep.subr.mxu0 0.0
    %8489 = vmatpush1.msra.mxu0 0.0
    %8490 = vmatprep.subr.mxu0 0.0
    %8491 = vmatpush1.msra.mxu0 0.0
    %8492 = vmatprep.subr.mxu0 0.0
    %8493 = vmatpush1.msra.mxu0 0.0
    %8494 = vmatprep.subr.mxu0 0.0
    %8495 = vmatpush1.msra.mxu0 0.0
    %8496 = vmatprep.subr.mxu0 0.0
    %8497 = vmatpush1.msra.mxu0 0.0
    %8498 = vmatprep.subr.mxu0 0.0
    %8499 = vmatpush1.msra.mxu0 0.0
    %8500 = vmatprep.subr.mxu0 0.0
    %8501 = vmatpush1.msra.mxu0 0.0
    %8502 = vmatprep.subr.mxu0 0.0
    %8503 = vmatpush1.msra.mxu0 0.0
    %8504 = vmatprep.subr.mxu0 0.0
    %8505 = vmatpush1.msra.mxu0 0.0
    %8506 = vmatprep.subr.mxu0 0.0
    %8507 = vmatpush1.msra.mxu0 0.0
    %8508 = vmatprep.subr.mxu0 0.0
    %8509 = vmatpush1.msra.mxu0 0.0
    %8510 = vmatprep.subr.mxu0 0.0
    %8511 = vmatpush1.msra.mxu0 0.0
    %8512 = vmatprep.subr.mxu0 0.0
    %8513 = vmatpush1.msra.mxu0 0.0
    %8514 = vmatprep.subr.mxu0 0.0
    %8515 = vmatpush1.msra.mxu0 0.0
    %8516 = vmatprep.subr.mxu0 0.0
    %8517 = vmatpush1.msra.mxu0 0.0
    %8518 = vmatprep.subr.mxu0 0.0
    %8519 = vmatpush1.msra.mxu0 0.0
    %8520 = vmatprep.mubr.f32.mxu0 0.0
    %v8521 = vand.u32 %v8453, 4294901760
    %v8522 = vsub.f32 %v8453, %v8521
    %v8523 = vand.u32 %v8522, 4294901760
    %v8524 = vsub.f32 %v8522, %v8523
    %v8525 = vand.u32 %v8524, 4294901760
    %8526 = vmatmul.mubr.f32.gmra.mrb[0].mxu0 %v8525
    %v8527 = vpop.f32.mrb[0].mxu0
    %v8528 = vadd.f32 0.0, %v8527
    %v8529 = vpop.f32.mrb[0].mxu0
    %8530 = vdwg.mxu0
    %8531 = vmatprep.subr.mxu0 0.0
    %v8532 = vand.u32 %v2043, 4294901760
    %v8533 = vsub.f32 %v2043, %v8532
    %v8534 = vand.u32 %v8533, 4294901760
    %v8535 = vsub.f32 %v8533, %v8534
    %v8536 = vand.u32 %v8535, 4294901760
    %8537 = vmatpush1.msra.mxu0 %v8536
    %8538 = vmatprep.subr.mxu0 0.0
    %8539 = vmatpush1.msra.mxu0 0.0
    %8540 = vmatprep.subr.mxu0 0.0
    %8541 = vmatpush1.msra.mxu0 0.0
    %8542 = vmatprep.subr.mxu0 0.0
    %8543 = vmatpush1.msra.mxu0 0.0
    %8544 = vmatprep.subr.mxu0 0.0
    %8545 = vmatpush1.msra.mxu0 0.0
    %8546 = vmatprep.subr.mxu0 0.0
    %8547 = vmatpush1.msra.mxu0 0.0
    %8548 = vmatprep.subr.mxu0 0.0
    %8549 = vmatpush1.msra.mxu0 0.0
    %8550 = vmatprep.subr.mxu0 0.0
    %8551 = vmatpush1.msra.mxu0 0.0
    %8552 = vmatprep.subr.mxu0 0.0
    %8553 = vmatpush1.msra.mxu0 0.0
    %8554 = vmatprep.subr.mxu0 0.0
    %8555 = vmatpush1.msra.mxu0 0.0
    %8556 = vmatprep.subr.mxu0 0.0
    %8557 = vmatpush1.msra.mxu0 0.0
    %8558 = vmatprep.subr.mxu0 0.0
    %8559 = vmatpush1.msra.mxu0 0.0
    %8560 = vmatprep.subr.mxu0 0.0
    %8561 = vmatpush1.msra.mxu0 0.0
    %8562 = vmatprep.subr.mxu0 0.0
    %8563 = vmatpush1.msra.mxu0 0.0
    %8564 = vmatprep.subr.mxu0 0.0
    %8565 = vmatpush1.msra.mxu0 0.0
    %8566 = vmatprep.subr.mxu0 0.0
    %8567 = vmatpush1.msra.mxu0 0.0
    %8568 = vmatprep.subr.mxu0 0.0
    %8569 = vmatpush1.msra.mxu0 0.0
    %8570 = vmatprep.subr.mxu0 0.0
    %8571 = vmatpush1.msra.mxu0 0.0
    %8572 = vmatprep.subr.mxu0 0.0
    %8573 = vmatpush1.msra.mxu0 0.0
    %8574 = vmatprep.subr.mxu0 0.0
    %8575 = vmatpush1.msra.mxu0 0.0
    %8576 = vmatprep.subr.mxu0 0.0
    %8577 = vmatpush1.msra.mxu0 0.0
    %8578 = vmatprep.subr.mxu0 0.0
    %8579 = vmatpush1.msra.mxu0 0.0
    %8580 = vmatprep.subr.mxu0 0.0
    %8581 = vmatpush1.msra.mxu0 0.0
    %8582 = vmatprep.subr.mxu0 0.0
    %8583 = vmatpush1.msra.mxu0 0.0
    %8584 = vmatprep.subr.mxu0 0.0
    %8585 = vmatpush1.msra.mxu0 0.0
    %8586 = vmatprep.subr.mxu0 0.0
    %8587 = vmatpush1.msra.mxu0 0.0
    %8588 = vmatprep.subr.mxu0 0.0
    %8589 = vmatpush1.msra.mxu0 0.0
    %8590 = vmatprep.subr.mxu0 0.0
    %8591 = vmatpush1.msra.mxu0 0.0
    %8592 = vmatprep.subr.mxu0 0.0
    %8593 = vmatpush1.msra.mxu0 0.0
    %8594 = vmatprep.subr.mxu0 0.0
    %8595 = vmatpush1.msra.mxu0 0.0
    %8596 = vmatprep.subr.mxu0 0.0
    %8597 = vmatpush1.msra.mxu0 0.0
    %8598 = vmatprep.subr.mxu0 0.0
    %8599 = vmatpush1.msra.mxu0 0.0
    %8600 = vmatprep.mubr.f32.mxu0 0.0
    %v8601 = vand.u32 %v8453, 4294901760
    %8602 = vmatmul.mubr.f32.gmra.mrb[0].mxu0 %v8601
    %v8603 = vpop.f32.mrb[0].mxu0
    %v8604 = vadd.f32 %v8528, %v8603
    %v8605 = vpop.f32.mrb[0].mxu0
    %8606 = vdwg.mxu0
    %8607 = vmatprep.subr.mxu0 0.0
    %v8608 = vand.u32 %v2043, 4294901760
    %v8609 = vsub.f32 %v2043, %v8608
    %8610 = vmatpush1.msra.mxu0 %v8609
    %8611 = vmatprep.subr.mxu0 0.0
    %8612 = vmatpush1.msra.mxu0 0.0
    %8613 = vmatprep.subr.mxu0 0.0
    %8614 = vmatpush1.msra.mxu0 0.0
    %8615 = vmatprep.subr.mxu0 0.0
    %8616 = vmatpush1.msra.mxu0 0.0
    %8617 = vmatprep.subr.mxu0 0.0
    %8618 = vmatpush1.msra.mxu0 0.0
    %8619 = vmatprep.subr.mxu0 0.0
    %8620 = vmatpush1.msra.mxu0 0.0
    %8621 = vmatprep.subr.mxu0 0.0
    %8622 = vmatpush1.msra.mxu0 0.0
    %8623 = vmatprep.subr.mxu0 0.0
    %8624 = vmatpush1.msra.mxu0 0.0
    %8625 = vmatprep.subr.mxu0 0.0
    %8626 = vmatpush1.msra.mxu0 0.0
    %8627 = vmatprep.subr.mxu0 0.0
    %8628 = vmatpush1.msra.mxu0 0.0
    %8629 = vmatprep.subr.mxu0 0.0
    %8630 = vmatpush1.msra.mxu0 0.0
    %8631 = vmatprep.subr.mxu0 0.0
    %8632 = vmatpush1.msra.mxu0 0.0
    %8633 = vmatprep.subr.mxu0 0.0
    %8634 = vmatpush1.msra.mxu0 0.0
    %8635 = vmatprep.subr.mxu0 0.0
    %8636 = vmatpush1.msra.mxu0 0.0
    %8637 = vmatprep.subr.mxu0 0.0
    %8638 = vmatpush1.msra.mxu0 0.0
    %8639 = vmatprep.subr.mxu0 0.0
    %8640 = vmatpush1.msra.mxu0 0.0
    %8641 = vmatprep.subr.mxu0 0.0
    %8642 = vmatpush1.msra.mxu0 0.0
    %8643 = vmatprep.subr.mxu0 0.0
    %8644 = vmatpush1.msra.mxu0 0.0
    %8645 = vmatprep.subr.mxu0 0.0
    %8646 = vmatpush1.msra.mxu0 0.0
    %8647 = vmatprep.subr.mxu0 0.0
    %8648 = vmatpush1.msra.mxu0 0.0
    %8649 = vmatprep.subr.mxu0 0.0
    %8650 = vmatpush1.msra.mxu0 0.0
    %8651 = vmatprep.subr.mxu0 0.0
    %8652 = vmatpush1.msra.mxu0 0.0
    %8653 = vmatprep.subr.mxu0 0.0
    %8654 = vmatpush1.msra.mxu0 0.0
    %8655 = vmatprep.subr.mxu0 0.0
    %8656 = vmatpush1.msra.mxu0 0.0
    %8657 = vmatprep.subr.mxu0 0.0
    %8658 = vmatpush1.msra.mxu0 0.0
    %8659 = vmatprep.subr.mxu0 0.0
    %8660 = vmatpush1.msra.mxu0 0.0
    %8661 = vmatprep.subr.mxu0 0.0
    %8662 = vmatpush1.msra.mxu0 0.0
    %8663 = vmatprep.subr.mxu0 0.0
    %8664 = vmatpush1.msra.mxu0 0.0
    %8665 = vmatprep.subr.mxu0 0.0
    %8666 = vmatpush1.msra.mxu0 0.0
    %8667 = vmatprep.subr.mxu0 0.0
    %8668 = vmatpush1.msra.mxu0 0.0
    %8669 = vmatprep.subr.mxu0 0.0
    %8670 = vmatpush1.msra.mxu0 0.0
    %8671 = vmatprep.subr.mxu0 0.0
    %8672 = vmatpush1.msra.mxu0 0.0
    %8673 = vmatprep.mubr.f32.mxu0 0.0
    %v8674 = vand.u32 %v8453, 4294901760
    %v8675 = vsub.f32 %v8453, %v8674
    %8676 = vmatmul.mubr.f32.gmra.mrb[0].mxu0 %v8675
    %v8677 = vpop.f32.mrb[0].mxu0
    %v8678 = vadd.f32 %v8604, %v8677
    %v8679 = vpop.f32.mrb[0].mxu0
    %8680 = vdwg.mxu0
    %8681 = vmatprep.subr.mxu0 0.0
    %v8682 = vand.u32 %v2043, 4294901760
    %8683 = vmatpush1.msra.mxu0 %v8682
    %8684 = vmatprep.subr.mxu0 0.0
    %8685 = vmatpush1.msra.mxu0 0.0
    %8686 = vmatprep.subr.mxu0 0.0
    %8687 = vmatpush1.msra.mxu0 0.0
    %8688 = vmatprep.subr.mxu0 0.0
    %8689 = vmatpush1.msra.mxu0 0.0
    %8690 = vmatprep.subr.mxu0 0.0
    %8691 = vmatpush1.msra.mxu0 0.0
    %8692 = vmatprep.subr.mxu0 0.0
    %8693 = vmatpush1.msra.mxu0 0.0
    %8694 = vmatprep.subr.mxu0 0.0
    %8695 = vmatpush1.msra.mxu0 0.0
    %8696 = vmatprep.subr.mxu0 0.0
    %8697 = vmatpush1.msra.mxu0 0.0
    %8698 = vmatprep.subr.mxu0 0.0
    %8699 = vmatpush1.msra.mxu0 0.0
    %8700 = vmatprep.subr.mxu0 0.0
    %8701 = vmatpush1.msra.mxu0 0.0
    %8702 = vmatprep.subr.mxu0 0.0
    %8703 = vmatpush1.msra.mxu0 0.0
    %8704 = vmatprep.subr.mxu0 0.0
    %8705 = vmatpush1.msra.mxu0 0.0
    %8706 = vmatprep.subr.mxu0 0.0
    %8707 = vmatpush1.msra.mxu0 0.0
    %8708 = vmatprep.subr.mxu0 0.0
    %8709 = vmatpush1.msra.mxu0 0.0
    %8710 = vmatprep.subr.mxu0 0.0
    %8711 = vmatpush1.msra.mxu0 0.0
    %8712 = vmatprep.subr.mxu0 0.0
    %8713 = vmatpush1.msra.mxu0 0.0
    %8714 = vmatprep.subr.mxu0 0.0
    %8715 = vmatpush1.msra.mxu0 0.0
    %8716 = vmatprep.subr.mxu0 0.0
    %8717 = vmatpush1.msra.mxu0 0.0
    %8718 = vmatprep.subr.mxu0 0.0
    %8719 = vmatpush1.msra.mxu0 0.0
    %8720 = vmatprep.subr.mxu0 0.0
    %8721 = vmatpush1.msra.mxu0 0.0
    %8722 = vmatprep.subr.mxu0 0.0
    %8723 = vmatpush1.msra.mxu0 0.0
    %8724 = vmatprep.subr.mxu0 0.0
    %8725 = vmatpush1.msra.mxu0 0.0
    %8726 = vmatprep.subr.mxu0 0.0
    %8727 = vmatpush1.msra.mxu0 0.0
    %8728 = vmatprep.subr.mxu0 0.0
    %8729 = vmatpush1.msra.mxu0 0.0
    %8730 = vmatprep.subr.mxu0 0.0
    %8731 = vmatpush1.msra.mxu0 0.0
    %8732 = vmatprep.subr.mxu0 0.0
    %8733 = vmatpush1.msra.mxu0 0.0
    %8734 = vmatprep.subr.mxu0 0.0
    %8735 = vmatpush1.msra.mxu0 0.0
    %8736 = vmatprep.subr.mxu0 0.0
    %8737 = vmatpush1.msra.mxu0 0.0
    %8738 = vmatprep.subr.mxu0 0.0
    %8739 = vmatpush1.msra.mxu0 0.0
    %8740 = vmatprep.subr.mxu0 0.0
    %8741 = vmatpush1.msra.mxu0 0.0
    %8742 = vmatprep.subr.mxu0 0.0
    %8743 = vmatpush1.msra.mxu0 0.0
    %8744 = vmatprep.subr.mxu0 0.0
    %8745 = vmatpush1.msra.mxu0 0.0
    %8746 = vmatprep.mubr.f32.mxu0 0.0
    %v8747 = vand.u32 %v8453, 4294901760
    %v8748 = vsub.f32 %v8453, %v8747
    %v8749 = vand.u32 %v8748, 4294901760
    %8750 = vmatmul.mubr.f32.gmra.mrb[0].mxu0 %v8749
    %v8751 = vpop.f32.mrb[0].mxu0
    %v8752 = vadd.f32 %v8678, %v8751
    %v8753 = vpop.f32.mrb[0].mxu0
    %8754 = vdwg.mxu0
    %8755 = vmatprep.subr.mxu0 0.0
    %v8756 = vand.u32 %v2043, 4294901760
    %v8757 = vsub.f32 %v2043, %v8756
    %v8758 = vand.u32 %v8757, 4294901760
    %8759 = vmatpush1.msra.mxu0 %v8758
    %8760 = vmatprep.subr.mxu0 0.0
    %8761 = vmatpush1.msra.mxu0 0.0
    %8762 = vmatprep.subr.mxu0 0.0
    %8763 = vmatpush1.msra.mxu0 0.0
    %8764 = vmatprep.subr.mxu0 0.0
    %8765 = vmatpush1.msra.mxu0 0.0
    %8766 = vmatprep.subr.mxu0 0.0
    %8767 = vmatpush1.msra.mxu0 0.0
    %8768 = vmatprep.subr.mxu0 0.0
    %8769 = vmatpush1.msra.mxu0 0.0
    %8770 = vmatprep.subr.mxu0 0.0
    %8771 = vmatpush1.msra.mxu0 0.0
    %8772 = vmatprep.subr.mxu0 0.0
    %8773 = vmatpush1.msra.mxu0 0.0
    %8774 = vmatprep.subr.mxu0 0.0
    %8775 = vmatpush1.msra.mxu0 0.0
    %8776 = vmatprep.subr.mxu0 0.0
    %8777 = vmatpush1.msra.mxu0 0.0
    %8778 = vmatprep.subr.mxu0 0.0
    %8779 = vmatpush1.msra.mxu0 0.0
    %8780 = vmatprep.subr.mxu0 0.0
    %8781 = vmatpush1.msra.mxu0 0.0
    %8782 = vmatprep.subr.mxu0 0.0
    %8783 = vmatpush1.msra.mxu0 0.0
    %8784 = vmatprep.subr.mxu0 0.0
    %8785 = vmatpush1.msra.mxu0 0.0
    %8786 = vmatprep.subr.mxu0 0.0
    %8787 = vmatpush1.msra.mxu0 0.0
    %8788 = vmatprep.subr.mxu0 0.0
    %8789 = vmatpush1.msra.mxu0 0.0
    %8790 = vmatprep.subr.mxu0 0.0
    %8791 = vmatpush1.msra.mxu0 0.0
    %8792 = vmatprep.subr.mxu0 0.0
    %8793 = vmatpush1.msra.mxu0 0.0
    %8794 = vmatprep.subr.mxu0 0.0
    %8795 = vmatpush1.msra.mxu0 0.0
    %8796 = vmatprep.subr.mxu0 0.0
    %8797 = vmatpush1.msra.mxu0 0.0
    %8798 = vmatprep.subr.mxu0 0.0
    %8799 = vmatpush1.msra.mxu0 0.0
    %8800 = vmatprep.subr.mxu0 0.0
    %8801 = vmatpush1.msra.mxu0 0.0
    %8802 = vmatprep.subr.mxu0 0.0
    %8803 = vmatpush1.msra.mxu0 0.0
    %8804 = vmatprep.subr.mxu0 0.0
    %8805 = vmatpush1.msra.mxu0 0.0
    %8806 = vmatprep.subr.mxu0 0.0
    %8807 = vmatpush1.msra.mxu0 0.0
    %8808 = vmatprep.subr.mxu0 0.0
    %8809 = vmatpush1.msra.mxu0 0.0
    %8810 = vmatprep.subr.mxu0 0.0
    %8811 = vmatpush1.msra.mxu0 0.0
    %8812 = vmatprep.subr.mxu0 0.0
    %8813 = vmatpush1.msra.mxu0 0.0
    %8814 = vmatprep.subr.mxu0 0.0
    %8815 = vmatpush1.msra.mxu0 0.0
    %8816 = vmatprep.subr.mxu0 0.0
    %8817 = vmatpush1.msra.mxu0 0.0
    %8818 = vmatprep.subr.mxu0 0.0
    %8819 = vmatpush1.msra.mxu0 0.0
    %8820 = vmatprep.subr.mxu0 0.0
    %8821 = vmatpush1.msra.mxu0 0.0
    %8822 = vmatprep.mubr.f32.mxu0 0.0
    %v8823 = vand.u32 %v8453, 4294901760
    %8824 = vmatmul.mubr.f32.gmra.mrb[0].mxu0 %v8823
    %v8825 = vpop.f32.mrb[0].mxu0
    %v8826 = vadd.f32 %v8752, %v8825
    %v8827 = vpop.f32.mrb[0].mxu0
    %8828 = vdwg.mxu0
    %8829 = vmatprep.subr.mxu0 0.0
    %v8830 = vand.u32 %v2043, 4294901760
    %8831 = vmatpush1.msra.mxu0 %v8830
    %8832 = vmatprep.subr.mxu0 0.0
    %8833 = vmatpush1.msra.mxu0 0.0
    %8834 = vmatprep.subr.mxu0 0.0
    %8835 = vmatpush1.msra.mxu0 0.0
    %8836 = vmatprep.subr.mxu0 0.0
    %8837 = vmatpush1.msra.mxu0 0.0
    %8838 = vmatprep.subr.mxu0 0.0
    %8839 = vmatpush1.msra.mxu0 0.0
    %8840 = vmatprep.subr.mxu0 0.0
    %8841 = vmatpush1.msra.mxu0 0.0
    %8842 = vmatprep.subr.mxu0 0.0
    %8843 = vmatpush1.msra.mxu0 0.0
    %8844 = vmatprep.subr.mxu0 0.0
    %8845 = vmatpush1.msra.mxu0 0.0
    %8846 = vmatprep.subr.mxu0 0.0
    %8847 = vmatpush1.msra.mxu0 0.0
    %8848 = vmatprep.subr.mxu0 0.0
    %8849 = vmatpush1.msra.mxu0 0.0
    %8850 = vmatprep.subr.mxu0 0.0
    %8851 = vmatpush1.msra.mxu0 0.0
    %8852 = vmatprep.subr.mxu0 0.0
    %8853 = vmatpush1.msra.mxu0 0.0
    %8854 = vmatprep.subr.mxu0 0.0
    %8855 = vmatpush1.msra.mxu0 0.0
    %8856 = vmatprep.subr.mxu0 0.0
    %8857 = vmatpush1.msra.mxu0 0.0
    %8858 = vmatprep.subr.mxu0 0.0
    %8859 = vmatpush1.msra.mxu0 0.0
    %8860 = vmatprep.subr.mxu0 0.0
    %8861 = vmatpush1.msra.mxu0 0.0
    %8862 = vmatprep.subr.mxu0 0.0
    %8863 = vmatpush1.msra.mxu0 0.0
    %8864 = vmatprep.subr.mxu0 0.0
    %8865 = vmatpush1.msra.mxu0 0.0
    %8866 = vmatprep.subr.mxu0 0.0
    %8867 = vmatpush1.msra.mxu0 0.0
    %8868 = vmatprep.subr.mxu0 0.0
    %8869 = vmatpush1.msra.mxu0 0.0
    %8870 = vmatprep.subr.mxu0 0.0
    %8871 = vmatpush1.msra.mxu0 0.0
    %8872 = vmatprep.subr.mxu0 0.0
    %8873 = vmatpush1.msra.mxu0 0.0
    %8874 = vmatprep.subr.mxu0 0.0
    %8875 = vmatpush1.msra.mxu0 0.0
    %8876 = vmatprep.subr.mxu0 0.0
    %8877 = vmatpush1.msra.mxu0 0.0
    %8878 = vmatprep.subr.mxu0 0.0
    %8879 = vmatpush1.msra.mxu0 0.0
    %8880 = vmatprep.subr.mxu0 0.0
    %8881 = vmatpush1.msra.mxu0 0.0
    %8882 = vmatprep.subr.mxu0 0.0
    %8883 = vmatpush1.msra.mxu0 0.0
    %8884 = vmatprep.subr.mxu0 0.0
    %8885 = vmatpush1.msra.mxu0 0.0
    %8886 = vmatprep.subr.mxu0 0.0
    %8887 = vmatpush1.msra.mxu0 0.0
    %8888 = vmatprep.subr.mxu0 0.0
    %8889 = vmatpush1.msra.mxu0 0.0
    %8890 = vmatprep.subr.mxu0 0.0
    %8891 = vmatpush1.msra.mxu0 0.0
    %8892 = vmatprep.subr.mxu0 0.0
    %8893 = vmatpush1.msra.mxu0 0.0
    %8894 = vmatprep.mubr.f32.mxu0 0.0
    %v8895 = vand.u32 %v8453, 4294901760
    %8896 = vmatmul.mubr.f32.gmra.mrb[0].mxu0 %v8895
    %v8897 = vpop.f32.mrb[0].mxu0
    %v8898 = vadd.f32 %v8826, %v8897
    %v8899 = vpop.f32.mrb[0].mxu0
    %8900 = vdwg.mxu0
    %v8902 = vsel %vm2045, %v5757, 0
    %8904 = vmatprep.subr.mxu0 0.0
    %v8905 = vand.u32 %v2044, 4294901760
    %8906 = vmatpush1.msra.mxu0 %v8905
    %8907 = vmatprep.subr.mxu0 0.0
    %8908 = vmatpush1.msra.mxu0 0.0
    %8909 = vmatprep.subr.mxu0 0.0
    %8910 = vmatpush1.msra.mxu0 0.0
    %8911 = vmatprep.subr.mxu0 0.0
    %8912 = vmatpush1.msra.mxu0 0.0
    %8913 = vmatprep.subr.mxu0 0.0
    %8914 = vmatpush1.msra.mxu0 0.0
    %8915 = vmatprep.subr.mxu0 0.0
    %8916 = vmatpush1.msra.mxu0 0.0
    %8917 = vmatprep.subr.mxu0 0.0
    %8918 = vmatpush1.msra.mxu0 0.0
    %8919 = vmatprep.subr.mxu0 0.0
    %8920 = vmatpush1.msra.mxu0 0.0
    %8921 = vmatprep.subr.mxu0 0.0
    %8922 = vmatpush1.msra.mxu0 0.0
    %8923 = vmatprep.subr.mxu0 0.0
    %8924 = vmatpush1.msra.mxu0 0.0
    %8925 = vmatprep.subr.mxu0 0.0
    %8926 = vmatpush1.msra.mxu0 0.0
    %8927 = vmatprep.subr.mxu0 0.0
    %8928 = vmatpush1.msra.mxu0 0.0
    %8929 = vmatprep.subr.mxu0 0.0
    %8930 = vmatpush1.msra.mxu0 0.0
    %8931 = vmatprep.subr.mxu0 0.0
    %8932 = vmatpush1.msra.mxu0 0.0
    %8933 = vmatprep.subr.mxu0 0.0
    %8934 = vmatpush1.msra.mxu0 0.0
    %8935 = vmatprep.subr.mxu0 0.0
    %8936 = vmatpush1.msra.mxu0 0.0
    %8937 = vmatprep.subr.mxu0 0.0
    %8938 = vmatpush1.msra.mxu0 0.0
    %8939 = vmatprep.subr.mxu0 0.0
    %8940 = vmatpush1.msra.mxu0 0.0
    %8941 = vmatprep.subr.mxu0 0.0
    %8942 = vmatpush1.msra.mxu0 0.0
    %8943 = vmatprep.subr.mxu0 0.0
    %8944 = vmatpush1.msra.mxu0 0.0
    %8945 = vmatprep.subr.mxu0 0.0
    %8946 = vmatpush1.msra.mxu0 0.0
    %8947 = vmatprep.subr.mxu0 0.0
    %8948 = vmatpush1.msra.mxu0 0.0
    %8949 = vmatprep.subr.mxu0 0.0
    %8950 = vmatpush1.msra.mxu0 0.0
    %8951 = vmatprep.subr.mxu0 0.0
    %8952 = vmatpush1.msra.mxu0 0.0
    %8953 = vmatprep.subr.mxu0 0.0
    %8954 = vmatpush1.msra.mxu0 0.0
    %8955 = vmatprep.subr.mxu0 0.0
    %8956 = vmatpush1.msra.mxu0 0.0
    %8957 = vmatprep.subr.mxu0 0.0
    %8958 = vmatpush1.msra.mxu0 0.0
    %8959 = vmatprep.subr.mxu0 0.0
    %8960 = vmatpush1.msra.mxu0 0.0
    %8961 = vmatprep.subr.mxu0 0.0
    %8962 = vmatpush1.msra.mxu0 0.0
    %8963 = vmatprep.subr.mxu0 0.0
    %8964 = vmatpush1.msra.mxu0 0.0
    %8965 = vmatprep.subr.mxu0 0.0
    %8966 = vmatpush1.msra.mxu0 0.0
    %8967 = vmatprep.subr.mxu0 0.0
    %8968 = vmatpush1.msra.mxu0 0.0
    %8969 = vmatprep.mubr.f32.mxu0 0.0
    %v8970 = vand.u32 %v8902, 4294901760
    %v8971 = vsub.f32 %v8902, %v8970
    %v8972 = vand.u32 %v8971, 4294901760
    %v8973 = vsub.f32 %v8971, %v8972
    %v8974 = vand.u32 %v8973, 4294901760
    %8975 = vmatmul.mubr.f32.gmra.mrb[0].mxu0 %v8974
    %v8976 = vpop.f32.mrb[0].mxu0
    %v8977 = vadd.f32 0.0, %v8976
    %v8978 = vpop.f32.mrb[0].mxu0
    %8979 = vdwg.mxu0
    %8980 = vmatprep.subr.mxu0 0.0
    %v8981 = vand.u32 %v2044, 4294901760
    %v8982 = vsub.f32 %v2044, %v8981
    %v8983 = vand.u32 %v8982, 4294901760
    %v8984 = vsub.f32 %v8982, %v8983
    %v8985 = vand.u32 %v8984, 4294901760
    %8986 = vmatpush1.msra.mxu0 %v8985
    %8987 = vmatprep.subr.mxu0 0.0
    %8988 = vmatpush1.msra.mxu0 0.0
    %8989 = vmatprep.subr.mxu0 0.0
    %8990 = vmatpush1.msra.mxu0 0.0
    %8991 = vmatprep.subr.mxu0 0.0
    %8992 = vmatpush1.msra.mxu0 0.0
    %8993 = vmatprep.subr.mxu0 0.0
    %8994 = vmatpush1.msra.mxu0 0.0
    %8995 = vmatprep.subr.mxu0 0.0
    %8996 = vmatpush1.msra.mxu0 0.0
    %8997 = vmatprep.subr.mxu0 0.0
    %8998 = vmatpush1.msra.mxu0 0.0
    %8999 = vmatprep.subr.mxu0 0.0
    %9000 = vmatpush1.msra.mxu0 0.0
    %9001 = vmatprep.subr.mxu0 0.0
    %9002 = vmatpush1.msra.mxu0 0.0
    %9003 = vmatprep.subr.mxu0 0.0
    %9004 = vmatpush1.msra.mxu0 0.0
    %9005 = vmatprep.subr.mxu0 0.0
    %9006 = vmatpush1.msra.mxu0 0.0
    %9007 = vmatprep.subr.mxu0 0.0
    %9008 = vmatpush1.msra.mxu0 0.0
    %9009 = vmatprep.subr.mxu0 0.0
    %9010 = vmatpush1.msra.mxu0 0.0
    %9011 = vmatprep.subr.mxu0 0.0
    %9012 = vmatpush1.msra.mxu0 0.0
    %9013 = vmatprep.subr.mxu0 0.0
    %9014 = vmatpush1.msra.mxu0 0.0
    %9015 = vmatprep.subr.mxu0 0.0
    %9016 = vmatpush1.msra.mxu0 0.0
    %9017 = vmatprep.subr.mxu0 0.0
    %9018 = vmatpush1.msra.mxu0 0.0
    %9019 = vmatprep.subr.mxu0 0.0
    %9020 = vmatpush1.msra.mxu0 0.0
    %9021 = vmatprep.subr.mxu0 0.0
    %9022 = vmatpush1.msra.mxu0 0.0
    %9023 = vmatprep.subr.mxu0 0.0
    %9024 = vmatpush1.msra.mxu0 0.0
    %9025 = vmatprep.subr.mxu0 0.0
    %9026 = vmatpush1.msra.mxu0 0.0
    %9027 = vmatprep.subr.mxu0 0.0
    %9028 = vmatpush1.msra.mxu0 0.0
    %9029 = vmatprep.subr.mxu0 0.0
    %9030 = vmatpush1.msra.mxu0 0.0
    %9031 = vmatprep.subr.mxu0 0.0
    %9032 = vmatpush1.msra.mxu0 0.0
    %9033 = vmatprep.subr.mxu0 0.0
    %9034 = vmatpush1.msra.mxu0 0.0
    %9035 = vmatprep.subr.mxu0 0.0
    %9036 = vmatpush1.msra.mxu0 0.0
    %9037 = vmatprep.subr.mxu0 0.0
    %9038 = vmatpush1.msra.mxu0 0.0
    %9039 = vmatprep.subr.mxu0 0.0
    %9040 = vmatpush1.msra.mxu0 0.0
    %9041 = vmatprep.subr.mxu0 0.0
    %9042 = vmatpush1.msra.mxu0 0.0
    %9043 = vmatprep.subr.mxu0 0.0
    %9044 = vmatpush1.msra.mxu0 0.0
    %9045 = vmatprep.subr.mxu0 0.0
    %9046 = vmatpush1.msra.mxu0 0.0
    %9047 = vmatprep.subr.mxu0 0.0
    %9048 = vmatpush1.msra.mxu0 0.0
    %9049 = vmatprep.mubr.f32.mxu0 0.0
    %v9050 = vand.u32 %v8902, 4294901760
    %9051 = vmatmul.mubr.f32.gmra.mrb[0].mxu0 %v9050
    %v9052 = vpop.f32.mrb[0].mxu0
    %v9053 = vadd.f32 %v8977, %v9052
    %v9054 = vpop.f32.mrb[0].mxu0
    %9055 = vdwg.mxu0
    %9056 = vmatprep.subr.mxu0 0.0
    %v9057 = vand.u32 %v2044, 4294901760
    %v9058 = vsub.f32 %v2044, %v9057
    %9059 = vmatpush1.msra.mxu0 %v9058
    %9060 = vmatprep.subr.mxu0 0.0
    %9061 = vmatpush1.msra.mxu0 0.0
    %9062 = vmatprep.subr.mxu0 0.0
    %9063 = vmatpush1.msra.mxu0 0.0
    %9064 = vmatprep.subr.mxu0 0.0
    %9065 = vmatpush1.msra.mxu0 0.0
    %9066 = vmatprep.subr.mxu0 0.0
    %9067 = vmatpush1.msra.mxu0 0.0
    %9068 = vmatprep.subr.mxu0 0.0
    %9069 = vmatpush1.msra.mxu0 0.0
    %9070 = vmatprep.subr.mxu0 0.0
    %9071 = vmatpush1.msra.mxu0 0.0
    %9072 = vmatprep.subr.mxu0 0.0
    %9073 = vmatpush1.msra.mxu0 0.0
    %9074 = vmatprep.subr.mxu0 0.0
    %9075 = vmatpush1.msra.mxu0 0.0
    %9076 = vmatprep.subr.mxu0 0.0
    %9077 = vmatpush1.msra.mxu0 0.0
    %9078 = vmatprep.subr.mxu0 0.0
    %9079 = vmatpush1.msra.mxu0 0.0
    %9080 = vmatprep.subr.mxu0 0.0
    %9081 = vmatpush1.msra.mxu0 0.0
    %9082 = vmatprep.subr.mxu0 0.0
    %9083 = vmatpush1.msra.mxu0 0.0
    %9084 = vmatprep.subr.mxu0 0.0
    %9085 = vmatpush1.msra.mxu0 0.0
    %9086 = vmatprep.subr.mxu0 0.0
    %9087 = vmatpush1.msra.mxu0 0.0
    %9088 = vmatprep.subr.mxu0 0.0
    %9089 = vmatpush1.msra.mxu0 0.0
    %9090 = vmatprep.subr.mxu0 0.0
    %9091 = vmatpush1.msra.mxu0 0.0
    %9092 = vmatprep.subr.mxu0 0.0
    %9093 = vmatpush1.msra.mxu0 0.0
    %9094 = vmatprep.subr.mxu0 0.0
    %9095 = vmatpush1.msra.mxu0 0.0
    %9096 = vmatprep.subr.mxu0 0.0
    %9097 = vmatpush1.msra.mxu0 0.0
    %9098 = vmatprep.subr.mxu0 0.0
    %9099 = vmatpush1.msra.mxu0 0.0
    %9100 = vmatprep.subr.mxu0 0.0
    %9101 = vmatpush1.msra.mxu0 0.0
    %9102 = vmatprep.subr.mxu0 0.0
    %9103 = vmatpush1.msra.mxu0 0.0
    %9104 = vmatprep.subr.mxu0 0.0
    %9105 = vmatpush1.msra.mxu0 0.0
    %9106 = vmatprep.subr.mxu0 0.0
    %9107 = vmatpush1.msra.mxu0 0.0
    %9108 = vmatprep.subr.mxu0 0.0
    %9109 = vmatpush1.msra.mxu0 0.0
    %9110 = vmatprep.subr.mxu0 0.0
    %9111 = vmatpush1.msra.mxu0 0.0
    %9112 = vmatprep.subr.mxu0 0.0
    %9113 = vmatpush1.msra.mxu0 0.0
    %9114 = vmatprep.subr.mxu0 0.0
    %9115 = vmatpush1.msra.mxu0 0.0
    %9116 = vmatprep.subr.mxu0 0.0
    %9117 = vmatpush1.msra.mxu0 0.0
    %9118 = vmatprep.subr.mxu0 0.0
    %9119 = vmatpush1.msra.mxu0 0.0
    %9120 = vmatprep.subr.mxu0 0.0
    %9121 = vmatpush1.msra.mxu0 0.0
    %9122 = vmatprep.mubr.f32.mxu0 0.0
    %v9123 = vand.u32 %v8902, 4294901760
    %v9124 = vsub.f32 %v8902, %v9123
    %9125 = vmatmul.mubr.f32.gmra.mrb[0].mxu0 %v9124
    %v9126 = vpop.f32.mrb[0].mxu0
    %v9127 = vadd.f32 %v9053, %v9126
    %v9128 = vpop.f32.mrb[0].mxu0
    %9129 = vdwg.mxu0
    %9130 = vmatprep.subr.mxu0 0.0
    %v9131 = vand.u32 %v2044, 4294901760
    %9132 = vmatpush1.msra.mxu0 %v9131
    %9133 = vmatprep.subr.mxu0 0.0
    %9134 = vmatpush1.msra.mxu0 0.0
    %9135 = vmatprep.subr.mxu0 0.0
    %9136 = vmatpush1.msra.mxu0 0.0
    %9137 = vmatprep.subr.mxu0 0.0
    %9138 = vmatpush1.msra.mxu0 0.0
    %9139 = vmatprep.subr.mxu0 0.0
    %9140 = vmatpush1.msra.mxu0 0.0
    %9141 = vmatprep.subr.mxu0 0.0
    %9142 = vmatpush1.msra.mxu0 0.0
    %9143 = vmatprep.subr.mxu0 0.0
    %9144 = vmatpush1.msra.mxu0 0.0
    %9145 = vmatprep.subr.mxu0 0.0
    %9146 = vmatpush1.msra.mxu0 0.0
    %9147 = vmatprep.subr.mxu0 0.0
    %9148 = vmatpush1.msra.mxu0 0.0
    %9149 = vmatprep.subr.mxu0 0.0
    %9150 = vmatpush1.msra.mxu0 0.0
    %9151 = vmatprep.subr.mxu0 0.0
    %9152 = vmatpush1.msra.mxu0 0.0
    %9153 = vmatprep.subr.mxu0 0.0
    %9154 = vmatpush1.msra.mxu0 0.0
    %9155 = vmatprep.subr.mxu0 0.0
    %9156 = vmatpush1.msra.mxu0 0.0
    %9157 = vmatprep.subr.mxu0 0.0
    %9158 = vmatpush1.msra.mxu0 0.0
    %9159 = vmatprep.subr.mxu0 0.0
    %9160 = vmatpush1.msra.mxu0 0.0
    %9161 = vmatprep.subr.mxu0 0.0
    %9162 = vmatpush1.msra.mxu0 0.0
    %9163 = vmatprep.subr.mxu0 0.0
    %9164 = vmatpush1.msra.mxu0 0.0
    %9165 = vmatprep.subr.mxu0 0.0
    %9166 = vmatpush1.msra.mxu0 0.0
    %9167 = vmatprep.subr.mxu0 0.0
    %9168 = vmatpush1.msra.mxu0 0.0
    %9169 = vmatprep.subr.mxu0 0.0
    %9170 = vmatpush1.msra.mxu0 0.0
    %9171 = vmatprep.subr.mxu0 0.0
    %9172 = vmatpush1.msra.mxu0 0.0
    %9173 = vmatprep.subr.mxu0 0.0
    %9174 = vmatpush1.msra.mxu0 0.0
    %9175 = vmatprep.subr.mxu0 0.0
    %9176 = vmatpush1.msra.mxu0 0.0
    %9177 = vmatprep.subr.mxu0 0.0
    %9178 = vmatpush1.msra.mxu0 0.0
    %9179 = vmatprep.subr.mxu0 0.0
    %9180 = vmatpush1.msra.mxu0 0.0
    %9181 = vmatprep.subr.mxu0 0.0
    %9182 = vmatpush1.msra.mxu0 0.0
    %9183 = vmatprep.subr.mxu0 0.0
    %9184 = vmatpush1.msra.mxu0 0.0
    %9185 = vmatprep.subr.mxu0 0.0
    %9186 = vmatpush1.msra.mxu0 0.0
    %9187 = vmatprep.subr.mxu0 0.0
    %9188 = vmatpush1.msra.mxu0 0.0
    %9189 = vmatprep.subr.mxu0 0.0
    %9190 = vmatpush1.msra.mxu0 0.0
    %9191 = vmatprep.subr.mxu0 0.0
    %9192 = vmatpush1.msra.mxu0 0.0
    %9193 = vmatprep.subr.mxu0 0.0
    %9194 = vmatpush1.msra.mxu0 0.0
    %9195 = vmatprep.mubr.f32.mxu0 0.0
    %v9196 = vand.u32 %v8902, 4294901760
    %v9197 = vsub.f32 %v8902, %v9196
    %v9198 = vand.u32 %v9197, 4294901760
    %9199 = vmatmul.mubr.f32.gmra.mrb[0].mxu0 %v9198
    %v9200 = vpop.f32.mrb[0].mxu0
    %v9201 = vadd.f32 %v9127, %v9200
    %v9202 = vpop.f32.mrb[0].mxu0
    %9203 = vdwg.mxu0
    %9204 = vmatprep.subr.mxu0 0.0
    %v9205 = vand.u32 %v2044, 4294901760
    %v9206 = vsub.f32 %v2044, %v9205
    %v9207 = vand.u32 %v9206, 4294901760
    %9208 = vmatpush1.msra.mxu0 %v9207
    %9209 = vmatprep.subr.mxu0 0.0
    %9210 = vmatpush1.msra.mxu0 0.0
    %9211 = vmatprep.subr.mxu0 0.0
    %9212 = vmatpush1.msra.mxu0 0.0
    %9213 = vmatprep.subr.mxu0 0.0
    %9214 = vmatpush1.msra.mxu0 0.0
    %9215 = vmatprep.subr.mxu0 0.0
    %9216 = vmatpush1.msra.mxu0 0.0
    %9217 = vmatprep.subr.mxu0 0.0
    %9218 = vmatpush1.msra.mxu0 0.0
    %9219 = vmatprep.subr.mxu0 0.0
    %9220 = vmatpush1.msra.mxu0 0.0
    %9221 = vmatprep.subr.mxu0 0.0
    %9222 = vmatpush1.msra.mxu0 0.0
    %9223 = vmatprep.subr.mxu0 0.0
    %9224 = vmatpush1.msra.mxu0 0.0
    %9225 = vmatprep.subr.mxu0 0.0
    %9226 = vmatpush1.msra.mxu0 0.0
    %9227 = vmatprep.subr.mxu0 0.0
    %9228 = vmatpush1.msra.mxu0 0.0
    %9229 = vmatprep.subr.mxu0 0.0
    %9230 = vmatpush1.msra.mxu0 0.0
    %9231 = vmatprep.subr.mxu0 0.0
    %9232 = vmatpush1.msra.mxu0 0.0
    %9233 = vmatprep.subr.mxu0 0.0
    %9234 = vmatpush1.msra.mxu0 0.0
    %9235 = vmatprep.subr.mxu0 0.0
    %9236 = vmatpush1.msra.mxu0 0.0
    %9237 = vmatprep.subr.mxu0 0.0
    %9238 = vmatpush1.msra.mxu0 0.0
    %9239 = vmatprep.subr.mxu0 0.0
    %9240 = vmatpush1.msra.mxu0 0.0
    %9241 = vmatprep.subr.mxu0 0.0
    %9242 = vmatpush1.msra.mxu0 0.0
    %9243 = vmatprep.subr.mxu0 0.0
    %9244 = vmatpush1.msra.mxu0 0.0
    %9245 = vmatprep.subr.mxu0 0.0
    %9246 = vmatpush1.msra.mxu0 0.0
    %9247 = vmatprep.subr.mxu0 0.0
    %9248 = vmatpush1.msra.mxu0 0.0
    %9249 = vmatprep.subr.mxu0 0.0
    %9250 = vmatpush1.msra.mxu0 0.0
    %9251 = vmatprep.subr.mxu0 0.0
    %9252 = vmatpush1.msra.mxu0 0.0
    %9253 = vmatprep.subr.mxu0 0.0
    %9254 = vmatpush1.msra.mxu0 0.0
    %9255 = vmatprep.subr.mxu0 0.0
    %9256 = vmatpush1.msra.mxu0 0.0
    %9257 = vmatprep.subr.mxu0 0.0
    %9258 = vmatpush1.msra.mxu0 0.0
    %9259 = vmatprep.subr.mxu0 0.0
    %9260 = vmatpush1.msra.mxu0 0.0
    %9261 = vmatprep.subr.mxu0 0.0
    %9262 = vmatpush1.msra.mxu0 0.0
    %9263 = vmatprep.subr.mxu0 0.0
    %9264 = vmatpush1.msra.mxu0 0.0
    %9265 = vmatprep.subr.mxu0 0.0
    %9266 = vmatpush1.msra.mxu0 0.0
    %9267 = vmatprep.subr.mxu0 0.0
    %9268 = vmatpush1.msra.mxu0 0.0
    %9269 = vmatprep.subr.mxu0 0.0
    %9270 = vmatpush1.msra.mxu0 0.0
    %9271 = vmatprep.mubr.f32.mxu0 0.0
    %v9272 = vand.u32 %v8902, 4294901760
    %9273 = vmatmul.mubr.f32.gmra.mrb[0].mxu0 %v9272
    %v9274 = vpop.f32.mrb[0].mxu0
    %v9275 = vadd.f32 %v9201, %v9274
    %v9276 = vpop.f32.mrb[0].mxu0
    %9277 = vdwg.mxu0
    %9278 = vmatprep.subr.mxu0 0.0
    %v9279 = vand.u32 %v2044, 4294901760
    %9280 = vmatpush1.msra.mxu0 %v9279
    %9281 = vmatprep.subr.mxu0 0.0
    %9282 = vmatpush1.msra.mxu0 0.0
    %9283 = vmatprep.subr.mxu0 0.0
    %9284 = vmatpush1.msra.mxu0 0.0
    %9285 = vmatprep.subr.mxu0 0.0
    %9286 = vmatpush1.msra.mxu0 0.0
    %9287 = vmatprep.subr.mxu0 0.0
    %9288 = vmatpush1.msra.mxu0 0.0
    %9289 = vmatprep.subr.mxu0 0.0
    %9290 = vmatpush1.msra.mxu0 0.0
    %9291 = vmatprep.subr.mxu0 0.0
    %9292 = vmatpush1.msra.mxu0 0.0
    %9293 = vmatprep.subr.mxu0 0.0
    %9294 = vmatpush1.msra.mxu0 0.0
    %9295 = vmatprep.subr.mxu0 0.0
    %9296 = vmatpush1.msra.mxu0 0.0
    %9297 = vmatprep.subr.mxu0 0.0
    %9298 = vmatpush1.msra.mxu0 0.0
    %9299 = vmatprep.subr.mxu0 0.0
    %9300 = vmatpush1.msra.mxu0 0.0
    %9301 = vmatprep.subr.mxu0 0.0
    %9302 = vmatpush1.msra.mxu0 0.0
    %9303 = vmatprep.subr.mxu0 0.0
    %9304 = vmatpush1.msra.mxu0 0.0
    %9305 = vmatprep.subr.mxu0 0.0
    %9306 = vmatpush1.msra.mxu0 0.0
    %9307 = vmatprep.subr.mxu0 0.0
    %9308 = vmatpush1.msra.mxu0 0.0
    %9309 = vmatprep.subr.mxu0 0.0
    %9310 = vmatpush1.msra.mxu0 0.0
    %9311 = vmatprep.subr.mxu0 0.0
    %9312 = vmatpush1.msra.mxu0 0.0
    %9313 = vmatprep.subr.mxu0 0.0
    %9314 = vmatpush1.msra.mxu0 0.0
    %9315 = vmatprep.subr.mxu0 0.0
    %9316 = vmatpush1.msra.mxu0 0.0
    %9317 = vmatprep.subr.mxu0 0.0
    %9318 = vmatpush1.msra.mxu0 0.0
    %9319 = vmatprep.subr.mxu0 0.0
    %9320 = vmatpush1.msra.mxu0 0.0
    %9321 = vmatprep.subr.mxu0 0.0
    %9322 = vmatpush1.msra.mxu0 0.0
    %9323 = vmatprep.subr.mxu0 0.0
    %9324 = vmatpush1.msra.mxu0 0.0
    %9325 = vmatprep.subr.mxu0 0.0
    %9326 = vmatpush1.msra.mxu0 0.0
    %9327 = vmatprep.subr.mxu0 0.0
    %9328 = vmatpush1.msra.mxu0 0.0
    %9329 = vmatprep.subr.mxu0 0.0
    %9330 = vmatpush1.msra.mxu0 0.0
    %9331 = vmatprep.subr.mxu0 0.0
    %9332 = vmatpush1.msra.mxu0 0.0
    %9333 = vmatprep.subr.mxu0 0.0
    %9334 = vmatpush1.msra.mxu0 0.0
    %9335 = vmatprep.subr.mxu0 0.0
    %9336 = vmatpush1.msra.mxu0 0.0
    %9337 = vmatprep.subr.mxu0 0.0
    %9338 = vmatpush1.msra.mxu0 0.0
    %9339 = vmatprep.subr.mxu0 0.0
    %9340 = vmatpush1.msra.mxu0 0.0
    %9341 = vmatprep.subr.mxu0 0.0
    %9342 = vmatpush1.msra.mxu0 0.0
    %9343 = vmatprep.mubr.f32.mxu0 0.0
    %v9344 = vand.u32 %v8902, 4294901760
    %9345 = vmatmul.mubr.f32.gmra.mrb[0].mxu0 %v9344
    %v9346 = vpop.f32.mrb[0].mxu0
    %v9347 = vadd.f32 %v9275, %v9346
    %v9348 = vpop.f32.mrb[0].mxu0
    %9349 = vdwg.mxu0
    %v9350 = vcombine.low %v6204, %v7102
    %v9351 = vcombine.high %v6204, %v7102
    %v9353 = vunpack.c.l.s4 1983009808
    %v9354 = vunpack.c.0.s8 %v9353
    %v9355 = vlaneseq
    %v9356 = vshrl.u32 %v9355, 7
    %v9357 = vsub.s32 %v9354, %v9356
    %v9358 = vrot.slane %v9350, %v9357
    %v9360 = vunpack.c.l.s4 1983009808
    %v9361 = vunpack.c.0.s8 %v9360
    %v9362 = vlaneseq
    %v9363 = vshrl.u32 %v9362, 7
    %v9364 = vsub.s32 %v9361, %v9363
    %v9365 = vrot.slane %v9351, %v9364
    %v9366 = vcombine.low %v6653, %v7551
    %v9367 = vcombine.high %v6653, %v7551
    %v9369 = vunpack.c.l.s4 1983009808
    %v9370 = vunpack.c.0.s8 %v9369
    %v9371 = vlaneseq
    %v9372 = vshrl.u32 %v9371, 7
    %v9373 = vsub.s32 %v9370, %v9372
    %v9374 = vrot.slane %v9366, %v9373
    %v9376 = vunpack.c.l.s4 1983009808
    %v9377 = vunpack.c.0.s8 %v9376
    %v9378 = vlaneseq
    %v9379 = vshrl.u32 %v9378, 7
    %v9380 = vsub.s32 %v9377, %v9379
    %v9381 = vrot.slane %v9367, %v9380
    %v9382 = vcombine.low %v9358, %v9374
    %v9383 = vcombine.high %v9358, %v9374
    %v9385 = vunpack.c.l.s4 1934713408
    %v9386 = vunpack.c.0.s8 %v9385
    %v9387 = vlaneseq
    %v9388 = vshrl.u32 %v9387, 7
    %v9389 = vsub.s32 %v9386, %v9388
    %v9390 = vrot.slane %v9382, %v9389
    %v9392 = vunpack.c.l.s4 1934713408
    %v9393 = vunpack.c.0.s8 %v9392
    %v9394 = vlaneseq
    %v9395 = vshrl.u32 %v9394, 7
    %v9396 = vsub.s32 %v9393, %v9395
    %v9397 = vrot.slane %v9383, %v9396
    %v9398 = vcombine.low %v9365, %v9381
    %v9399 = vcombine.high %v9365, %v9381
    %v9401 = vunpack.c.l.s4 1934713408
    %v9402 = vunpack.c.0.s8 %v9401
    %v9403 = vlaneseq
    %v9404 = vshrl.u32 %v9403, 7
    %v9405 = vsub.s32 %v9402, %v9404
    %v9406 = vrot.slane %v9398, %v9405
    %v9408 = vunpack.c.l.s4 1934713408
    %v9409 = vunpack.c.0.s8 %v9408
    %v9410 = vlaneseq
    %v9411 = vshrl.u32 %v9410, 7
    %v9412 = vsub.s32 %v9409, %v9411
    %v9413 = vrot.slane %v9399, %v9412
    %v9414 = vcombine.high %v9390, 0.0
    %v9415 = vcombine.high %v9397, 0.0
    %v9416 = vcombine.high %v9406, 0.0
    %v9417 = vcombine.high %v9413, 0.0
    %v9418 = vcombine.low %v8000, %v8898
    %v9419 = vcombine.high %v8000, %v8898
    %v9421 = vunpack.c.l.s4 1983009808
    %v9422 = vunpack.c.0.s8 %v9421
    %v9423 = vlaneseq
    %v9424 = vshrl.u32 %v9423, 7
    %v9425 = vsub.s32 %v9422, %v9424
    %v9426 = vrot.slane %v9418, %v9425
    %v9428 = vunpack.c.l.s4 1983009808
    %v9429 = vunpack.c.0.s8 %v9428
    %v9430 = vlaneseq
    %v9431 = vshrl.u32 %v9430, 7
    %v9432 = vsub.s32 %v9429, %v9431
    %v9433 = vrot.slane %v9419, %v9432
    %v9434 = vcombine.low %v8449, %v9347
    %v9435 = vcombine.high %v8449, %v9347
    %v9437 = vunpack.c.l.s4 1983009808
    %v9438 = vunpack.c.0.s8 %v9437
    %v9439 = vlaneseq
    %v9440 = vshrl.u32 %v9439, 7
    %v9441 = vsub.s32 %v9438, %v9440
    %v9442 = vrot.slane %v9434, %v9441
    %v9444 = vunpack.c.l.s4 1983009808
    %v9445 = vunpack.c.0.s8 %v9444
    %v9446 = vlaneseq
    %v9447 = vshrl.u32 %v9446, 7
    %v9448 = vsub.s32 %v9445, %v9447
    %v9449 = vrot.slane %v9435, %v9448
    %v9450 = vcombine.low %v9426, %v9442
    %v9451 = vcombine.high %v9426, %v9442
    %v9453 = vunpack.c.l.s4 1934713408
    %v9454 = vunpack.c.0.s8 %v9453
    %v9455 = vlaneseq
    %v9456 = vshrl.u32 %v9455, 7
    %v9457 = vsub.s32 %v9454, %v9456
    %v9458 = vrot.slane %v9450, %v9457
    %v9460 = vunpack.c.l.s4 1934713408
    %v9461 = vunpack.c.0.s8 %v9460
    %v9462 = vlaneseq
    %v9463 = vshrl.u32 %v9462, 7
    %v9464 = vsub.s32 %v9461, %v9463
    %v9465 = vrot.slane %v9451, %v9464
    %v9466 = vcombine.low %v9433, %v9449
    %v9467 = vcombine.high %v9433, %v9449
    %v9469 = vunpack.c.l.s4 1934713408
    %v9470 = vunpack.c.0.s8 %v9469
    %v9471 = vlaneseq
    %v9472 = vshrl.u32 %v9471, 7
    %v9473 = vsub.s32 %v9470, %v9472
    %v9474 = vrot.slane %v9466, %v9473
    %v9476 = vunpack.c.l.s4 1934713408
    %v9477 = vunpack.c.0.s8 %v9476
    %v9478 = vlaneseq
    %v9479 = vshrl.u32 %v9478, 7
    %v9480 = vsub.s32 %v9477, %v9479
    %v9481 = vrot.slane %v9467, %v9480
    %v9482 = vcombine.high %v9458, 0.0
    %v9483 = vcombine.high %v9465, 0.0
    %v9484 = vcombine.high %v9474, 0.0
    %v9485 = vcombine.high %v9481, 0.0
    %v9486 = vcombine.low %v9390, %v9397
    %v9488 = vunpack.c.l.s4 1983009808
    %v9489 = vunpack.c.0.s8 %v9488
    %v9490 = vlaneseq
    %v9491 = vshrl.u32 %v9490, 7
    %v9492 = vsub.s32 %v9489, %v9491
    %v9493 = vrot.slane %v9486, %v9492
    %v9494 = vcombine.low %v9414, %v9415
    %v9496 = vunpack.c.l.s4 1983009808
    %v9497 = vunpack.c.0.s8 %v9496
    %v9498 = vlaneseq
    %v9499 = vshrl.u32 %v9498, 7
    %v9500 = vsub.s32 %v9497, %v9499
    %v9501 = vrot.slane %v9494, %v9500
    %v9502 = vcombine.low %v9406, %v9413
    %v9504 = vunpack.c.l.s4 1983009808
    %v9505 = vunpack.c.0.s8 %v9504
    %v9506 = vlaneseq
    %v9507 = vshrl.u32 %v9506, 7
    %v9508 = vsub.s32 %v9505, %v9507
    %v9509 = vrot.slane %v9502, %v9508
    %v9510 = vcombine.low %v9416, %v9417
    %v9512 = vunpack.c.l.s4 1983009808
    %v9513 = vunpack.c.0.s8 %v9512
    %v9514 = vlaneseq
    %v9515 = vshrl.u32 %v9514, 7
    %v9516 = vsub.s32 %v9513, %v9515
    %v9517 = vrot.slane %v9510, %v9516
    %v9518 = vcombine.low %v9493, %v9501
    %v9519 = vcombine.high %v9493, %v9501
    %v9521 = vunpack.c.l.s4 1934713408
    %v9522 = vunpack.c.0.s8 %v9521
    %v9523 = vlaneseq
    %v9524 = vshrl.u32 %v9523, 7
    %v9525 = vsub.s32 %v9522, %v9524
    %v9526 = vrot.slane %v9518, %v9525
    %v9528 = vunpack.c.l.s4 1934713408
    %v9529 = vunpack.c.0.s8 %v9528
    %v9530 = vlaneseq
    %v9531 = vshrl.u32 %v9530, 7
    %v9532 = vsub.s32 %v9529, %v9531
    %v9533 = vrot.slane %v9519, %v9532
    %v9534 = vcombine.low %v9509, %v9517
    %v9535 = vcombine.high %v9509, %v9517
    %v9537 = vunpack.c.l.s4 1934713408
    %v9538 = vunpack.c.0.s8 %v9537
    %v9539 = vlaneseq
    %v9540 = vshrl.u32 %v9539, 7
    %v9541 = vsub.s32 %v9538, %v9540
    %v9542 = vrot.slane %v9534, %v9541
    %v9544 = vunpack.c.l.s4 1934713408
    %v9545 = vunpack.c.0.s8 %v9544
    %v9546 = vlaneseq
    %v9547 = vshrl.u32 %v9546, 7
    %v9548 = vsub.s32 %v9545, %v9547
    %v9549 = vrot.slane %v9535, %v9548
    %v9550 = vcombine.low %v9526, %v9542
    %v9551 = vcombine.high %v9526, %v9542
    %v9552 = vcombine.low %v9533, %v9549
    %v9553 = vcombine.high %v9533, %v9549
    %v9554 = vcombine.low %v9458, %v9465
    %v9556 = vunpack.c.l.s4 1983009808
    %v9557 = vunpack.c.0.s8 %v9556
    %v9558 = vlaneseq
    %v9559 = vshrl.u32 %v9558, 7
    %v9560 = vsub.s32 %v9557, %v9559
    %v9561 = vrot.slane %v9554, %v9560
    %v9562 = vcombine.low %v9482, %v9483
    %v9564 = vunpack.c.l.s4 1983009808
    %v9565 = vunpack.c.0.s8 %v9564
    %v9566 = vlaneseq
    %v9567 = vshrl.u32 %v9566, 7
    %v9568 = vsub.s32 %v9565, %v9567
    %v9569 = vrot.slane %v9562, %v9568
    %v9570 = vcombine.low %v9474, %v9481
    %v9572 = vunpack.c.l.s4 1983009808
    %v9573 = vunpack.c.0.s8 %v9572
    %v9574 = vlaneseq
    %v9575 = vshrl.u32 %v9574, 7
    %v9576 = vsub.s32 %v9573, %v9575
    %v9577 = vrot.slane %v9570, %v9576
    %v9578 = vcombine.low %v9484, %v9485
    %v9580 = vunpack.c.l.s4 1983009808
    %v9581 = vunpack.c.0.s8 %v9580
    %v9582 = vlaneseq
    %v9583 = vshrl.u32 %v9582, 7
    %v9584 = vsub.s32 %v9581, %v9583
    %v9585 = vrot.slane %v9578, %v9584
    %v9586 = vcombine.low %v9561, %v9569
    %v9587 = vcombine.high %v9561, %v9569
    %v9589 = vunpack.c.l.s4 1934713408
    %v9590 = vunpack.c.0.s8 %v9589
    %v9591 = vlaneseq
    %v9592 = vshrl.u32 %v9591, 7
    %v9593 = vsub.s32 %v9590, %v9592
    %v9594 = vrot.slane %v9586, %v9593
    %v9596 = vunpack.c.l.s4 1934713408
    %v9597 = vunpack.c.0.s8 %v9596
    %v9598 = vlaneseq
    %v9599 = vshrl.u32 %v9598, 7
    %v9600 = vsub.s32 %v9597, %v9599
    %v9601 = vrot.slane %v9587, %v9600
    %v9602 = vcombine.low %v9577, %v9585
    %v9603 = vcombine.high %v9577, %v9585
    %v9605 = vunpack.c.l.s4 1934713408
    %v9606 = vunpack.c.0.s8 %v9605
    %v9607 = vlaneseq
    %v9608 = vshrl.u32 %v9607, 7
    %v9609 = vsub.s32 %v9606, %v9608
    %v9610 = vrot.slane %v9602, %v9609
    %v9612 = vunpack.c.l.s4 1934713408
    %v9613 = vunpack.c.0.s8 %v9612
    %v9614 = vlaneseq
    %v9615 = vshrl.u32 %v9614, 7
    %v9616 = vsub.s32 %v9613, %v9615
    %v9617 = vrot.slane %v9603, %v9616
    %v9618 = vcombine.low %v9594, %v9610
    %v9619 = vcombine.high %v9594, %v9610
    %v9620 = vcombine.low %v9601, %v9617
    %v9621 = vcombine.high %v9601, %v9617
    %9624 = vrot.lane.b32.xlu0 %v9551, 8
    %v9625 = vpop.permute.xlu0 %9624
    %9626 = vrot.lane.b32.xlu0 %v9619, 8
    %v9627 = vpop.permute.xlu0 %9626
    %9632 = vrot.lane.b32.xlu0 %v9552, 16
    %v9633 = vpop.permute.xlu0 %9632
    %9634 = vrot.lane.b32.xlu0 %v9620, 16
    %v9635 = vpop.permute.xlu0 %9634
    %9640 = vrot.lane.b32.xlu0 %v9553, 24
    %v9641 = vpop.permute.xlu0 %9640
    %9642 = vrot.lane.b32.xlu0 %v9621, 24
    %v9643 = vpop.permute.xlu0 %9642
    %v9646 = vsel %vm2045, %v9550, %v9625
    %v9647 = vsel %vm2045, %v9618, %v9627
    %vm9648 = vcmask 130048
    %v9649 = vsel %vm9648, %v9646, %v9633
    %v9650 = vsel %vm9648, %v9647, %v9635
    %vm9651 = vcmask 195584
    %v9652 = vsel %vm9651, %v9649, %v9641
    %v9653 = vsel %vm9651, %v9650, %v9643
    %9654 = vrot.lane.b32.xlu0 %v62, 32
    %v9655 = vpop.permute.xlu0 %9654
    %9656 = vrot.lane.b32.xlu0 %v63, 32
    %v9657 = vpop.permute.xlu0 %9656
    %9658 = vrot.lane.b32.xlu0 %v64, 32
    %v9659 = vpop.permute.xlu0 %9658
    %9660 = vrot.lane.b32.xlu0 %v65, 32
    %v9661 = vpop.permute.xlu0 %9660
    %9666 = vrot.lane.b32.xlu0 %v75, 32
    %v9667 = vpop.permute.xlu0 %9666
    %v9670 = vsel %vm77, %v9652, 0
    %v9673 = vsel %vm77, %v9653, 0
    %9675 = vmatprep.subr.mxu0 0.0
    %v9676 = vand.u32 %v9655, 4294901760
    %9677 = vmatpush1.msra.mxu0 %v9676
    %9678 = vmatprep.subr.mxu0 0.0
    %v9679 = vand.u32 %v9657, 4294901760
    %9680 = vmatpush1.msra.mxu0 %v9679
    %9681 = vmatprep.subr.mxu0 0.0
    %v9682 = vand.u32 %v9659, 4294901760
    %9683 = vmatpush1.msra.mxu0 %v9682
    %9684 = vmatprep.subr.mxu0 0.0
    %v9685 = vand.u32 %v9661, 4294901760
    %9686 = vmatpush1.msra.mxu0 %v9685
    %9687 = vmatprep.subr.mxu0 0.0
    %9688 = vmatpush1.msra.mxu0 0.0
    %9689 = vmatprep.subr.mxu0 0.0
    %9690 = vmatpush1.msra.mxu0 0.0
    %9691 = vmatprep.subr.mxu0 0.0
    %9692 = vmatpush1.msra.mxu0 0.0
    %9693 = vmatprep.subr.mxu0 0.0
    %9694 = vmatpush1.msra.mxu0 0.0
    %9695 = vmatprep.subr.mxu0 0.0
    %9696 = vmatpush1.msra.mxu0 0.0
    %9697 = vmatprep.subr.mxu0 0.0
    %9698 = vmatpush1.msra.mxu0 0.0
    %9699 = vmatprep.subr.mxu0 0.0
    %9700 = vmatpush1.msra.mxu0 0.0
    %9701 = vmatprep.subr.mxu0 0.0
    %9702 = vmatpush1.msra.mxu0 0.0
    %9703 = vmatprep.subr.mxu0 0.0
    %9704 = vmatpush1.msra.mxu0 0.0
    %9705 = vmatprep.subr.mxu0 0.0
    %9706 = vmatpush1.msra.mxu0 0.0
    %9707 = vmatprep.subr.mxu0 0.0
    %9708 = vmatpush1.msra.mxu0 0.0
    %9709 = vmatprep.subr.mxu0 0.0
    %9710 = vmatpush1.msra.mxu0 0.0
    %9711 = vmatprep.subr.mxu0 0.0
    %9712 = vmatpush1.msra.mxu0 0.0
    %9713 = vmatprep.subr.mxu0 0.0
    %9714 = vmatpush1.msra.mxu0 0.0
    %9715 = vmatprep.subr.mxu0 0.0
    %9716 = vmatpush1.msra.mxu0 0.0
    %9717 = vmatprep.subr.mxu0 0.0
    %9718 = vmatpush1.msra.mxu0 0.0
    %9719 = vmatprep.subr.mxu0 0.0
    %9720 = vmatpush1.msra.mxu0 0.0
    %9721 = vmatprep.subr.mxu0 0.0
    %9722 = vmatpush1.msra.mxu0 0.0
    %9723 = vmatprep.subr.mxu0 0.0
    %9724 = vmatpush1.msra.mxu0 0.0
    %9725 = vmatprep.subr.mxu0 0.0
    %9726 = vmatpush1.msra.mxu0 0.0
    %9727 = vmatprep.subr.mxu0 0.0
    %9728 = vmatpush1.msra.mxu0 0.0
    %9729 = vmatprep.subr.mxu0 0.0
    %9730 = vmatpush1.msra.mxu0 0.0
    %9731 = vmatprep.subr.mxu0 0.0
    %9732 = vmatpush1.msra.mxu0 0.0
    %9733 = vmatprep.subr.mxu0 0.0
    %9734 = vmatpush1.msra.mxu0 0.0
    %9735 = vmatprep.subr.mxu0 0.0
    %9736 = vmatpush1.msra.mxu0 0.0
    %9737 = vmatprep.subr.mxu0 0.0
    %9738 = vmatpush1.msra.mxu0 0.0
    %9739 = vmatprep.subr.mxu0 0.0
    %9740 = vmatpush1.msra.mxu0 0.0
    %9741 = vmatprep.subr.mxu0 0.0
    %9742 = vmatpush1.msra.mxu0 0.0
    %9743 = vmatprep.mubr.f32.mxu0 0.0
    %v9744 = vand.u32 %v9670, 4294901760
    %v9745 = vsub.f32 %v9670, %v9744
    %v9746 = vand.u32 %v9745, 4294901760
    %v9747 = vsub.f32 %v9745, %v9746
    %v9748 = vand.u32 %v9747, 4294901760
    %9749 = vmatmul.mubr.f32.gmra.mrb[0].mxu0 %v9748
    %v9750 = vpop.f32.mrb[0].mxu0
    %v9751 = vadd.f32 %v9667, %v9750
    %v9752 = vpop.f32.mrb[0].mxu0
    %9753 = vmatprep.mubr.f32.mxu0 0.0
    %v9754 = vand.u32 %v9673, 4294901760
    %v9755 = vsub.f32 %v9673, %v9754
    %v9756 = vand.u32 %v9755, 4294901760
    %v9757 = vsub.f32 %v9755, %v9756
    %v9758 = vand.u32 %v9757, 4294901760
    %9759 = vmatmul.mubr.f32.gmra.mrb[0].mxu0 %v9758
    %v9760 = vpop.f32.mrb[0].mxu0
    %v9761 = vadd.f32 %v9667, %v9760
    %v9762 = vpop.f32.mrb[0].mxu0
    %9763 = vdwg.mxu0
    %9764 = vmatprep.subr.mxu0 0.0
    %v9765 = vand.u32 %v9655, 4294901760
    %v9766 = vsub.f32 %v9655, %v9765
    %v9767 = vand.u32 %v9766, 4294901760
    %v9768 = vsub.f32 %v9766, %v9767
    %v9769 = vand.u32 %v9768, 4294901760
    %9770 = vmatpush1.msra.mxu0 %v9769
    %9771 = vmatprep.subr.mxu0 0.0
    %v9772 = vand.u32 %v9657, 4294901760
    %v9773 = vsub.f32 %v9657, %v9772
    %v9774 = vand.u32 %v9773, 4294901760
    %v9775 = vsub.f32 %v9773, %v9774
    %v9776 = vand.u32 %v9775, 4294901760
    %9777 = vmatpush1.msra.mxu0 %v9776
    %9778 = vmatprep.subr.mxu0 0.0
    %v9779 = vand.u32 %v9659, 4294901760
    %v9780 = vsub.f32 %v9659, %v9779
    %v9781 = vand.u32 %v9780, 4294901760
    %v9782 = vsub.f32 %v9780, %v9781
    %v9783 = vand.u32 %v9782, 4294901760
    %9784 = vmatpush1.msra.mxu0 %v9783
    %9785 = vmatprep.subr.mxu0 0.0
    %v9786 = vand.u32 %v9661, 4294901760
    %v9787 = vsub.f32 %v9661, %v9786
    %v9788 = vand.u32 %v9787, 4294901760
    %v9789 = vsub.f32 %v9787, %v9788
    %v9790 = vand.u32 %v9789, 4294901760
    %9791 = vmatpush1.msra.mxu0 %v9790
    %9792 = vmatprep.subr.mxu0 0.0
    %9793 = vmatpush1.msra.mxu0 0.0
    %9794 = vmatprep.subr.mxu0 0.0
    %9795 = vmatpush1.msra.mxu0 0.0
    %9796 = vmatprep.subr.mxu0 0.0
    %9797 = vmatpush1.msra.mxu0 0.0
    %9798 = vmatprep.subr.mxu0 0.0
    %9799 = vmatpush1.msra.mxu0 0.0
    %9800 = vmatprep.subr.mxu0 0.0
    %9801 = vmatpush1.msra.mxu0 0.0
    %9802 = vmatprep.subr.mxu0 0.0
    %9803 = vmatpush1.msra.mxu0 0.0
    %9804 = vmatprep.subr.mxu0 0.0
    %9805 = vmatpush1.msra.mxu0 0.0
    %9806 = vmatprep.subr.mxu0 0.0
    %9807 = vmatpush1.msra.mxu0 0.0
    %9808 = vmatprep.subr.mxu0 0.0
    %9809 = vmatpush1.msra.mxu0 0.0
    %9810 = vmatprep.subr.mxu0 0.0
    %9811 = vmatpush1.msra.mxu0 0.0
    %9812 = vmatprep.subr.mxu0 0.0
    %9813 = vmatpush1.msra.mxu0 0.0
    %9814 = vmatprep.subr.mxu0 0.0
    %9815 = vmatpush1.msra.mxu0 0.0
    %9816 = vmatprep.subr.mxu0 0.0
    %9817 = vmatpush1.msra.mxu0 0.0
    %9818 = vmatprep.subr.mxu0 0.0
    %9819 = vmatpush1.msra.mxu0 0.0
    %9820 = vmatprep.subr.mxu0 0.0
    %9821 = vmatpush1.msra.mxu0 0.0
    %9822 = vmatprep.subr.mxu0 0.0
    %9823 = vmatpush1.msra.mxu0 0.0
    %9824 = vmatprep.subr.mxu0 0.0
    %9825 = vmatpush1.msra.mxu0 0.0
    %9826 = vmatprep.subr.mxu0 0.0
    %9827 = vmatpush1.msra.mxu0 0.0
    %9828 = vmatprep.subr.mxu0 0.0
    %9829 = vmatpush1.msra.mxu0 0.0
    %9830 = vmatprep.subr.mxu0 0.0
    %9831 = vmatpush1.msra.mxu0 0.0
    %9832 = vmatprep.subr.mxu0 0.0
    %9833 = vmatpush1.msra.mxu0 0.0
    %9834 = vmatprep.subr.mxu0 0.0
    %9835 = vmatpush1.msra.mxu0 0.0
    %9836 = vmatprep.subr.mxu0 0.0
    %9837 = vmatpush1.msra.mxu0 0.0
    %9838 = vmatprep.subr.mxu0 0.0
    %9839 = vmatpush1.msra.mxu0 0.0
    %9840 = vmatprep.subr.mxu0 0.0
    %9841 = vmatpush1.msra.mxu0 0.0
    %9842 = vmatprep.subr.mxu0 0.0
    %9843 = vmatpush1.msra.mxu0 0.0
    %9844 = vmatprep.subr.mxu0 0.0
    %9845 = vmatpush1.msra.mxu0 0.0
    %9846 = vmatprep.subr.mxu0 0.0
    %9847 = vmatpush1.msra.mxu0 0.0
    %9848 = vmatprep.mubr.f32.mxu0 0.0
    %v9849 = vand.u32 %v9670, 4294901760
    %9850 = vmatmul.mubr.f32.gmra.mrb[0].mxu0 %v9849
    %v9851 = vpop.f32.mrb[0].mxu0
    %v9852 = vadd.f32 %v9751, %v9851
    %v9853 = vpop.f32.mrb[0].mxu0
    %9854 = vmatprep.mubr.f32.mxu0 0.0
    %v9855 = vand.u32 %v9673, 4294901760
    %9856 = vmatmul.mubr.f32.gmra.mrb[0].mxu0 %v9855
    %v9857 = vpop.f32.mrb[0].mxu0
    %v9858 = vadd.f32 %v9761, %v9857
    %v9859 = vpop.f32.mrb[0].mxu0
    %9860 = vdwg.mxu0
    %9861 = vmatprep.subr.mxu0 0.0
    %v9862 = vand.u32 %v9655, 4294901760
    %v9863 = vsub.f32 %v9655, %v9862
    %9864 = vmatpush1.msra.mxu0 %v9863
    %9865 = vmatprep.subr.mxu0 0.0
    %v9866 = vand.u32 %v9657, 4294901760
    %v9867 = vsub.f32 %v9657, %v9866
    %9868 = vmatpush1.msra.mxu0 %v9867
    %9869 = vmatprep.subr.mxu0 0.0
    %v9870 = vand.u32 %v9659, 4294901760
    %v9871 = vsub.f32 %v9659, %v9870
    %9872 = vmatpush1.msra.mxu0 %v9871
    %9873 = vmatprep.subr.mxu0 0.0
    %v9874 = vand.u32 %v9661, 4294901760
    %v9875 = vsub.f32 %v9661, %v9874
    %9876 = vmatpush1.msra.mxu0 %v9875
    %9877 = vmatprep.subr.mxu0 0.0
    %9878 = vmatpush1.msra.mxu0 0.0
    %9879 = vmatprep.subr.mxu0 0.0
    %9880 = vmatpush1.msra.mxu0 0.0
    %9881 = vmatprep.subr.mxu0 0.0
    %9882 = vmatpush1.msra.mxu0 0.0
    %9883 = vmatprep.subr.mxu0 0.0
    %9884 = vmatpush1.msra.mxu0 0.0
    %9885 = vmatprep.subr.mxu0 0.0
    %9886 = vmatpush1.msra.mxu0 0.0
    %9887 = vmatprep.subr.mxu0 0.0
    %9888 = vmatpush1.msra.mxu0 0.0
    %9889 = vmatprep.subr.mxu0 0.0
    %9890 = vmatpush1.msra.mxu0 0.0
    %9891 = vmatprep.subr.mxu0 0.0
    %9892 = vmatpush1.msra.mxu0 0.0
    %9893 = vmatprep.subr.mxu0 0.0
    %9894 = vmatpush1.msra.mxu0 0.0
    %9895 = vmatprep.subr.mxu0 0.0
    %9896 = vmatpush1.msra.mxu0 0.0
    %9897 = vmatprep.subr.mxu0 0.0
    %9898 = vmatpush1.msra.mxu0 0.0
    %9899 = vmatprep.subr.mxu0 0.0
    %9900 = vmatpush1.msra.mxu0 0.0
    %9901 = vmatprep.subr.mxu0 0.0
    %9902 = vmatpush1.msra.mxu0 0.0
    %9903 = vmatprep.subr.mxu0 0.0
    %9904 = vmatpush1.msra.mxu0 0.0
    %9905 = vmatprep.subr.mxu0 0.0
    %9906 = vmatpush1.msra.mxu0 0.0
    %9907 = vmatprep.subr.mxu0 0.0
    %9908 = vmatpush1.msra.mxu0 0.0
    %9909 = vmatprep.subr.mxu0 0.0
    %9910 = vmatpush1.msra.mxu0 0.0
    %9911 = vmatprep.subr.mxu0 0.0
    %9912 = vmatpush1.msra.mxu0 0.0
    %9913 = vmatprep.subr.mxu0 0.0
    %9914 = vmatpush1.msra.mxu0 0.0
    %9915 = vmatprep.subr.mxu0 0.0
    %9916 = vmatpush1.msra.mxu0 0.0
    %9917 = vmatprep.subr.mxu0 0.0
    %9918 = vmatpush1.msra.mxu0 0.0
    %9919 = vmatprep.subr.mxu0 0.0
    %9920 = vmatpush1.msra.mxu0 0.0
    %9921 = vmatprep.subr.mxu0 0.0
    %9922 = vmatpush1.msra.mxu0 0.0
    %9923 = vmatprep.subr.mxu0 0.0
    %9924 = vmatpush1.msra.mxu0 0.0
    %9925 = vmatprep.subr.mxu0 0.0
    %9926 = vmatpush1.msra.mxu0 0.0
    %9927 = vmatprep.subr.mxu0 0.0
    %9928 = vmatpush1.msra.mxu0 0.0
    %9929 = vmatprep.subr.mxu0 0.0
    %9930 = vmatpush1.msra.mxu0 0.0
    %9931 = vmatprep.subr.mxu0 0.0
    %9932 = vmatpush1.msra.mxu0 0.0
    %9933 = vmatprep.mubr.f32.mxu0 0.0
    %v9934 = vand.u32 %v9670, 4294901760
    %v9935 = vsub.f32 %v9670, %v9934
    %9936 = vmatmul.mubr.f32.gmra.mrb[0].mxu0 %v9935
    %v9937 = vpop.f32.mrb[0].mxu0
    %v9938 = vadd.f32 %v9852, %v9937
    %v9939 = vpop.f32.mrb[0].mxu0
    %9940 = vmatprep.mubr.f32.mxu0 0.0
    %v9941 = vand.u32 %v9673, 4294901760
    %v9942 = vsub.f32 %v9673, %v9941
    %9943 = vmatmul.mubr.f32.gmra.mrb[0].mxu0 %v9942
    %v9944 = vpop.f32.mrb[0].mxu0
    %v9945 = vadd.f32 %v9858, %v9944
    %v9946 = vpop.f32.mrb[0].mxu0
    %9947 = vdwg.mxu0
    %9948 = vmatprep.subr.mxu0 0.0
    %v9949 = vand.u32 %v9655, 4294901760
    %9950 = vmatpush1.msra.mxu0 %v9949
    %9951 = vmatprep.subr.mxu0 0.0
    %v9952 = vand.u32 %v9657, 4294901760
    %9953 = vmatpush1.msra.mxu0 %v9952
    %9954 = vmatprep.subr.mxu0 0.0
    %v9955 = vand.u32 %v9659, 4294901760
    %9956 = vmatpush1.msra.mxu0 %v9955
    %9957 = vmatprep.subr.mxu0 0.0
    %v9958 = vand.u32 %v9661, 4294901760
    %9959 = vmatpush1.msra.mxu0 %v9958
    %9960 = vmatprep.subr.mxu0 0.0
    %9961 = vmatpush1.msra.mxu0 0.0
    %9962 = vmatprep.subr.mxu0 0.0
    %9963 = vmatpush1.msra.mxu0 0.0
    %9964 = vmatprep.subr.mxu0 0.0
    %9965 = vmatpush1.msra.mxu0 0.0
    %9966 = vmatprep.subr.mxu0 0.0
    %9967 = vmatpush1.msra.mxu0 0.0
    %9968 = vmatprep.subr.mxu0 0.0
    %9969 = vmatpush1.msra.mxu0 0.0
    %9970 = vmatprep.subr.mxu0 0.0
    %9971 = vmatpush1.msra.mxu0 0.0
    %9972 = vmatprep.subr.mxu0 0.0
    %9973 = vmatpush1.msra.mxu0 0.0
    %9974 = vmatprep.subr.mxu0 0.0
    %9975 = vmatpush1.msra.mxu0 0.0
    %9976 = vmatprep.subr.mxu0 0.0
    %9977 = vmatpush1.msra.mxu0 0.0
    %9978 = vmatprep.subr.mxu0 0.0
    %9979 = vmatpush1.msra.mxu0 0.0
    %9980 = vmatprep.subr.mxu0 0.0
    %9981 = vmatpush1.msra.mxu0 0.0
    %9982 = vmatprep.subr.mxu0 0.0
    %9983 = vmatpush1.msra.mxu0 0.0
    %9984 = vmatprep.subr.mxu0 0.0
    %9985 = vmatpush1.msra.mxu0 0.0
    %9986 = vmatprep.subr.mxu0 0.0
    %9987 = vmatpush1.msra.mxu0 0.0
    %9988 = vmatprep.subr.mxu0 0.0
    %9989 = vmatpush1.msra.mxu0 0.0
    %9990 = vmatprep.subr.mxu0 0.0
    %9991 = vmatpush1.msra.mxu0 0.0
    %9992 = vmatprep.subr.mxu0 0.0
    %9993 = vmatpush1.msra.mxu0 0.0
    %9994 = vmatprep.subr.mxu0 0.0
    %9995 = vmatpush1.msra.mxu0 0.0
    %9996 = vmatprep.subr.mxu0 0.0
    %9997 = vmatpush1.msra.mxu0 0.0
    %9998 = vmatprep.subr.mxu0 0.0
    %9999 = vmatpush1.msra.mxu0 0.0
    %10000 = vmatprep.subr.mxu0 0.0
    %10001 = vmatpush1.msra.mxu0 0.0
    %10002 = vmatprep.subr.mxu0 0.0
    %10003 = vmatpush1.msra.mxu0 0.0
    %10004 = vmatprep.subr.mxu0 0.0
    %10005 = vmatpush1.msra.mxu0 0.0
    %10006 = vmatprep.subr.mxu0 0.0
    %10007 = vmatpush1.msra.mxu0 0.0
    %10008 = vmatprep.subr.mxu0 0.0
    %10009 = vmatpush1.msra.mxu0 0.0
    %10010 = vmatprep.subr.mxu0 0.0
    %10011 = vmatpush1.msra.mxu0 0.0
    %10012 = vmatprep.subr.mxu0 0.0
    %10013 = vmatpush1.msra.mxu0 0.0
    %10014 = vmatprep.subr.mxu0 0.0
    %10015 = vmatpush1.msra.mxu0 0.0
    %10016 = vmatprep.mubr.f32.mxu0 0.0
    %v10017 = vand.u32 %v9670, 4294901760
    %v10018 = vsub.f32 %v9670, %v10017
    %v10019 = vand.u32 %v10018, 4294901760
    %10020 = vmatmul.mubr.f32.gmra.mrb[0].mxu0 %v10019
    %v10021 = vpop.f32.mrb[0].mxu0
    %v10022 = vadd.f32 %v9938, %v10021
    %v10023 = vpop.f32.mrb[0].mxu0
    %10024 = vmatprep.mubr.f32.mxu0 0.0
    %v10025 = vand.u32 %v9673, 4294901760
    %v10026 = vsub.f32 %v9673, %v10025
    %v10027 = vand.u32 %v10026, 4294901760
    %10028 = vmatmul.mubr.f32.gmra.mrb[0].mxu0 %v10027
    %v10029 = vpop.f32.mrb[0].mxu0
    %v10030 = vadd.f32 %v9945, %v10029
    %v10031 = vpop.f32.mrb[0].mxu0
    %10032 = vdwg.mxu0
    %10033 = vmatprep.subr.mxu0 0.0
    %v10034 = vand.u32 %v9655, 4294901760
    %v10035 = vsub.f32 %v9655, %v10034
    %v10036 = vand.u32 %v10035, 4294901760
    %10037 = vmatpush1.msra.mxu0 %v10036
    %10038 = vmatprep.subr.mxu0 0.0
    %v10039 = vand.u32 %v9657, 4294901760
    %v10040 = vsub.f32 %v9657, %v10039
    %v10041 = vand.u32 %v10040, 4294901760
    %10042 = vmatpush1.msra.mxu0 %v10041
    %10043 = vmatprep.subr.mxu0 0.0
    %v10044 = vand.u32 %v9659, 4294901760
    %v10045 = vsub.f32 %v9659, %v10044
    %v10046 = vand.u32 %v10045, 4294901760
    %10047 = vmatpush1.msra.mxu0 %v10046
    %10048 = vmatprep.subr.mxu0 0.0
    %v10049 = vand.u32 %v9661, 4294901760
    %v10050 = vsub.f32 %v9661, %v10049
    %v10051 = vand.u32 %v10050, 4294901760
    %10052 = vmatpush1.msra.mxu0 %v10051
    %10053 = vmatprep.subr.mxu0 0.0
    %10054 = vmatpush1.msra.mxu0 0.0
    %10055 = vmatprep.subr.mxu0 0.0
    %10056 = vmatpush1.msra.mxu0 0.0
    %10057 = vmatprep.subr.mxu0 0.0
    %10058 = vmatpush1.msra.mxu0 0.0
    %10059 = vmatprep.subr.mxu0 0.0
    %10060 = vmatpush1.msra.mxu0 0.0
    %10061 = vmatprep.subr.mxu0 0.0
    %10062 = vmatpush1.msra.mxu0 0.0
    %10063 = vmatprep.subr.mxu0 0.0
    %10064 = vmatpush1.msra.mxu0 0.0
    %10065 = vmatprep.subr.mxu0 0.0
    %10066 = vmatpush1.msra.mxu0 0.0
    %10067 = vmatprep.subr.mxu0 0.0
    %10068 = vmatpush1.msra.mxu0 0.0
    %10069 = vmatprep.subr.mxu0 0.0
    %10070 = vmatpush1.msra.mxu0 0.0
    %10071 = vmatprep.subr.mxu0 0.0
    %10072 = vmatpush1.msra.mxu0 0.0
    %10073 = vmatprep.subr.mxu0 0.0
    %10074 = vmatpush1.msra.mxu0 0.0
    %10075 = vmatprep.subr.mxu0 0.0
    %10076 = vmatpush1.msra.mxu0 0.0
    %10077 = vmatprep.subr.mxu0 0.0
    %10078 = vmatpush1.msra.mxu0 0.0
    %10079 = vmatprep.subr.mxu0 0.0
    %10080 = vmatpush1.msra.mxu0 0.0
    %10081 = vmatprep.subr.mxu0 0.0
    %10082 = vmatpush1.msra.mxu0 0.0
    %10083 = vmatprep.subr.mxu0 0.0
    %10084 = vmatpush1.msra.mxu0 0.0
    %10085 = vmatprep.subr.mxu0 0.0
    %10086 = vmatpush1.msra.mxu0 0.0
    %10087 = vmatprep.subr.mxu0 0.0
    %10088 = vmatpush1.msra.mxu0 0.0
    %10089 = vmatprep.subr.mxu0 0.0
    %10090 = vmatpush1.msra.mxu0 0.0
    %10091 = vmatprep.subr.mxu0 0.0
    %10092 = vmatpush1.msra.mxu0 0.0
    %10093 = vmatprep.subr.mxu0 0.0
    %10094 = vmatpush1.msra.mxu0 0.0
    %10095 = vmatprep.subr.mxu0 0.0
    %10096 = vmatpush1.msra.mxu0 0.0
    %10097 = vmatprep.subr.mxu0 0.0
    %10098 = vmatpush1.msra.mxu0 0.0
    %10099 = vmatprep.subr.mxu0 0.0
    %10100 = vmatpush1.msra.mxu0 0.0
    %10101 = vmatprep.subr.mxu0 0.0
    %10102 = vmatpush1.msra.mxu0 0.0
    %10103 = vmatprep.subr.mxu0 0.0
    %10104 = vmatpush1.msra.mxu0 0.0
    %10105 = vmatprep.subr.mxu0 0.0
    %10106 = vmatpush1.msra.mxu0 0.0
    %10107 = vmatprep.subr.mxu0 0.0
    %10108 = vmatpush1.msra.mxu0 0.0
    %10109 = vmatprep.mubr.f32.mxu0 0.0
    %v10110 = vand.u32 %v9670, 4294901760
    %10111 = vmatmul.mubr.f32.gmra.mrb[0].mxu0 %v10110
    %v10112 = vpop.f32.mrb[0].mxu0
    %v10113 = vadd.f32 %v10022, %v10112
    %v10114 = vpop.f32.mrb[0].mxu0
    %10115 = vmatprep.mubr.f32.mxu0 0.0
    %v10116 = vand.u32 %v9673, 4294901760
    %10117 = vmatmul.mubr.f32.gmra.mrb[0].mxu0 %v10116
    %v10118 = vpop.f32.mrb[0].mxu0
    %v10119 = vadd.f32 %v10030, %v10118
    %v10120 = vpop.f32.mrb[0].mxu0
    %10121 = vdwg.mxu0
    %10122 = vmatprep.subr.mxu0 0.0
    %v10123 = vand.u32 %v9655, 4294901760
    %10124 = vmatpush1.msra.mxu0 %v10123
    %10125 = vmatprep.subr.mxu0 0.0
    %v10126 = vand.u32 %v9657, 4294901760
    %10127 = vmatpush1.msra.mxu0 %v10126
    %10128 = vmatprep.subr.mxu0 0.0
    %v10129 = vand.u32 %v9659, 4294901760
    %10130 = vmatpush1.msra.mxu0 %v10129
    %10131 = vmatprep.subr.mxu0 0.0
    %v10132 = vand.u32 %v9661, 4294901760
    %10133 = vmatpush1.msra.mxu0 %v10132
    %10134 = vmatprep.subr.mxu0 0.0
    %10135 = vmatpush1.msra.mxu0 0.0
    %10136 = vmatprep.subr.mxu0 0.0
    %10137 = vmatpush1.msra.mxu0 0.0
    %10138 = vmatprep.subr.mxu0 0.0
    %10139 = vmatpush1.msra.mxu0 0.0
    %10140 = vmatprep.subr.mxu0 0.0
    %10141 = vmatpush1.msra.mxu0 0.0
    %10142 = vmatprep.subr.mxu0 0.0
    %10143 = vmatpush1.msra.mxu0 0.0
    %10144 = vmatprep.subr.mxu0 0.0
    %10145 = vmatpush1.msra.mxu0 0.0
    %10146 = vmatprep.subr.mxu0 0.0
    %10147 = vmatpush1.msra.mxu0 0.0
    %10148 = vmatprep.subr.mxu0 0.0
    %10149 = vmatpush1.msra.mxu0 0.0
    %10150 = vmatprep.subr.mxu0 0.0
    %10151 = vmatpush1.msra.mxu0 0.0
    %10152 = vmatprep.subr.mxu0 0.0
    %10153 = vmatpush1.msra.mxu0 0.0
    %10154 = vmatprep.subr.mxu0 0.0
    %10155 = vmatpush1.msra.mxu0 0.0
    %10156 = vmatprep.subr.mxu0 0.0
    %10157 = vmatpush1.msra.mxu0 0.0
    %10158 = vmatprep.subr.mxu0 0.0
    %10159 = vmatpush1.msra.mxu0 0.0
    %10160 = vmatprep.subr.mxu0 0.0
    %10161 = vmatpush1.msra.mxu0 0.0
    %10162 = vmatprep.subr.mxu0 0.0
    %10163 = vmatpush1.msra.mxu0 0.0
    %10164 = vmatprep.subr.mxu0 0.0
    %10165 = vmatpush1.msra.mxu0 0.0
    %10166 = vmatprep.subr.mxu0 0.0
    %10167 = vmatpush1.msra.mxu0 0.0
    %10168 = vmatprep.subr.mxu0 0.0
    %10169 = vmatpush1.msra.mxu0 0.0
    %10170 = vmatprep.subr.mxu0 0.0
    %10171 = vmatpush1.msra.mxu0 0.0
    %10172 = vmatprep.subr.mxu0 0.0
    %10173 = vmatpush1.msra.mxu0 0.0
    %10174 = vmatprep.subr.mxu0 0.0
    %10175 = vmatpush1.msra.mxu0 0.0
    %10176 = vmatprep.subr.mxu0 0.0
    %10177 = vmatpush1.msra.mxu0 0.0
    %10178 = vmatprep.subr.mxu0 0.0
    %10179 = vmatpush1.msra.mxu0 0.0
    %10180 = vmatprep.subr.mxu0 0.0
    %10181 = vmatpush1.msra.mxu0 0.0
    %10182 = vmatprep.subr.mxu0 0.0
    %10183 = vmatpush1.msra.mxu0 0.0
    %10184 = vmatprep.subr.mxu0 0.0
    %10185 = vmatpush1.msra.mxu0 0.0
    %10186 = vmatprep.subr.mxu0 0.0
    %10187 = vmatpush1.msra.mxu0 0.0
    %10188 = vmatprep.subr.mxu0 0.0
    %10189 = vmatpush1.msra.mxu0 0.0
    %10190 = vmatprep.mubr.f32.mxu0 0.0
    %v10191 = vand.u32 %v9670, 4294901760
    %10192 = vmatmul.mubr.f32.gmra.mrb[0].mxu0 %v10191
    %v10193 = vpop.f32.mrb[0].mxu0
    %v10194 = vadd.f32 %v10113, %v10193
    %v10195 = vpop.f32.mrb[0].mxu0
    %10196 = vmatprep.mubr.f32.mxu0 0.0
    %v10197 = vand.u32 %v9673, 4294901760
    %10198 = vmatmul.mubr.f32.gmra.mrb[0].mxu0 %v10197
    %v10199 = vpop.f32.mrb[0].mxu0
    %v10200 = vadd.f32 %v10119, %v10199
    %v10201 = vpop.f32.mrb[0].mxu0
    %10202 = vdwg.mxu0
    %10203 = vst.msk [vmem:[#allocation8] sm:$0xff] %vm77, %v10194
    %10204 = vst.msk [vmem:[#allocation8 + $0x8] sm:$0xff] %vm77, %v10200
    %10205 = vst.msk [vmem:[#allocation9] sm:$0xff] %vm2045, %v5750
    %10206 = vst.msk [vmem:[#allocation9 + $0x8] sm:$0xff] %vm2045, %v5751
    %10207 = vst.msk [vmem:[#allocation9 + $0x10] sm:$0xff] %vm2045, %v5752
    %10208 = vst.msk [vmem:[#allocation9 + $0x18] sm:$0xff] %vm2045, %v5753
    %10209 = vst.msk [vmem:[#allocation9 + $0x20] sm:$0xff] %vm2045, %v5754
    %10210 = vst.msk [vmem:[#allocation9 + $0x28] sm:$0xff] %vm2045, %v5755
    %10211 = vst.msk [vmem:[#allocation9 + $0x30] sm:$0xff] %vm2045, %v5756
    %10212 = vst.msk [vmem:[#allocation9 + $0x38] sm:$0xff] %vm2045, %v5757
    // Predicated region
    $region30: #{tpu_custom_call.1} parent=1 // pred_check
      _
    $region31: #{tpu_custom_call.1} parent=1 // pred_check_branch
      %10214 = sbr.rel (0) target = $region33
    $region32: #{tpu_custom_call.1} parent=1 // pred_region
      %s10216 = ssub.s32 256, 256
      %10217 = vsyncadd [#allocation4], %s10216
      %s10218 = sshll.u32 [#allocation8], 4
      %s10219 = int_to_ptr.vmem [resolvable:$true] %s10218
      %10224 = dma.vmem_to_hbm [thread:$0]  %s10219, 256, %s4, [#allocation4], 128, 128, 8
    $region33: #{tpu_custom_call.1} parent=1 // pred_fallthru
      _
    // Predicated region
    $region34: #{tpu_custom_call.1} parent=1 // pred_check
      _
    $region35: #{tpu_custom_call.1} parent=1 // pred_check_branch
      %10226 = sbr.rel (0) target = $region37
    $region36: #{tpu_custom_call.1} parent=1 // pred_region
      %s10228 = ssub.s32 1024, 1024
      %10229 = vsyncadd [#allocation10], %s10228
      %s10230 = sshll.u32 [#allocation9], 4
      %s10231 = int_to_ptr.vmem [resolvable:$true] %s10230
      %10236 = dma.vmem_to_hbm [thread:$0]  %s10231, 1024, %s5, [#allocation10], 128, 128, 8
    $region37: #{tpu_custom_call.1} parent=1 // pred_fallthru
      _
    // Predicated region
    $region38: #{tpu_custom_call.1} parent=1 // pred_check
      _
    $region39: #{tpu_custom_call.1} parent=1 // pred_check_branch
      %10238 = sbr.rel (0) target = $region41
    $region40: #{tpu_custom_call.1} parent=1 // pred_region
      %10239 = dma.done [#allocation4], 256
    $region41: #{tpu_custom_call.1} parent=1 // pred_fallthru
      _
    // Predicated region
    $region42: #{tpu_custom_call.1} parent=1 // pred_check
      _
    $region43: #{tpu_custom_call.1} parent=1 // pred_check_branch
      %10241 = sbr.rel (0) target = $region45
    $region44: #{tpu_custom_call.1} parent=1 // pred_region
      %10242 = dma.done [#allocation10], 1024
    $region45: #{tpu_custom_call.1} parent=1 // pred_fallthru
      _
    %10243 = vsyncpa [#allocation3], 1
    %10244 = vsyncpa [#allocation6], 1
    %10245 = vsyncpa [#allocation4], 1
    %10246 = vsyncpa [#allocation10], 1

</llo_original>
